<compile_context>
chip_gen: v5e
topology: v5e:2x2
jax: 0.10.0
libtpu: 0.0.40
codegen_flags: <defaults>
</compile_context>

<pallas_src>
import functools

import jax
import jax.numpy as jnp
from jax.experimental import pallas as pl
from jax.experimental.pallas import tpu as pltpu

_EPS = 1e-5
_OW = 128          # heads output slab width (lane-dense)


def _compiler_params():
    return pltpu.CompilerParams(
        dimension_semantics=("arbitrary",),
        vmem_limit_bytes=32 * 1024 * 1024,
    )


def _full_spec(shape):
    nd = len(shape)
    return pl.BlockSpec(shape, lambda *_, nd=nd: (0,) * nd)


def _bn_relu(y, gamma, beta):
    """Training-mode BatchNorm over axis 0 (biased var, eps=1e-5) + ReLU, f32."""
    mean = jnp.mean(y, axis=0, keepdims=True)
    var = jnp.mean(jnp.square(y - mean), axis=0, keepdims=True)
    scale = gamma * jax.lax.rsqrt(var + _EPS)
    return jnp.maximum(y * scale + (beta - mean * scale), 0.0)


# ----------------------------------------------------------------------------
# Kernel 1 & 2 (shared body): conv as im2col matmul + BN2d + ReLU + fused
# 2x2 max-pool.  Rows of the im2col slab are quadrant-major, so the pool is an
# elementwise max of 4 contiguous row blocks of length q.  Conv bias is dropped
# (it cancels exactly under training-mode BN).  Output is lane-dense bf16.
# ----------------------------------------------------------------------------
def _conv_kernel(c_ref, w_ref, g_ref, be_ref, o_ref, *, q):
    y = jnp.dot(c_ref[...], w_ref[...], preferred_element_type=jnp.float32)
    y = _bn_relu(y, g_ref[...], be_ref[...])
    p = jnp.maximum(jnp.maximum(y[0:q], y[q:2 * q]),
                    jnp.maximum(y[2 * q:3 * q], y[3 * q:4 * q]))
    o_ref[...] = p.astype(o_ref.dtype)


def conv_stage(cols_bf16, w_bf16, g, be, *, q):
    M, K = cols_bf16.shape
    N = w_bf16.shape[1]
    return pl.pallas_call(
        functools.partial(_conv_kernel, q=q),
        out_shape=jax.ShapeDtypeStruct((q, N), jnp.bfloat16),
        grid=(1,),
        in_specs=[_full_spec((M, K)), _full_spec((K, N)),
                  _full_spec((1, N)), _full_spec((1, N))],
        out_specs=_full_spec((q, N)),
        compiler_params=_compiler_params(),
    )(cols_bf16, w_bf16, g, be)


# ----------------------------------------------------------------------------
# Kernel 3: all FC heads (class classifier + n_domain domain classifiers).
# fc1 of every head concatenated along N (BN1d is per-column).  The final
# logits are computed as [logit | swapped-partner] (N=2*_OW), so the 2-way
# log-softmax of every head is vectorized with no per-head slicing, and the
# output is a single lane-dense (B, _OW) store.
# ----------------------------------------------------------------------------
def _heads_kernel(feat_ref, w1_ref, g1_ref, be1_ref,
                  w2_ref, g2_ref, be2_ref,
                  w3a_ref, w3b_ref, b3_ref, o_ref, *, n_heads):
    f32, bf16 = jnp.float32, jnp.bfloat16
    # fc1 of every head (+BN1d +ReLU).  Padded columns have gamma=0 -> exact 0.
    h1 = _bn_relu(jnp.dot(feat_ref[...], w1_ref[...], preferred_element_type=f32),
                  g1_ref[...], be1_ref[...])
    h1b = h1.astype(bf16)
    # class classifier fc2 (+BN +ReLU) acts only on the class block of h1.
    h2 = _bn_relu(jnp.dot(h1b[:, 0:128], w2_ref[...], preferred_element_type=f32),
                  g2_ref[...], be2_ref[...])
    # final logits for all heads; columns [0:_OW) = logits, [_OW:2*_OW) = the
    # partner logit of the same head (class-0 <-> class-1 swapped).
    ll = (jnp.dot(h1b, w3a_ref[...], preferred_element_type=f32)
          + jnp.dot(h2.astype(bf16), w3b_ref[...], preferred_element_type=f32)
          + b3_ref[...])
    ow = o_ref.shape[1]
    logit, partner = ll[:, 0:ow], ll[:, ow:2 * ow]
    m = jnp.maximum(logit, partner)
    lse = m + jnp.log(jnp.exp(logit - m) + jnp.exp(partner - m))
    lane = jax.lax.broadcasted_iota(jnp.int32, logit.shape, 1)
    o_ref[...] = jnp.where(lane < 2 * n_heads, logit - lse, 0.0)


def heads_stage(feat_bf16, packed, n_heads):
    B = feat_bf16.shape[0]
    args = [feat_bf16, packed["w1h"], packed["g1h"], packed["be1h"],
            packed["w2h"], packed["g2h"], packed["be2h"],
            packed["w3a"], packed["w3b"], packed["b3"]]
    return pl.pallas_call(
        functools.partial(_heads_kernel, n_heads=n_heads),
        out_shape=jax.ShapeDtypeStruct((B, _OW), jnp.float32),
        grid=(1,),
        in_specs=[_full_spec(a.shape) for a in args],
        out_specs=_full_spec((B, _OW)),
        compiler_params=_compiler_params(),
    )(*args)


# ----------------------------------------------------------------------------
# Glue: bf16 im2col with quadrant-major (pool-friendly) row ordering.
# Column order is (kh, kw, c) with c fastest (matches HWIO weight flatten).
# ----------------------------------------------------------------------------
def im2col_pool_quadrants(x_nhwc_bf16, k, pad_k_to=None):
    B, H, W, C = x_nhwc_bf16.shape
    oh, ow = H - k + 1, W - k + 1
    patches = [x_nhwc_bf16[:, kh:kh + oh, kw:kw + ow, :]
               for kh in range(k) for kw in range(k)]
    cols = jnp.concatenate(patches, axis=-1)           # (B, oh, ow, k*k*C)
    K = k * k * C
    if pad_k_to is not None and pad_k_to > K:
        cols = jnp.pad(cols, ((0, 0), (0, 0), (0, 0), (0, pad_k_to - K)))
        K = pad_k_to
    poh, pow_ = oh // 2, ow // 2
    cols = cols.reshape(B, poh, 2, pow_, 2, K).transpose(2, 4, 0, 1, 3, 5)
    return cols.reshape(4 * B * poh * pow_, K), (poh, pow_)


# ----------------------------------------------------------------------------
# One-time weight packing (hoisted out of the jitted forward).
# ----------------------------------------------------------------------------
def _reorder_fc1(w_torch):
    """(1600,100) fc1 weight (rows in NCHW order c*25 + h*5 + w, c<64) ->
    (3200,100) rows matching the pooled conv2 slab layout (h*5+w)*128 + c."""
    r = jnp.arange(3200)
    s, c = r // 128, r % 128
    idx = jnp.where(c < 64, c * 25 + s, 0)
    w = jnp.take(w_torch, idx, axis=0)
    return w * (c < 64)[:, None].astype(w_torch.dtype)


def pack_params(p, input_channel, n_domain):
    bf16, f32 = jnp.bfloat16, jnp.float32
    nh = 1 + n_domain
    assert 2 * nh <= _OW

    # conv1: HWIO (5,5,Cin,128) -> (25*Cin,128), K padded to a 128 multiple.
    k1 = 25 * input_channel
    k1p = -(-k1 // 128) * 128
    w1 = jnp.pad(p["conv1_w"].reshape(k1, 128), ((0, k1p - k1), (0, 0))).astype(bf16)
    g1 = p["bn1_g"].reshape(1, 128).astype(f32)
    be1 = p["bn1_b"].reshape(1, 128).astype(f32)

    # conv2: (5,5,128,64) -> (3200,64), Cout padded 64 -> 128 (gamma=0 padding).
    w2 = jnp.pad(p["conv2_w"].reshape(3200, 64), ((0, 0), (0, 64))).astype(bf16)
    g2 = jnp.zeros((1, 128), f32).at[0, 0:64].set(p["bn2_g"])
    be2 = jnp.zeros((1, 128), f32).at[0, 0:64].set(p["bn2_b"])

    # heads fc1: one 128-lane block per head, padded columns have gamma=0.
    w1h = jnp.zeros((3200, 128 * nh), f32)
    g1h = jnp.zeros((1, 128 * nh), f32)
    be1h = jnp.zeros((1, 128 * nh), f32)
    heads_fc1 = [(p["c_fc1_w"], p["c_bn1_g"], p["c_bn1_b"])] + \
                [(d["fc1_w"], d["bn1_g"], d["bn1_b"]) for d in p["domains"]]
    for j, (w, g, b) in enumerate(heads_fc1):
        c0 = 128 * j
        w1h = w1h.at[:, c0:c0 + 100].set(_reorder_fc1(w))
        g1h = g1h.at[0, c0:c0 + 100].set(g)
        be1h = be1h.at[0, c0:c0 + 100].set(b)

    # class classifier fc2 (acts on the class block of h1 only).
    w2h = jnp.zeros((128, 128), f32).at[0:100, 0:100].set(p["c_fc2_w"])
    g2h = jnp.zeros((1, 128), f32).at[0, 0:100].set(p["c_bn2_g"])
    be2h = jnp.zeros((1, 128), f32).at[0, 0:100].set(p["c_bn2_b"])

    # final 2-class heads: columns [0:_OW) = [class0_head0.., class1_head0.., 0..],
    # columns [_OW:2*_OW) = the swapped partner logits (for vectorized log-softmax).
    w3a = jnp.zeros((128 * nh, 2 * _OW), f32)   # driven by h1 (domain heads)
    w3b = jnp.zeros((128, 2 * _OW), f32)        # driven by h2 (class head)
    b3 = jnp.zeros((1, 2 * _OW), f32)

    w3b = w3b.at[0:100, 0].set(p["c_fc3_w"][:, 0])
    w3b = w3b.at[0:100, nh].set(p["c_fc3_w"][:, 1])
    w3b = w3b.at[0:100, _OW + 0].set(p["c_fc3_w"][:, 1])
    w3b = w3b.at[0:100, _OW + nh].set(p["c_fc3_w"][:, 0])
    b3 = b3.at[0, 0].set(p["c_fc3_b"][0]).at[0, nh].set(p["c_fc3_b"][1])
    b3 = b3.at[0, _OW + 0].set(p["c_fc3_b"][1]).at[0, _OW + nh].set(p["c_fc3_b"][0])

    for i, d in enumerate(p["domains"]):
        j = 1 + i
        r0 = 128 * j
        w3a = w3a.at[r0:r0 + 100, j].set(d["fc2_w"][:, 0])
        w3a = w3a.at[r0:r0 + 100, nh + j].set(d["fc2_w"][:, 1])
        w3a = w3a.at[r0:r0 + 100, _OW + j].set(d["fc2_w"][:, 1])
        w3a = w3a.at[r0:r0 + 100, _OW + nh + j].set(d["fc2_w"][:, 0])
        b3 = b3.at[0, j].set(d["fc2_b"][0]).at[0, nh + j].set(d["fc2_b"][1])
        b3 = b3.at[0, _OW + j].set(d["fc2_b"][1]).at[0, _OW + nh + j].set(d["fc2_b"][0])

    # NOTE: conv1/conv2/fc1/fc2 biases cancel exactly under training-mode BN
    # ((y+b) - mean(y+b) = y - mean(y)) and are intentionally not packed.
    return dict(w1=w1, g1=g1, be1=be1, w2=w2, g2=g2, be2=be2,
                w1h=w1h.astype(bf16), g1h=g1h, be1h=be1h,
                w2h=w2h.astype(bf16), g2h=g2h, be2h=be2h,
                w3a=w3a.astype(bf16), w3b=w3b.astype(bf16), b3=b3)


# ----------------------------------------------------------------------------
# Parameter construction (deterministic, synthetic, mirrors the torch module).
# ----------------------------------------------------------------------------
def init_params(key, n_domain, input_channel):
    def nrm(k, shape, scale=0.05):
        return scale * jax.random.normal(k, shape, dtype=jnp.float32)

    keys = jax.random.split(key, 16)
    p = {
        "conv1_w": nrm(keys[0], (5, 5, input_channel, 128)),
        "conv1_b": nrm(keys[1], (128,)),          # dead under training BN
        "bn1_g": jnp.ones((128,), jnp.float32), "bn1_b": jnp.zeros((128,), jnp.float32),
        "conv2_w": nrm(keys[2], (5, 5, 128, 64)),
        "conv2_b": nrm(keys[3], (64,)),           # dead under training BN
        "bn2_g": jnp.ones((64,), jnp.float32), "bn2_b": jnp.zeros((64,), jnp.float32),
        "c_fc1_w": nrm(keys[4], (1600, 100)), "c_fc1_b": nrm(keys[5], (100,)),
        "c_bn1_g": jnp.ones((100,), jnp.float32), "c_bn1_b": jnp.zeros((100,), jnp.float32),
        "c_fc2_w": nrm(keys[6], (100, 100)), "c_fc2_b": nrm(keys[7], (100,)),
        "c_bn2_g": jnp.ones((100,), jnp.float32), "c_bn2_b": jnp.zeros((100,), jnp.float32),
        "c_fc3_w": nrm(keys[8], (100, 2)), "c_fc3_b": nrm(keys[9], (2,)),
        "domains": [],
    }
    dkeys = jax.random.split(keys[10], 4 * n_domain)
    for i in range(n_domain):
        p["domains"].append({
            "fc1_w": nrm(dkeys[4 * i + 0], (1600, 100)),
            "fc1_b": nrm(dkeys[4 * i + 1], (100,)),   # dead under training BN
            "bn1_g": jnp.ones((100,), jnp.float32),
            "bn1_b": jnp.zeros((100,), jnp.float32),
            "fc2_w": nrm(dkeys[4 * i + 2], (1600 // 16, 2)[:1] + (2,)) if False else nrm(dkeys[4 * i + 2], (100, 2)),
            "fc2_b": nrm(dkeys[4 * i + 3], (2,)),
        })
    return p


# ----------------------------------------------------------------------------
# Forward pass (mirrors DANN_Rep.forward).  `packed` is produced once by
# pack_params outside the jit.
# ----------------------------------------------------------------------------
def dann_rep_forward(packed, input_nchw, alpha):
    del alpha  # ReverseLayerF is identity in the forward pass.
    B = input_nchw.shape[0]
    nh = packed["g1h"].shape[1] // 128
    x = jnp.transpose(input_nchw, (0, 2, 3, 1)).astype(jnp.bfloat16)   # NHWC bf16

    # --- f_conv1 + f_bn1 + f_pool1 + relu (one fused kernel) -----------------
    cols1, (poh1, pow1) = im2col_pool_quadrants(x, 5, pad_k_to=packed["w1"].shape[0])
    q1 = B * poh1 * pow1
    h1 = conv_stage(cols1, packed["w1"], packed["g1"], packed["be1"], q=q1)
    x2 = h1.reshape(B, poh1, pow1, 128)                     # (B,14,14,128) bf16

    # --- f_conv2 + f_bn2 + drop(id) + f_pool2 + relu (one fused kernel) ------
    # TODO(synk): nn.Dropout (p=0.5, training mode) is stochastic; identity here.
    cols2, (poh2, pow2) = im2col_pool_quadrants(x2, 5, pad_k_to=None)
    q2 = B * poh2 * pow2
    h2 = conv_stage(cols2, packed["w2"], packed["g2"], packed["be2"], q=q2)

    # --- flatten: NCHW ordering is folded into the packed fc1 weights --------
    feat = h2.reshape(B, poh2 * pow2 * 128)                  # (B, 3200) bf16
    assert feat.shape[1] == packed["w1h"].shape[0]

    # --- all FC heads (class + n_domain domains) in ONE fused kernel ---------
    slab = heads_stage(feat, packed, nh)                     # (B, 128) f32
    logp = jnp.stack([slab[:, 0:nh], slab[:, nh:2 * nh]], axis=-1)   # (B, nh, 2)
    class_output = logp[:, 0, :]
    domain_output = [logp[:, 1 + i, :] for i in range(nh - 1)]
    return class_output, domain_output


if __name__ == "__main__":
    n_domain = 2
    input_channel = 3
    B, H, W = 2, 32, 32   # 32x32 input -> 64*5*5 flattened feature (as in module)

    key = jax.random.PRNGKey(0)
    pkey, xkey = jax.random.split(key)
    raw_params = init_params(pkey, n_domain, input_channel)
    packed = pack_params(raw_params, input_channel, n_domain)   # one-time, outside jit

    x = jax.random.normal(xkey, (B, input_channel, H, W), dtype=jnp.float32)
    alpha = 0.5

    fwd = jax.jit(dann_rep_forward)
    class_out, domain_out = fwd(packed, x, alpha)
    class_out = jax.block_until_ready(class_out)
    domain_out = [jax.block_until_ready(d) for d in domain_out]

    assert class_out.shape == (B, 2)
    assert len(domain_out) == n_domain
    assert all(d.shape == (B, 2) for d in domain_out)
    assert bool(jnp.all(jnp.isfinite(class_out)))
    # log-softmax rows should sum (in prob space) to ~1
    assert jnp.allclose(jnp.exp(class_out).sum(axis=1), 1.0, atol=1e-3)
    for d in domain_out:
        assert bool(jnp.all(jnp.isfinite(d)))
        assert jnp.allclose(jnp.exp(d).sum(axis=1), 1.0, atol=1e-3)
    print("KERNEL_OK")
</pallas_src>

<mosaic_0001>
module attributes {stable_mosaic.version = 11 : i64} {
  func.func @_conv_kernel(%arg0: i32, %arg1: memref<1568x128xbf16, #tpu.memory_space<vmem>>, %arg2: memref<128x128xbf16, #tpu.memory_space<vmem>>, %arg3: memref<1x128xf32, #tpu.memory_space<vmem>>, %arg4: memref<1x128xf32, #tpu.memory_space<vmem>>, %arg5: memref<392x128xbf16, #tpu.memory_space<vmem>>) attributes {dimension_semantics = [#tpu.dimension_semantics<arbitrary>], iteration_bounds = array<i64: 1>, scalar_prefetch = 0 : i64, scratch_operands = 0 : i64, tpu.core_type = #tpu.core_type<tc>, window_params = [{pipeline_mode = #tpu.pipeline_mode<synchronous>, transform_indices = @transform_0, window_bounds = array<i64: 1568, 128>}, {pipeline_mode = #tpu.pipeline_mode<synchronous>, transform_indices = @transform_1, window_bounds = array<i64: 128, 128>}, {pipeline_mode = #tpu.pipeline_mode<synchronous>, transform_indices = @transform_2, window_bounds = array<i64: 1, 128>}, {pipeline_mode = #tpu.pipeline_mode<synchronous>, transform_indices = @transform_3, window_bounds = array<i64: 1, 128>}, {pipeline_mode = #tpu.pipeline_mode<synchronous>, transform_indices = @transform_4, window_bounds = array<i64: 392, 128>}]} {
    %c0 = arith.constant 0 : index
    %c0_0 = arith.constant 0 : index
    %0 = vector.load %arg1[%c0, %c0_0] : memref<1568x128xbf16, #tpu.memory_space<vmem>>, vector<1568x128xbf16>
    %c0_1 = arith.constant 0 : index
    %c0_2 = arith.constant 0 : index
    %1 = vector.load %arg2[%c0_1, %c0_2] : memref<128x128xbf16, #tpu.memory_space<vmem>>, vector<128x128xbf16>
    %cst = arith.constant dense<0.000000e+00> : vector<1568x128xf32>
    %2 = tpu.matmul %0, %1, %cst {dimension_numbers = #tpu.dot_dimension_numbers<[1], [0], [0], [1], [0, 0, 1, 1], [], []>} : vector<1568x128xbf16>, vector<128x128xbf16>, vector<1568x128xf32> -> vector<1568x128xf32>
    %c0_3 = arith.constant 0 : index
    %c0_4 = arith.constant 0 : index
    %3 = vector.load %arg3[%c0_3, %c0_4] : memref<1x128xf32, #tpu.memory_space<vmem>>, vector<1x128xf32>
    %c0_5 = arith.constant 0 : index
    %c0_6 = arith.constant 0 : index
    %4 = vector.load %arg4[%c0_5, %c0_6] : memref<1x128xf32, #tpu.memory_space<vmem>>, vector<1x128xf32>
    %cst_7 = arith.constant dense<0.000000e+00> : vector<128xf32>
    %5 = vector.multi_reduction <add>, %2, %cst_7 [0] : vector<1568x128xf32> to vector<128xf32>
    %6 = vector.shape_cast %5 : vector<128xf32> to vector<1x128xf32>
    %cst_8 = arith.constant 1.568000e+03 : f32
    %7 = vector.broadcast %cst_8 : f32 to vector<1x128xf32>
    %8 = arith.divf %6, %7 : vector<1x128xf32>
    %9 = vector.broadcast %8 : vector<1x128xf32> to vector<1568x128xf32>
    %10 = arith.subf %2, %9 : vector<1568x128xf32>
    %11 = arith.mulf %10, %10 : vector<1568x128xf32>
    %cst_9 = arith.constant dense<0.000000e+00> : vector<128xf32>
    %12 = vector.multi_reduction <add>, %11, %cst_9 [0] : vector<1568x128xf32> to vector<128xf32>
    %13 = vector.shape_cast %12 : vector<128xf32> to vector<1x128xf32>
    %cst_10 = arith.constant 1.568000e+03 : f32
    %14 = vector.broadcast %cst_10 : f32 to vector<1x128xf32>
    %15 = arith.divf %13, %14 : vector<1x128xf32>
    %cst_11 = arith.constant 9.99999974E-6 : f32
    %16 = vector.broadcast %cst_11 : f32 to vector<1x128xf32>
    %17 = arith.addf %15, %16 : vector<1x128xf32>
    %18 = math.rsqrt %17 : vector<1x128xf32>
    %19 = arith.mulf %3, %18 : vector<1x128xf32>
    %20 = vector.broadcast %19 : vector<1x128xf32> to vector<1568x128xf32>
    %21 = arith.mulf %2, %20 : vector<1568x128xf32>
    %22 = arith.mulf %8, %19 : vector<1x128xf32>
    %23 = arith.subf %4, %22 : vector<1x128xf32>
    %24 = vector.broadcast %23 : vector<1x128xf32> to vector<1568x128xf32>
    %25 = arith.addf %21, %24 : vector<1568x128xf32>
    %cst_12 = arith.constant 0.000000e+00 : f32
    %26 = vector.broadcast %cst_12 : f32 to vector<1568x128xf32>
    %27 = arith.maximumf %25, %26 : vector<1568x128xf32>
    %28 = vector.extract_strided_slice %27 {offsets = [0, 0], sizes = [392, 128], strides = [1, 1]} : vector<1568x128xf32> to vector<392x128xf32>
    %29 = vector.extract_strided_slice %27 {offsets = [392, 0], sizes = [392, 128], strides = [1, 1]} : vector<1568x128xf32> to vector<392x128xf32>
    %30 = arith.maximumf %28, %29 : vector<392x128xf32>
    %31 = vector.extract_strided_slice %27 {offsets = [784, 0], sizes = [392, 128], strides = [1, 1]} : vector<1568x128xf32> to vector<392x128xf32>
    %32 = vector.extract_strided_slice %27 {offsets = [1176, 0], sizes = [392, 128], strides = [1, 1]} : vector<1568x128xf32> to vector<392x128xf32>
    %33 = arith.maximumf %31, %32 : vector<392x128xf32>
    %34 = arith.maximumf %30, %33 : vector<392x128xf32>
    %35 = arith.truncf %34 : vector<392x128xf32> to vector<392x128xbf16>
    %c0_13 = arith.constant 0 : index
    %c0_14 = arith.constant 0 : index
    %36 = vector.load %arg5[%c0_13, %c0_14] : memref<392x128xbf16, #tpu.memory_space<vmem>>, vector<392x128xbf16>
    tpu.vector_store %arg5[%c0_13, %c0_14], %35 {strides = array<i32>} : memref<392x128xbf16, #tpu.memory_space<vmem>>, vector<392x128xbf16>,
    return
  }
  func.func @transform_0(%arg0: i32) -> (i32, i32) {
    %c0_i32 = arith.constant 0 : i32
    %c0_i32_0 = arith.constant 0 : i32
    %c0_i32_1 = arith.constant 0 : i32
    return %c0_i32, %c0_i32_0 : i32, i32
  }
  func.func @transform_1(%arg0: i32) -> (i32, i32) {
    %c0_i32 = arith.constant 0 : i32
    %c0_i32_0 = arith.constant 0 : i32
    %c0_i32_1 = arith.constant 0 : i32
    return %c0_i32, %c0_i32_0 : i32, i32
  }
  func.func @transform_2(%arg0: i32) -> (i32, i32) {
    %c0_i32 = arith.constant 0 : i32
    %c0_i32_0 = arith.constant 0 : i32
    %c0_i32_1 = arith.constant 0 : i32
    return %c0_i32, %c0_i32_0 : i32, i32
  }
  func.func @transform_3(%arg0: i32) -> (i32, i32) {
    %c0_i32 = arith.constant 0 : i32
    %c0_i32_0 = arith.constant 0 : i32
    %c0_i32_1 = arith.constant 0 : i32
    return %c0_i32, %c0_i32_0 : i32, i32
  }
  func.func @transform_4(%arg0: i32) -> (i32, i32) {
    %c0_i32 = arith.constant 0 : i32
    %c0_i32_0 = arith.constant 0 : i32
    %c0_i32_1 = arith.constant 0 : i32
    return %c0_i32, %c0_i32_0 : i32, i32
  }
}

module attributes {stable_mosaic.version = 11 : i64} {
  func.func @_conv_kernel(%arg0: i32, %arg1: memref<200x3200xbf16, #tpu.memory_space<vmem>>, %arg2: memref<3200x128xbf16, #tpu.memory_space<vmem>>, %arg3: memref<1x128xf32, #tpu.memory_space<vmem>>, %arg4: memref<1x128xf32, #tpu.memory_space<vmem>>, %arg5: memref<50x128xbf16, #tpu.memory_space<vmem>>) attributes {dimension_semantics = [#tpu.dimension_semantics<arbitrary>], iteration_bounds = array<i64: 1>, scalar_prefetch = 0 : i64, scratch_operands = 0 : i64, tpu.core_type = #tpu.core_type<tc>, window_params = [{pipeline_mode = #tpu.pipeline_mode<synchronous>, transform_indices = @transform_0, window_bounds = array<i64: 200, 3200>}, {pipeline_mode = #tpu.pipeline_mode<synchronous>, transform_indices = @transform_1, window_bounds = array<i64: 3200, 128>}, {pipeline_mode = #tpu.pipeline_mode<synchronous>, transform_indices = @transform_2, window_bounds = array<i64: 1, 128>}, {pipeline_mode = #tpu.pipeline_mode<synchronous>, transform_indices = @transform_3, window_bounds = array<i64: 1, 128>}, {pipeline_mode = #tpu.pipeline_mode<synchronous>, transform_indices = @transform_4, window_bounds = array<i64: 50, 128>}]} {
    %c0 = arith.constant 0 : index
    %c0_0 = arith.constant 0 : index
    %0 = vector.load %arg1[%c0, %c0_0] : memref<200x3200xbf16, #tpu.memory_space<vmem>>, vector<200x3200xbf16>
    %c0_1 = arith.constant 0 : index
    %c0_2 = arith.constant 0 : index
    %1 = vector.load %arg2[%c0_1, %c0_2] : memref<3200x128xbf16, #tpu.memory_space<vmem>>, vector<3200x128xbf16>
    %cst = arith.constant dense<0.000000e+00> : vector<200x128xf32>
    %2 = tpu.matmul %0, %1, %cst {dimension_numbers = #tpu.dot_dimension_numbers<[1], [0], [0], [1], [0, 0, 1, 1], [], []>} : vector<200x3200xbf16>, vector<3200x128xbf16>, vector<200x128xf32> -> vector<200x128xf32>
    %c0_3 = arith.constant 0 : index
    %c0_4 = arith.constant 0 : index
    %3 = vector.load %arg3[%c0_3, %c0_4] : memref<1x128xf32, #tpu.memory_space<vmem>>, vector<1x128xf32>
    %c0_5 = arith.constant 0 : index
    %c0_6 = arith.constant 0 : index
    %4 = vector.load %arg4[%c0_5, %c0_6] : memref<1x128xf32, #tpu.memory_space<vmem>>, vector<1x128xf32>
    %cst_7 = arith.constant dense<0.000000e+00> : vector<128xf32>
    %5 = vector.multi_reduction <add>, %2, %cst_7 [0] : vector<200x128xf32> to vector<128xf32>
    %6 = vector.shape_cast %5 : vector<128xf32> to vector<1x128xf32>
    %cst_8 = arith.constant 2.000000e+02 : f32
    %7 = vector.broadcast %cst_8 : f32 to vector<1x128xf32>
    %8 = arith.divf %6, %7 : vector<1x128xf32>
    %9 = vector.broadcast %8 : vector<1x128xf32> to vector<200x128xf32>
    %10 = arith.subf %2, %9 : vector<200x128xf32>
    %11 = arith.mulf %10, %10 : vector<200x128xf32>
    %cst_9 = arith.constant dense<0.000000e+00> : vector<128xf32>
    %12 = vector.multi_reduction <add>, %11, %cst_9 [0] : vector<200x128xf32> to vector<128xf32>
    %13 = vector.shape_cast %12 : vector<128xf32> to vector<1x128xf32>
    %cst_10 = arith.constant 2.000000e+02 : f32
    %14 = vector.broadcast %cst_10 : f32 to vector<1x128xf32>
    %15 = arith.divf %13, %14 : vector<1x128xf32>
    %cst_11 = arith.constant 9.99999974E-6 : f32
    %16 = vector.broadcast %cst_11 : f32 to vector<1x128xf32>
    %17 = arith.addf %15, %16 : vector<1x128xf32>
    %18 = math.rsqrt %17 : vector<1x128xf32>
    %19 = arith.mulf %3, %18 : vector<1x128xf32>
    %20 = vector.broadcast %19 : vector<1x128xf32> to vector<200x128xf32>
    %21 = arith.mulf %2, %20 : vector<200x128xf32>
    %22 = arith.mulf %8, %19 : vector<1x128xf32>
    %23 = arith.subf %4, %22 : vector<1x128xf32>
    %24 = vector.broadcast %23 : vector<1x128xf32> to vector<200x128xf32>
    %25 = arith.addf %21, %24 : vector<200x128xf32>
    %cst_12 = arith.constant 0.000000e+00 : f32
    %26 = vector.broadcast %cst_12 : f32 to vector<200x128xf32>
    %27 = arith.maximumf %25, %26 : vector<200x128xf32>
    %28 = vector.extract_strided_slice %27 {offsets = [0, 0], sizes = [50, 128], strides = [1, 1]} : vector<200x128xf32> to vector<50x128xf32>
    %29 = vector.extract_strided_slice %27 {offsets = [50, 0], sizes = [50, 128], strides = [1, 1]} : vector<200x128xf32> to vector<50x128xf32>
    %30 = arith.maximumf %28, %29 : vector<50x128xf32>
    %31 = vector.extract_strided_slice %27 {offsets = [100, 0], sizes = [50, 128], strides = [1, 1]} : vector<200x128xf32> to vector<50x128xf32>
    %32 = vector.extract_strided_slice %27 {offsets = [150, 0], sizes = [50, 128], strides = [1, 1]} : vector<200x128xf32> to vector<50x128xf32>
    %33 = arith.maximumf %31, %32 : vector<50x128xf32>
    %34 = arith.maximumf %30, %33 : vector<50x128xf32>
    %35 = arith.truncf %34 : vector<50x128xf32> to vector<50x128xbf16>
    %c0_13 = arith.constant 0 : index
    %c0_14 = arith.constant 0 : index
    %36 = vector.load %arg5[%c0_13, %c0_14] : memref<50x128xbf16, #tpu.memory_space<vmem>>, vector<50x128xbf16>
    tpu.vector_store %arg5[%c0_13, %c0_14], %35 {strides = array<i32>} : memref<50x128xbf16, #tpu.memory_space<vmem>>, vector<50x128xbf16>,
    return
  }
  func.func @transform_0(%arg0: i32) -> (i32, i32) {
    %c0_i32 = arith.constant 0 : i32
    %c0_i32_0 = arith.constant 0 : i32
    %c0_i32_1 = arith.constant 0 : i32
    return %c0_i32, %c0_i32_0 : i32, i32
  }
  func.func @transform_1(%arg0: i32) -> (i32, i32) {
    %c0_i32 = arith.constant 0 : i32
    %c0_i32_0 = arith.constant 0 : i32
    %c0_i32_1 = arith.constant 0 : i32
    return %c0_i32, %c0_i32_0 : i32, i32
  }
  func.func @transform_2(%arg0: i32) -> (i32, i32) {
    %c0_i32 = arith.constant 0 : i32
    %c0_i32_0 = arith.constant 0 : i32
    %c0_i32_1 = arith.constant 0 : i32
    return %c0_i32, %c0_i32_0 : i32, i32
  }
  func.func @transform_3(%arg0: i32) -> (i32, i32) {
    %c0_i32 = arith.constant 0 : i32
    %c0_i32_0 = arith.constant 0 : i32
    %c0_i32_1 = arith.constant 0 : i32
    return %c0_i32, %c0_i32_0 : i32, i32
  }
  func.func @transform_4(%arg0: i32) -> (i32, i32) {
    %c0_i32 = arith.constant 0 : i32
    %c0_i32_0 = arith.constant 0 : i32
    %c0_i32_1 = arith.constant 0 : i32
    return %c0_i32, %c0_i32_0 : i32, i32
  }
}

module attributes {stable_mosaic.version = 11 : i64} {
  func.func @_heads_kernel(%arg0: i32, %arg1: memref<2x3200xbf16, #tpu.memory_space<vmem>>, %arg2: memref<3200x384xbf16, #tpu.memory_space<vmem>>, %arg3: memref<1x384xf32, #tpu.memory_space<vmem>>, %arg4: memref<1x384xf32, #tpu.memory_space<vmem>>, %arg5: memref<128x128xbf16, #tpu.memory_space<vmem>>, %arg6: memref<1x128xf32, #tpu.memory_space<vmem>>, %arg7: memref<1x128xf32, #tpu.memory_space<vmem>>, %arg8: memref<384x256xbf16, #tpu.memory_space<vmem>>, %arg9: memref<128x256xbf16, #tpu.memory_space<vmem>>, %arg10: memref<1x256xf32, #tpu.memory_space<vmem>>, %arg11: memref<2x128xf32, #tpu.memory_space<vmem>>) attributes {dimension_semantics = [#tpu.dimension_semantics<arbitrary>], iteration_bounds = array<i64: 1>, scalar_prefetch = 0 : i64, scratch_operands = 0 : i64, tpu.core_type = #tpu.core_type<tc>, window_params = [{pipeline_mode = #tpu.pipeline_mode<synchronous>, transform_indices = @transform_0, window_bounds = array<i64: 2, 3200>}, {pipeline_mode = #tpu.pipeline_mode<synchronous>, transform_indices = @transform_1, window_bounds = array<i64: 3200, 384>}, {pipeline_mode = #tpu.pipeline_mode<synchronous>, transform_indices = @transform_2, window_bounds = array<i64: 1, 384>}, {pipeline_mode = #tpu.pipeline_mode<synchronous>, transform_indices = @transform_3, window_bounds = array<i64: 1, 384>}, {pipeline_mode = #tpu.pipeline_mode<synchronous>, transform_indices = @transform_4, window_bounds = array<i64: 128, 128>}, {pipeline_mode = #tpu.pipeline_mode<synchronous>, transform_indices = @transform_5, window_bounds = array<i64: 1, 128>}, {pipeline_mode = #tpu.pipeline_mode<synchronous>, transform_indices = @transform_6, window_bounds = array<i64: 1, 128>}, {pipeline_mode = #tpu.pipeline_mode<synchronous>, transform_indices = @transform_7, window_bounds = array<i64: 384, 256>}, {pipeline_mode = #tpu.pipeline_mode<synchronous>, transform_indices = @transform_8, window_bounds = array<i64: 128, 256>}, {pipeline_mode = #tpu.pipeline_mode<synchronous>, transform_indices = @transform_9, window_bounds = array<i64: 1, 256>}, {pipeline_mode = #tpu.pipeline_mode<synchronous>, transform_indices = @transform_10, window_bounds = array<i64: 2, 128>}]} {
    %c0 = arith.constant 0 : index
    %c0_0 = arith.constant 0 : index
    %0 = vector.load %arg1[%c0, %c0_0] : memref<2x3200xbf16, #tpu.memory_space<vmem>>, vector<2x3200xbf16>
    %c0_1 = arith.constant 0 : index
    %c0_2 = arith.constant 0 : index
    %1 = vector.load %arg2[%c0_1, %c0_2] : memref<3200x384xbf16, #tpu.memory_space<vmem>>, vector<3200x384xbf16>
    %cst = arith.constant dense<0.000000e+00> : vector<2x384xf32>
    %2 = tpu.matmul %0, %1, %cst {dimension_numbers = #tpu.dot_dimension_numbers<[1], [0], [0], [1], [0, 0, 1, 1], [], []>} : vector<2x3200xbf16>, vector<3200x384xbf16>, vector<2x384xf32> -> vector<2x384xf32>
    %c0_3 = arith.constant 0 : index
    %c0_4 = arith.constant 0 : index
    %3 = vector.load %arg3[%c0_3, %c0_4] : memref<1x384xf32, #tpu.memory_space<vmem>>, vector<1x384xf32>
    %c0_5 = arith.constant 0 : index
    %c0_6 = arith.constant 0 : index
    %4 = vector.load %arg4[%c0_5, %c0_6] : memref<1x384xf32, #tpu.memory_space<vmem>>, vector<1x384xf32>
    %cst_7 = arith.constant dense<0.000000e+00> : vector<384xf32>
    %5 = vector.multi_reduction <add>, %2, %cst_7 [0] : vector<2x384xf32> to vector<384xf32>
    %6 = vector.shape_cast %5 : vector<384xf32> to vector<1x384xf32>
    %cst_8 = arith.constant 2.000000e+00 : f32
    %7 = vector.broadcast %cst_8 : f32 to vector<1x384xf32>
    %8 = arith.divf %6, %7 : vector<1x384xf32>
    %9 = vector.broadcast %8 : vector<1x384xf32> to vector<2x384xf32>
    %10 = arith.subf %2, %9 : vector<2x384xf32>
    %11 = arith.mulf %10, %10 : vector<2x384xf32>
    %cst_9 = arith.constant dense<0.000000e+00> : vector<384xf32>
    %12 = vector.multi_reduction <add>, %11, %cst_9 [0] : vector<2x384xf32> to vector<384xf32>
    %13 = vector.shape_cast %12 : vector<384xf32> to vector<1x384xf32>
    %cst_10 = arith.constant 2.000000e+00 : f32
    %14 = vector.broadcast %cst_10 : f32 to vector<1x384xf32>
    %15 = arith.divf %13, %14 : vector<1x384xf32>
    %cst_11 = arith.constant 9.99999974E-6 : f32
    %16 = vector.broadcast %cst_11 : f32 to vector<1x384xf32>
    %17 = arith.addf %15, %16 : vector<1x384xf32>
    %18 = math.rsqrt %17 : vector<1x384xf32>
    %19 = arith.mulf %3, %18 : vector<1x384xf32>
    %20 = vector.broadcast %19 : vector<1x384xf32> to vector<2x384xf32>
    %21 = arith.mulf %2, %20 : vector<2x384xf32>
    %22 = arith.mulf %8, %19 : vector<1x384xf32>
    %23 = arith.subf %4, %22 : vector<1x384xf32>
    %24 = vector.broadcast %23 : vector<1x384xf32> to vector<2x384xf32>
    %25 = arith.addf %21, %24 : vector<2x384xf32>
    %cst_12 = arith.constant 0.000000e+00 : f32
    %26 = vector.broadcast %cst_12 : f32 to vector<2x384xf32>
    %27 = arith.maximumf %25, %26 : vector<2x384xf32>
    %28 = arith.truncf %27 : vector<2x384xf32> to vector<2x384xbf16>
    %29 = vector.extract_strided_slice %28 {offsets = [0, 0], sizes = [2, 128], strides = [1, 1]} : vector<2x384xbf16> to vector<2x128xbf16>
    %c0_13 = arith.constant 0 : index
    %c0_14 = arith.constant 0 : index
    %30 = vector.load %arg5[%c0_13, %c0_14] : memref<128x128xbf16, #tpu.memory_space<vmem>>, vector<128x128xbf16>
    %cst_15 = arith.constant dense<0.000000e+00> : vector<2x128xf32>
    %31 = tpu.matmul %29, %30, %cst_15 {dimension_numbers = #tpu.dot_dimension_numbers<[1], [0], [0], [1], [0, 0, 1, 1], [], []>} : vector<2x128xbf16>, vector<128x128xbf16>, vector<2x128xf32> -> vector<2x128xf32>
    %c0_16 = arith.constant 0 : index
    %c0_17 = arith.constant 0 : index
    %32 = vector.load %arg6[%c0_16, %c0_17] : memref<1x128xf32, #tpu.memory_space<vmem>>, vector<1x128xf32>
    %c0_18 = arith.constant 0 : index
    %c0_19 = arith.constant 0 : index
    %33 = vector.load %arg7[%c0_18, %c0_19] : memref<1x128xf32, #tpu.memory_space<vmem>>, vector<1x128xf32>
    %cst_20 = arith.constant dense<0.000000e+00> : vector<128xf32>
    %34 = vector.multi_reduction <add>, %31, %cst_20 [0] : vector<2x128xf32> to vector<128xf32>
    %35 = vector.shape_cast %34 : vector<128xf32> to vector<1x128xf32>
    %cst_21 = arith.constant 2.000000e+00 : f32
    %36 = vector.broadcast %cst_21 : f32 to vector<1x128xf32>
    %37 = arith.divf %35, %36 : vector<1x128xf32>
    %38 = vector.broadcast %37 : vector<1x128xf32> to vector<2x128xf32>
    %39 = arith.subf %31, %38 : vector<2x128xf32>
    %40 = arith.mulf %39, %39 : vector<2x128xf32>
    %cst_22 = arith.constant dense<0.000000e+00> : vector<128xf32>
    %41 = vector.multi_reduction <add>, %40, %cst_22 [0] : vector<2x128xf32> to vector<128xf32>
    %42 = vector.shape_cast %41 : vector<128xf32> to vector<1x128xf32>
    %cst_23 = arith.constant 2.000000e+00 : f32
    %43 = vector.broadcast %cst_23 : f32 to vector<1x128xf32>
    %44 = arith.divf %42, %43 : vector<1x128xf32>
    %cst_24 = arith.constant 9.99999974E-6 : f32
    %45 = vector.broadcast %cst_24 : f32 to vector<1x128xf32>
    %46 = arith.addf %44, %45 : vector<1x128xf32>
    %47 = math.rsqrt %46 : vector<1x128xf32>
    %48 = arith.mulf %32, %47 : vector<1x128xf32>
    %49 = vector.broadcast %48 : vector<1x128xf32> to vector<2x128xf32>
    %50 = arith.mulf %31, %49 : vector<2x128xf32>
    %51 = arith.mulf %37, %48 : vector<1x128xf32>
    %52 = arith.subf %33, %51 : vector<1x128xf32>
    %53 = vector.broadcast %52 : vector<1x128xf32> to vector<2x128xf32>
    %54 = arith.addf %50, %53 : vector<2x128xf32>
    %cst_25 = arith.constant 0.000000e+00 : f32
    %55 = vector.broadcast %cst_25 : f32 to vector<2x128xf32>
    %56 = arith.maximumf %54, %55 : vector<2x128xf32>
    %c0_26 = arith.constant 0 : index
    %c0_27 = arith.constant 0 : index
    %57 = vector.load %arg8[%c0_26, %c0_27] : memref<384x256xbf16, #tpu.memory_space<vmem>>, vector<384x256xbf16>
    %cst_28 = arith.constant dense<0.000000e+00> : vector<2x256xf32>
    %58 = tpu.matmul %28, %57, %cst_28 {dimension_numbers = #tpu.dot_dimension_numbers<[1], [0], [0], [1], [0, 0, 1, 1], [], []>} : vector<2x384xbf16>, vector<384x256xbf16>, vector<2x256xf32> -> vector<2x256xf32>
    %59 = arith.truncf %56 : vector<2x128xf32> to vector<2x128xbf16>
    %c0_29 = arith.constant 0 : index
    %c0_30 = arith.constant 0 : index
    %60 = vector.load %arg9[%c0_29, %c0_30] : memref<128x256xbf16, #tpu.memory_space<vmem>>, vector<128x256xbf16>
    %cst_31 = arith.constant dense<0.000000e+00> : vector<2x256xf32>
    %61 = tpu.matmul %59, %60, %cst_31 {dimension_numbers = #tpu.dot_dimension_numbers<[1], [0], [0], [1], [0, 0, 1, 1], [], []>} : vector<2x128xbf16>, vector<128x256xbf16>, vector<2x256xf32> -> vector<2x256xf32>
    %62 = arith.addf %58, %61 : vector<2x256xf32>
    %c0_32 = arith.constant 0 : index
    %c0_33 = arith.constant 0 : index
    %63 = vector.load %arg10[%c0_32, %c0_33] : memref<1x256xf32, #tpu.memory_space<vmem>>, vector<1x256xf32>
    %64 = vector.broadcast %63 : vector<1x256xf32> to vector<2x256xf32>
    %65 = arith.addf %62, %64 : vector<2x256xf32>
    %66 = vector.extract_strided_slice %65 {offsets = [0, 0], sizes = [2, 128], strides = [1, 1]} : vector<2x256xf32> to vector<2x128xf32>
    %67 = vector.extract_strided_slice %65 {offsets = [0, 128], sizes = [2, 128], strides = [1, 1]} : vector<2x256xf32> to vector<2x128xf32>
    %68 = arith.maximumf %66, %67 : vector<2x128xf32>
    %69 = arith.subf %66, %68 : vector<2x128xf32>
    %70 = math.exp %69 : vector<2x128xf32>
    %71 = arith.subf %67, %68 : vector<2x128xf32>
    %72 = math.exp %71 : vector<2x128xf32>
    %73 = arith.addf %70, %72 : vector<2x128xf32>
    %74 = math.log %73 : vector<2x128xf32>
    %75 = arith.addf %68, %74 : vector<2x128xf32>
    %76 = tpu.iota {dimensions = array<i32: 1>} : vector<2x128xi32>
    %c6_i32 = arith.constant 6 : i32
    %77 = vector.broadcast %c6_i32 : i32 to vector<2x128xi32>
    %78 = arith.cmpi slt, %76, %77 : vector<2x128xi32>
    %79 = arith.subf %66, %75 : vector<2x128xf32>
    %cst_34 = arith.constant 0.000000e+00 : f32
    %80 = vector.broadcast %cst_34 : f32 to vector<2x128xf32>
    %81 = arith.select %78, %79, %80 : vector<2x128xi1>, vector<2x128xf32>
    %c0_35 = arith.constant 0 : index
    %c0_36 = arith.constant 0 : index
    %82 = vector.load %arg11[%c0_35, %c0_36] : memref<2x128xf32, #tpu.memory_space<vmem>>, vector<2x128xf32>
    tpu.vector_store %arg11[%c0_35, %c0_36], %81 {strides = array<i32>} : memref<2x128xf32, #tpu.memory_space<vmem>>, vector<2x128xf32>,
    return
  }
  func.func @transform_0(%arg0: i32) -> (i32, i32) {
    %c0_i32 = arith.constant 0 : i32
    %c0_i32_0 = arith.constant 0 : i32
    %c0_i32_1 = arith.constant 0 : i32
    return %c0_i32, %c0_i32_0 : i32, i32
  }
  func.func @transform_1(%arg0: i32) -> (i32, i32) {
    %c0_i32 = arith.constant 0 : i32
    %c0_i32_0 = arith.constant 0 : i32
    %c0_i32_1 = arith.constant 0 : i32
    return %c0_i32, %c0_i32_0 : i32, i32
  }
  func.func @transform_2(%arg0: i32) -> (i32, i32) {
    %c0_i32 = arith.constant 0 : i32
    %c0_i32_0 = arith.constant 0 : i32
    %c0_i32_1 = arith.constant 0 : i32
    return %c0_i32, %c0_i32_0 : i32, i32
  }
  func.func @transform_3(%arg0: i32) -> (i32, i32) {
    %c0_i32 = arith.constant 0 : i32
    %c0_i32_0 = arith.constant 0 : i32
    %c0_i32_1 = arith.constant 0 : i32
    return %c0_i32, %c0_i32_0 : i32, i32
  }
  func.func @transform_4(%arg0: i32) -> (i32, i32) {
    %c0_i32 = arith.constant 0 : i32
    %c0_i32_0 = arith.constant 0 : i32
    %c0_i32_1 = arith.constant 0 : i32
    return %c0_i32, %c0_i32_0 : i32, i32
  }
  func.func @transform_5(%arg0: i32) -> (i32, i32) {
    %c0_i32 = arith.constant 0 : i32
    %c0_i32_0 = arith.constant 0 : i32
    %c0_i32_1 = arith.constant 0 : i32
    return %c0_i32, %c0_i32_0 : i32, i32
  }
  func.func @transform_6(%arg0: i32) -> (i32, i32) {
    %c0_i32 = arith.constant 0 : i32
    %c0_i32_0 = arith.constant 0 : i32
    %c0_i32_1 = arith.constant 0 : i32
    return %c0_i32, %c0_i32_0 : i32, i32
  }
  func.func @transform_7(%arg0: i32) -> (i32, i32) {
    %c0_i32 = arith.constant 0 : i32
    %c0_i32_0 = arith.constant 0 : i32
    %c0_i32_1 = arith.constant 0 : i32
    return %c0_i32, %c0_i32_0 : i32, i32
  }
  func.func @transform_8(%arg0: i32) -> (i32, i32) {
    %c0_i32 = arith.constant 0 : i32
    %c0_i32_0 = arith.constant 0 : i32
    %c0_i32_1 = arith.constant 0 : i32
    return %c0_i32, %c0_i32_0 : i32, i32
  }
  func.func @transform_9(%arg0: i32) -> (i32, i32) {
    %c0_i32 = arith.constant 0 : i32
    %c0_i32_0 = arith.constant 0 : i32
    %c0_i32_1 = arith.constant 0 : i32
    return %c0_i32, %c0_i32_0 : i32, i32
  }
  func.func @transform_10(%arg0: i32) -> (i32, i32) {
    %c0_i32 = arith.constant 0 : i32
    %c0_i32_0 = arith.constant 0 : i32
    %c0_i32_1 = arith.constant 0 : i32
    return %c0_i32, %c0_i32_0 : i32, i32
  }
}

</mosaic_0001>

<llo_original>
// kernel: dann_rep_forward.3
$region0: #{dann_rep_forward.3}
  #allocation0 [shape = 'u32[]', space=smem, size = 0x4, offset = 0x4, fixed_abs, tag = 'smem constant byte address 0x4 - core index']
  #allocation1 [shape = 'u32[72,128]{1,0:T(1,128)}', space=vmem, size = 0x9000, scoped, tag = 'internal scratch']
  %s0 = inlined_call_operand.vmem [shape: bf16[1568,128], index: 0, kind: input, shape index: {}]
  %s1 = inlined_call_operand.vmem [shape: bf16[128,128], index: 1, kind: input, shape index: {}]
  %s2 = inlined_call_operand.vmem [shape: f32[1,128], index: 2, kind: input, shape index: {}]
  %s3 = inlined_call_operand.vmem [shape: f32[1,128], index: 3, kind: input, shape index: {}]
  %s4 = inlined_call_operand.vmem [shape: bf16[392,128], index: 4, kind: output, shape index: {}]
  %s5 = sld [smem:[#allocation0]]
  $region26: #{dann_rep_forward.3} parent=0
    _
  %s7 = ssub.s32 1, %s5
  %s8 = scalar_select 0, %s7, %s5
  // Predicated region
  $region2: #{dann_rep_forward.3} parent=0 // pred_check
    _
  $region3: #{dann_rep_forward.3} parent=0 // pred_check_branch
    %10 = sbr.rel (0) target = $region5
  $region4: #{dann_rep_forward.3} parent=0 // pred_region
    _
  $region5: #{dann_rep_forward.3} parent=0 // pred_fallthru
    _
  // Predicated region
  $region6: #{dann_rep_forward.3} parent=0 // pred_check
    _
  $region7: #{dann_rep_forward.3} parent=0 // pred_check_branch
    %12 = sbr.rel (0) target = $region9
  $region8: #{dann_rep_forward.3} parent=0 // pred_region
    _
  $region9: #{dann_rep_forward.3} parent=0 // pred_fallthru
    _
  // Predicated region
  $region10: #{dann_rep_forward.3} parent=0 // pred_check
    _
  $region11: #{dann_rep_forward.3} parent=0 // pred_check_branch
    %14 = sbr.rel (0) target = $region13
  $region12: #{dann_rep_forward.3} parent=0 // pred_region
    _
  $region13: #{dann_rep_forward.3} parent=0 // pred_fallthru
    _
  // Predicated region
  $region14: #{dann_rep_forward.3} parent=0 // pred_check
    _
  $region15: #{dann_rep_forward.3} parent=0 // pred_check_branch
    %16 = sbr.rel (0) target = $region17
  $region16: #{dann_rep_forward.3} parent=0 // pred_region
    _
  $region17: #{dann_rep_forward.3} parent=0 // pred_fallthru
    _
  %v17 = vld [vmem:[%s0] sm:$0xf]
  %v18 = vld [vmem:[%s0 + $0x4] sm:$0xf]
  %v19 = vld [vmem:[%s0 + $0x8] sm:$0xf]
  %v20 = vld [vmem:[%s0 + $0xc] sm:$0xf]
  %v21 = vld [vmem:[%s0 + $0x10] sm:$0xf]
  %v22 = vld [vmem:[%s0 + $0x14] sm:$0xf]
  %v23 = vld [vmem:[%s0 + $0x18] sm:$0xf]
  %v24 = vld [vmem:[%s0 + $0x1c] sm:$0xf]
  %v25 = vld [vmem:[%s0 + $0x20] sm:$0xf]
  %v26 = vld [vmem:[%s0 + $0x24] sm:$0xf]
  %v27 = vld [vmem:[%s0 + $0x28] sm:$0xf]
  %v28 = vld [vmem:[%s0 + $0x2c] sm:$0xf]
  %v29 = vld [vmem:[%s0 + $0x30] sm:$0xf]
  %v30 = vld [vmem:[%s0 + $0x34] sm:$0xf]
  %v31 = vld [vmem:[%s0 + $0x38] sm:$0xf]
  %v32 = vld [vmem:[%s0 + $0x3c] sm:$0xf]
  %v33 = vld [vmem:[%s0 + $0x40] sm:$0xf]
  %v34 = vld [vmem:[%s0 + $0x44] sm:$0xf]
  %v35 = vld [vmem:[%s0 + $0x48] sm:$0xf]
  %v36 = vld [vmem:[%s0 + $0x4c] sm:$0xf]
  %v37 = vld [vmem:[%s0 + $0x50] sm:$0xf]
  %v38 = vld [vmem:[%s0 + $0x54] sm:$0xf]
  %v39 = vld [vmem:[%s0 + $0x58] sm:$0xf]
  %v40 = vld [vmem:[%s0 + $0x5c] sm:$0xf]
  %v41 = vld [vmem:[%s0 + $0x60] sm:$0xf]
  %v42 = vld [vmem:[%s0 + $0x64] sm:$0xf]
  %v43 = vld [vmem:[%s0 + $0x68] sm:$0xf]
  %v44 = vld [vmem:[%s0 + $0x6c] sm:$0xf]
  %v45 = vld [vmem:[%s0 + $0x70] sm:$0xf]
  %v46 = vld [vmem:[%s0 + $0x74] sm:$0xf]
  %v47 = vld [vmem:[%s0 + $0x78] sm:$0xf]
  %v48 = vld [vmem:[%s0 + $0x7c] sm:$0xf]
  %v49 = vld [vmem:[%s0 + $0x80] sm:$0xf]
  %v50 = vld [vmem:[%s0 + $0x84] sm:$0xf]
  %v51 = vld [vmem:[%s0 + $0x88] sm:$0xf]
  %v52 = vld [vmem:[%s0 + $0x8c] sm:$0xf]
  %v53 = vld [vmem:[%s0 + $0x90] sm:$0xf]
  %v54 = vld [vmem:[%s0 + $0x94] sm:$0xf]
  %v55 = vld [vmem:[%s0 + $0x98] sm:$0xf]
  %v56 = vld [vmem:[%s0 + $0x9c] sm:$0xf]
  %v57 = vld [vmem:[%s0 + $0xa0] sm:$0xf]
  %v58 = vld [vmem:[%s0 + $0xa4] sm:$0xf]
  %v59 = vld [vmem:[%s0 + $0xa8] sm:$0xf]
  %v60 = vld [vmem:[%s0 + $0xac] sm:$0xf]
  %v61 = vld [vmem:[%s0 + $0xb0] sm:$0xf]
  %v62 = vld [vmem:[%s0 + $0xb4] sm:$0xf]
  %v63 = vld [vmem:[%s0 + $0xb8] sm:$0xf]
  %v64 = vld [vmem:[%s0 + $0xbc] sm:$0xf]
  %v65 = vld [vmem:[%s0 + $0xc0] sm:$0xf]
  %v66 = vld [vmem:[%s0 + $0xc4] sm:$0xf]
  %v67 = vld [vmem:[%s0 + $0xc8] sm:$0xf]
  %v68 = vld [vmem:[%s0 + $0xcc] sm:$0xf]
  %v69 = vld [vmem:[%s0 + $0xd0] sm:$0xf]
  %v70 = vld [vmem:[%s0 + $0xd4] sm:$0xf]
  %v71 = vld [vmem:[%s0 + $0xd8] sm:$0xf]
  %v72 = vld [vmem:[%s0 + $0xdc] sm:$0xf]
  %v73 = vld [vmem:[%s0 + $0xe0] sm:$0xf]
  %v74 = vld [vmem:[%s0 + $0xe4] sm:$0xf]
  %v75 = vld [vmem:[%s0 + $0xe8] sm:$0xf]
  %v76 = vld [vmem:[%s0 + $0xec] sm:$0xf]
  %v77 = vld [vmem:[%s0 + $0xf0] sm:$0xf]
  %v78 = vld [vmem:[%s0 + $0xf4] sm:$0xf]
  %v79 = vld [vmem:[%s0 + $0xf8] sm:$0xf]
  %v80 = vld [vmem:[%s0 + $0xfc] sm:$0xf]
  %v81 = vld [vmem:[%s0 + $0x100] sm:$0xf]
  %v82 = vld [vmem:[%s0 + $0x104] sm:$0xf]
  %v83 = vld [vmem:[%s0 + $0x108] sm:$0xf]
  %v84 = vld [vmem:[%s0 + $0x10c] sm:$0xf]
  %v85 = vld [vmem:[%s0 + $0x110] sm:$0xf]
  %v86 = vld [vmem:[%s0 + $0x114] sm:$0xf]
  %v87 = vld [vmem:[%s0 + $0x118] sm:$0xf]
  %v88 = vld [vmem:[%s0 + $0x11c] sm:$0xf]
  %v89 = vld [vmem:[%s0 + $0x120] sm:$0xf]
  %v90 = vld [vmem:[%s0 + $0x124] sm:$0xf]
  %v91 = vld [vmem:[%s0 + $0x128] sm:$0xf]
  %v92 = vld [vmem:[%s0 + $0x12c] sm:$0xf]
  %v93 = vld [vmem:[%s0 + $0x130] sm:$0xf]
  %v94 = vld [vmem:[%s0 + $0x134] sm:$0xf]
  %v95 = vld [vmem:[%s0 + $0x138] sm:$0xf]
  %v96 = vld [vmem:[%s0 + $0x13c] sm:$0xf]
  %v97 = vld [vmem:[%s0 + $0x140] sm:$0xf]
  %v98 = vld [vmem:[%s0 + $0x144] sm:$0xf]
  %v99 = vld [vmem:[%s0 + $0x148] sm:$0xf]
  %v100 = vld [vmem:[%s0 + $0x14c] sm:$0xf]
  %v101 = vld [vmem:[%s0 + $0x150] sm:$0xf]
  %v102 = vld [vmem:[%s0 + $0x154] sm:$0xf]
  %v103 = vld [vmem:[%s0 + $0x158] sm:$0xf]
  %v104 = vld [vmem:[%s0 + $0x15c] sm:$0xf]
  %v105 = vld [vmem:[%s0 + $0x160] sm:$0xf]
  %v106 = vld [vmem:[%s0 + $0x164] sm:$0xf]
  %v107 = vld [vmem:[%s0 + $0x168] sm:$0xf]
  %v108 = vld [vmem:[%s0 + $0x16c] sm:$0xf]
  %v109 = vld [vmem:[%s0 + $0x170] sm:$0xf]
  %v110 = vld [vmem:[%s0 + $0x174] sm:$0xf]
  %v111 = vld [vmem:[%s0 + $0x178] sm:$0xf]
  %v112 = vld [vmem:[%s0 + $0x17c] sm:$0xf]
  %v113 = vld [vmem:[%s0 + $0x180] sm:$0xf]
  %v114 = vld [vmem:[%s0 + $0x184] sm:$0xf]
  %v115 = vld [vmem:[%s0 + $0x188] sm:$0xf]
  %v116 = vld [vmem:[%s0 + $0x18c] sm:$0xf]
  %v117 = vld [vmem:[%s0 + $0x190] sm:$0xf]
  %v118 = vld [vmem:[%s0 + $0x194] sm:$0xf]
  %v119 = vld [vmem:[%s0 + $0x198] sm:$0xf]
  %v120 = vld [vmem:[%s0 + $0x19c] sm:$0xf]
  %v121 = vld [vmem:[%s0 + $0x1a0] sm:$0xf]
  %v122 = vld [vmem:[%s0 + $0x1a4] sm:$0xf]
  %v123 = vld [vmem:[%s0 + $0x1a8] sm:$0xf]
  %v124 = vld [vmem:[%s0 + $0x1ac] sm:$0xf]
  %v125 = vld [vmem:[%s0 + $0x1b0] sm:$0xf]
  %v126 = vld [vmem:[%s0 + $0x1b4] sm:$0xf]
  %v127 = vld [vmem:[%s0 + $0x1b8] sm:$0xf]
  %v128 = vld [vmem:[%s0 + $0x1bc] sm:$0xf]
  %v129 = vld [vmem:[%s0 + $0x1c0] sm:$0xf]
  %v130 = vld [vmem:[%s0 + $0x1c4] sm:$0xf]
  %v131 = vld [vmem:[%s0 + $0x1c8] sm:$0xf]
  %v132 = vld [vmem:[%s0 + $0x1cc] sm:$0xf]
  %v133 = vld [vmem:[%s0 + $0x1d0] sm:$0xf]
  %v134 = vld [vmem:[%s0 + $0x1d4] sm:$0xf]
  %v135 = vld [vmem:[%s0 + $0x1d8] sm:$0xf]
  %v136 = vld [vmem:[%s0 + $0x1dc] sm:$0xf]
  %v137 = vld [vmem:[%s0 + $0x1e0] sm:$0xf]
  %v138 = vld [vmem:[%s0 + $0x1e4] sm:$0xf]
  %v139 = vld [vmem:[%s0 + $0x1e8] sm:$0xf]
  %v140 = vld [vmem:[%s0 + $0x1ec] sm:$0xf]
  %v141 = vld [vmem:[%s0 + $0x1f0] sm:$0xf]
  %v142 = vld [vmem:[%s0 + $0x1f4] sm:$0xf]
  %v143 = vld [vmem:[%s0 + $0x1f8] sm:$0xf]
  %v144 = vld [vmem:[%s0 + $0x1fc] sm:$0xf]
  %v145 = vld [vmem:[%s0 + $0x200] sm:$0xf]
  %v146 = vld [vmem:[%s0 + $0x204] sm:$0xf]
  %v147 = vld [vmem:[%s0 + $0x208] sm:$0xf]
  %v148 = vld [vmem:[%s0 + $0x20c] sm:$0xf]
  %v149 = vld [vmem:[%s0 + $0x210] sm:$0xf]
  %v150 = vld [vmem:[%s0 + $0x214] sm:$0xf]
  %v151 = vld [vmem:[%s0 + $0x218] sm:$0xf]
  %v152 = vld [vmem:[%s0 + $0x21c] sm:$0xf]
  %v153 = vld [vmem:[%s0 + $0x220] sm:$0xf]
  %v154 = vld [vmem:[%s0 + $0x224] sm:$0xf]
  %v155 = vld [vmem:[%s0 + $0x228] sm:$0xf]
  %v156 = vld [vmem:[%s0 + $0x22c] sm:$0xf]
  %v157 = vld [vmem:[%s0 + $0x230] sm:$0xf]
  %v158 = vld [vmem:[%s0 + $0x234] sm:$0xf]
  %v159 = vld [vmem:[%s0 + $0x238] sm:$0xf]
  %v160 = vld [vmem:[%s0 + $0x23c] sm:$0xf]
  %v161 = vld [vmem:[%s0 + $0x240] sm:$0xf]
  %v162 = vld [vmem:[%s0 + $0x244] sm:$0xf]
  %v163 = vld [vmem:[%s0 + $0x248] sm:$0xf]
  %v164 = vld [vmem:[%s0 + $0x24c] sm:$0xf]
  %v165 = vld [vmem:[%s0 + $0x250] sm:$0xf]
  %v166 = vld [vmem:[%s0 + $0x254] sm:$0xf]
  %v167 = vld [vmem:[%s0 + $0x258] sm:$0xf]
  %v168 = vld [vmem:[%s0 + $0x25c] sm:$0xf]
  %v169 = vld [vmem:[%s0 + $0x260] sm:$0xf]
  %v170 = vld [vmem:[%s0 + $0x264] sm:$0xf]
  %v171 = vld [vmem:[%s0 + $0x268] sm:$0xf]
  %v172 = vld [vmem:[%s0 + $0x26c] sm:$0xf]
  %v173 = vld [vmem:[%s0 + $0x270] sm:$0xf]
  %v174 = vld [vmem:[%s0 + $0x274] sm:$0xf]
  %v175 = vld [vmem:[%s0 + $0x278] sm:$0xf]
  %v176 = vld [vmem:[%s0 + $0x27c] sm:$0xf]
  %v177 = vld [vmem:[%s0 + $0x280] sm:$0xf]
  %v178 = vld [vmem:[%s0 + $0x284] sm:$0xf]
  %v179 = vld [vmem:[%s0 + $0x288] sm:$0xf]
  %v180 = vld [vmem:[%s0 + $0x28c] sm:$0xf]
  %v181 = vld [vmem:[%s0 + $0x290] sm:$0xf]
  %v182 = vld [vmem:[%s0 + $0x294] sm:$0xf]
  %v183 = vld [vmem:[%s0 + $0x298] sm:$0xf]
  %v184 = vld [vmem:[%s0 + $0x29c] sm:$0xf]
  %v185 = vld [vmem:[%s0 + $0x2a0] sm:$0xf]
  %v186 = vld [vmem:[%s0 + $0x2a4] sm:$0xf]
  %v187 = vld [vmem:[%s0 + $0x2a8] sm:$0xf]
  %v188 = vld [vmem:[%s0 + $0x2ac] sm:$0xf]
  %v189 = vld [vmem:[%s0 + $0x2b0] sm:$0xf]
  %v190 = vld [vmem:[%s0 + $0x2b4] sm:$0xf]
  %v191 = vld [vmem:[%s0 + $0x2b8] sm:$0xf]
  %v192 = vld [vmem:[%s0 + $0x2bc] sm:$0xf]
  %v193 = vld [vmem:[%s0 + $0x2c0] sm:$0xf]
  %v194 = vld [vmem:[%s0 + $0x2c4] sm:$0xf]
  %v195 = vld [vmem:[%s0 + $0x2c8] sm:$0xf]
  %v196 = vld [vmem:[%s0 + $0x2cc] sm:$0xf]
  %v197 = vld [vmem:[%s0 + $0x2d0] sm:$0xf]
  %v198 = vld [vmem:[%s0 + $0x2d4] sm:$0xf]
  %v199 = vld [vmem:[%s0 + $0x2d8] sm:$0xf]
  %v200 = vld [vmem:[%s0 + $0x2dc] sm:$0xf]
  %v201 = vld [vmem:[%s0 + $0x2e0] sm:$0xf]
  %v202 = vld [vmem:[%s0 + $0x2e4] sm:$0xf]
  %v203 = vld [vmem:[%s0 + $0x2e8] sm:$0xf]
  %v204 = vld [vmem:[%s0 + $0x2ec] sm:$0xf]
  %v205 = vld [vmem:[%s0 + $0x2f0] sm:$0xf]
  %v206 = vld [vmem:[%s0 + $0x2f4] sm:$0xf]
  %v207 = vld [vmem:[%s0 + $0x2f8] sm:$0xf]
  %v208 = vld [vmem:[%s0 + $0x2fc] sm:$0xf]
  %v209 = vld [vmem:[%s0 + $0x300] sm:$0xf]
  %v210 = vld [vmem:[%s0 + $0x304] sm:$0xf]
  %v211 = vld [vmem:[%s0 + $0x308] sm:$0xf]
  %v212 = vld [vmem:[%s0 + $0x30c] sm:$0xf]
  %v213 = vld [vmem:[%s1] sm:$0xf]
  %v214 = vld [vmem:[%s1 + $0x4] sm:$0xf]
  %v215 = vld [vmem:[%s1 + $0x8] sm:$0xf]
  %v216 = vld [vmem:[%s1 + $0xc] sm:$0xf]
  %v217 = vld [vmem:[%s1 + $0x10] sm:$0xf]
  %v218 = vld [vmem:[%s1 + $0x14] sm:$0xf]
  %v219 = vld [vmem:[%s1 + $0x18] sm:$0xf]
  %v220 = vld [vmem:[%s1 + $0x1c] sm:$0xf]
  %v221 = vld [vmem:[%s1 + $0x20] sm:$0xf]
  %v222 = vld [vmem:[%s1 + $0x24] sm:$0xf]
  %v223 = vld [vmem:[%s1 + $0x28] sm:$0xf]
  %v224 = vld [vmem:[%s1 + $0x2c] sm:$0xf]
  %v225 = vld [vmem:[%s1 + $0x30] sm:$0xf]
  %v226 = vld [vmem:[%s1 + $0x34] sm:$0xf]
  %v227 = vld [vmem:[%s1 + $0x38] sm:$0xf]
  %v228 = vld [vmem:[%s1 + $0x3c] sm:$0xf]
  %v425 = vunpack.c.l.b16 %v17
  %v426 = vunpack.c.l.b16 %v18
  %v427 = vunpack.c.l.b16 %v19
  %v428 = vunpack.c.l.b16 %v20
  %v429 = vunpack.c.l.b16 %v21
  %v430 = vunpack.c.l.b16 %v22
  %v431 = vunpack.c.l.b16 %v23
  %v432 = vunpack.c.l.b16 %v24
  %v433 = vunpack.c.l.b16 %v25
  %v434 = vunpack.c.l.b16 %v26
  %v435 = vunpack.c.l.b16 %v27
  %v436 = vunpack.c.l.b16 %v28
  %v437 = vunpack.c.l.b16 %v29
  %v438 = vunpack.c.l.b16 %v30
  %v439 = vunpack.c.l.b16 %v31
  %v440 = vunpack.c.l.b16 %v32
  %v441 = vunpack.c.l.b16 %v33
  %v442 = vunpack.c.l.b16 %v34
  %v443 = vunpack.c.l.b16 %v35
  %v444 = vunpack.c.l.b16 %v36
  %v445 = vunpack.c.l.b16 %v37
  %v446 = vunpack.c.l.b16 %v38
  %v447 = vunpack.c.l.b16 %v39
  %v448 = vunpack.c.l.b16 %v40
  %v449 = vunpack.c.l.b16 %v41
  %v450 = vunpack.c.l.b16 %v42
  %v451 = vunpack.c.l.b16 %v43
  %v452 = vunpack.c.l.b16 %v44
  %v453 = vunpack.c.l.b16 %v45
  %v454 = vunpack.c.l.b16 %v46
  %v455 = vunpack.c.l.b16 %v47
  %v456 = vunpack.c.l.b16 %v48
  %v457 = vunpack.c.l.b16 %v49
  %v458 = vunpack.c.l.b16 %v50
  %v459 = vunpack.c.l.b16 %v51
  %v460 = vunpack.c.l.b16 %v52
  %v461 = vunpack.c.l.b16 %v53
  %v462 = vunpack.c.l.b16 %v54
  %v463 = vunpack.c.l.b16 %v55
  %v464 = vunpack.c.l.b16 %v56
  %v465 = vunpack.c.l.b16 %v57
  %v466 = vunpack.c.l.b16 %v58
  %v467 = vunpack.c.l.b16 %v59
  %v468 = vunpack.c.l.b16 %v60
  %v469 = vunpack.c.l.b16 %v61
  %v470 = vunpack.c.l.b16 %v62
  %v471 = vunpack.c.l.b16 %v63
  %v472 = vunpack.c.l.b16 %v64
  %v473 = vunpack.c.l.b16 %v65
  %v474 = vunpack.c.l.b16 %v66
  %v475 = vunpack.c.l.b16 %v67
  %v476 = vunpack.c.l.b16 %v68
  %v477 = vunpack.c.l.b16 %v69
  %v478 = vunpack.c.l.b16 %v70
  %v479 = vunpack.c.l.b16 %v71
  %v480 = vunpack.c.l.b16 %v72
  %v481 = vunpack.c.l.b16 %v73
  %v482 = vunpack.c.l.b16 %v74
  %v483 = vunpack.c.l.b16 %v75
  %v484 = vunpack.c.l.b16 %v76
  %v485 = vunpack.c.l.b16 %v77
  %v486 = vunpack.c.l.b16 %v78
  %v487 = vunpack.c.l.b16 %v79
  %v488 = vunpack.c.l.b16 %v80
  %v489 = vunpack.c.l.b16 %v81
  %v490 = vunpack.c.l.b16 %v82
  %v491 = vunpack.c.l.b16 %v83
  %v492 = vunpack.c.l.b16 %v84
  %v493 = vunpack.c.l.b16 %v85
  %v494 = vunpack.c.l.b16 %v86
  %v495 = vunpack.c.l.b16 %v87
  %v496 = vunpack.c.l.b16 %v88
  %v497 = vunpack.c.l.b16 %v89
  %v498 = vunpack.c.l.b16 %v90
  %v499 = vunpack.c.l.b16 %v91
  %v500 = vunpack.c.l.b16 %v92
  %v501 = vunpack.c.l.b16 %v93
  %v502 = vunpack.c.l.b16 %v94
  %v503 = vunpack.c.l.b16 %v95
  %v504 = vunpack.c.l.b16 %v96
  %v505 = vunpack.c.l.b16 %v97
  %v506 = vunpack.c.l.b16 %v98
  %v507 = vunpack.c.l.b16 %v99
  %v508 = vunpack.c.l.b16 %v100
  %v509 = vunpack.c.l.b16 %v101
  %v510 = vunpack.c.l.b16 %v102
  %v511 = vunpack.c.l.b16 %v103
  %v512 = vunpack.c.l.b16 %v104
  %v513 = vunpack.c.l.b16 %v105
  %v514 = vunpack.c.l.b16 %v106
  %v515 = vunpack.c.l.b16 %v107
  %v516 = vunpack.c.l.b16 %v108
  %v517 = vunpack.c.l.b16 %v109
  %v518 = vunpack.c.l.b16 %v110
  %v519 = vunpack.c.l.b16 %v111
  %v520 = vunpack.c.l.b16 %v112
  %v521 = vunpack.c.l.b16 %v113
  %v522 = vunpack.c.l.b16 %v114
  %v523 = vunpack.c.l.b16 %v115
  %v524 = vunpack.c.l.b16 %v116
  %v525 = vunpack.c.l.b16 %v117
  %v526 = vunpack.c.l.b16 %v118
  %v527 = vunpack.c.l.b16 %v119
  %v528 = vunpack.c.l.b16 %v120
  %v529 = vunpack.c.l.b16 %v121
  %v530 = vunpack.c.l.b16 %v122
  %v531 = vunpack.c.l.b16 %v123
  %v532 = vunpack.c.l.b16 %v124
  %v533 = vunpack.c.l.b16 %v125
  %v534 = vunpack.c.l.b16 %v126
  %v535 = vunpack.c.l.b16 %v127
  %v536 = vunpack.c.l.b16 %v128
  %v537 = vunpack.c.l.b16 %v129
  %v538 = vunpack.c.l.b16 %v130
  %v539 = vunpack.c.l.b16 %v131
  %v540 = vunpack.c.l.b16 %v132
  %v541 = vunpack.c.l.b16 %v133
  %v542 = vunpack.c.l.b16 %v134
  %v543 = vunpack.c.l.b16 %v135
  %v544 = vunpack.c.l.b16 %v136
  %v545 = vunpack.c.l.b16 %v137
  %v546 = vunpack.c.l.b16 %v138
  %v547 = vunpack.c.l.b16 %v139
  %v548 = vunpack.c.l.b16 %v140
  %v549 = vunpack.c.l.b16 %v141
  %v550 = vunpack.c.l.b16 %v142
  %v551 = vunpack.c.l.b16 %v143
  %v552 = vunpack.c.l.b16 %v144
  %v553 = vunpack.c.l.b16 %v145
  %v554 = vunpack.c.l.b16 %v146
  %v555 = vunpack.c.l.b16 %v147
  %v556 = vunpack.c.l.b16 %v148
  %v557 = vunpack.c.l.b16 %v149
  %v558 = vunpack.c.l.b16 %v150
  %v559 = vunpack.c.l.b16 %v151
  %v560 = vunpack.c.l.b16 %v152
  %v561 = vunpack.c.l.b16 %v153
  %v562 = vunpack.c.l.b16 %v154
  %v563 = vunpack.c.l.b16 %v155
  %v564 = vunpack.c.l.b16 %v156
  %v565 = vunpack.c.l.b16 %v157
  %v566 = vunpack.c.l.b16 %v158
  %v567 = vunpack.c.l.b16 %v159
  %v568 = vunpack.c.l.b16 %v160
  %v569 = vunpack.c.l.b16 %v161
  %v570 = vunpack.c.l.b16 %v162
  %v571 = vunpack.c.l.b16 %v163
  %v572 = vunpack.c.l.b16 %v164
  %v573 = vunpack.c.l.b16 %v165
  %v574 = vunpack.c.l.b16 %v166
  %v575 = vunpack.c.l.b16 %v167
  %v576 = vunpack.c.l.b16 %v168
  %v577 = vunpack.c.l.b16 %v169
  %v578 = vunpack.c.l.b16 %v170
  %v579 = vunpack.c.l.b16 %v171
  %v580 = vunpack.c.l.b16 %v172
  %v581 = vunpack.c.l.b16 %v173
  %v582 = vunpack.c.l.b16 %v174
  %v583 = vunpack.c.l.b16 %v175
  %v584 = vunpack.c.l.b16 %v176
  %v585 = vunpack.c.l.b16 %v177
  %v586 = vunpack.c.l.b16 %v178
  %v587 = vunpack.c.l.b16 %v179
  %v588 = vunpack.c.l.b16 %v180
  %v589 = vunpack.c.l.b16 %v181
  %v590 = vunpack.c.l.b16 %v182
  %v591 = vunpack.c.l.b16 %v183
  %v592 = vunpack.c.l.b16 %v184
  %v593 = vunpack.c.l.b16 %v185
  %v594 = vunpack.c.l.b16 %v186
  %v595 = vunpack.c.l.b16 %v187
  %v596 = vunpack.c.l.b16 %v188
  %v597 = vunpack.c.l.b16 %v189
  %v598 = vunpack.c.l.b16 %v190
  %v599 = vunpack.c.l.b16 %v191
  %v600 = vunpack.c.l.b16 %v192
  %v601 = vunpack.c.l.b16 %v193
  %v602 = vunpack.c.l.b16 %v194
  %v603 = vunpack.c.l.b16 %v195
  %v604 = vunpack.c.l.b16 %v196
  %v605 = vunpack.c.l.b16 %v197
  %v606 = vunpack.c.l.b16 %v198
  %v607 = vunpack.c.l.b16 %v199
  %v608 = vunpack.c.l.b16 %v200
  %v609 = vunpack.c.l.b16 %v201
  %v610 = vunpack.c.l.b16 %v202
  %v611 = vunpack.c.l.b16 %v203
  %v612 = vunpack.c.l.b16 %v204
  %v613 = vunpack.c.l.b16 %v205
  %v614 = vunpack.c.l.b16 %v206
  %v615 = vunpack.c.l.b16 %v207
  %v616 = vunpack.c.l.b16 %v208
  %v617 = vunpack.c.l.b16 %v209
  %v618 = vunpack.c.l.b16 %v210
  %v619 = vunpack.c.l.b16 %v211
  %v620 = vunpack.c.l.b16 %v212
  %v621 = vpack.c.b16 %v426, %v425
  %v622 = vpack.c.b16 %v428, %v427
  %v623 = vpack.c.b16 %v430, %v429
  %v624 = vpack.c.b16 %v432, %v431
  %v625 = vpack.c.b16 %v434, %v433
  %v626 = vpack.c.b16 %v436, %v435
  %v627 = vpack.c.b16 %v438, %v437
  %v628 = vpack.c.b16 %v440, %v439
  %v629 = vpack.c.b16 %v442, %v441
  %v630 = vpack.c.b16 %v444, %v443
  %v631 = vpack.c.b16 %v446, %v445
  %v632 = vpack.c.b16 %v448, %v447
  %v633 = vpack.c.b16 %v450, %v449
  %v634 = vpack.c.b16 %v452, %v451
  %v635 = vpack.c.b16 %v454, %v453
  %v636 = vpack.c.b16 %v456, %v455
  %v637 = vpack.c.b16 %v458, %v457
  %v638 = vpack.c.b16 %v460, %v459
  %v639 = vpack.c.b16 %v462, %v461
  %v640 = vpack.c.b16 %v464, %v463
  %v641 = vpack.c.b16 %v466, %v465
  %v642 = vpack.c.b16 %v468, %v467
  %v643 = vpack.c.b16 %v470, %v469
  %v644 = vpack.c.b16 %v472, %v471
  %v645 = vpack.c.b16 %v474, %v473
  %v646 = vpack.c.b16 %v476, %v475
  %v647 = vpack.c.b16 %v478, %v477
  %v648 = vpack.c.b16 %v480, %v479
  %v649 = vpack.c.b16 %v482, %v481
  %v650 = vpack.c.b16 %v484, %v483
  %v651 = vpack.c.b16 %v486, %v485
  %v652 = vpack.c.b16 %v488, %v487
  %v653 = vpack.c.b16 %v490, %v489
  %v654 = vpack.c.b16 %v492, %v491
  %v655 = vpack.c.b16 %v494, %v493
  %v656 = vpack.c.b16 %v496, %v495
  %v657 = vpack.c.b16 %v498, %v497
  %v658 = vpack.c.b16 %v500, %v499
  %v659 = vpack.c.b16 %v502, %v501
  %v660 = vpack.c.b16 %v504, %v503
  %v661 = vpack.c.b16 %v506, %v505
  %v662 = vpack.c.b16 %v508, %v507
  %v663 = vpack.c.b16 %v510, %v509
  %v664 = vpack.c.b16 %v512, %v511
  %v665 = vpack.c.b16 %v514, %v513
  %v666 = vpack.c.b16 %v516, %v515
  %v667 = vpack.c.b16 %v518, %v517
  %v668 = vpack.c.b16 %v520, %v519
  %v669 = vpack.c.b16 %v522, %v521
  %v670 = vpack.c.b16 %v524, %v523
  %v671 = vpack.c.b16 %v526, %v525
  %v672 = vpack.c.b16 %v528, %v527
  %v673 = vpack.c.b16 %v530, %v529
  %v674 = vpack.c.b16 %v532, %v531
  %v675 = vpack.c.b16 %v534, %v533
  %v676 = vpack.c.b16 %v536, %v535
  %v677 = vpack.c.b16 %v538, %v537
  %v678 = vpack.c.b16 %v540, %v539
  %v679 = vpack.c.b16 %v542, %v541
  %v680 = vpack.c.b16 %v544, %v543
  %v681 = vpack.c.b16 %v546, %v545
  %v682 = vpack.c.b16 %v548, %v547
  %v683 = vpack.c.b16 %v550, %v549
  %v684 = vpack.c.b16 %v552, %v551
  %v685 = vpack.c.b16 %v554, %v553
  %v686 = vpack.c.b16 %v556, %v555
  %v687 = vpack.c.b16 %v558, %v557
  %v688 = vpack.c.b16 %v560, %v559
  %v689 = vpack.c.b16 %v562, %v561
  %v690 = vpack.c.b16 %v564, %v563
  %v691 = vpack.c.b16 %v566, %v565
  %v692 = vpack.c.b16 %v568, %v567
  %v693 = vpack.c.b16 %v570, %v569
  %v694 = vpack.c.b16 %v572, %v571
  %v695 = vpack.c.b16 %v574, %v573
  %v696 = vpack.c.b16 %v576, %v575
  %v697 = vpack.c.b16 %v578, %v577
  %v698 = vpack.c.b16 %v580, %v579
  %v699 = vpack.c.b16 %v582, %v581
  %v700 = vpack.c.b16 %v584, %v583
  %v701 = vpack.c.b16 %v586, %v585
  %v702 = vpack.c.b16 %v588, %v587
  %v703 = vpack.c.b16 %v590, %v589
  %v704 = vpack.c.b16 %v592, %v591
  %v705 = vpack.c.b16 %v594, %v593
  %v706 = vpack.c.b16 %v596, %v595
  %v707 = vpack.c.b16 %v598, %v597
  %v708 = vpack.c.b16 %v600, %v599
  %v709 = vpack.c.b16 %v602, %v601
  %v710 = vpack.c.b16 %v604, %v603
  %v711 = vpack.c.b16 %v606, %v605
  %v712 = vpack.c.b16 %v608, %v607
  %v713 = vpack.c.b16 %v610, %v609
  %v714 = vpack.c.b16 %v612, %v611
  %v715 = vpack.c.b16 %v614, %v613
  %v716 = vpack.c.b16 %v616, %v615
  %v717 = vpack.c.b16 %v618, %v617
  %v718 = vpack.c.b16 %v620, %v619
  %v833 = vunpack.c.l.b16 %v213
  %v834 = vunpack.c.l.b16 %v214
  %v835 = vunpack.c.l.b16 %v215
  %v836 = vunpack.c.l.b16 %v216
  %v837 = vunpack.c.l.b16 %v217
  %v838 = vunpack.c.l.b16 %v218
  %v839 = vunpack.c.l.b16 %v219
  %v840 = vunpack.c.l.b16 %v220
  %v841 = vunpack.c.l.b16 %v221
  %v842 = vunpack.c.l.b16 %v222
  %v843 = vunpack.c.l.b16 %v223
  %v844 = vunpack.c.l.b16 %v224
  %v845 = vunpack.c.l.b16 %v225
  %v846 = vunpack.c.l.b16 %v226
  %v847 = vunpack.c.l.b16 %v227
  %v848 = vunpack.c.l.b16 %v228
  %v849 = vpack.c.b16 %v834, %v833
  %v850 = vpack.c.b16 %v836, %v835
  %v851 = vpack.c.b16 %v838, %v837
  %v852 = vpack.c.b16 %v840, %v839
  %v853 = vpack.c.b16 %v842, %v841
  %v854 = vpack.c.b16 %v844, %v843
  %v855 = vpack.c.b16 %v846, %v845
  %v856 = vpack.c.b16 %v848, %v847
  %865 = vmatpush.bf16.msra.mxu0 %v856
  %866 = vmatpush.bf16.msra.mxu0 %v855
  %867 = vmatpush.bf16.msra.mxu0 %v854
  %868 = vmatpush.bf16.msra.mxu0 %v853
  %869 = vmatpush.bf16.msra.mxu0 %v852
  %870 = vmatpush.bf16.msra.mxu0 %v851
  %871 = vmatpush.bf16.msra.mxu0 %v850
  %872 = vmatpush.bf16.msra.mxu0 %v849
  %873 = vmatmul.bf16.gmra.mxu0 %v621
  %v874 = vpop.f32.mrf.mxu0
  %v875 = vadd.f32 0.0, %v874
  %v876 = vpop.f32.mrf.mxu0
  %v877 = vadd.f32 0.0, %v876
  %878 = vmatmul.bf16.gmra.mxu0 %v622
  %v879 = vpop.f32.mrf.mxu0
  %v880 = vadd.f32 0.0, %v879
  %v881 = vpop.f32.mrf.mxu0
  %v882 = vadd.f32 0.0, %v881
  %883 = vmatmul.bf16.gmra.mxu0 %v623
  %v884 = vpop.f32.mrf.mxu0
  %v885 = vadd.f32 0.0, %v884
  %v886 = vpop.f32.mrf.mxu0
  %v887 = vadd.f32 0.0, %v886
  %888 = vmatmul.bf16.gmra.mxu0 %v624
  %v889 = vpop.f32.mrf.mxu0
  %v890 = vadd.f32 0.0, %v889
  %v891 = vpop.f32.mrf.mxu0
  %v892 = vadd.f32 0.0, %v891
  %893 = vmatmul.bf16.gmra.mxu0 %v625
  %v894 = vpop.f32.mrf.mxu0
  %v895 = vadd.f32 0.0, %v894
  %v896 = vpop.f32.mrf.mxu0
  %v897 = vadd.f32 0.0, %v896
  %898 = vmatmul.bf16.gmra.mxu0 %v626
  %v899 = vpop.f32.mrf.mxu0
  %v900 = vadd.f32 0.0, %v899
  %v901 = vpop.f32.mrf.mxu0
  %v902 = vadd.f32 0.0, %v901
  %903 = vmatmul.bf16.gmra.mxu0 %v627
  %v904 = vpop.f32.mrf.mxu0
  %v905 = vadd.f32 0.0, %v904
  %v906 = vpop.f32.mrf.mxu0
  %v907 = vadd.f32 0.0, %v906
  %908 = vmatmul.bf16.gmra.mxu0 %v628
  %v909 = vpop.f32.mrf.mxu0
  %v910 = vadd.f32 0.0, %v909
  %v911 = vpop.f32.mrf.mxu0
  %v912 = vadd.f32 0.0, %v911
  %913 = vmatmul.bf16.gmra.mxu0 %v629
  %v914 = vpop.f32.mrf.mxu0
  %v915 = vadd.f32 0.0, %v914
  %v916 = vpop.f32.mrf.mxu0
  %v917 = vadd.f32 0.0, %v916
  %918 = vmatmul.bf16.gmra.mxu0 %v630
  %v919 = vpop.f32.mrf.mxu0
  %v920 = vadd.f32 0.0, %v919
  %v921 = vpop.f32.mrf.mxu0
  %v922 = vadd.f32 0.0, %v921
  %923 = vmatmul.bf16.gmra.mxu0 %v631
  %v924 = vpop.f32.mrf.mxu0
  %v925 = vadd.f32 0.0, %v924
  %v926 = vpop.f32.mrf.mxu0
  %v927 = vadd.f32 0.0, %v926
  %928 = vmatmul.bf16.gmra.mxu0 %v632
  %v929 = vpop.f32.mrf.mxu0
  %v930 = vadd.f32 0.0, %v929
  %v931 = vpop.f32.mrf.mxu0
  %v932 = vadd.f32 0.0, %v931
  %933 = vmatmul.bf16.gmra.mxu0 %v633
  %v934 = vpop.f32.mrf.mxu0
  %v935 = vadd.f32 0.0, %v934
  %v936 = vpop.f32.mrf.mxu0
  %v937 = vadd.f32 0.0, %v936
  %938 = vmatmul.bf16.gmra.mxu0 %v634
  %v939 = vpop.f32.mrf.mxu0
  %v940 = vadd.f32 0.0, %v939
  %v941 = vpop.f32.mrf.mxu0
  %v942 = vadd.f32 0.0, %v941
  %943 = vmatmul.bf16.gmra.mxu0 %v635
  %v944 = vpop.f32.mrf.mxu0
  %v945 = vadd.f32 0.0, %v944
  %v946 = vpop.f32.mrf.mxu0
  %v947 = vadd.f32 0.0, %v946
  %948 = vmatmul.bf16.gmra.mxu0 %v636
  %v949 = vpop.f32.mrf.mxu0
  %v950 = vadd.f32 0.0, %v949
  %v951 = vpop.f32.mrf.mxu0
  %v952 = vadd.f32 0.0, %v951
  %953 = vmatmul.bf16.gmra.mxu0 %v637
  %v954 = vpop.f32.mrf.mxu0
  %v955 = vadd.f32 0.0, %v954
  %v956 = vpop.f32.mrf.mxu0
  %v957 = vadd.f32 0.0, %v956
  %958 = vmatmul.bf16.gmra.mxu0 %v638
  %v959 = vpop.f32.mrf.mxu0
  %v960 = vadd.f32 0.0, %v959
  %v961 = vpop.f32.mrf.mxu0
  %v962 = vadd.f32 0.0, %v961
  %963 = vmatmul.bf16.gmra.mxu0 %v639
  %v964 = vpop.f32.mrf.mxu0
  %v965 = vadd.f32 0.0, %v964
  %v966 = vpop.f32.mrf.mxu0
  %v967 = vadd.f32 0.0, %v966
  %968 = vmatmul.bf16.gmra.mxu0 %v640
  %v969 = vpop.f32.mrf.mxu0
  %v970 = vadd.f32 0.0, %v969
  %v971 = vpop.f32.mrf.mxu0
  %v972 = vadd.f32 0.0, %v971
  %973 = vmatmul.bf16.gmra.mxu0 %v641
  %v974 = vpop.f32.mrf.mxu0
  %v975 = vadd.f32 0.0, %v974
  %v976 = vpop.f32.mrf.mxu0
  %v977 = vadd.f32 0.0, %v976
  %978 = vmatmul.bf16.gmra.mxu0 %v642
  %v979 = vpop.f32.mrf.mxu0
  %v980 = vadd.f32 0.0, %v979
  %v981 = vpop.f32.mrf.mxu0
  %v982 = vadd.f32 0.0, %v981
  %983 = vmatmul.bf16.gmra.mxu0 %v643
  %v984 = vpop.f32.mrf.mxu0
  %v985 = vadd.f32 0.0, %v984
  %v986 = vpop.f32.mrf.mxu0
  %v987 = vadd.f32 0.0, %v986
  %988 = vmatmul.bf16.gmra.mxu0 %v644
  %v989 = vpop.f32.mrf.mxu0
  %v990 = vadd.f32 0.0, %v989
  %v991 = vpop.f32.mrf.mxu0
  %v992 = vadd.f32 0.0, %v991
  %993 = vmatmul.bf16.gmra.mxu0 %v645
  %v994 = vpop.f32.mrf.mxu0
  %v995 = vadd.f32 0.0, %v994
  %v996 = vpop.f32.mrf.mxu0
  %v997 = vadd.f32 0.0, %v996
  %998 = vmatmul.bf16.gmra.mxu0 %v646
  %v999 = vpop.f32.mrf.mxu0
  %v1000 = vadd.f32 0.0, %v999
  %v1001 = vpop.f32.mrf.mxu0
  %v1002 = vadd.f32 0.0, %v1001
  %1003 = vmatmul.bf16.gmra.mxu0 %v647
  %v1004 = vpop.f32.mrf.mxu0
  %v1005 = vadd.f32 0.0, %v1004
  %v1006 = vpop.f32.mrf.mxu0
  %v1007 = vadd.f32 0.0, %v1006
  %1008 = vmatmul.bf16.gmra.mxu0 %v648
  %v1009 = vpop.f32.mrf.mxu0
  %v1010 = vadd.f32 0.0, %v1009
  %v1011 = vpop.f32.mrf.mxu0
  %v1012 = vadd.f32 0.0, %v1011
  %1013 = vmatmul.bf16.gmra.mxu0 %v649
  %v1014 = vpop.f32.mrf.mxu0
  %v1015 = vadd.f32 0.0, %v1014
  %v1016 = vpop.f32.mrf.mxu0
  %v1017 = vadd.f32 0.0, %v1016
  %1018 = vmatmul.bf16.gmra.mxu0 %v650
  %v1019 = vpop.f32.mrf.mxu0
  %v1020 = vadd.f32 0.0, %v1019
  %v1021 = vpop.f32.mrf.mxu0
  %v1022 = vadd.f32 0.0, %v1021
  %1023 = vmatmul.bf16.gmra.mxu0 %v651
  %v1024 = vpop.f32.mrf.mxu0
  %v1025 = vadd.f32 0.0, %v1024
  %v1026 = vpop.f32.mrf.mxu0
  %v1027 = vadd.f32 0.0, %v1026
  %1028 = vmatmul.bf16.gmra.mxu0 %v652
  %v1029 = vpop.f32.mrf.mxu0
  %v1030 = vadd.f32 0.0, %v1029
  %v1031 = vpop.f32.mrf.mxu0
  %v1032 = vadd.f32 0.0, %v1031
  %1033 = vmatmul.bf16.gmra.mxu0 %v653
  %v1034 = vpop.f32.mrf.mxu0
  %v1035 = vadd.f32 0.0, %v1034
  %v1036 = vpop.f32.mrf.mxu0
  %v1037 = vadd.f32 0.0, %v1036
  %1038 = vmatmul.bf16.gmra.mxu0 %v654
  %v1039 = vpop.f32.mrf.mxu0
  %v1040 = vadd.f32 0.0, %v1039
  %v1041 = vpop.f32.mrf.mxu0
  %v1042 = vadd.f32 0.0, %v1041
  %1043 = vmatmul.bf16.gmra.mxu0 %v655
  %v1044 = vpop.f32.mrf.mxu0
  %v1045 = vadd.f32 0.0, %v1044
  %v1046 = vpop.f32.mrf.mxu0
  %v1047 = vadd.f32 0.0, %v1046
  %1048 = vmatmul.bf16.gmra.mxu0 %v656
  %v1049 = vpop.f32.mrf.mxu0
  %v1050 = vadd.f32 0.0, %v1049
  %v1051 = vpop.f32.mrf.mxu0
  %v1052 = vadd.f32 0.0, %v1051
  %1053 = vmatmul.bf16.gmra.mxu0 %v657
  %v1054 = vpop.f32.mrf.mxu0
  %v1055 = vadd.f32 0.0, %v1054
  %v1056 = vpop.f32.mrf.mxu0
  %v1057 = vadd.f32 0.0, %v1056
  %1058 = vmatmul.bf16.gmra.mxu0 %v658
  %v1059 = vpop.f32.mrf.mxu0
  %v1060 = vadd.f32 0.0, %v1059
  %v1061 = vpop.f32.mrf.mxu0
  %v1062 = vadd.f32 0.0, %v1061
  %1063 = vmatmul.bf16.gmra.mxu0 %v659
  %v1064 = vpop.f32.mrf.mxu0
  %v1065 = vadd.f32 0.0, %v1064
  %v1066 = vpop.f32.mrf.mxu0
  %v1067 = vadd.f32 0.0, %v1066
  %1068 = vmatmul.bf16.gmra.mxu0 %v660
  %v1069 = vpop.f32.mrf.mxu0
  %v1070 = vadd.f32 0.0, %v1069
  %v1071 = vpop.f32.mrf.mxu0
  %v1072 = vadd.f32 0.0, %v1071
  %1073 = vmatmul.bf16.gmra.mxu0 %v661
  %v1074 = vpop.f32.mrf.mxu0
  %v1075 = vadd.f32 0.0, %v1074
  %v1076 = vpop.f32.mrf.mxu0
  %v1077 = vadd.f32 0.0, %v1076
  %1078 = vmatmul.bf16.gmra.mxu0 %v662
  %v1079 = vpop.f32.mrf.mxu0
  %v1080 = vadd.f32 0.0, %v1079
  %v1081 = vpop.f32.mrf.mxu0
  %v1082 = vadd.f32 0.0, %v1081
  %1083 = vmatmul.bf16.gmra.mxu0 %v663
  %v1084 = vpop.f32.mrf.mxu0
  %v1085 = vadd.f32 0.0, %v1084
  %v1086 = vpop.f32.mrf.mxu0
  %v1087 = vadd.f32 0.0, %v1086
  %1088 = vmatmul.bf16.gmra.mxu0 %v664
  %v1089 = vpop.f32.mrf.mxu0
  %v1090 = vadd.f32 0.0, %v1089
  %v1091 = vpop.f32.mrf.mxu0
  %v1092 = vadd.f32 0.0, %v1091
  %1093 = vmatmul.bf16.gmra.mxu0 %v665
  %v1094 = vpop.f32.mrf.mxu0
  %v1095 = vadd.f32 0.0, %v1094
  %v1096 = vpop.f32.mrf.mxu0
  %v1097 = vadd.f32 0.0, %v1096
  %1098 = vmatmul.bf16.gmra.mxu0 %v666
  %v1099 = vpop.f32.mrf.mxu0
  %v1100 = vadd.f32 0.0, %v1099
  %v1101 = vpop.f32.mrf.mxu0
  %v1102 = vadd.f32 0.0, %v1101
  %1103 = vmatmul.bf16.gmra.mxu0 %v667
  %v1104 = vpop.f32.mrf.mxu0
  %v1105 = vadd.f32 0.0, %v1104
  %v1106 = vpop.f32.mrf.mxu0
  %v1107 = vadd.f32 0.0, %v1106
  %1108 = vmatmul.bf16.gmra.mxu0 %v668
  %v1109 = vpop.f32.mrf.mxu0
  %v1110 = vadd.f32 0.0, %v1109
  %v1111 = vpop.f32.mrf.mxu0
  %v1112 = vadd.f32 0.0, %v1111
  %1113 = vmatmul.bf16.gmra.mxu0 %v669
  %v1114 = vpop.f32.mrf.mxu0
  %v1115 = vadd.f32 0.0, %v1114
  %v1116 = vpop.f32.mrf.mxu0
  %v1117 = vadd.f32 0.0, %v1116
  %1118 = vmatmul.bf16.gmra.mxu0 %v670
  %v1119 = vpop.f32.mrf.mxu0
  %v1120 = vadd.f32 0.0, %v1119
  %v1121 = vpop.f32.mrf.mxu0
  %v1122 = vadd.f32 0.0, %v1121
  %1123 = vmatmul.bf16.gmra.mxu0 %v671
  %v1124 = vpop.f32.mrf.mxu0
  %v1125 = vadd.f32 0.0, %v1124
  %v1126 = vpop.f32.mrf.mxu0
  %v1127 = vadd.f32 0.0, %v1126
  %1128 = vmatmul.bf16.gmra.mxu0 %v672
  %v1129 = vpop.f32.mrf.mxu0
  %v1130 = vadd.f32 0.0, %v1129
  %v1131 = vpop.f32.mrf.mxu0
  %v1132 = vadd.f32 0.0, %v1131
  %1133 = vmatmul.bf16.gmra.mxu0 %v673
  %v1134 = vpop.f32.mrf.mxu0
  %v1135 = vadd.f32 0.0, %v1134
  %v1136 = vpop.f32.mrf.mxu0
  %v1137 = vadd.f32 0.0, %v1136
  %1138 = vmatmul.bf16.gmra.mxu0 %v674
  %v1139 = vpop.f32.mrf.mxu0
  %v1140 = vadd.f32 0.0, %v1139
  %v1141 = vpop.f32.mrf.mxu0
  %v1142 = vadd.f32 0.0, %v1141
  %1143 = vmatmul.bf16.gmra.mxu0 %v675
  %v1144 = vpop.f32.mrf.mxu0
  %v1145 = vadd.f32 0.0, %v1144
  %v1146 = vpop.f32.mrf.mxu0
  %v1147 = vadd.f32 0.0, %v1146
  %1148 = vmatmul.bf16.gmra.mxu0 %v676
  %v1149 = vpop.f32.mrf.mxu0
  %v1150 = vadd.f32 0.0, %v1149
  %v1151 = vpop.f32.mrf.mxu0
  %v1152 = vadd.f32 0.0, %v1151
  %1153 = vmatmul.bf16.gmra.mxu0 %v677
  %v1154 = vpop.f32.mrf.mxu0
  %v1155 = vadd.f32 0.0, %v1154
  %v1156 = vpop.f32.mrf.mxu0
  %v1157 = vadd.f32 0.0, %v1156
  %1158 = vmatmul.bf16.gmra.mxu0 %v678
  %v1159 = vpop.f32.mrf.mxu0
  %v1160 = vadd.f32 0.0, %v1159
  %v1161 = vpop.f32.mrf.mxu0
  %v1162 = vadd.f32 0.0, %v1161
  %1163 = vmatmul.bf16.gmra.mxu0 %v679
  %v1164 = vpop.f32.mrf.mxu0
  %v1165 = vadd.f32 0.0, %v1164
  %v1166 = vpop.f32.mrf.mxu0
  %v1167 = vadd.f32 0.0, %v1166
  %1168 = vmatmul.bf16.gmra.mxu0 %v680
  %v1169 = vpop.f32.mrf.mxu0
  %v1170 = vadd.f32 0.0, %v1169
  %v1171 = vpop.f32.mrf.mxu0
  %v1172 = vadd.f32 0.0, %v1171
  %1173 = vmatmul.bf16.gmra.mxu0 %v681
  %v1174 = vpop.f32.mrf.mxu0
  %v1175 = vadd.f32 0.0, %v1174
  %v1176 = vpop.f32.mrf.mxu0
  %v1177 = vadd.f32 0.0, %v1176
  %1178 = vmatmul.bf16.gmra.mxu0 %v682
  %v1179 = vpop.f32.mrf.mxu0
  %v1180 = vadd.f32 0.0, %v1179
  %v1181 = vpop.f32.mrf.mxu0
  %v1182 = vadd.f32 0.0, %v1181
  %1183 = vmatmul.bf16.gmra.mxu0 %v683
  %v1184 = vpop.f32.mrf.mxu0
  %v1185 = vadd.f32 0.0, %v1184
  %v1186 = vpop.f32.mrf.mxu0
  %v1187 = vadd.f32 0.0, %v1186
  %1188 = vmatmul.bf16.gmra.mxu0 %v684
  %v1189 = vpop.f32.mrf.mxu0
  %v1190 = vadd.f32 0.0, %v1189
  %v1191 = vpop.f32.mrf.mxu0
  %v1192 = vadd.f32 0.0, %v1191
  %1193 = vmatmul.bf16.gmra.mxu0 %v685
  %v1194 = vpop.f32.mrf.mxu0
  %v1195 = vadd.f32 0.0, %v1194
  %v1196 = vpop.f32.mrf.mxu0
  %v1197 = vadd.f32 0.0, %v1196
  %1198 = vmatmul.bf16.gmra.mxu0 %v686
  %v1199 = vpop.f32.mrf.mxu0
  %v1200 = vadd.f32 0.0, %v1199
  %v1201 = vpop.f32.mrf.mxu0
  %v1202 = vadd.f32 0.0, %v1201
  %1203 = vmatmul.bf16.gmra.mxu0 %v687
  %v1204 = vpop.f32.mrf.mxu0
  %v1205 = vadd.f32 0.0, %v1204
  %v1206 = vpop.f32.mrf.mxu0
  %v1207 = vadd.f32 0.0, %v1206
  %1208 = vmatmul.bf16.gmra.mxu0 %v688
  %v1209 = vpop.f32.mrf.mxu0
  %v1210 = vadd.f32 0.0, %v1209
  %v1211 = vpop.f32.mrf.mxu0
  %v1212 = vadd.f32 0.0, %v1211
  %1213 = vmatmul.bf16.gmra.mxu0 %v689
  %v1214 = vpop.f32.mrf.mxu0
  %v1215 = vadd.f32 0.0, %v1214
  %v1216 = vpop.f32.mrf.mxu0
  %v1217 = vadd.f32 0.0, %v1216
  %1218 = vmatmul.bf16.gmra.mxu0 %v690
  %v1219 = vpop.f32.mrf.mxu0
  %v1220 = vadd.f32 0.0, %v1219
  %v1221 = vpop.f32.mrf.mxu0
  %v1222 = vadd.f32 0.0, %v1221
  %1223 = vmatmul.bf16.gmra.mxu0 %v691
  %v1224 = vpop.f32.mrf.mxu0
  %v1225 = vadd.f32 0.0, %v1224
  %v1226 = vpop.f32.mrf.mxu0
  %v1227 = vadd.f32 0.0, %v1226
  %1228 = vmatmul.bf16.gmra.mxu0 %v692
  %v1229 = vpop.f32.mrf.mxu0
  %v1230 = vadd.f32 0.0, %v1229
  %v1231 = vpop.f32.mrf.mxu0
  %v1232 = vadd.f32 0.0, %v1231
  %1233 = vmatmul.bf16.gmra.mxu0 %v693
  %v1234 = vpop.f32.mrf.mxu0
  %v1235 = vadd.f32 0.0, %v1234
  %v1236 = vpop.f32.mrf.mxu0
  %v1237 = vadd.f32 0.0, %v1236
  %1238 = vmatmul.bf16.gmra.mxu0 %v694
  %v1239 = vpop.f32.mrf.mxu0
  %v1240 = vadd.f32 0.0, %v1239
  %v1241 = vpop.f32.mrf.mxu0
  %v1242 = vadd.f32 0.0, %v1241
  %1243 = vmatmul.bf16.gmra.mxu0 %v695
  %v1244 = vpop.f32.mrf.mxu0
  %v1245 = vadd.f32 0.0, %v1244
  %v1246 = vpop.f32.mrf.mxu0
  %v1247 = vadd.f32 0.0, %v1246
  %1248 = vmatmul.bf16.gmra.mxu0 %v696
  %v1249 = vpop.f32.mrf.mxu0
  %v1250 = vadd.f32 0.0, %v1249
  %v1251 = vpop.f32.mrf.mxu0
  %v1252 = vadd.f32 0.0, %v1251
  %1253 = vmatmul.bf16.gmra.mxu0 %v697
  %v1254 = vpop.f32.mrf.mxu0
  %v1255 = vadd.f32 0.0, %v1254
  %v1256 = vpop.f32.mrf.mxu0
  %v1257 = vadd.f32 0.0, %v1256
  %1258 = vmatmul.bf16.gmra.mxu0 %v698
  %v1259 = vpop.f32.mrf.mxu0
  %v1260 = vadd.f32 0.0, %v1259
  %v1261 = vpop.f32.mrf.mxu0
  %v1262 = vadd.f32 0.0, %v1261
  %1263 = vmatmul.bf16.gmra.mxu0 %v699
  %v1264 = vpop.f32.mrf.mxu0
  %v1265 = vadd.f32 0.0, %v1264
  %v1266 = vpop.f32.mrf.mxu0
  %v1267 = vadd.f32 0.0, %v1266
  %1268 = vmatmul.bf16.gmra.mxu0 %v700
  %v1269 = vpop.f32.mrf.mxu0
  %v1270 = vadd.f32 0.0, %v1269
  %v1271 = vpop.f32.mrf.mxu0
  %v1272 = vadd.f32 0.0, %v1271
  %1273 = vmatmul.bf16.gmra.mxu0 %v701
  %v1274 = vpop.f32.mrf.mxu0
  %v1275 = vadd.f32 0.0, %v1274
  %v1276 = vpop.f32.mrf.mxu0
  %v1277 = vadd.f32 0.0, %v1276
  %1278 = vmatmul.bf16.gmra.mxu0 %v702
  %v1279 = vpop.f32.mrf.mxu0
  %v1280 = vadd.f32 0.0, %v1279
  %v1281 = vpop.f32.mrf.mxu0
  %v1282 = vadd.f32 0.0, %v1281
  %1283 = vmatmul.bf16.gmra.mxu0 %v703
  %v1284 = vpop.f32.mrf.mxu0
  %v1285 = vadd.f32 0.0, %v1284
  %v1286 = vpop.f32.mrf.mxu0
  %v1287 = vadd.f32 0.0, %v1286
  %1288 = vmatmul.bf16.gmra.mxu0 %v704
  %v1289 = vpop.f32.mrf.mxu0
  %v1290 = vadd.f32 0.0, %v1289
  %v1291 = vpop.f32.mrf.mxu0
  %v1292 = vadd.f32 0.0, %v1291
  %1293 = vmatmul.bf16.gmra.mxu0 %v705
  %v1294 = vpop.f32.mrf.mxu0
  %v1295 = vadd.f32 0.0, %v1294
  %v1296 = vpop.f32.mrf.mxu0
  %v1297 = vadd.f32 0.0, %v1296
  %1298 = vmatmul.bf16.gmra.mxu0 %v706
  %v1299 = vpop.f32.mrf.mxu0
  %v1300 = vadd.f32 0.0, %v1299
  %v1301 = vpop.f32.mrf.mxu0
  %v1302 = vadd.f32 0.0, %v1301
  %1303 = vmatmul.bf16.gmra.mxu0 %v707
  %v1304 = vpop.f32.mrf.mxu0
  %v1305 = vadd.f32 0.0, %v1304
  %v1306 = vpop.f32.mrf.mxu0
  %v1307 = vadd.f32 0.0, %v1306
  %1308 = vmatmul.bf16.gmra.mxu0 %v708
  %v1309 = vpop.f32.mrf.mxu0
  %v1310 = vadd.f32 0.0, %v1309
  %v1311 = vpop.f32.mrf.mxu0
  %v1312 = vadd.f32 0.0, %v1311
  %1313 = vmatmul.bf16.gmra.mxu0 %v709
  %v1314 = vpop.f32.mrf.mxu0
  %v1315 = vadd.f32 0.0, %v1314
  %v1316 = vpop.f32.mrf.mxu0
  %v1317 = vadd.f32 0.0, %v1316
  %1318 = vmatmul.bf16.gmra.mxu0 %v710
  %v1319 = vpop.f32.mrf.mxu0
  %v1320 = vadd.f32 0.0, %v1319
  %v1321 = vpop.f32.mrf.mxu0
  %v1322 = vadd.f32 0.0, %v1321
  %1323 = vmatmul.bf16.gmra.mxu0 %v711
  %v1324 = vpop.f32.mrf.mxu0
  %v1325 = vadd.f32 0.0, %v1324
  %v1326 = vpop.f32.mrf.mxu0
  %v1327 = vadd.f32 0.0, %v1326
  %1328 = vmatmul.bf16.gmra.mxu0 %v712
  %v1329 = vpop.f32.mrf.mxu0
  %v1330 = vadd.f32 0.0, %v1329
  %v1331 = vpop.f32.mrf.mxu0
  %v1332 = vadd.f32 0.0, %v1331
  %1333 = vmatmul.bf16.gmra.mxu0 %v713
  %v1334 = vpop.f32.mrf.mxu0
  %v1335 = vadd.f32 0.0, %v1334
  %v1336 = vpop.f32.mrf.mxu0
  %v1337 = vadd.f32 0.0, %v1336
  %1338 = vmatmul.bf16.gmra.mxu0 %v714
  %v1339 = vpop.f32.mrf.mxu0
  %v1340 = vadd.f32 0.0, %v1339
  %v1341 = vpop.f32.mrf.mxu0
  %v1342 = vadd.f32 0.0, %v1341
  %1343 = vmatmul.bf16.gmra.mxu0 %v715
  %v1344 = vpop.f32.mrf.mxu0
  %v1345 = vadd.f32 0.0, %v1344
  %v1346 = vpop.f32.mrf.mxu0
  %v1347 = vadd.f32 0.0, %v1346
  %1348 = vmatmul.bf16.gmra.mxu0 %v716
  %v1349 = vpop.f32.mrf.mxu0
  %v1350 = vadd.f32 0.0, %v1349
  %v1351 = vpop.f32.mrf.mxu0
  %v1352 = vadd.f32 0.0, %v1351
  %1353 = vmatmul.bf16.gmra.mxu0 %v717
  %v1354 = vpop.f32.mrf.mxu0
  %v1355 = vadd.f32 0.0, %v1354
  %v1356 = vpop.f32.mrf.mxu0
  %v1357 = vadd.f32 0.0, %v1356
  %1358 = vmatmul.bf16.gmra.mxu0 %v718
  %v1359 = vpop.f32.mrf.mxu0
  %v1360 = vadd.f32 0.0, %v1359
  %v1361 = vpop.f32.mrf.mxu0
  %v1362 = vadd.f32 0.0, %v1361
  %1363 = vdwg.mxu0
  %v1364 = vld [vmem:[%s2] sm:$0x1]
  %v1365 = vld [vmem:[%s3] sm:$0x1]
  %v1366 = vadd.f32 %v875, %v877
  %v1367 = vadd.f32 %v1366, %v880
  %v1368 = vadd.f32 %v1367, %v882
  %v1369 = vadd.f32 %v1368, %v885
  %v1370 = vadd.f32 %v1369, %v887
  %v1371 = vadd.f32 %v1370, %v890
  %v1372 = vadd.f32 %v1371, %v892
  %v1373 = vadd.f32 %v1372, %v895
  %v1374 = vadd.f32 %v1373, %v897
  %v1375 = vadd.f32 %v1374, %v900
  %v1376 = vadd.f32 %v1375, %v902
  %v1377 = vadd.f32 %v1376, %v905
  %v1378 = vadd.f32 %v1377, %v907
  %v1379 = vadd.f32 %v1378, %v910
  %v1380 = vadd.f32 %v1379, %v912
  %v1381 = vadd.f32 %v1380, %v915
  %v1382 = vadd.f32 %v1381, %v917
  %v1383 = vadd.f32 %v1382, %v920
  %v1384 = vadd.f32 %v1383, %v922
  %v1385 = vadd.f32 %v1384, %v925
  %v1386 = vadd.f32 %v1385, %v927
  %v1387 = vadd.f32 %v1386, %v930
  %v1388 = vadd.f32 %v1387, %v932
  %v1389 = vadd.f32 %v1388, %v935
  %v1390 = vadd.f32 %v1389, %v937
  %v1391 = vadd.f32 %v1390, %v940
  %v1392 = vadd.f32 %v1391, %v942
  %v1393 = vadd.f32 %v1392, %v945
  %v1394 = vadd.f32 %v1393, %v947
  %v1395 = vadd.f32 %v1394, %v950
  %v1396 = vadd.f32 %v1395, %v952
  %v1397 = vadd.f32 %v1396, %v955
  %v1398 = vadd.f32 %v1397, %v957
  %v1399 = vadd.f32 %v1398, %v960
  %v1400 = vadd.f32 %v1399, %v962
  %v1401 = vadd.f32 %v1400, %v965
  %v1402 = vadd.f32 %v1401, %v967
  %v1403 = vadd.f32 %v1402, %v970
  %v1404 = vadd.f32 %v1403, %v972
  %v1405 = vadd.f32 %v1404, %v975
  %v1406 = vadd.f32 %v1405, %v977
  %v1407 = vadd.f32 %v1406, %v980
  %v1408 = vadd.f32 %v1407, %v982
  %v1409 = vadd.f32 %v1408, %v985
  %v1410 = vadd.f32 %v1409, %v987
  %v1411 = vadd.f32 %v1410, %v990
  %v1412 = vadd.f32 %v1411, %v992
  %v1413 = vadd.f32 %v1412, %v995
  %v1414 = vadd.f32 %v1413, %v997
  %v1415 = vadd.f32 %v1414, %v1000
  %v1416 = vadd.f32 %v1415, %v1002
  %v1417 = vadd.f32 %v1416, %v1005
  %v1418 = vadd.f32 %v1417, %v1007
  %v1419 = vadd.f32 %v1418, %v1010
  %v1420 = vadd.f32 %v1419, %v1012
  %v1421 = vadd.f32 %v1420, %v1015
  %v1422 = vadd.f32 %v1421, %v1017
  %v1423 = vadd.f32 %v1422, %v1020
  %v1424 = vadd.f32 %v1423, %v1022
  %v1425 = vadd.f32 %v1424, %v1025
  %v1426 = vadd.f32 %v1425, %v1027
  %v1427 = vadd.f32 %v1426, %v1030
  %v1428 = vadd.f32 %v1427, %v1032
  %v1429 = vadd.f32 %v1428, %v1035
  %v1430 = vadd.f32 %v1429, %v1037
  %v1431 = vadd.f32 %v1430, %v1040
  %v1432 = vadd.f32 %v1431, %v1042
  %v1433 = vadd.f32 %v1432, %v1045
  %v1434 = vadd.f32 %v1433, %v1047
  %v1435 = vadd.f32 %v1434, %v1050
  %v1436 = vadd.f32 %v1435, %v1052
  %v1437 = vadd.f32 %v1436, %v1055
  %v1438 = vadd.f32 %v1437, %v1057
  %v1439 = vadd.f32 %v1438, %v1060
  %v1440 = vadd.f32 %v1439, %v1062
  %v1441 = vadd.f32 %v1440, %v1065
  %v1442 = vadd.f32 %v1441, %v1067
  %v1443 = vadd.f32 %v1442, %v1070
  %v1444 = vadd.f32 %v1443, %v1072
  %v1445 = vadd.f32 %v1444, %v1075
  %v1446 = vadd.f32 %v1445, %v1077
  %v1447 = vadd.f32 %v1446, %v1080
  %v1448 = vadd.f32 %v1447, %v1082
  %v1449 = vadd.f32 %v1448, %v1085
  %v1450 = vadd.f32 %v1449, %v1087
  %v1451 = vadd.f32 %v1450, %v1090
  %v1452 = vadd.f32 %v1451, %v1092
  %v1453 = vadd.f32 %v1452, %v1095
  %v1454 = vadd.f32 %v1453, %v1097
  %v1455 = vadd.f32 %v1454, %v1100
  %v1456 = vadd.f32 %v1455, %v1102
  %v1457 = vadd.f32 %v1456, %v1105
  %v1458 = vadd.f32 %v1457, %v1107
  %v1459 = vadd.f32 %v1458, %v1110
  %v1460 = vadd.f32 %v1459, %v1112
  %v1461 = vadd.f32 %v1460, %v1115
  %v1462 = vadd.f32 %v1461, %v1117
  %v1463 = vadd.f32 %v1462, %v1120
  %v1464 = vadd.f32 %v1463, %v1122
  %v1465 = vadd.f32 %v1464, %v1125
  %v1466 = vadd.f32 %v1465, %v1127
  %v1467 = vadd.f32 %v1466, %v1130
  %v1468 = vadd.f32 %v1467, %v1132
  %v1469 = vadd.f32 %v1468, %v1135
  %v1470 = vadd.f32 %v1469, %v1137
  %v1471 = vadd.f32 %v1470, %v1140
  %v1472 = vadd.f32 %v1471, %v1142
  %v1473 = vadd.f32 %v1472, %v1145
  %v1474 = vadd.f32 %v1473, %v1147
  %v1475 = vadd.f32 %v1474, %v1150
  %v1476 = vadd.f32 %v1475, %v1152
  %v1477 = vadd.f32 %v1476, %v1155
  %v1478 = vadd.f32 %v1477, %v1157
  %v1479 = vadd.f32 %v1478, %v1160
  %v1480 = vadd.f32 %v1479, %v1162
  %v1481 = vadd.f32 %v1480, %v1165
  %v1482 = vadd.f32 %v1481, %v1167
  %v1483 = vadd.f32 %v1482, %v1170
  %v1484 = vadd.f32 %v1483, %v1172
  %v1485 = vadd.f32 %v1484, %v1175
  %v1486 = vadd.f32 %v1485, %v1177
  %v1487 = vadd.f32 %v1486, %v1180
  %v1488 = vadd.f32 %v1487, %v1182
  %v1489 = vadd.f32 %v1488, %v1185
  %v1490 = vadd.f32 %v1489, %v1187
  %v1491 = vadd.f32 %v1490, %v1190
  %v1492 = vadd.f32 %v1491, %v1192
  %v1493 = vadd.f32 %v1492, %v1195
  %v1494 = vadd.f32 %v1493, %v1197
  %v1495 = vadd.f32 %v1494, %v1200
  %v1496 = vadd.f32 %v1495, %v1202
  %v1497 = vadd.f32 %v1496, %v1205
  %v1498 = vadd.f32 %v1497, %v1207
  %v1499 = vadd.f32 %v1498, %v1210
  %v1500 = vadd.f32 %v1499, %v1212
  %v1501 = vadd.f32 %v1500, %v1215
  %v1502 = vadd.f32 %v1501, %v1217
  %v1503 = vadd.f32 %v1502, %v1220
  %v1504 = vadd.f32 %v1503, %v1222
  %v1505 = vadd.f32 %v1504, %v1225
  %v1506 = vadd.f32 %v1505, %v1227
  %v1507 = vadd.f32 %v1506, %v1230
  %v1508 = vadd.f32 %v1507, %v1232
  %v1509 = vadd.f32 %v1508, %v1235
  %v1510 = vadd.f32 %v1509, %v1237
  %v1511 = vadd.f32 %v1510, %v1240
  %v1512 = vadd.f32 %v1511, %v1242
  %v1513 = vadd.f32 %v1512, %v1245
  %v1514 = vadd.f32 %v1513, %v1247
  %v1515 = vadd.f32 %v1514, %v1250
  %v1516 = vadd.f32 %v1515, %v1252
  %v1517 = vadd.f32 %v1516, %v1255
  %v1518 = vadd.f32 %v1517, %v1257
  %v1519 = vadd.f32 %v1518, %v1260
  %v1520 = vadd.f32 %v1519, %v1262
  %v1521 = vadd.f32 %v1520, %v1265
  %v1522 = vadd.f32 %v1521, %v1267
  %v1523 = vadd.f32 %v1522, %v1270
  %v1524 = vadd.f32 %v1523, %v1272
  %v1525 = vadd.f32 %v1524, %v1275
  %v1526 = vadd.f32 %v1525, %v1277
  %v1527 = vadd.f32 %v1526, %v1280
  %v1528 = vadd.f32 %v1527, %v1282
  %v1529 = vadd.f32 %v1528, %v1285
  %v1530 = vadd.f32 %v1529, %v1287
  %v1531 = vadd.f32 %v1530, %v1290
  %v1532 = vadd.f32 %v1531, %v1292
  %v1533 = vadd.f32 %v1532, %v1295
  %v1534 = vadd.f32 %v1533, %v1297
  %v1535 = vadd.f32 %v1534, %v1300
  %v1536 = vadd.f32 %v1535, %v1302
  %v1537 = vadd.f32 %v1536, %v1305
  %v1538 = vadd.f32 %v1537, %v1307
  %v1539 = vadd.f32 %v1538, %v1310
  %v1540 = vadd.f32 %v1539, %v1312
  %v1541 = vadd.f32 %v1540, %v1315
  %v1542 = vadd.f32 %v1541, %v1317
  %v1543 = vadd.f32 %v1542, %v1320
  %v1544 = vadd.f32 %v1543, %v1322
  %v1545 = vadd.f32 %v1544, %v1325
  %v1546 = vadd.f32 %v1545, %v1327
  %v1547 = vadd.f32 %v1546, %v1330
  %v1548 = vadd.f32 %v1547, %v1332
  %v1549 = vadd.f32 %v1548, %v1335
  %v1550 = vadd.f32 %v1549, %v1337
  %v1551 = vadd.f32 %v1550, %v1340
  %v1552 = vadd.f32 %v1551, %v1342
  %v1553 = vadd.f32 %v1552, %v1345
  %v1554 = vadd.f32 %v1553, %v1347
  %v1555 = vadd.f32 %v1554, %v1350
  %v1556 = vadd.f32 %v1555, %v1352
  %v1557 = vadd.f32 %v1556, %v1355
  %v1558 = vadd.f32 %v1557, %v1357
  %v1559 = vadd.f32 %v1558, %v1360
  %v1560 = vadd.f32 %v1559, %v1362
  %v1561 = vrot.slane %v1560, 4
  %v1562 = vadd.f32 %v1560, %v1561
  %v1563 = vrot.slane %v1562, 2
  %v1564 = vadd.f32 %v1562, %v1563
  %v1565 = vrot.slane %v1564, 1
  %v1566 = vadd.f32 %v1564, %v1565
  %v1567 = vrcp.pop 1568.0
  %v1568 = vmul.f32 1568.0, %v1567
  %v1569 = vsub.f32 1.0, %v1568
  %v1570 = vmul.f32 %v1567, %v1569
  %v1571 = vadd.f32 %v1567, %v1570
  %vm1572 = vweird.f32 %v1567
  %v1573 = vsel %vm1572, %v1567, %v1571
  %v1574 = vmul.f32 %v1566, %v1573
  %v1575 = vsub.f32 %v875, %v1574
  %v1576 = vsub.f32 %v877, %v1574
  %v1577 = vsub.f32 %v880, %v1574
  %v1578 = vsub.f32 %v882, %v1574
  %v1579 = vsub.f32 %v885, %v1574
  %v1580 = vsub.f32 %v887, %v1574
  %v1581 = vsub.f32 %v890, %v1574
  %v1582 = vsub.f32 %v892, %v1574
  %v1583 = vsub.f32 %v895, %v1574
  %v1584 = vsub.f32 %v897, %v1574
  %v1585 = vsub.f32 %v900, %v1574
  %v1586 = vsub.f32 %v902, %v1574
  %v1587 = vsub.f32 %v905, %v1574
  %v1588 = vsub.f32 %v907, %v1574
  %v1589 = vsub.f32 %v910, %v1574
  %v1590 = vsub.f32 %v912, %v1574
  %v1591 = vsub.f32 %v915, %v1574
  %v1592 = vsub.f32 %v917, %v1574
  %v1593 = vsub.f32 %v920, %v1574
  %v1594 = vsub.f32 %v922, %v1574
  %v1595 = vsub.f32 %v925, %v1574
  %v1596 = vsub.f32 %v927, %v1574
  %v1597 = vsub.f32 %v930, %v1574
  %v1598 = vsub.f32 %v932, %v1574
  %v1599 = vsub.f32 %v935, %v1574
  %v1600 = vsub.f32 %v937, %v1574
  %v1601 = vsub.f32 %v940, %v1574
  %v1602 = vsub.f32 %v942, %v1574
  %v1603 = vsub.f32 %v945, %v1574
  %v1604 = vsub.f32 %v947, %v1574
  %v1605 = vsub.f32 %v950, %v1574
  %v1606 = vsub.f32 %v952, %v1574
  %v1607 = vsub.f32 %v955, %v1574
  %v1608 = vsub.f32 %v957, %v1574
  %v1609 = vsub.f32 %v960, %v1574
  %v1610 = vsub.f32 %v962, %v1574
  %v1611 = vsub.f32 %v965, %v1574
  %v1612 = vsub.f32 %v967, %v1574
  %v1613 = vsub.f32 %v970, %v1574
  %v1614 = vsub.f32 %v972, %v1574
  %v1615 = vsub.f32 %v975, %v1574
  %v1616 = vsub.f32 %v977, %v1574
  %v1617 = vsub.f32 %v980, %v1574
  %v1618 = vsub.f32 %v982, %v1574
  %v1619 = vsub.f32 %v985, %v1574
  %v1620 = vsub.f32 %v987, %v1574
  %v1621 = vsub.f32 %v990, %v1574
  %v1622 = vsub.f32 %v992, %v1574
  %v1623 = vsub.f32 %v995, %v1574
  %v1624 = vsub.f32 %v997, %v1574
  %v1625 = vsub.f32 %v1000, %v1574
  %v1626 = vsub.f32 %v1002, %v1574
  %v1627 = vsub.f32 %v1005, %v1574
  %v1628 = vsub.f32 %v1007, %v1574
  %v1629 = vsub.f32 %v1010, %v1574
  %v1630 = vsub.f32 %v1012, %v1574
  %v1631 = vsub.f32 %v1015, %v1574
  %v1632 = vsub.f32 %v1017, %v1574
  %v1633 = vsub.f32 %v1020, %v1574
  %v1634 = vsub.f32 %v1022, %v1574
  %v1635 = vsub.f32 %v1025, %v1574
  %v1636 = vsub.f32 %v1027, %v1574
  %v1637 = vsub.f32 %v1030, %v1574
  %v1638 = vsub.f32 %v1032, %v1574
  %v1639 = vsub.f32 %v1035, %v1574
  %v1640 = vsub.f32 %v1037, %v1574
  %v1641 = vsub.f32 %v1040, %v1574
  %v1642 = vsub.f32 %v1042, %v1574
  %v1643 = vsub.f32 %v1045, %v1574
  %v1644 = vsub.f32 %v1047, %v1574
  %v1645 = vsub.f32 %v1050, %v1574
  %v1646 = vsub.f32 %v1052, %v1574
  %v1647 = vsub.f32 %v1055, %v1574
  %v1648 = vsub.f32 %v1057, %v1574
  %v1649 = vsub.f32 %v1060, %v1574
  %v1650 = vsub.f32 %v1062, %v1574
  %v1651 = vsub.f32 %v1065, %v1574
  %v1652 = vsub.f32 %v1067, %v1574
  %v1653 = vsub.f32 %v1070, %v1574
  %v1654 = vsub.f32 %v1072, %v1574
  %v1655 = vsub.f32 %v1075, %v1574
  %v1656 = vsub.f32 %v1077, %v1574
  %v1657 = vsub.f32 %v1080, %v1574
  %v1658 = vsub.f32 %v1082, %v1574
  %v1659 = vsub.f32 %v1085, %v1574
  %v1660 = vsub.f32 %v1087, %v1574
  %v1661 = vsub.f32 %v1090, %v1574
  %v1662 = vsub.f32 %v1092, %v1574
  %v1663 = vsub.f32 %v1095, %v1574
  %v1664 = vsub.f32 %v1097, %v1574
  %v1665 = vsub.f32 %v1100, %v1574
  %v1666 = vsub.f32 %v1102, %v1574
  %v1667 = vsub.f32 %v1105, %v1574
  %v1668 = vsub.f32 %v1107, %v1574
  %v1669 = vsub.f32 %v1110, %v1574
  %v1670 = vsub.f32 %v1112, %v1574
  %v1671 = vsub.f32 %v1115, %v1574
  %v1672 = vsub.f32 %v1117, %v1574
  %v1673 = vsub.f32 %v1120, %v1574
  %v1674 = vsub.f32 %v1122, %v1574
  %v1675 = vsub.f32 %v1125, %v1574
  %v1676 = vsub.f32 %v1127, %v1574
  %v1677 = vsub.f32 %v1130, %v1574
  %v1678 = vsub.f32 %v1132, %v1574
  %v1679 = vsub.f32 %v1135, %v1574
  %v1680 = vsub.f32 %v1137, %v1574
  %v1681 = vsub.f32 %v1140, %v1574
  %v1682 = vsub.f32 %v1142, %v1574
  %v1683 = vsub.f32 %v1145, %v1574
  %v1684 = vsub.f32 %v1147, %v1574
  %v1685 = vsub.f32 %v1150, %v1574
  %v1686 = vsub.f32 %v1152, %v1574
  %v1687 = vsub.f32 %v1155, %v1574
  %v1688 = vsub.f32 %v1157, %v1574
  %v1689 = vsub.f32 %v1160, %v1574
  %v1690 = vsub.f32 %v1162, %v1574
  %v1691 = vsub.f32 %v1165, %v1574
  %v1692 = vsub.f32 %v1167, %v1574
  %v1693 = vsub.f32 %v1170, %v1574
  %v1694 = vsub.f32 %v1172, %v1574
  %v1695 = vsub.f32 %v1175, %v1574
  %v1696 = vsub.f32 %v1177, %v1574
  %v1697 = vsub.f32 %v1180, %v1574
  %v1698 = vsub.f32 %v1182, %v1574
  %v1699 = vsub.f32 %v1185, %v1574
  %v1700 = vsub.f32 %v1187, %v1574
  %v1701 = vsub.f32 %v1190, %v1574
  %v1702 = vsub.f32 %v1192, %v1574
  %v1703 = vsub.f32 %v1195, %v1574
  %v1704 = vsub.f32 %v1197, %v1574
  %v1705 = vsub.f32 %v1200, %v1574
  %v1706 = vsub.f32 %v1202, %v1574
  %v1707 = vsub.f32 %v1205, %v1574
  %v1708 = vsub.f32 %v1207, %v1574
  %v1709 = vsub.f32 %v1210, %v1574
  %v1710 = vsub.f32 %v1212, %v1574
  %v1711 = vsub.f32 %v1215, %v1574
  %v1712 = vsub.f32 %v1217, %v1574
  %v1713 = vsub.f32 %v1220, %v1574
  %v1714 = vsub.f32 %v1222, %v1574
  %v1715 = vsub.f32 %v1225, %v1574
  %v1716 = vsub.f32 %v1227, %v1574
  %v1717 = vsub.f32 %v1230, %v1574
  %v1718 = vsub.f32 %v1232, %v1574
  %v1719 = vsub.f32 %v1235, %v1574
  %v1720 = vsub.f32 %v1237, %v1574
  %v1721 = vsub.f32 %v1240, %v1574
  %v1722 = vsub.f32 %v1242, %v1574
  %v1723 = vsub.f32 %v1245, %v1574
  %v1724 = vsub.f32 %v1247, %v1574
  %v1725 = vsub.f32 %v1250, %v1574
  %v1726 = vsub.f32 %v1252, %v1574
  %v1727 = vsub.f32 %v1255, %v1574
  %v1728 = vsub.f32 %v1257, %v1574
  %v1729 = vsub.f32 %v1260, %v1574
  %v1730 = vsub.f32 %v1262, %v1574
  %v1731 = vsub.f32 %v1265, %v1574
  %v1732 = vsub.f32 %v1267, %v1574
  %v1733 = vsub.f32 %v1270, %v1574
  %v1734 = vsub.f32 %v1272, %v1574
  %v1735 = vsub.f32 %v1275, %v1574
  %v1736 = vsub.f32 %v1277, %v1574
  %v1737 = vsub.f32 %v1280, %v1574
  %v1738 = vsub.f32 %v1282, %v1574
  %v1739 = vsub.f32 %v1285, %v1574
  %v1740 = vsub.f32 %v1287, %v1574
  %v1741 = vsub.f32 %v1290, %v1574
  %v1742 = vsub.f32 %v1292, %v1574
  %v1743 = vsub.f32 %v1295, %v1574
  %v1744 = vsub.f32 %v1297, %v1574
  %v1745 = vsub.f32 %v1300, %v1574
  %v1746 = vsub.f32 %v1302, %v1574
  %v1747 = vsub.f32 %v1305, %v1574
  %v1748 = vsub.f32 %v1307, %v1574
  %v1749 = vsub.f32 %v1310, %v1574
  %v1750 = vsub.f32 %v1312, %v1574
  %v1751 = vsub.f32 %v1315, %v1574
  %v1752 = vsub.f32 %v1317, %v1574
  %v1753 = vsub.f32 %v1320, %v1574
  %v1754 = vsub.f32 %v1322, %v1574
  %v1755 = vsub.f32 %v1325, %v1574
  %v1756 = vsub.f32 %v1327, %v1574
  %v1757 = vsub.f32 %v1330, %v1574
  %v1758 = vsub.f32 %v1332, %v1574
  %v1759 = vsub.f32 %v1335, %v1574
  %v1760 = vsub.f32 %v1337, %v1574
  %v1761 = vsub.f32 %v1340, %v1574
  %v1762 = vsub.f32 %v1342, %v1574
  %v1763 = vsub.f32 %v1345, %v1574
  %v1764 = vsub.f32 %v1347, %v1574
  %v1765 = vsub.f32 %v1350, %v1574
  %v1766 = vsub.f32 %v1352, %v1574
  %v1767 = vsub.f32 %v1355, %v1574
  %v1768 = vsub.f32 %v1357, %v1574
  %v1769 = vsub.f32 %v1360, %v1574
  %v1770 = vsub.f32 %v1362, %v1574
  %v1771 = vmul.f32 %v1575, %v1575
  %v1772 = vmul.f32 %v1576, %v1576
  %v1773 = vmul.f32 %v1577, %v1577
  %v1774 = vmul.f32 %v1578, %v1578
  %v1775 = vmul.f32 %v1579, %v1579
  %v1776 = vmul.f32 %v1580, %v1580
  %v1777 = vmul.f32 %v1581, %v1581
  %v1778 = vmul.f32 %v1582, %v1582
  %v1779 = vmul.f32 %v1583, %v1583
  %v1780 = vmul.f32 %v1584, %v1584
  %v1781 = vmul.f32 %v1585, %v1585
  %v1782 = vmul.f32 %v1586, %v1586
  %v1783 = vmul.f32 %v1587, %v1587
  %v1784 = vmul.f32 %v1588, %v1588
  %v1785 = vmul.f32 %v1589, %v1589
  %v1786 = vmul.f32 %v1590, %v1590
  %v1787 = vmul.f32 %v1591, %v1591
  %v1788 = vmul.f32 %v1592, %v1592
  %v1789 = vmul.f32 %v1593, %v1593
  %v1790 = vmul.f32 %v1594, %v1594
  %v1791 = vmul.f32 %v1595, %v1595
  %v1792 = vmul.f32 %v1596, %v1596
  %v1793 = vmul.f32 %v1597, %v1597
  %v1794 = vmul.f32 %v1598, %v1598
  %v1795 = vmul.f32 %v1599, %v1599
  %v1796 = vmul.f32 %v1600, %v1600
  %v1797 = vmul.f32 %v1601, %v1601
  %v1798 = vmul.f32 %v1602, %v1602
  %v1799 = vmul.f32 %v1603, %v1603
  %v1800 = vmul.f32 %v1604, %v1604
  %v1801 = vmul.f32 %v1605, %v1605
  %v1802 = vmul.f32 %v1606, %v1606
  %v1803 = vmul.f32 %v1607, %v1607
  %v1804 = vmul.f32 %v1608, %v1608
  %v1805 = vmul.f32 %v1609, %v1609
  %v1806 = vmul.f32 %v1610, %v1610
  %v1807 = vmul.f32 %v1611, %v1611
  %v1808 = vmul.f32 %v1612, %v1612
  %v1809 = vmul.f32 %v1613, %v1613
  %v1810 = vmul.f32 %v1614, %v1614
  %v1811 = vmul.f32 %v1615, %v1615
  %v1812 = vmul.f32 %v1616, %v1616
  %v1813 = vmul.f32 %v1617, %v1617
  %v1814 = vmul.f32 %v1618, %v1618
  %v1815 = vmul.f32 %v1619, %v1619
  %v1816 = vmul.f32 %v1620, %v1620
  %v1817 = vmul.f32 %v1621, %v1621
  %v1818 = vmul.f32 %v1622, %v1622
  %v1819 = vmul.f32 %v1623, %v1623
  %v1820 = vmul.f32 %v1624, %v1624
  %v1821 = vmul.f32 %v1625, %v1625
  %v1822 = vmul.f32 %v1626, %v1626
  %v1823 = vmul.f32 %v1627, %v1627
  %v1824 = vmul.f32 %v1628, %v1628
  %v1825 = vmul.f32 %v1629, %v1629
  %v1826 = vmul.f32 %v1630, %v1630
  %v1827 = vmul.f32 %v1631, %v1631
  %v1828 = vmul.f32 %v1632, %v1632
  %v1829 = vmul.f32 %v1633, %v1633
  %v1830 = vmul.f32 %v1634, %v1634
  %v1831 = vmul.f32 %v1635, %v1635
  %v1832 = vmul.f32 %v1636, %v1636
  %v1833 = vmul.f32 %v1637, %v1637
  %v1834 = vmul.f32 %v1638, %v1638
  %v1835 = vmul.f32 %v1639, %v1639
  %v1836 = vmul.f32 %v1640, %v1640
  %v1837 = vmul.f32 %v1641, %v1641
  %v1838 = vmul.f32 %v1642, %v1642
  %v1839 = vmul.f32 %v1643, %v1643
  %v1840 = vmul.f32 %v1644, %v1644
  %v1841 = vmul.f32 %v1645, %v1645
  %v1842 = vmul.f32 %v1646, %v1646
  %v1843 = vmul.f32 %v1647, %v1647
  %v1844 = vmul.f32 %v1648, %v1648
  %v1845 = vmul.f32 %v1649, %v1649
  %v1846 = vmul.f32 %v1650, %v1650
  %v1847 = vmul.f32 %v1651, %v1651
  %v1848 = vmul.f32 %v1652, %v1652
  %v1849 = vmul.f32 %v1653, %v1653
  %v1850 = vmul.f32 %v1654, %v1654
  %v1851 = vmul.f32 %v1655, %v1655
  %v1852 = vmul.f32 %v1656, %v1656
  %v1853 = vmul.f32 %v1657, %v1657
  %v1854 = vmul.f32 %v1658, %v1658
  %v1855 = vmul.f32 %v1659, %v1659
  %v1856 = vmul.f32 %v1660, %v1660
  %v1857 = vmul.f32 %v1661, %v1661
  %v1858 = vmul.f32 %v1662, %v1662
  %v1859 = vmul.f32 %v1663, %v1663
  %v1860 = vmul.f32 %v1664, %v1664
  %v1861 = vmul.f32 %v1665, %v1665
  %v1862 = vmul.f32 %v1666, %v1666
  %v1863 = vmul.f32 %v1667, %v1667
  %v1864 = vmul.f32 %v1668, %v1668
  %v1865 = vmul.f32 %v1669, %v1669
  %v1866 = vmul.f32 %v1670, %v1670
  %v1867 = vmul.f32 %v1671, %v1671
  %v1868 = vmul.f32 %v1672, %v1672
  %v1869 = vmul.f32 %v1673, %v1673
  %v1870 = vmul.f32 %v1674, %v1674
  %v1871 = vmul.f32 %v1675, %v1675
  %v1872 = vmul.f32 %v1676, %v1676
  %v1873 = vmul.f32 %v1677, %v1677
  %v1874 = vmul.f32 %v1678, %v1678
  %v1875 = vmul.f32 %v1679, %v1679
  %v1876 = vmul.f32 %v1680, %v1680
  %v1877 = vmul.f32 %v1681, %v1681
  %v1878 = vmul.f32 %v1682, %v1682
  %v1879 = vmul.f32 %v1683, %v1683
  %v1880 = vmul.f32 %v1684, %v1684
  %v1881 = vmul.f32 %v1685, %v1685
  %v1882 = vmul.f32 %v1686, %v1686
  %v1883 = vmul.f32 %v1687, %v1687
  %v1884 = vmul.f32 %v1688, %v1688
  %v1885 = vmul.f32 %v1689, %v1689
  %v1886 = vmul.f32 %v1690, %v1690
  %v1887 = vmul.f32 %v1691, %v1691
  %v1888 = vmul.f32 %v1692, %v1692
  %v1889 = vmul.f32 %v1693, %v1693
  %v1890 = vmul.f32 %v1694, %v1694
  %v1891 = vmul.f32 %v1695, %v1695
  %v1892 = vmul.f32 %v1696, %v1696
  %v1893 = vmul.f32 %v1697, %v1697
  %v1894 = vmul.f32 %v1698, %v1698
  %v1895 = vmul.f32 %v1699, %v1699
  %v1896 = vmul.f32 %v1700, %v1700
  %v1897 = vmul.f32 %v1701, %v1701
  %v1898 = vmul.f32 %v1702, %v1702
  %v1899 = vmul.f32 %v1703, %v1703
  %v1900 = vmul.f32 %v1704, %v1704
  %v1901 = vmul.f32 %v1705, %v1705
  %v1902 = vmul.f32 %v1706, %v1706
  %v1903 = vmul.f32 %v1707, %v1707
  %v1904 = vmul.f32 %v1708, %v1708
  %v1905 = vmul.f32 %v1709, %v1709
  %v1906 = vmul.f32 %v1710, %v1710
  %v1907 = vmul.f32 %v1711, %v1711
  %v1908 = vmul.f32 %v1712, %v1712
  %v1909 = vmul.f32 %v1713, %v1713
  %v1910 = vmul.f32 %v1714, %v1714
  %v1911 = vmul.f32 %v1715, %v1715
  %v1912 = vmul.f32 %v1716, %v1716
  %v1913 = vmul.f32 %v1717, %v1717
  %v1914 = vmul.f32 %v1718, %v1718
  %v1915 = vmul.f32 %v1719, %v1719
  %v1916 = vmul.f32 %v1720, %v1720
  %v1917 = vmul.f32 %v1721, %v1721
  %v1918 = vmul.f32 %v1722, %v1722
  %v1919 = vmul.f32 %v1723, %v1723
  %v1920 = vmul.f32 %v1724, %v1724
  %v1921 = vmul.f32 %v1725, %v1725
  %v1922 = vmul.f32 %v1726, %v1726
  %v1923 = vmul.f32 %v1727, %v1727
  %v1924 = vmul.f32 %v1728, %v1728
  %v1925 = vmul.f32 %v1729, %v1729
  %v1926 = vmul.f32 %v1730, %v1730
  %v1927 = vmul.f32 %v1731, %v1731
  %v1928 = vmul.f32 %v1732, %v1732
  %v1929 = vmul.f32 %v1733, %v1733
  %v1930 = vmul.f32 %v1734, %v1734
  %v1931 = vmul.f32 %v1735, %v1735
  %v1932 = vmul.f32 %v1736, %v1736
  %v1933 = vmul.f32 %v1737, %v1737
  %v1934 = vmul.f32 %v1738, %v1738
  %v1935 = vmul.f32 %v1739, %v1739
  %v1936 = vmul.f32 %v1740, %v1740
  %v1937 = vmul.f32 %v1741, %v1741
  %v1938 = vmul.f32 %v1742, %v1742
  %v1939 = vmul.f32 %v1743, %v1743
  %v1940 = vmul.f32 %v1744, %v1744
  %v1941 = vmul.f32 %v1745, %v1745
  %v1942 = vmul.f32 %v1746, %v1746
  %v1943 = vmul.f32 %v1747, %v1747
  %v1944 = vmul.f32 %v1748, %v1748
  %v1945 = vmul.f32 %v1749, %v1749
  %v1946 = vmul.f32 %v1750, %v1750
  %v1947 = vmul.f32 %v1751, %v1751
  %v1948 = vmul.f32 %v1752, %v1752
  %v1949 = vmul.f32 %v1753, %v1753
  %v1950 = vmul.f32 %v1754, %v1754
  %v1951 = vmul.f32 %v1755, %v1755
  %v1952 = vmul.f32 %v1756, %v1756
  %v1953 = vmul.f32 %v1757, %v1757
  %v1954 = vmul.f32 %v1758, %v1758
  %v1955 = vmul.f32 %v1759, %v1759
  %v1956 = vmul.f32 %v1760, %v1760
  %v1957 = vmul.f32 %v1761, %v1761
  %v1958 = vmul.f32 %v1762, %v1762
  %v1959 = vmul.f32 %v1763, %v1763
  %v1960 = vmul.f32 %v1764, %v1764
  %v1961 = vmul.f32 %v1765, %v1765
  %v1962 = vmul.f32 %v1766, %v1766
  %v1963 = vmul.f32 %v1767, %v1767
  %v1964 = vmul.f32 %v1768, %v1768
  %v1965 = vmul.f32 %v1769, %v1769
  %v1966 = vmul.f32 %v1770, %v1770
  %v1967 = vadd.f32 %v1771, %v1772
  %v1968 = vadd.f32 %v1967, %v1773
  %v1969 = vadd.f32 %v1968, %v1774
  %v1970 = vadd.f32 %v1969, %v1775
  %v1971 = vadd.f32 %v1970, %v1776
  %v1972 = vadd.f32 %v1971, %v1777
  %v1973 = vadd.f32 %v1972, %v1778
  %v1974 = vadd.f32 %v1973, %v1779
  %v1975 = vadd.f32 %v1974, %v1780
  %v1976 = vadd.f32 %v1975, %v1781
  %v1977 = vadd.f32 %v1976, %v1782
  %v1978 = vadd.f32 %v1977, %v1783
  %v1979 = vadd.f32 %v1978, %v1784
  %v1980 = vadd.f32 %v1979, %v1785
  %v1981 = vadd.f32 %v1980, %v1786
  %v1982 = vadd.f32 %v1981, %v1787
  %v1983 = vadd.f32 %v1982, %v1788
  %v1984 = vadd.f32 %v1983, %v1789
  %v1985 = vadd.f32 %v1984, %v1790
  %v1986 = vadd.f32 %v1985, %v1791
  %v1987 = vadd.f32 %v1986, %v1792
  %v1988 = vadd.f32 %v1987, %v1793
  %v1989 = vadd.f32 %v1988, %v1794
  %v1990 = vadd.f32 %v1989, %v1795
  %v1991 = vadd.f32 %v1990, %v1796
  %v1992 = vadd.f32 %v1991, %v1797
  %v1993 = vadd.f32 %v1992, %v1798
  %v1994 = vadd.f32 %v1993, %v1799
  %v1995 = vadd.f32 %v1994, %v1800
  %v1996 = vadd.f32 %v1995, %v1801
  %v1997 = vadd.f32 %v1996, %v1802
  %v1998 = vadd.f32 %v1997, %v1803
  %v1999 = vadd.f32 %v1998, %v1804
  %v2000 = vadd.f32 %v1999, %v1805
  %v2001 = vadd.f32 %v2000, %v1806
  %v2002 = vadd.f32 %v2001, %v1807
  %v2003 = vadd.f32 %v2002, %v1808
  %v2004 = vadd.f32 %v2003, %v1809
  %v2005 = vadd.f32 %v2004, %v1810
  %v2006 = vadd.f32 %v2005, %v1811
  %v2007 = vadd.f32 %v2006, %v1812
  %v2008 = vadd.f32 %v2007, %v1813
  %v2009 = vadd.f32 %v2008, %v1814
  %v2010 = vadd.f32 %v2009, %v1815
  %v2011 = vadd.f32 %v2010, %v1816
  %v2012 = vadd.f32 %v2011, %v1817
  %v2013 = vadd.f32 %v2012, %v1818
  %v2014 = vadd.f32 %v2013, %v1819
  %v2015 = vadd.f32 %v2014, %v1820
  %v2016 = vadd.f32 %v2015, %v1821
  %v2017 = vadd.f32 %v2016, %v1822
  %v2018 = vadd.f32 %v2017, %v1823
  %v2019 = vadd.f32 %v2018, %v1824
  %v2020 = vadd.f32 %v2019, %v1825
  %v2021 = vadd.f32 %v2020, %v1826
  %v2022 = vadd.f32 %v2021, %v1827
  %v2023 = vadd.f32 %v2022, %v1828
  %v2024 = vadd.f32 %v2023, %v1829
  %v2025 = vadd.f32 %v2024, %v1830
  %v2026 = vadd.f32 %v2025, %v1831
  %v2027 = vadd.f32 %v2026, %v1832
  %v2028 = vadd.f32 %v2027, %v1833
  %v2029 = vadd.f32 %v2028, %v1834
  %v2030 = vadd.f32 %v2029, %v1835
  %v2031 = vadd.f32 %v2030, %v1836
  %v2032 = vadd.f32 %v2031, %v1837
  %v2033 = vadd.f32 %v2032, %v1838
  %v2034 = vadd.f32 %v2033, %v1839
  %v2035 = vadd.f32 %v2034, %v1840
  %v2036 = vadd.f32 %v2035, %v1841
  %v2037 = vadd.f32 %v2036, %v1842
  %v2038 = vadd.f32 %v2037, %v1843
  %v2039 = vadd.f32 %v2038, %v1844
  %v2040 = vadd.f32 %v2039, %v1845
  %v2041 = vadd.f32 %v2040, %v1846
  %v2042 = vadd.f32 %v2041, %v1847
  %v2043 = vadd.f32 %v2042, %v1848
  %v2044 = vadd.f32 %v2043, %v1849
  %v2045 = vadd.f32 %v2044, %v1850
  %v2046 = vadd.f32 %v2045, %v1851
  %v2047 = vadd.f32 %v2046, %v1852
  %v2048 = vadd.f32 %v2047, %v1853
  %v2049 = vadd.f32 %v2048, %v1854
  %v2050 = vadd.f32 %v2049, %v1855
  %v2051 = vadd.f32 %v2050, %v1856
  %v2052 = vadd.f32 %v2051, %v1857
  %v2053 = vadd.f32 %v2052, %v1858
  %v2054 = vadd.f32 %v2053, %v1859
  %v2055 = vadd.f32 %v2054, %v1860
  %v2056 = vadd.f32 %v2055, %v1861
  %v2057 = vadd.f32 %v2056, %v1862
  %v2058 = vadd.f32 %v2057, %v1863
  %v2059 = vadd.f32 %v2058, %v1864
  %v2060 = vadd.f32 %v2059, %v1865
  %v2061 = vadd.f32 %v2060, %v1866
  %v2062 = vadd.f32 %v2061, %v1867
  %v2063 = vadd.f32 %v2062, %v1868
  %v2064 = vadd.f32 %v2063, %v1869
  %v2065 = vadd.f32 %v2064, %v1870
  %v2066 = vadd.f32 %v2065, %v1871
  %v2067 = vadd.f32 %v2066, %v1872
  %v2068 = vadd.f32 %v2067, %v1873
  %v2069 = vadd.f32 %v2068, %v1874
  %v2070 = vadd.f32 %v2069, %v1875
  %v2071 = vadd.f32 %v2070, %v1876
  %v2072 = vadd.f32 %v2071, %v1877
  %v2073 = vadd.f32 %v2072, %v1878
  %v2074 = vadd.f32 %v2073, %v1879
  %v2075 = vadd.f32 %v2074, %v1880
  %v2076 = vadd.f32 %v2075, %v1881
  %v2077 = vadd.f32 %v2076, %v1882
  %v2078 = vadd.f32 %v2077, %v1883
  %v2079 = vadd.f32 %v2078, %v1884
  %v2080 = vadd.f32 %v2079, %v1885
  %v2081 = vadd.f32 %v2080, %v1886
  %v2082 = vadd.f32 %v2081, %v1887
  %v2083 = vadd.f32 %v2082, %v1888
  %v2084 = vadd.f32 %v2083, %v1889
  %v2085 = vadd.f32 %v2084, %v1890
  %v2086 = vadd.f32 %v2085, %v1891
  %v2087 = vadd.f32 %v2086, %v1892
  %v2088 = vadd.f32 %v2087, %v1893
  %v2089 = vadd.f32 %v2088, %v1894
  %v2090 = vadd.f32 %v2089, %v1895
  %v2091 = vadd.f32 %v2090, %v1896
  %v2092 = vadd.f32 %v2091, %v1897
  %v2093 = vadd.f32 %v2092, %v1898
  %v2094 = vadd.f32 %v2093, %v1899
  %v2095 = vadd.f32 %v2094, %v1900
  %v2096 = vadd.f32 %v2095, %v1901
  %v2097 = vadd.f32 %v2096, %v1902
  %v2098 = vadd.f32 %v2097, %v1903
  %v2099 = vadd.f32 %v2098, %v1904
  %v2100 = vadd.f32 %v2099, %v1905
  %v2101 = vadd.f32 %v2100, %v1906
  %v2102 = vadd.f32 %v2101, %v1907
  %v2103 = vadd.f32 %v2102, %v1908
  %v2104 = vadd.f32 %v2103, %v1909
  %v2105 = vadd.f32 %v2104, %v1910
  %v2106 = vadd.f32 %v2105, %v1911
  %v2107 = vadd.f32 %v2106, %v1912
  %v2108 = vadd.f32 %v2107, %v1913
  %v2109 = vadd.f32 %v2108, %v1914
  %v2110 = vadd.f32 %v2109, %v1915
  %v2111 = vadd.f32 %v2110, %v1916
  %v2112 = vadd.f32 %v2111, %v1917
  %v2113 = vadd.f32 %v2112, %v1918
  %v2114 = vadd.f32 %v2113, %v1919
  %v2115 = vadd.f32 %v2114, %v1920
  %v2116 = vadd.f32 %v2115, %v1921
  %v2117 = vadd.f32 %v2116, %v1922
  %v2118 = vadd.f32 %v2117, %v1923
  %v2119 = vadd.f32 %v2118, %v1924
  %v2120 = vadd.f32 %v2119, %v1925
  %v2121 = vadd.f32 %v2120, %v1926
  %v2122 = vadd.f32 %v2121, %v1927
  %v2123 = vadd.f32 %v2122, %v1928
  %v2124 = vadd.f32 %v2123, %v1929
  %v2125 = vadd.f32 %v2124, %v1930
  %v2126 = vadd.f32 %v2125, %v1931
  %v2127 = vadd.f32 %v2126, %v1932
  %v2128 = vadd.f32 %v2127, %v1933
  %v2129 = vadd.f32 %v2128, %v1934
  %v2130 = vadd.f32 %v2129, %v1935
  %v2131 = vadd.f32 %v2130, %v1936
  %v2132 = vadd.f32 %v2131, %v1937
  %v2133 = vadd.f32 %v2132, %v1938
  %v2134 = vadd.f32 %v2133, %v1939
  %v2135 = vadd.f32 %v2134, %v1940
  %v2136 = vadd.f32 %v2135, %v1941
  %v2137 = vadd.f32 %v2136, %v1942
  %v2138 = vadd.f32 %v2137, %v1943
  %v2139 = vadd.f32 %v2138, %v1944
  %v2140 = vadd.f32 %v2139, %v1945
  %v2141 = vadd.f32 %v2140, %v1946
  %v2142 = vadd.f32 %v2141, %v1947
  %v2143 = vadd.f32 %v2142, %v1948
  %v2144 = vadd.f32 %v2143, %v1949
  %v2145 = vadd.f32 %v2144, %v1950
  %v2146 = vadd.f32 %v2145, %v1951
  %v2147 = vadd.f32 %v2146, %v1952
  %v2148 = vadd.f32 %v2147, %v1953
  %v2149 = vadd.f32 %v2148, %v1954
  %v2150 = vadd.f32 %v2149, %v1955
  %v2151 = vadd.f32 %v2150, %v1956
  %v2152 = vadd.f32 %v2151, %v1957
  %v2153 = vadd.f32 %v2152, %v1958
  %v2154 = vadd.f32 %v2153, %v1959
  %v2155 = vadd.f32 %v2154, %v1960
  %v2156 = vadd.f32 %v2155, %v1961
  %v2157 = vadd.f32 %v2156, %v1962
  %v2158 = vadd.f32 %v2157, %v1963
  %v2159 = vadd.f32 %v2158, %v1964
  %v2160 = vadd.f32 %v2159, %v1965
  %v2161 = vadd.f32 %v2160, %v1966
  %v2162 = vrot.slane %v2161, 4
  %v2163 = vadd.f32 %v2161, %v2162
  %v2164 = vrot.slane %v2163, 2
  %v2165 = vadd.f32 %v2163, %v2164
  %v2166 = vrot.slane %v2165, 1
  %v2167 = vadd.f32 %v2165, %v2166
  %v2168 = vmul.f32 %v2167, %v1573
  %v2169 = vadd.f32 %v2168, 1e-05
  %v2170 = vrsqrt.pop %v2169
  %v2171 = vmul.f32 %v2170, %v2169
  %v2172 = vmul.f32 %v2171, %v2170
  %v2173 = vmul.f32 0.5, %v2172
  %v2174 = vsub.f32 1.5, %v2173
  %v2175 = vmul.f32 %v2170, %v2174
  %vm2176 = vweird.f32 %v2169
  %vm2177 = vweird.f32 %v2170
  %vm2178 = vmor %vm2176, %vm2177
  %v2179 = vsel %vm2178, %v2170, %v2175
  %v2180 = vmul.f32 %v1364, %v2179
  %v2182 = vperm.slane %v2180, 0
  %v2184 = vmul.f32 %v875, %v2182
  %v2185 = vmul.f32 %v877, %v2182
  %v2186 = vmul.f32 %v880, %v2182
  %v2187 = vmul.f32 %v882, %v2182
  %v2188 = vmul.f32 %v885, %v2182
  %v2189 = vmul.f32 %v887, %v2182
  %v2190 = vmul.f32 %v890, %v2182
  %v2191 = vmul.f32 %v892, %v2182
  %v2192 = vmul.f32 %v895, %v2182
  %v2193 = vmul.f32 %v897, %v2182
  %v2194 = vmul.f32 %v900, %v2182
  %v2195 = vmul.f32 %v902, %v2182
  %v2196 = vmul.f32 %v905, %v2182
  %v2197 = vmul.f32 %v907, %v2182
  %v2198 = vmul.f32 %v910, %v2182
  %v2199 = vmul.f32 %v912, %v2182
  %v2200 = vmul.f32 %v915, %v2182
  %v2201 = vmul.f32 %v917, %v2182
  %v2202 = vmul.f32 %v920, %v2182
  %v2203 = vmul.f32 %v922, %v2182
  %v2204 = vmul.f32 %v925, %v2182
  %v2205 = vmul.f32 %v927, %v2182
  %v2206 = vmul.f32 %v930, %v2182
  %v2207 = vmul.f32 %v932, %v2182
  %v2208 = vmul.f32 %v935, %v2182
  %v2209 = vmul.f32 %v937, %v2182
  %v2210 = vmul.f32 %v940, %v2182
  %v2211 = vmul.f32 %v942, %v2182
  %v2212 = vmul.f32 %v945, %v2182
  %v2213 = vmul.f32 %v947, %v2182
  %v2214 = vmul.f32 %v950, %v2182
  %v2215 = vmul.f32 %v952, %v2182
  %v2216 = vmul.f32 %v955, %v2182
  %v2217 = vmul.f32 %v957, %v2182
  %v2218 = vmul.f32 %v960, %v2182
  %v2219 = vmul.f32 %v962, %v2182
  %v2220 = vmul.f32 %v965, %v2182
  %v2221 = vmul.f32 %v967, %v2182
  %v2222 = vmul.f32 %v970, %v2182
  %v2223 = vmul.f32 %v972, %v2182
  %v2224 = vmul.f32 %v975, %v2182
  %v2225 = vmul.f32 %v977, %v2182
  %v2226 = vmul.f32 %v980, %v2182
  %v2227 = vmul.f32 %v982, %v2182
  %v2228 = vmul.f32 %v985, %v2182
  %v2229 = vmul.f32 %v987, %v2182
  %v2230 = vmul.f32 %v990, %v2182
  %v2231 = vmul.f32 %v992, %v2182
  %v2232 = vmul.f32 %v995, %v2182
  %v2233 = vmul.f32 %v997, %v2182
  %v2234 = vmul.f32 %v1000, %v2182
  %v2235 = vmul.f32 %v1002, %v2182
  %v2236 = vmul.f32 %v1005, %v2182
  %v2237 = vmul.f32 %v1007, %v2182
  %v2238 = vmul.f32 %v1010, %v2182
  %v2239 = vmul.f32 %v1012, %v2182
  %v2240 = vmul.f32 %v1015, %v2182
  %v2241 = vmul.f32 %v1017, %v2182
  %v2242 = vmul.f32 %v1020, %v2182
  %v2243 = vmul.f32 %v1022, %v2182
  %v2244 = vmul.f32 %v1025, %v2182
  %v2245 = vmul.f32 %v1027, %v2182
  %v2246 = vmul.f32 %v1030, %v2182
  %v2247 = vmul.f32 %v1032, %v2182
  %v2248 = vmul.f32 %v1035, %v2182
  %v2249 = vmul.f32 %v1037, %v2182
  %v2250 = vmul.f32 %v1040, %v2182
  %v2251 = vmul.f32 %v1042, %v2182
  %v2252 = vmul.f32 %v1045, %v2182
  %v2253 = vmul.f32 %v1047, %v2182
  %v2254 = vmul.f32 %v1050, %v2182
  %v2255 = vmul.f32 %v1052, %v2182
  %v2256 = vmul.f32 %v1055, %v2182
  %v2257 = vmul.f32 %v1057, %v2182
  %v2258 = vmul.f32 %v1060, %v2182
  %v2259 = vmul.f32 %v1062, %v2182
  %v2260 = vmul.f32 %v1065, %v2182
  %v2261 = vmul.f32 %v1067, %v2182
  %v2262 = vmul.f32 %v1070, %v2182
  %v2263 = vmul.f32 %v1072, %v2182
  %v2264 = vmul.f32 %v1075, %v2182
  %v2265 = vmul.f32 %v1077, %v2182
  %v2266 = vmul.f32 %v1080, %v2182
  %v2267 = vmul.f32 %v1082, %v2182
  %v2268 = vmul.f32 %v1085, %v2182
  %v2269 = vmul.f32 %v1087, %v2182
  %v2270 = vmul.f32 %v1090, %v2182
  %v2271 = vmul.f32 %v1092, %v2182
  %v2272 = vmul.f32 %v1095, %v2182
  %v2273 = vmul.f32 %v1097, %v2182
  %v2274 = vmul.f32 %v1100, %v2182
  %v2275 = vmul.f32 %v1102, %v2182
  %v2276 = vmul.f32 %v1105, %v2182
  %v2277 = vmul.f32 %v1107, %v2182
  %v2278 = vmul.f32 %v1110, %v2182
  %v2279 = vmul.f32 %v1112, %v2182
  %v2280 = vmul.f32 %v1115, %v2182
  %v2281 = vmul.f32 %v1117, %v2182
  %v2282 = vmul.f32 %v1120, %v2182
  %v2283 = vmul.f32 %v1122, %v2182
  %v2284 = vmul.f32 %v1125, %v2182
  %v2285 = vmul.f32 %v1127, %v2182
  %v2286 = vmul.f32 %v1130, %v2182
  %v2287 = vmul.f32 %v1132, %v2182
  %v2288 = vmul.f32 %v1135, %v2182
  %v2289 = vmul.f32 %v1137, %v2182
  %v2290 = vmul.f32 %v1140, %v2182
  %v2291 = vmul.f32 %v1142, %v2182
  %v2292 = vmul.f32 %v1145, %v2182
  %v2293 = vmul.f32 %v1147, %v2182
  %v2294 = vmul.f32 %v1150, %v2182
  %v2295 = vmul.f32 %v1152, %v2182
  %v2296 = vmul.f32 %v1155, %v2182
  %v2297 = vmul.f32 %v1157, %v2182
  %v2298 = vmul.f32 %v1160, %v2182
  %v2299 = vmul.f32 %v1162, %v2182
  %v2300 = vmul.f32 %v1165, %v2182
  %v2301 = vmul.f32 %v1167, %v2182
  %v2302 = vmul.f32 %v1170, %v2182
  %v2303 = vmul.f32 %v1172, %v2182
  %v2304 = vmul.f32 %v1175, %v2182
  %v2305 = vmul.f32 %v1177, %v2182
  %v2306 = vmul.f32 %v1180, %v2182
  %v2307 = vmul.f32 %v1182, %v2182
  %v2308 = vmul.f32 %v1185, %v2182
  %v2309 = vmul.f32 %v1187, %v2182
  %v2310 = vmul.f32 %v1190, %v2182
  %v2311 = vmul.f32 %v1192, %v2182
  %v2312 = vmul.f32 %v1195, %v2182
  %v2313 = vmul.f32 %v1197, %v2182
  %v2314 = vmul.f32 %v1200, %v2182
  %v2315 = vmul.f32 %v1202, %v2182
  %v2316 = vmul.f32 %v1205, %v2182
  %v2317 = vmul.f32 %v1207, %v2182
  %v2318 = vmul.f32 %v1210, %v2182
  %v2319 = vmul.f32 %v1212, %v2182
  %v2320 = vmul.f32 %v1215, %v2182
  %v2321 = vmul.f32 %v1217, %v2182
  %v2322 = vmul.f32 %v1220, %v2182
  %v2323 = vmul.f32 %v1222, %v2182
  %v2324 = vmul.f32 %v1225, %v2182
  %v2325 = vmul.f32 %v1227, %v2182
  %v2326 = vmul.f32 %v1230, %v2182
  %v2327 = vmul.f32 %v1232, %v2182
  %v2328 = vmul.f32 %v1235, %v2182
  %v2329 = vmul.f32 %v1237, %v2182
  %v2330 = vmul.f32 %v1240, %v2182
  %v2331 = vmul.f32 %v1242, %v2182
  %v2332 = vmul.f32 %v1245, %v2182
  %v2333 = vmul.f32 %v1247, %v2182
  %v2334 = vmul.f32 %v1250, %v2182
  %v2335 = vmul.f32 %v1252, %v2182
  %v2336 = vmul.f32 %v1255, %v2182
  %v2337 = vmul.f32 %v1257, %v2182
  %v2338 = vmul.f32 %v1260, %v2182
  %v2339 = vmul.f32 %v1262, %v2182
  %v2340 = vmul.f32 %v1265, %v2182
  %v2341 = vmul.f32 %v1267, %v2182
  %v2342 = vmul.f32 %v1270, %v2182
  %v2343 = vmul.f32 %v1272, %v2182
  %v2344 = vmul.f32 %v1275, %v2182
  %v2345 = vmul.f32 %v1277, %v2182
  %v2346 = vmul.f32 %v1280, %v2182
  %v2347 = vmul.f32 %v1282, %v2182
  %v2348 = vmul.f32 %v1285, %v2182
  %v2349 = vmul.f32 %v1287, %v2182
  %v2350 = vmul.f32 %v1290, %v2182
  %v2351 = vmul.f32 %v1292, %v2182
  %v2352 = vmul.f32 %v1295, %v2182
  %v2353 = vmul.f32 %v1297, %v2182
  %v2354 = vmul.f32 %v1300, %v2182
  %v2355 = vmul.f32 %v1302, %v2182
  %v2356 = vmul.f32 %v1305, %v2182
  %v2357 = vmul.f32 %v1307, %v2182
  %v2358 = vmul.f32 %v1310, %v2182
  %v2359 = vmul.f32 %v1312, %v2182
  %v2360 = vmul.f32 %v1315, %v2182
  %v2361 = vmul.f32 %v1317, %v2182
  %v2362 = vmul.f32 %v1320, %v2182
  %v2363 = vmul.f32 %v1322, %v2182
  %v2364 = vmul.f32 %v1325, %v2182
  %v2365 = vmul.f32 %v1327, %v2182
  %v2366 = vmul.f32 %v1330, %v2182
  %v2367 = vmul.f32 %v1332, %v2182
  %v2368 = vmul.f32 %v1335, %v2182
  %v2369 = vmul.f32 %v1337, %v2182
  %v2370 = vmul.f32 %v1340, %v2182
  %v2371 = vmul.f32 %v1342, %v2182
  %v2372 = vmul.f32 %v1345, %v2182
  %v2373 = vmul.f32 %v1347, %v2182
  %v2374 = vmul.f32 %v1350, %v2182
  %v2375 = vmul.f32 %v1352, %v2182
  %v2376 = vmul.f32 %v1355, %v2182
  %v2377 = vmul.f32 %v1357, %v2182
  %v2378 = vmul.f32 %v1360, %v2182
  %v2379 = vmul.f32 %v1362, %v2182
  %v2380 = vmul.f32 %v1574, %v2180
  %v2381 = vsub.f32 %v1365, %v2380
  %v2383 = vperm.slane %v2381, 0
  %v2385 = vadd.f32 %v2184, %v2383
  %v2386 = vadd.f32 %v2185, %v2383
  %v2387 = vadd.f32 %v2186, %v2383
  %v2388 = vadd.f32 %v2187, %v2383
  %v2389 = vadd.f32 %v2188, %v2383
  %v2390 = vadd.f32 %v2189, %v2383
  %v2391 = vadd.f32 %v2190, %v2383
  %v2392 = vadd.f32 %v2191, %v2383
  %v2393 = vadd.f32 %v2192, %v2383
  %v2394 = vadd.f32 %v2193, %v2383
  %v2395 = vadd.f32 %v2194, %v2383
  %v2396 = vadd.f32 %v2195, %v2383
  %v2397 = vadd.f32 %v2196, %v2383
  %v2398 = vadd.f32 %v2197, %v2383
  %v2399 = vadd.f32 %v2198, %v2383
  %v2400 = vadd.f32 %v2199, %v2383
  %v2401 = vadd.f32 %v2200, %v2383
  %v2402 = vadd.f32 %v2201, %v2383
  %v2403 = vadd.f32 %v2202, %v2383
  %v2404 = vadd.f32 %v2203, %v2383
  %v2405 = vadd.f32 %v2204, %v2383
  %v2406 = vadd.f32 %v2205, %v2383
  %v2407 = vadd.f32 %v2206, %v2383
  %v2408 = vadd.f32 %v2207, %v2383
  %v2409 = vadd.f32 %v2208, %v2383
  %v2410 = vadd.f32 %v2209, %v2383
  %v2411 = vadd.f32 %v2210, %v2383
  %v2412 = vadd.f32 %v2211, %v2383
  %v2413 = vadd.f32 %v2212, %v2383
  %v2414 = vadd.f32 %v2213, %v2383
  %v2415 = vadd.f32 %v2214, %v2383
  %v2416 = vadd.f32 %v2215, %v2383
  %v2417 = vadd.f32 %v2216, %v2383
  %v2418 = vadd.f32 %v2217, %v2383
  %v2419 = vadd.f32 %v2218, %v2383
  %v2420 = vadd.f32 %v2219, %v2383
  %v2421 = vadd.f32 %v2220, %v2383
  %v2422 = vadd.f32 %v2221, %v2383
  %v2423 = vadd.f32 %v2222, %v2383
  %v2424 = vadd.f32 %v2223, %v2383
  %v2425 = vadd.f32 %v2224, %v2383
  %v2426 = vadd.f32 %v2225, %v2383
  %v2427 = vadd.f32 %v2226, %v2383
  %v2428 = vadd.f32 %v2227, %v2383
  %v2429 = vadd.f32 %v2228, %v2383
  %v2430 = vadd.f32 %v2229, %v2383
  %v2431 = vadd.f32 %v2230, %v2383
  %v2432 = vadd.f32 %v2231, %v2383
  %v2433 = vadd.f32 %v2232, %v2383
  %v2434 = vadd.f32 %v2233, %v2383
  %v2435 = vadd.f32 %v2234, %v2383
  %v2436 = vadd.f32 %v2235, %v2383
  %v2437 = vadd.f32 %v2236, %v2383
  %v2438 = vadd.f32 %v2237, %v2383
  %v2439 = vadd.f32 %v2238, %v2383
  %v2440 = vadd.f32 %v2239, %v2383
  %v2441 = vadd.f32 %v2240, %v2383
  %v2442 = vadd.f32 %v2241, %v2383
  %v2443 = vadd.f32 %v2242, %v2383
  %v2444 = vadd.f32 %v2243, %v2383
  %v2445 = vadd.f32 %v2244, %v2383
  %v2446 = vadd.f32 %v2245, %v2383
  %v2447 = vadd.f32 %v2246, %v2383
  %v2448 = vadd.f32 %v2247, %v2383
  %v2449 = vadd.f32 %v2248, %v2383
  %v2450 = vadd.f32 %v2249, %v2383
  %v2451 = vadd.f32 %v2250, %v2383
  %v2452 = vadd.f32 %v2251, %v2383
  %v2453 = vadd.f32 %v2252, %v2383
  %v2454 = vadd.f32 %v2253, %v2383
  %v2455 = vadd.f32 %v2254, %v2383
  %v2456 = vadd.f32 %v2255, %v2383
  %v2457 = vadd.f32 %v2256, %v2383
  %v2458 = vadd.f32 %v2257, %v2383
  %v2459 = vadd.f32 %v2258, %v2383
  %v2460 = vadd.f32 %v2259, %v2383
  %v2461 = vadd.f32 %v2260, %v2383
  %v2462 = vadd.f32 %v2261, %v2383
  %v2463 = vadd.f32 %v2262, %v2383
  %v2464 = vadd.f32 %v2263, %v2383
  %v2465 = vadd.f32 %v2264, %v2383
  %v2466 = vadd.f32 %v2265, %v2383
  %v2467 = vadd.f32 %v2266, %v2383
  %v2468 = vadd.f32 %v2267, %v2383
  %v2469 = vadd.f32 %v2268, %v2383
  %v2470 = vadd.f32 %v2269, %v2383
  %v2471 = vadd.f32 %v2270, %v2383
  %v2472 = vadd.f32 %v2271, %v2383
  %v2473 = vadd.f32 %v2272, %v2383
  %v2474 = vadd.f32 %v2273, %v2383
  %v2475 = vadd.f32 %v2274, %v2383
  %v2476 = vadd.f32 %v2275, %v2383
  %v2477 = vadd.f32 %v2276, %v2383
  %v2478 = vadd.f32 %v2277, %v2383
  %v2479 = vadd.f32 %v2278, %v2383
  %v2480 = vadd.f32 %v2279, %v2383
  %v2481 = vadd.f32 %v2280, %v2383
  %v2482 = vadd.f32 %v2281, %v2383
  %v2483 = vadd.f32 %v2282, %v2383
  %v2484 = vadd.f32 %v2283, %v2383
  %v2485 = vadd.f32 %v2284, %v2383
  %v2486 = vadd.f32 %v2285, %v2383
  %v2487 = vadd.f32 %v2286, %v2383
  %v2488 = vadd.f32 %v2287, %v2383
  %v2489 = vadd.f32 %v2288, %v2383
  %v2490 = vadd.f32 %v2289, %v2383
  %v2491 = vadd.f32 %v2290, %v2383
  %v2492 = vadd.f32 %v2291, %v2383
  %v2493 = vadd.f32 %v2292, %v2383
  %v2494 = vadd.f32 %v2293, %v2383
  %v2495 = vadd.f32 %v2294, %v2383
  %v2496 = vadd.f32 %v2295, %v2383
  %v2497 = vadd.f32 %v2296, %v2383
  %v2498 = vadd.f32 %v2297, %v2383
  %v2499 = vadd.f32 %v2298, %v2383
  %v2500 = vadd.f32 %v2299, %v2383
  %v2501 = vadd.f32 %v2300, %v2383
  %v2502 = vadd.f32 %v2301, %v2383
  %v2503 = vadd.f32 %v2302, %v2383
  %v2504 = vadd.f32 %v2303, %v2383
  %v2505 = vadd.f32 %v2304, %v2383
  %v2506 = vadd.f32 %v2305, %v2383
  %v2507 = vadd.f32 %v2306, %v2383
  %v2508 = vadd.f32 %v2307, %v2383
  %v2509 = vadd.f32 %v2308, %v2383
  %v2510 = vadd.f32 %v2309, %v2383
  %v2511 = vadd.f32 %v2310, %v2383
  %v2512 = vadd.f32 %v2311, %v2383
  %v2513 = vadd.f32 %v2312, %v2383
  %v2514 = vadd.f32 %v2313, %v2383
  %v2515 = vadd.f32 %v2314, %v2383
  %v2516 = vadd.f32 %v2315, %v2383
  %v2517 = vadd.f32 %v2316, %v2383
  %v2518 = vadd.f32 %v2317, %v2383
  %v2519 = vadd.f32 %v2318, %v2383
  %v2520 = vadd.f32 %v2319, %v2383
  %v2521 = vadd.f32 %v2320, %v2383
  %v2522 = vadd.f32 %v2321, %v2383
  %v2523 = vadd.f32 %v2322, %v2383
  %v2524 = vadd.f32 %v2323, %v2383
  %v2525 = vadd.f32 %v2324, %v2383
  %v2526 = vadd.f32 %v2325, %v2383
  %v2527 = vadd.f32 %v2326, %v2383
  %v2528 = vadd.f32 %v2327, %v2383
  %v2529 = vadd.f32 %v2328, %v2383
  %v2530 = vadd.f32 %v2329, %v2383
  %v2531 = vadd.f32 %v2330, %v2383
  %v2532 = vadd.f32 %v2331, %v2383
  %v2533 = vadd.f32 %v2332, %v2383
  %v2534 = vadd.f32 %v2333, %v2383
  %v2535 = vadd.f32 %v2334, %v2383
  %v2536 = vadd.f32 %v2335, %v2383
  %v2537 = vadd.f32 %v2336, %v2383
  %v2538 = vadd.f32 %v2337, %v2383
  %v2539 = vadd.f32 %v2338, %v2383
  %v2540 = vadd.f32 %v2339, %v2383
  %v2541 = vadd.f32 %v2340, %v2383
  %v2542 = vadd.f32 %v2341, %v2383
  %v2543 = vadd.f32 %v2342, %v2383
  %v2544 = vadd.f32 %v2343, %v2383
  %v2545 = vadd.f32 %v2344, %v2383
  %v2546 = vadd.f32 %v2345, %v2383
  %v2547 = vadd.f32 %v2346, %v2383
  %v2548 = vadd.f32 %v2347, %v2383
  %v2549 = vadd.f32 %v2348, %v2383
  %v2550 = vadd.f32 %v2349, %v2383
  %v2551 = vadd.f32 %v2350, %v2383
  %v2552 = vadd.f32 %v2351, %v2383
  %v2553 = vadd.f32 %v2352, %v2383
  %v2554 = vadd.f32 %v2353, %v2383
  %v2555 = vadd.f32 %v2354, %v2383
  %v2556 = vadd.f32 %v2355, %v2383
  %v2557 = vadd.f32 %v2356, %v2383
  %v2558 = vadd.f32 %v2357, %v2383
  %v2559 = vadd.f32 %v2358, %v2383
  %v2560 = vadd.f32 %v2359, %v2383
  %v2561 = vadd.f32 %v2360, %v2383
  %v2562 = vadd.f32 %v2361, %v2383
  %v2563 = vadd.f32 %v2362, %v2383
  %v2564 = vadd.f32 %v2363, %v2383
  %v2565 = vadd.f32 %v2364, %v2383
  %v2566 = vadd.f32 %v2365, %v2383
  %v2567 = vadd.f32 %v2366, %v2383
  %v2568 = vadd.f32 %v2367, %v2383
  %v2569 = vadd.f32 %v2368, %v2383
  %v2570 = vadd.f32 %v2369, %v2383
  %v2571 = vadd.f32 %v2370, %v2383
  %v2572 = vadd.f32 %v2371, %v2383
  %v2573 = vadd.f32 %v2372, %v2383
  %v2574 = vadd.f32 %v2373, %v2383
  %v2575 = vadd.f32 %v2374, %v2383
  %v2576 = vadd.f32 %v2375, %v2383
  %v2577 = vadd.f32 %v2376, %v2383
  %v2578 = vadd.f32 %v2377, %v2383
  %v2579 = vadd.f32 %v2378, %v2383
  %v2580 = vadd.f32 %v2379, %v2383
  %v2581 = vmax.f32 %v2385, 0.0
  %v2582 = vmax.f32 %v2386, 0.0
  %v2583 = vmax.f32 %v2387, 0.0
  %v2584 = vmax.f32 %v2388, 0.0
  %v2585 = vmax.f32 %v2389, 0.0
  %v2586 = vmax.f32 %v2390, 0.0
  %v2587 = vmax.f32 %v2391, 0.0
  %v2588 = vmax.f32 %v2392, 0.0
  %v2589 = vmax.f32 %v2393, 0.0
  %v2590 = vmax.f32 %v2394, 0.0
  %v2591 = vmax.f32 %v2395, 0.0
  %v2592 = vmax.f32 %v2396, 0.0
  %v2593 = vmax.f32 %v2397, 0.0
  %v2594 = vmax.f32 %v2398, 0.0
  %v2595 = vmax.f32 %v2399, 0.0
  %v2596 = vmax.f32 %v2400, 0.0
  %v2597 = vmax.f32 %v2401, 0.0
  %v2598 = vmax.f32 %v2402, 0.0
  %v2599 = vmax.f32 %v2403, 0.0
  %v2600 = vmax.f32 %v2404, 0.0
  %v2601 = vmax.f32 %v2405, 0.0
  %v2602 = vmax.f32 %v2406, 0.0
  %v2603 = vmax.f32 %v2407, 0.0
  %v2604 = vmax.f32 %v2408, 0.0
  %v2605 = vmax.f32 %v2409, 0.0
  %v2606 = vmax.f32 %v2410, 0.0
  %v2607 = vmax.f32 %v2411, 0.0
  %v2608 = vmax.f32 %v2412, 0.0
  %v2609 = vmax.f32 %v2413, 0.0
  %v2610 = vmax.f32 %v2414, 0.0
  %v2611 = vmax.f32 %v2415, 0.0
  %v2612 = vmax.f32 %v2416, 0.0
  %v2613 = vmax.f32 %v2417, 0.0
  %v2614 = vmax.f32 %v2418, 0.0
  %v2615 = vmax.f32 %v2419, 0.0
  %v2616 = vmax.f32 %v2420, 0.0
  %v2617 = vmax.f32 %v2421, 0.0
  %v2618 = vmax.f32 %v2422, 0.0
  %v2619 = vmax.f32 %v2423, 0.0
  %v2620 = vmax.f32 %v2424, 0.0
  %v2621 = vmax.f32 %v2425, 0.0
  %v2622 = vmax.f32 %v2426, 0.0
  %v2623 = vmax.f32 %v2427, 0.0
  %v2624 = vmax.f32 %v2428, 0.0
  %v2625 = vmax.f32 %v2429, 0.0
  %v2626 = vmax.f32 %v2430, 0.0
  %v2627 = vmax.f32 %v2431, 0.0
  %v2628 = vmax.f32 %v2432, 0.0
  %v2629 = vmax.f32 %v2433, 0.0
  %v2630 = vmax.f32 %v2434, 0.0
  %v2631 = vmax.f32 %v2435, 0.0
  %v2632 = vmax.f32 %v2436, 0.0
  %v2633 = vmax.f32 %v2437, 0.0
  %v2634 = vmax.f32 %v2438, 0.0
  %v2635 = vmax.f32 %v2439, 0.0
  %v2636 = vmax.f32 %v2440, 0.0
  %v2637 = vmax.f32 %v2441, 0.0
  %v2638 = vmax.f32 %v2442, 0.0
  %v2639 = vmax.f32 %v2443, 0.0
  %v2640 = vmax.f32 %v2444, 0.0
  %v2641 = vmax.f32 %v2445, 0.0
  %v2642 = vmax.f32 %v2446, 0.0
  %v2643 = vmax.f32 %v2447, 0.0
  %v2644 = vmax.f32 %v2448, 0.0
  %v2645 = vmax.f32 %v2449, 0.0
  %v2646 = vmax.f32 %v2450, 0.0
  %v2647 = vmax.f32 %v2451, 0.0
  %v2648 = vmax.f32 %v2452, 0.0
  %v2649 = vmax.f32 %v2453, 0.0
  %v2650 = vmax.f32 %v2454, 0.0
  %v2651 = vmax.f32 %v2455, 0.0
  %v2652 = vmax.f32 %v2456, 0.0
  %v2653 = vmax.f32 %v2457, 0.0
  %v2654 = vmax.f32 %v2458, 0.0
  %v2655 = vmax.f32 %v2459, 0.0
  %v2656 = vmax.f32 %v2460, 0.0
  %v2657 = vmax.f32 %v2461, 0.0
  %v2658 = vmax.f32 %v2462, 0.0
  %v2659 = vmax.f32 %v2463, 0.0
  %v2660 = vmax.f32 %v2464, 0.0
  %v2661 = vmax.f32 %v2465, 0.0
  %v2662 = vmax.f32 %v2466, 0.0
  %v2663 = vmax.f32 %v2467, 0.0
  %v2664 = vmax.f32 %v2468, 0.0
  %v2665 = vmax.f32 %v2469, 0.0
  %v2666 = vmax.f32 %v2470, 0.0
  %v2667 = vmax.f32 %v2471, 0.0
  %v2668 = vmax.f32 %v2472, 0.0
  %v2669 = vmax.f32 %v2473, 0.0
  %v2670 = vmax.f32 %v2474, 0.0
  %v2671 = vmax.f32 %v2475, 0.0
  %v2672 = vmax.f32 %v2476, 0.0
  %v2673 = vmax.f32 %v2477, 0.0
  %v2674 = vmax.f32 %v2478, 0.0
  %v2675 = vmax.f32 %v2479, 0.0
  %v2676 = vmax.f32 %v2480, 0.0
  %v2677 = vmax.f32 %v2481, 0.0
  %v2678 = vmax.f32 %v2482, 0.0
  %v2679 = vmax.f32 %v2483, 0.0
  %v2680 = vmax.f32 %v2484, 0.0
  %v2681 = vmax.f32 %v2485, 0.0
  %v2682 = vmax.f32 %v2486, 0.0
  %v2683 = vmax.f32 %v2487, 0.0
  %v2684 = vmax.f32 %v2488, 0.0
  %v2685 = vmax.f32 %v2489, 0.0
  %v2686 = vmax.f32 %v2490, 0.0
  %v2687 = vmax.f32 %v2491, 0.0
  %v2688 = vmax.f32 %v2492, 0.0
  %v2689 = vmax.f32 %v2493, 0.0
  %v2690 = vmax.f32 %v2494, 0.0
  %v2691 = vmax.f32 %v2495, 0.0
  %v2692 = vmax.f32 %v2496, 0.0
  %v2693 = vmax.f32 %v2497, 0.0
  %v2694 = vmax.f32 %v2498, 0.0
  %v2695 = vmax.f32 %v2499, 0.0
  %v2696 = vmax.f32 %v2500, 0.0
  %v2697 = vmax.f32 %v2501, 0.0
  %v2698 = vmax.f32 %v2502, 0.0
  %v2699 = vmax.f32 %v2503, 0.0
  %v2700 = vmax.f32 %v2504, 0.0
  %v2701 = vmax.f32 %v2505, 0.0
  %v2702 = vmax.f32 %v2506, 0.0
  %v2703 = vmax.f32 %v2507, 0.0
  %v2704 = vmax.f32 %v2508, 0.0
  %v2705 = vmax.f32 %v2509, 0.0
  %v2706 = vmax.f32 %v2510, 0.0
  %v2707 = vmax.f32 %v2511, 0.0
  %v2708 = vmax.f32 %v2512, 0.0
  %v2709 = vmax.f32 %v2513, 0.0
  %v2710 = vmax.f32 %v2514, 0.0
  %v2711 = vmax.f32 %v2515, 0.0
  %v2712 = vmax.f32 %v2516, 0.0
  %v2713 = vmax.f32 %v2517, 0.0
  %v2714 = vmax.f32 %v2518, 0.0
  %v2715 = vmax.f32 %v2519, 0.0
  %v2716 = vmax.f32 %v2520, 0.0
  %v2717 = vmax.f32 %v2521, 0.0
  %v2718 = vmax.f32 %v2522, 0.0
  %v2719 = vmax.f32 %v2523, 0.0
  %v2720 = vmax.f32 %v2524, 0.0
  %v2721 = vmax.f32 %v2525, 0.0
  %v2722 = vmax.f32 %v2526, 0.0
  %v2723 = vmax.f32 %v2527, 0.0
  %v2724 = vmax.f32 %v2528, 0.0
  %v2725 = vmax.f32 %v2529, 0.0
  %v2726 = vmax.f32 %v2530, 0.0
  %v2727 = vmax.f32 %v2531, 0.0
  %v2728 = vmax.f32 %v2532, 0.0
  %v2729 = vmax.f32 %v2533, 0.0
  %v2730 = vmax.f32 %v2534, 0.0
  %v2731 = vmax.f32 %v2535, 0.0
  %v2732 = vmax.f32 %v2536, 0.0
  %v2733 = vmax.f32 %v2537, 0.0
  %v2734 = vmax.f32 %v2538, 0.0
  %v2735 = vmax.f32 %v2539, 0.0
  %v2736 = vmax.f32 %v2540, 0.0
  %v2737 = vmax.f32 %v2541, 0.0
  %v2738 = vmax.f32 %v2542, 0.0
  %v2739 = vmax.f32 %v2543, 0.0
  %v2740 = vmax.f32 %v2544, 0.0
  %v2741 = vmax.f32 %v2545, 0.0
  %v2742 = vmax.f32 %v2546, 0.0
  %v2743 = vmax.f32 %v2547, 0.0
  %v2744 = vmax.f32 %v2548, 0.0
  %v2745 = vmax.f32 %v2549, 0.0
  %v2746 = vmax.f32 %v2550, 0.0
  %v2747 = vmax.f32 %v2551, 0.0
  %v2748 = vmax.f32 %v2552, 0.0
  %v2749 = vmax.f32 %v2553, 0.0
  %v2750 = vmax.f32 %v2554, 0.0
  %v2751 = vmax.f32 %v2555, 0.0
  %v2752 = vmax.f32 %v2556, 0.0
  %v2753 = vmax.f32 %v2557, 0.0
  %v2754 = vmax.f32 %v2558, 0.0
  %v2755 = vmax.f32 %v2559, 0.0
  %v2756 = vmax.f32 %v2560, 0.0
  %v2757 = vmax.f32 %v2561, 0.0
  %v2758 = vmax.f32 %v2562, 0.0
  %v2759 = vmax.f32 %v2563, 0.0
  %v2760 = vmax.f32 %v2564, 0.0
  %v2761 = vmax.f32 %v2565, 0.0
  %v2762 = vmax.f32 %v2566, 0.0
  %v2763 = vmax.f32 %v2567, 0.0
  %v2764 = vmax.f32 %v2568, 0.0
  %v2765 = vmax.f32 %v2569, 0.0
  %v2766 = vmax.f32 %v2570, 0.0
  %v2767 = vmax.f32 %v2571, 0.0
  %v2768 = vmax.f32 %v2572, 0.0
  %v2769 = vmax.f32 %v2573, 0.0
  %v2770 = vmax.f32 %v2574, 0.0
  %v2771 = vmax.f32 %v2575, 0.0
  %v2772 = vmax.f32 %v2576, 0.0
  %v2773 = vmax.f32 %v2577, 0.0
  %v2774 = vmax.f32 %v2578, 0.0
  %v2775 = vmax.f32 %v2579, 0.0
  %v2776 = vmax.f32 %v2580, 0.0
  %v2777 = vmax.f32 %v2581, %v2630
  %v2778 = vmax.f32 %v2582, %v2631
  %v2779 = vmax.f32 %v2583, %v2632
  %v2780 = vmax.f32 %v2584, %v2633
  %v2781 = vmax.f32 %v2585, %v2634
  %v2782 = vmax.f32 %v2586, %v2635
  %v2783 = vmax.f32 %v2587, %v2636
  %v2784 = vmax.f32 %v2588, %v2637
  %v2785 = vmax.f32 %v2589, %v2638
  %v2786 = vmax.f32 %v2590, %v2639
  %v2787 = vmax.f32 %v2591, %v2640
  %v2788 = vmax.f32 %v2592, %v2641
  %v2789 = vmax.f32 %v2593, %v2642
  %v2790 = vmax.f32 %v2594, %v2643
  %v2791 = vmax.f32 %v2595, %v2644
  %v2792 = vmax.f32 %v2596, %v2645
  %v2793 = vmax.f32 %v2597, %v2646
  %v2794 = vmax.f32 %v2598, %v2647
  %v2795 = vmax.f32 %v2599, %v2648
  %v2796 = vmax.f32 %v2600, %v2649
  %v2797 = vmax.f32 %v2601, %v2650
  %v2798 = vmax.f32 %v2602, %v2651
  %v2799 = vmax.f32 %v2603, %v2652
  %v2800 = vmax.f32 %v2604, %v2653
  %v2801 = vmax.f32 %v2605, %v2654
  %v2802 = vmax.f32 %v2606, %v2655
  %v2803 = vmax.f32 %v2607, %v2656
  %v2804 = vmax.f32 %v2608, %v2657
  %v2805 = vmax.f32 %v2609, %v2658
  %v2806 = vmax.f32 %v2610, %v2659
  %v2807 = vmax.f32 %v2611, %v2660
  %v2808 = vmax.f32 %v2612, %v2661
  %v2809 = vmax.f32 %v2613, %v2662
  %v2810 = vmax.f32 %v2614, %v2663
  %v2811 = vmax.f32 %v2615, %v2664
  %v2812 = vmax.f32 %v2616, %v2665
  %v2813 = vmax.f32 %v2617, %v2666
  %v2814 = vmax.f32 %v2618, %v2667
  %v2815 = vmax.f32 %v2619, %v2668
  %v2816 = vmax.f32 %v2620, %v2669
  %v2817 = vmax.f32 %v2621, %v2670
  %v2818 = vmax.f32 %v2622, %v2671
  %v2819 = vmax.f32 %v2623, %v2672
  %v2820 = vmax.f32 %v2624, %v2673
  %v2821 = vmax.f32 %v2625, %v2674
  %v2822 = vmax.f32 %v2626, %v2675
  %v2823 = vmax.f32 %v2627, %v2676
  %v2824 = vmax.f32 %v2628, %v2677
  %v2825 = vmax.f32 %v2629, %v2678
  %v2826 = vmax.f32 %v2679, %v2728
  %v2827 = vmax.f32 %v2680, %v2729
  %v2828 = vmax.f32 %v2681, %v2730
  %v2829 = vmax.f32 %v2682, %v2731
  %v2830 = vmax.f32 %v2683, %v2732
  %v2831 = vmax.f32 %v2684, %v2733
  %v2832 = vmax.f32 %v2685, %v2734
  %v2833 = vmax.f32 %v2686, %v2735
  %v2834 = vmax.f32 %v2687, %v2736
  %v2835 = vmax.f32 %v2688, %v2737
  %v2836 = vmax.f32 %v2689, %v2738
  %v2837 = vmax.f32 %v2690, %v2739
  %v2838 = vmax.f32 %v2691, %v2740
  %v2839 = vmax.f32 %v2692, %v2741
  %v2840 = vmax.f32 %v2693, %v2742
  %v2841 = vmax.f32 %v2694, %v2743
  %v2842 = vmax.f32 %v2695, %v2744
  %v2843 = vmax.f32 %v2696, %v2745
  %v2844 = vmax.f32 %v2697, %v2746
  %v2845 = vmax.f32 %v2698, %v2747
  %v2846 = vmax.f32 %v2699, %v2748
  %v2847 = vmax.f32 %v2700, %v2749
  %v2848 = vmax.f32 %v2701, %v2750
  %v2849 = vmax.f32 %v2702, %v2751
  %v2850 = vmax.f32 %v2703, %v2752
  %v2851 = vmax.f32 %v2704, %v2753
  %v2852 = vmax.f32 %v2705, %v2754
  %v2853 = vmax.f32 %v2706, %v2755
  %v2854 = vmax.f32 %v2707, %v2756
  %v2855 = vmax.f32 %v2708, %v2757
  %v2856 = vmax.f32 %v2709, %v2758
  %v2857 = vmax.f32 %v2710, %v2759
  %v2858 = vmax.f32 %v2711, %v2760
  %v2859 = vmax.f32 %v2712, %v2761
  %v2860 = vmax.f32 %v2713, %v2762
  %v2861 = vmax.f32 %v2714, %v2763
  %v2862 = vmax.f32 %v2715, %v2764
  %v2863 = vmax.f32 %v2716, %v2765
  %v2864 = vmax.f32 %v2717, %v2766
  %v2865 = vmax.f32 %v2718, %v2767
  %v2866 = vmax.f32 %v2719, %v2768
  %v2867 = vmax.f32 %v2720, %v2769
  %v2868 = vmax.f32 %v2721, %v2770
  %v2869 = vmax.f32 %v2722, %v2771
  %v2870 = vmax.f32 %v2723, %v2772
  %v2871 = vmax.f32 %v2724, %v2773
  %v2872 = vmax.f32 %v2725, %v2774
  %v2873 = vmax.f32 %v2726, %v2775
  %v2874 = vmax.f32 %v2727, %v2776
  %v2875 = vmax.f32 %v2777, %v2826
  %v2876 = vmax.f32 %v2778, %v2827
  %v2877 = vmax.f32 %v2779, %v2828
  %v2878 = vmax.f32 %v2780, %v2829
  %v2879 = vmax.f32 %v2781, %v2830
  %v2880 = vmax.f32 %v2782, %v2831
  %v2881 = vmax.f32 %v2783, %v2832
  %v2882 = vmax.f32 %v2784, %v2833
  %v2883 = vmax.f32 %v2785, %v2834
  %v2884 = vmax.f32 %v2786, %v2835
  %v2885 = vmax.f32 %v2787, %v2836
  %v2886 = vmax.f32 %v2788, %v2837
  %v2887 = vmax.f32 %v2789, %v2838
  %v2888 = vmax.f32 %v2790, %v2839
  %v2889 = vmax.f32 %v2791, %v2840
  %v2890 = vmax.f32 %v2792, %v2841
  %v2891 = vmax.f32 %v2793, %v2842
  %v2892 = vmax.f32 %v2794, %v2843
  %v2893 = vmax.f32 %v2795, %v2844
  %v2894 = vmax.f32 %v2796, %v2845
  %v2895 = vmax.f32 %v2797, %v2846
  %v2896 = vmax.f32 %v2798, %v2847
  %v2897 = vmax.f32 %v2799, %v2848
  %v2898 = vmax.f32 %v2800, %v2849
  %v2899 = vmax.f32 %v2801, %v2850
  %v2900 = vmax.f32 %v2802, %v2851
  %v2901 = vmax.f32 %v2803, %v2852
  %v2902 = vmax.f32 %v2804, %v2853
  %v2903 = vmax.f32 %v2805, %v2854
  %v2904 = vmax.f32 %v2806, %v2855
  %v2905 = vmax.f32 %v2807, %v2856
  %v2906 = vmax.f32 %v2808, %v2857
  %v2907 = vmax.f32 %v2809, %v2858
  %v2908 = vmax.f32 %v2810, %v2859
  %v2909 = vmax.f32 %v2811, %v2860
  %v2910 = vmax.f32 %v2812, %v2861
  %v2911 = vmax.f32 %v2813, %v2862
  %v2912 = vmax.f32 %v2814, %v2863
  %v2913 = vmax.f32 %v2815, %v2864
  %v2914 = vmax.f32 %v2816, %v2865
  %v2915 = vmax.f32 %v2817, %v2866
  %v2916 = vmax.f32 %v2818, %v2867
  %v2917 = vmax.f32 %v2819, %v2868
  %v2918 = vmax.f32 %v2820, %v2869
  %v2919 = vmax.f32 %v2821, %v2870
  %v2920 = vmax.f32 %v2822, %v2871
  %v2921 = vmax.f32 %v2823, %v2872
  %v2922 = vmax.f32 %v2824, %v2873
  %v2923 = vmax.f32 %v2825, %v2874
  %v2924 = vpack.c.bf16 %v2875, %v2875
  %v2925 = vpack.c.bf16 %v2876, %v2876
  %v2926 = vpack.c.bf16 %v2877, %v2877
  %v2927 = vpack.c.bf16 %v2878, %v2878
  %v2928 = vpack.c.bf16 %v2879, %v2879
  %v2929 = vpack.c.bf16 %v2880, %v2880
  %v2930 = vpack.c.bf16 %v2881, %v2881
  %v2931 = vpack.c.bf16 %v2882, %v2882
  %v2932 = vpack.c.bf16 %v2883, %v2883
  %v2933 = vpack.c.bf16 %v2884, %v2884
  %v2934 = vpack.c.bf16 %v2885, %v2885
  %v2935 = vpack.c.bf16 %v2886, %v2886
  %v2936 = vpack.c.bf16 %v2887, %v2887
  %v2937 = vpack.c.bf16 %v2888, %v2888
  %v2938 = vpack.c.bf16 %v2889, %v2889
  %v2939 = vpack.c.bf16 %v2890, %v2890
  %v2940 = vpack.c.bf16 %v2891, %v2891
  %v2941 = vpack.c.bf16 %v2892, %v2892
  %v2942 = vpack.c.bf16 %v2893, %v2893
  %v2943 = vpack.c.bf16 %v2894, %v2894
  %v2944 = vpack.c.bf16 %v2895, %v2895
  %v2945 = vpack.c.bf16 %v2896, %v2896
  %v2946 = vpack.c.bf16 %v2897, %v2897
  %v2947 = vpack.c.bf16 %v2898, %v2898
  %v2948 = vpack.c.bf16 %v2899, %v2899
  %v2949 = vpack.c.bf16 %v2900, %v2900
  %v2950 = vpack.c.bf16 %v2901, %v2901
  %v2951 = vpack.c.bf16 %v2902, %v2902
  %v2952 = vpack.c.bf16 %v2903, %v2903
  %v2953 = vpack.c.bf16 %v2904, %v2904
  %v2954 = vpack.c.bf16 %v2905, %v2905
  %v2955 = vpack.c.bf16 %v2906, %v2906
  %v2956 = vpack.c.bf16 %v2907, %v2907
  %v2957 = vpack.c.bf16 %v2908, %v2908
  %v2958 = vpack.c.bf16 %v2909, %v2909
  %v2959 = vpack.c.bf16 %v2910, %v2910
  %v2960 = vpack.c.bf16 %v2911, %v2911
  %v2961 = vpack.c.bf16 %v2912, %v2912
  %v2962 = vpack.c.bf16 %v2913, %v2913
  %v2963 = vpack.c.bf16 %v2914, %v2914
  %v2964 = vpack.c.bf16 %v2915, %v2915
  %v2965 = vpack.c.bf16 %v2916, %v2916
  %v2966 = vpack.c.bf16 %v2917, %v2917
  %v2967 = vpack.c.bf16 %v2918, %v2918
  %v2968 = vpack.c.bf16 %v2919, %v2919
  %v2969 = vpack.c.bf16 %v2920, %v2920
  %v2970 = vpack.c.bf16 %v2921, %v2921
  %v2971 = vpack.c.bf16 %v2922, %v2922
  %v2972 = vpack.c.bf16 %v2923, %v2923
  %2973 = vst [vmem:[%s4] sm:$0xf] %v2924
  %2974 = vst [vmem:[%s4 + $0x4] sm:$0xf] %v2925
  %2975 = vst [vmem:[%s4 + $0x8] sm:$0xf] %v2926
  %2976 = vst [vmem:[%s4 + $0xc] sm:$0xf] %v2927
  %2977 = vst [vmem:[%s4 + $0x10] sm:$0xf] %v2928
  %2978 = vst [vmem:[%s4 + $0x14] sm:$0xf] %v2929
  %2979 = vst [vmem:[%s4 + $0x18] sm:$0xf] %v2930
  %2980 = vst [vmem:[%s4 + $0x1c] sm:$0xf] %v2931
  %2981 = vst [vmem:[%s4 + $0x20] sm:$0xf] %v2932
  %2982 = vst [vmem:[%s4 + $0x24] sm:$0xf] %v2933
  %2983 = vst [vmem:[%s4 + $0x28] sm:$0xf] %v2934
  %2984 = vst [vmem:[%s4 + $0x2c] sm:$0xf] %v2935
  %2985 = vst [vmem:[%s4 + $0x30] sm:$0xf] %v2936
  %2986 = vst [vmem:[%s4 + $0x34] sm:$0xf] %v2937
  %2987 = vst [vmem:[%s4 + $0x38] sm:$0xf] %v2938
  %2988 = vst [vmem:[%s4 + $0x3c] sm:$0xf] %v2939
  %2989 = vst [vmem:[%s4 + $0x40] sm:$0xf] %v2940
  %2990 = vst [vmem:[%s4 + $0x44] sm:$0xf] %v2941
  %2991 = vst [vmem:[%s4 + $0x48] sm:$0xf] %v2942
  %2992 = vst [vmem:[%s4 + $0x4c] sm:$0xf] %v2943
  %2993 = vst [vmem:[%s4 + $0x50] sm:$0xf] %v2944
  %2994 = vst [vmem:[%s4 + $0x54] sm:$0xf] %v2945
  %2995 = vst [vmem:[%s4 + $0x58] sm:$0xf] %v2946
  %2996 = vst [vmem:[%s4 + $0x5c] sm:$0xf] %v2947
  %2997 = vst [vmem:[%s4 + $0x60] sm:$0xf] %v2948
  %2998 = vst [vmem:[%s4 + $0x64] sm:$0xf] %v2949
  %2999 = vst [vmem:[%s4 + $0x68] sm:$0xf] %v2950
  %3000 = vst [vmem:[%s4 + $0x6c] sm:$0xf] %v2951
  %3001 = vst [vmem:[%s4 + $0x70] sm:$0xf] %v2952
  %3002 = vst [vmem:[%s4 + $0x74] sm:$0xf] %v2953
  %3003 = vst [vmem:[%s4 + $0x78] sm:$0xf] %v2954
  %3004 = vst [vmem:[%s4 + $0x7c] sm:$0xf] %v2955
  %3005 = vst [vmem:[%s4 + $0x80] sm:$0xf] %v2956
  %3006 = vst [vmem:[%s4 + $0x84] sm:$0xf] %v2957
  %3007 = vst [vmem:[%s4 + $0x88] sm:$0xf] %v2958
  %3008 = vst [vmem:[%s4 + $0x8c] sm:$0xf] %v2959
  %3009 = vst [vmem:[%s4 + $0x90] sm:$0xf] %v2960
  %3010 = vst [vmem:[%s4 + $0x94] sm:$0xf] %v2961
  %3011 = vst [vmem:[%s4 + $0x98] sm:$0xf] %v2962
  %3012 = vst [vmem:[%s4 + $0x9c] sm:$0xf] %v2963
  %3013 = vst [vmem:[%s4 + $0xa0] sm:$0xf] %v2964
  %3014 = vst [vmem:[%s4 + $0xa4] sm:$0xf] %v2965
  %3015 = vst [vmem:[%s4 + $0xa8] sm:$0xf] %v2966
  %3016 = vst [vmem:[%s4 + $0xac] sm:$0xf] %v2967
  %3017 = vst [vmem:[%s4 + $0xb0] sm:$0xf] %v2968
  %3018 = vst [vmem:[%s4 + $0xb4] sm:$0xf] %v2969
  %3019 = vst [vmem:[%s4 + $0xb8] sm:$0xf] %v2970
  %3020 = vst [vmem:[%s4 + $0xbc] sm:$0xf] %v2971
  %3021 = vst [vmem:[%s4 + $0xc0] sm:$0xf] %v2972
  // Predicated region
  $region18: #{dann_rep_forward.3} parent=0 // pred_check
    _
  $region19: #{dann_rep_forward.3} parent=0 // pred_check_branch
    %3023 = sbr.rel (0) target = $region21
  $region20: #{dann_rep_forward.3} parent=0 // pred_region
    _
  $region21: #{dann_rep_forward.3} parent=0 // pred_fallthru
    _
  // Predicated region
  $region22: #{dann_rep_forward.3} parent=0 // pred_check
    _
  $region23: #{dann_rep_forward.3} parent=0 // pred_check_branch
    %3025 = sbr.rel (0) target = $region25
  $region24: #{dann_rep_forward.3} parent=0 // pred_region
    _
  $region25: #{dann_rep_forward.3} parent=0 // pred_fallthru
    _

// kernel: dann_rep_forward.4
$region0: #{dann_rep_forward.4}
  #allocation0 [shape = 'u32[]', space=smem, size = 0x4, offset = 0x4, fixed_abs, tag = 'smem constant byte address 0x4 - core index']
  #allocation1 [shape = 'u32[72,128]{1,0:T(1,128)}', space=vmem, size = 0x9000, scoped, tag = 'internal scratch']
  %s0 = inlined_call_operand.vmem [shape: bf16[200,3200], index: 0, kind: input, shape index: {}]
  %s1 = inlined_call_operand.vmem [shape: bf16[3200,128], index: 1, kind: input, shape index: {}]
  %s2 = inlined_call_operand.vmem [shape: f32[1,128], index: 2, kind: input, shape index: {}]
  %s3 = inlined_call_operand.vmem [shape: f32[1,128], index: 3, kind: input, shape index: {}]
  %s4 = inlined_call_operand.vmem [shape: bf16[50,128], index: 4, kind: output, shape index: {}]
  %s5 = sld [smem:[#allocation0]]
  $region26: #{dann_rep_forward.4} parent=0
    _
  %s7 = ssub.s32 1, %s5
  %s8 = scalar_select 0, %s7, %s5
  // Predicated region
  $region2: #{dann_rep_forward.4} parent=0 // pred_check
    _
  $region3: #{dann_rep_forward.4} parent=0 // pred_check_branch
    %10 = sbr.rel (0) target = $region5
  $region4: #{dann_rep_forward.4} parent=0 // pred_region
    _
  $region5: #{dann_rep_forward.4} parent=0 // pred_fallthru
    _
  // Predicated region
  $region6: #{dann_rep_forward.4} parent=0 // pred_check
    _
  $region7: #{dann_rep_forward.4} parent=0 // pred_check_branch
    %12 = sbr.rel (0) target = $region9
  $region8: #{dann_rep_forward.4} parent=0 // pred_region
    _
  $region9: #{dann_rep_forward.4} parent=0 // pred_fallthru
    _
  // Predicated region
  $region10: #{dann_rep_forward.4} parent=0 // pred_check
    _
  $region11: #{dann_rep_forward.4} parent=0 // pred_check_branch
    %14 = sbr.rel (0) target = $region13
  $region12: #{dann_rep_forward.4} parent=0 // pred_region
    _
  $region13: #{dann_rep_forward.4} parent=0 // pred_fallthru
    _
  // Predicated region
  $region14: #{dann_rep_forward.4} parent=0 // pred_check
    _
  $region15: #{dann_rep_forward.4} parent=0 // pred_check_branch
    %16 = sbr.rel (0) target = $region17
  $region16: #{dann_rep_forward.4} parent=0 // pred_region
    _
  $region17: #{dann_rep_forward.4} parent=0 // pred_fallthru
    _
  %v17 = vld [vmem:[%s0] sm:$0xff]
  %v18 = vld [vmem:[%s0 + $0x8] sm:$0xff]
  %v19 = vld [vmem:[%s0 + $0x10] sm:$0xff]
  %v20 = vld [vmem:[%s0 + $0x18] sm:$0xff]
  %v21 = vld [vmem:[%s0 + $0x20] sm:$0xff]
  %v22 = vld [vmem:[%s0 + $0x28] sm:$0xff]
  %v23 = vld [vmem:[%s0 + $0x30] sm:$0xff]
  %v24 = vld [vmem:[%s0 + $0x38] sm:$0xff]
  %v25 = vld [vmem:[%s0 + $0x40] sm:$0xff]
  %v26 = vld [vmem:[%s0 + $0x48] sm:$0xff]
  %v27 = vld [vmem:[%s0 + $0x50] sm:$0xff]
  %v28 = vld [vmem:[%s0 + $0x58] sm:$0xff]
  %v29 = vld [vmem:[%s0 + $0x60] sm:$0xf]
  %v30 = vld [vmem:[%s0 + $0x64] sm:$0xff]
  %v31 = vld [vmem:[%s0 + $0x6c] sm:$0xff]
  %v32 = vld [vmem:[%s0 + $0x74] sm:$0xff]
  %v33 = vld [vmem:[%s0 + $0x7c] sm:$0xff]
  %v34 = vld [vmem:[%s0 + $0x84] sm:$0xff]
  %v35 = vld [vmem:[%s0 + $0x8c] sm:$0xff]
  %v36 = vld [vmem:[%s0 + $0x94] sm:$0xff]
  %v37 = vld [vmem:[%s0 + $0x9c] sm:$0xff]
  %v38 = vld [vmem:[%s0 + $0xa4] sm:$0xff]
  %v39 = vld [vmem:[%s0 + $0xac] sm:$0xff]
  %v40 = vld [vmem:[%s0 + $0xb4] sm:$0xff]
  %v41 = vld [vmem:[%s0 + $0xbc] sm:$0xff]
  %v42 = vld [vmem:[%s0 + $0xc4] sm:$0xf]
  %v43 = vld [vmem:[%s0 + $0xc8] sm:$0xff]
  %v44 = vld [vmem:[%s0 + $0xd0] sm:$0xff]
  %v45 = vld [vmem:[%s0 + $0xd8] sm:$0xff]
  %v46 = vld [vmem:[%s0 + $0xe0] sm:$0xff]
  %v47 = vld [vmem:[%s0 + $0xe8] sm:$0xff]
  %v48 = vld [vmem:[%s0 + $0xf0] sm:$0xff]
  %v49 = vld [vmem:[%s0 + $0xf8] sm:$0xff]
  %v50 = vld [vmem:[%s0 + $0x100] sm:$0xff]
  %v51 = vld [vmem:[%s0 + $0x108] sm:$0xff]
  %v52 = vld [vmem:[%s0 + $0x110] sm:$0xff]
  %v53 = vld [vmem:[%s0 + $0x118] sm:$0xff]
  %v54 = vld [vmem:[%s0 + $0x120] sm:$0xff]
  %v55 = vld [vmem:[%s0 + $0x128] sm:$0xf]
  %v56 = vld [vmem:[%s0 + $0x12c] sm:$0xff]
  %v57 = vld [vmem:[%s0 + $0x134] sm:$0xff]
  %v58 = vld [vmem:[%s0 + $0x13c] sm:$0xff]
  %v59 = vld [vmem:[%s0 + $0x144] sm:$0xff]
  %v60 = vld [vmem:[%s0 + $0x14c] sm:$0xff]
  %v61 = vld [vmem:[%s0 + $0x154] sm:$0xff]
  %v62 = vld [vmem:[%s0 + $0x15c] sm:$0xff]
  %v63 = vld [vmem:[%s0 + $0x164] sm:$0xff]
  %v64 = vld [vmem:[%s0 + $0x16c] sm:$0xff]
  %v65 = vld [vmem:[%s0 + $0x174] sm:$0xff]
  %v66 = vld [vmem:[%s0 + $0x17c] sm:$0xff]
  %v67 = vld [vmem:[%s0 + $0x184] sm:$0xff]
  %v68 = vld [vmem:[%s0 + $0x18c] sm:$0xf]
  %v69 = vld [vmem:[%s0 + $0x190] sm:$0xff]
  %v70 = vld [vmem:[%s0 + $0x198] sm:$0xff]
  %v71 = vld [vmem:[%s0 + $0x1a0] sm:$0xff]
  %v72 = vld [vmem:[%s0 + $0x1a8] sm:$0xff]
  %v73 = vld [vmem:[%s0 + $0x1b0] sm:$0xff]
  %v74 = vld [vmem:[%s0 + $0x1b8] sm:$0xff]
  %v75 = vld [vmem:[%s0 + $0x1c0] sm:$0xff]
  %v76 = vld [vmem:[%s0 + $0x1c8] sm:$0xff]
  %v77 = vld [vmem:[%s0 + $0x1d0] sm:$0xff]
  %v78 = vld [vmem:[%s0 + $0x1d8] sm:$0xff]
  %v79 = vld [vmem:[%s0 + $0x1e0] sm:$0xff]
  %v80 = vld [vmem:[%s0 + $0x1e8] sm:$0xff]
  %v81 = vld [vmem:[%s0 + $0x1f0] sm:$0xf]
  %v82 = vld [vmem:[%s0 + $0x1f4] sm:$0xff]
  %v83 = vld [vmem:[%s0 + $0x1fc] sm:$0xff]
  %v84 = vld [vmem:[%s0 + $0x204] sm:$0xff]
  %v85 = vld [vmem:[%s0 + $0x20c] sm:$0xff]
  %v86 = vld [vmem:[%s0 + $0x214] sm:$0xff]
  %v87 = vld [vmem:[%s0 + $0x21c] sm:$0xff]
  %v88 = vld [vmem:[%s0 + $0x224] sm:$0xff]
  %v89 = vld [vmem:[%s0 + $0x22c] sm:$0xff]
  %v90 = vld [vmem:[%s0 + $0x234] sm:$0xff]
  %v91 = vld [vmem:[%s0 + $0x23c] sm:$0xff]
  %v92 = vld [vmem:[%s0 + $0x244] sm:$0xff]
  %v93 = vld [vmem:[%s0 + $0x24c] sm:$0xff]
  %v94 = vld [vmem:[%s0 + $0x254] sm:$0xf]
  %v95 = vld [vmem:[%s0 + $0x258] sm:$0xff]
  %v96 = vld [vmem:[%s0 + $0x260] sm:$0xff]
  %v97 = vld [vmem:[%s0 + $0x268] sm:$0xff]
  %v98 = vld [vmem:[%s0 + $0x270] sm:$0xff]
  %v99 = vld [vmem:[%s0 + $0x278] sm:$0xff]
  %v100 = vld [vmem:[%s0 + $0x280] sm:$0xff]
  %v101 = vld [vmem:[%s0 + $0x288] sm:$0xff]
  %v102 = vld [vmem:[%s0 + $0x290] sm:$0xff]
  %v103 = vld [vmem:[%s0 + $0x298] sm:$0xff]
  %v104 = vld [vmem:[%s0 + $0x2a0] sm:$0xff]
  %v105 = vld [vmem:[%s0 + $0x2a8] sm:$0xff]
  %v106 = vld [vmem:[%s0 + $0x2b0] sm:$0xff]
  %v107 = vld [vmem:[%s0 + $0x2b8] sm:$0xf]
  %v108 = vld [vmem:[%s0 + $0x2bc] sm:$0xff]
  %v109 = vld [vmem:[%s0 + $0x2c4] sm:$0xff]
  %v110 = vld [vmem:[%s0 + $0x2cc] sm:$0xff]
  %v111 = vld [vmem:[%s0 + $0x2d4] sm:$0xff]
  %v112 = vld [vmem:[%s0 + $0x2dc] sm:$0xff]
  %v113 = vld [vmem:[%s0 + $0x2e4] sm:$0xff]
  %v114 = vld [vmem:[%s0 + $0x2ec] sm:$0xff]
  %v115 = vld [vmem:[%s0 + $0x2f4] sm:$0xff]
  %v116 = vld [vmem:[%s0 + $0x2fc] sm:$0xff]
  %v117 = vld [vmem:[%s0 + $0x304] sm:$0xff]
  %v118 = vld [vmem:[%s0 + $0x30c] sm:$0xff]
  %v119 = vld [vmem:[%s0 + $0x314] sm:$0xff]
  %v120 = vld [vmem:[%s0 + $0x31c] sm:$0xf]
  %v121 = vld [vmem:[%s0 + $0x320] sm:$0xff]
  %v122 = vld [vmem:[%s0 + $0x328] sm:$0xff]
  %v123 = vld [vmem:[%s0 + $0x330] sm:$0xff]
  %v124 = vld [vmem:[%s0 + $0x338] sm:$0xff]
  %v125 = vld [vmem:[%s0 + $0x340] sm:$0xff]
  %v126 = vld [vmem:[%s0 + $0x348] sm:$0xff]
  %v127 = vld [vmem:[%s0 + $0x350] sm:$0xff]
  %v128 = vld [vmem:[%s0 + $0x358] sm:$0xff]
  %v129 = vld [vmem:[%s0 + $0x360] sm:$0xff]
  %v130 = vld [vmem:[%s0 + $0x368] sm:$0xff]
  %v131 = vld [vmem:[%s0 + $0x370] sm:$0xff]
  %v132 = vld [vmem:[%s0 + $0x378] sm:$0xff]
  %v133 = vld [vmem:[%s0 + $0x380] sm:$0xf]
  %v134 = vld [vmem:[%s0 + $0x384] sm:$0xff]
  %v135 = vld [vmem:[%s0 + $0x38c] sm:$0xff]
  %v136 = vld [vmem:[%s0 + $0x394] sm:$0xff]
  %v137 = vld [vmem:[%s0 + $0x39c] sm:$0xff]
  %v138 = vld [vmem:[%s0 + $0x3a4] sm:$0xff]
  %v139 = vld [vmem:[%s0 + $0x3ac] sm:$0xff]
  %v140 = vld [vmem:[%s0 + $0x3b4] sm:$0xff]
  %v141 = vld [vmem:[%s0 + $0x3bc] sm:$0xff]
  %v142 = vld [vmem:[%s0 + $0x3c4] sm:$0xff]
  %v143 = vld [vmem:[%s0 + $0x3cc] sm:$0xff]
  %v144 = vld [vmem:[%s0 + $0x3d4] sm:$0xff]
  %v145 = vld [vmem:[%s0 + $0x3dc] sm:$0xff]
  %v146 = vld [vmem:[%s0 + $0x3e4] sm:$0xf]
  %v147 = vld [vmem:[%s0 + $0x3e8] sm:$0xff]
  %v148 = vld [vmem:[%s0 + $0x3f0] sm:$0xff]
  %v149 = vld [vmem:[%s0 + $0x3f8] sm:$0xff]
  %v150 = vld [vmem:[%s0 + $0x400] sm:$0xff]
  %v151 = vld [vmem:[%s0 + $0x408] sm:$0xff]
  %v152 = vld [vmem:[%s0 + $0x410] sm:$0xff]
  %v153 = vld [vmem:[%s0 + $0x418] sm:$0xff]
  %v154 = vld [vmem:[%s0 + $0x420] sm:$0xff]
  %v155 = vld [vmem:[%s0 + $0x428] sm:$0xff]
  %v156 = vld [vmem:[%s0 + $0x430] sm:$0xff]
  %v157 = vld [vmem:[%s0 + $0x438] sm:$0xff]
  %v158 = vld [vmem:[%s0 + $0x440] sm:$0xff]
  %v159 = vld [vmem:[%s0 + $0x448] sm:$0xf]
  %v160 = vld [vmem:[%s0 + $0x44c] sm:$0xff]
  %v161 = vld [vmem:[%s0 + $0x454] sm:$0xff]
  %v162 = vld [vmem:[%s0 + $0x45c] sm:$0xff]
  %v163 = vld [vmem:[%s0 + $0x464] sm:$0xff]
  %v164 = vld [vmem:[%s0 + $0x46c] sm:$0xff]
  %v165 = vld [vmem:[%s0 + $0x474] sm:$0xff]
  %v166 = vld [vmem:[%s0 + $0x47c] sm:$0xff]
  %v167 = vld [vmem:[%s0 + $0x484] sm:$0xff]
  %v168 = vld [vmem:[%s0 + $0x48c] sm:$0xff]
  %v169 = vld [vmem:[%s0 + $0x494] sm:$0xff]
  %v170 = vld [vmem:[%s0 + $0x49c] sm:$0xff]
  %v171 = vld [vmem:[%s0 + $0x4a4] sm:$0xff]
  %v172 = vld [vmem:[%s0 + $0x4ac] sm:$0xf]
  %v173 = vld [vmem:[%s0 + $0x4b0] sm:$0xff]
  %v174 = vld [vmem:[%s0 + $0x4b8] sm:$0xff]
  %v175 = vld [vmem:[%s0 + $0x4c0] sm:$0xff]
  %v176 = vld [vmem:[%s0 + $0x4c8] sm:$0xff]
  %v177 = vld [vmem:[%s0 + $0x4d0] sm:$0xff]
  %v178 = vld [vmem:[%s0 + $0x4d8] sm:$0xff]
  %v179 = vld [vmem:[%s0 + $0x4e0] sm:$0xff]
  %v180 = vld [vmem:[%s0 + $0x4e8] sm:$0xff]
  %v181 = vld [vmem:[%s0 + $0x4f0] sm:$0xff]
  %v182 = vld [vmem:[%s0 + $0x4f8] sm:$0xff]
  %v183 = vld [vmem:[%s0 + $0x500] sm:$0xff]
  %v184 = vld [vmem:[%s0 + $0x508] sm:$0xff]
  %v185 = vld [vmem:[%s0 + $0x510] sm:$0xf]
  %v186 = vld [vmem:[%s0 + $0x514] sm:$0xff]
  %v187 = vld [vmem:[%s0 + $0x51c] sm:$0xff]
  %v188 = vld [vmem:[%s0 + $0x524] sm:$0xff]
  %v189 = vld [vmem:[%s0 + $0x52c] sm:$0xff]
  %v190 = vld [vmem:[%s0 + $0x534] sm:$0xff]
  %v191 = vld [vmem:[%s0 + $0x53c] sm:$0xff]
  %v192 = vld [vmem:[%s0 + $0x544] sm:$0xff]
  %v193 = vld [vmem:[%s0 + $0x54c] sm:$0xff]
  %v194 = vld [vmem:[%s0 + $0x554] sm:$0xff]
  %v195 = vld [vmem:[%s0 + $0x55c] sm:$0xff]
  %v196 = vld [vmem:[%s0 + $0x564] sm:$0xff]
  %v197 = vld [vmem:[%s0 + $0x56c] sm:$0xff]
  %v198 = vld [vmem:[%s0 + $0x574] sm:$0xf]
  %v199 = vld [vmem:[%s0 + $0x578] sm:$0xff]
  %v200 = vld [vmem:[%s0 + $0x580] sm:$0xff]
  %v201 = vld [vmem:[%s0 + $0x588] sm:$0xff]
  %v202 = vld [vmem:[%s0 + $0x590] sm:$0xff]
  %v203 = vld [vmem:[%s0 + $0x598] sm:$0xff]
  %v204 = vld [vmem:[%s0 + $0x5a0] sm:$0xff]
  %v205 = vld [vmem:[%s0 + $0x5a8] sm:$0xff]
  %v206 = vld [vmem:[%s0 + $0x5b0] sm:$0xff]
  %v207 = vld [vmem:[%s0 + $0x5b8] sm:$0xff]
  %v208 = vld [vmem:[%s0 + $0x5c0] sm:$0xff]
  %v209 = vld [vmem:[%s0 + $0x5c8] sm:$0xff]
  %v210 = vld [vmem:[%s0 + $0x5d0] sm:$0xff]
  %v211 = vld [vmem:[%s0 + $0x5d8] sm:$0xf]
  %v212 = vld [vmem:[%s0 + $0x5dc] sm:$0xff]
  %v213 = vld [vmem:[%s0 + $0x5e4] sm:$0xff]
  %v214 = vld [vmem:[%s0 + $0x5ec] sm:$0xff]
  %v215 = vld [vmem:[%s0 + $0x5f4] sm:$0xff]
  %v216 = vld [vmem:[%s0 + $0x5fc] sm:$0xff]
  %v217 = vld [vmem:[%s0 + $0x604] sm:$0xff]
  %v218 = vld [vmem:[%s0 + $0x60c] sm:$0xff]
  %v219 = vld [vmem:[%s0 + $0x614] sm:$0xff]
  %v220 = vld [vmem:[%s0 + $0x61c] sm:$0xff]
  %v221 = vld [vmem:[%s0 + $0x624] sm:$0xff]
  %v222 = vld [vmem:[%s0 + $0x62c] sm:$0xff]
  %v223 = vld [vmem:[%s0 + $0x634] sm:$0xff]
  %v224 = vld [vmem:[%s0 + $0x63c] sm:$0xf]
  %v225 = vld [vmem:[%s0 + $0x640] sm:$0xff]
  %v226 = vld [vmem:[%s0 + $0x648] sm:$0xff]
  %v227 = vld [vmem:[%s0 + $0x650] sm:$0xff]
  %v228 = vld [vmem:[%s0 + $0x658] sm:$0xff]
  %v229 = vld [vmem:[%s0 + $0x660] sm:$0xff]
  %v230 = vld [vmem:[%s0 + $0x668] sm:$0xff]
  %v231 = vld [vmem:[%s0 + $0x670] sm:$0xff]
  %v232 = vld [vmem:[%s0 + $0x678] sm:$0xff]
  %v233 = vld [vmem:[%s0 + $0x680] sm:$0xff]
  %v234 = vld [vmem:[%s0 + $0x688] sm:$0xff]
  %v235 = vld [vmem:[%s0 + $0x690] sm:$0xff]
  %v236 = vld [vmem:[%s0 + $0x698] sm:$0xff]
  %v237 = vld [vmem:[%s0 + $0x6a0] sm:$0xf]
  %v238 = vld [vmem:[%s0 + $0x6a4] sm:$0xff]
  %v239 = vld [vmem:[%s0 + $0x6ac] sm:$0xff]
  %v240 = vld [vmem:[%s0 + $0x6b4] sm:$0xff]
  %v241 = vld [vmem:[%s0 + $0x6bc] sm:$0xff]
  %v242 = vld [vmem:[%s0 + $0x6c4] sm:$0xff]
  %v243 = vld [vmem:[%s0 + $0x6cc] sm:$0xff]
  %v244 = vld [vmem:[%s0 + $0x6d4] sm:$0xff]
  %v245 = vld [vmem:[%s0 + $0x6dc] sm:$0xff]
  %v246 = vld [vmem:[%s0 + $0x6e4] sm:$0xff]
  %v247 = vld [vmem:[%s0 + $0x6ec] sm:$0xff]
  %v248 = vld [vmem:[%s0 + $0x6f4] sm:$0xff]
  %v249 = vld [vmem:[%s0 + $0x6fc] sm:$0xff]
  %v250 = vld [vmem:[%s0 + $0x704] sm:$0xf]
  %v251 = vld [vmem:[%s0 + $0x708] sm:$0xff]
  %v252 = vld [vmem:[%s0 + $0x710] sm:$0xff]
  %v253 = vld [vmem:[%s0 + $0x718] sm:$0xff]
  %v254 = vld [vmem:[%s0 + $0x720] sm:$0xff]
  %v255 = vld [vmem:[%s0 + $0x728] sm:$0xff]
  %v256 = vld [vmem:[%s0 + $0x730] sm:$0xff]
  %v257 = vld [vmem:[%s0 + $0x738] sm:$0xff]
  %v258 = vld [vmem:[%s0 + $0x740] sm:$0xff]
  %v259 = vld [vmem:[%s0 + $0x748] sm:$0xff]
  %v260 = vld [vmem:[%s0 + $0x750] sm:$0xff]
  %v261 = vld [vmem:[%s0 + $0x758] sm:$0xff]
  %v262 = vld [vmem:[%s0 + $0x760] sm:$0xff]
  %v263 = vld [vmem:[%s0 + $0x768] sm:$0xf]
  %v264 = vld [vmem:[%s0 + $0x76c] sm:$0xff]
  %v265 = vld [vmem:[%s0 + $0x774] sm:$0xff]
  %v266 = vld [vmem:[%s0 + $0x77c] sm:$0xff]
  %v267 = vld [vmem:[%s0 + $0x784] sm:$0xff]
  %v268 = vld [vmem:[%s0 + $0x78c] sm:$0xff]
  %v269 = vld [vmem:[%s0 + $0x794] sm:$0xff]
  %v270 = vld [vmem:[%s0 + $0x79c] sm:$0xff]
  %v271 = vld [vmem:[%s0 + $0x7a4] sm:$0xff]
  %v272 = vld [vmem:[%s0 + $0x7ac] sm:$0xff]
  %v273 = vld [vmem:[%s0 + $0x7b4] sm:$0xff]
  %v274 = vld [vmem:[%s0 + $0x7bc] sm:$0xff]
  %v275 = vld [vmem:[%s0 + $0x7c4] sm:$0xff]
  %v276 = vld [vmem:[%s0 + $0x7cc] sm:$0xf]
  %v277 = vld [vmem:[%s0 + $0x7d0] sm:$0xff]
  %v278 = vld [vmem:[%s0 + $0x7d8] sm:$0xff]
  %v279 = vld [vmem:[%s0 + $0x7e0] sm:$0xff]
  %v280 = vld [vmem:[%s0 + $0x7e8] sm:$0xff]
  %v281 = vld [vmem:[%s0 + $0x7f0] sm:$0xff]
  %v282 = vld [vmem:[%s0 + $0x7f8] sm:$0xff]
  %v283 = vld [vmem:[%s0 + $0x800] sm:$0xff]
  %v284 = vld [vmem:[%s0 + $0x808] sm:$0xff]
  %v285 = vld [vmem:[%s0 + $0x810] sm:$0xff]
  %v286 = vld [vmem:[%s0 + $0x818] sm:$0xff]
  %v287 = vld [vmem:[%s0 + $0x820] sm:$0xff]
  %v288 = vld [vmem:[%s0 + $0x828] sm:$0xff]
  %v289 = vld [vmem:[%s0 + $0x830] sm:$0xf]
  %v290 = vld [vmem:[%s0 + $0x834] sm:$0xff]
  %v291 = vld [vmem:[%s0 + $0x83c] sm:$0xff]
  %v292 = vld [vmem:[%s0 + $0x844] sm:$0xff]
  %v293 = vld [vmem:[%s0 + $0x84c] sm:$0xff]
  %v294 = vld [vmem:[%s0 + $0x854] sm:$0xff]
  %v295 = vld [vmem:[%s0 + $0x85c] sm:$0xff]
  %v296 = vld [vmem:[%s0 + $0x864] sm:$0xff]
  %v297 = vld [vmem:[%s0 + $0x86c] sm:$0xff]
  %v298 = vld [vmem:[%s0 + $0x874] sm:$0xff]
  %v299 = vld [vmem:[%s0 + $0x87c] sm:$0xff]
  %v300 = vld [vmem:[%s0 + $0x884] sm:$0xff]
  %v301 = vld [vmem:[%s0 + $0x88c] sm:$0xff]
  %v302 = vld [vmem:[%s0 + $0x894] sm:$0xf]
  %v303 = vld [vmem:[%s0 + $0x898] sm:$0xff]
  %v304 = vld [vmem:[%s0 + $0x8a0] sm:$0xff]
  %v305 = vld [vmem:[%s0 + $0x8a8] sm:$0xff]
  %v306 = vld [vmem:[%s0 + $0x8b0] sm:$0xff]
  %v307 = vld [vmem:[%s0 + $0x8b8] sm:$0xff]
  %v308 = vld [vmem:[%s0 + $0x8c0] sm:$0xff]
  %v309 = vld [vmem:[%s0 + $0x8c8] sm:$0xff]
  %v310 = vld [vmem:[%s0 + $0x8d0] sm:$0xff]
  %v311 = vld [vmem:[%s0 + $0x8d8] sm:$0xff]
  %v312 = vld [vmem:[%s0 + $0x8e0] sm:$0xff]
  %v313 = vld [vmem:[%s0 + $0x8e8] sm:$0xff]
  %v314 = vld [vmem:[%s0 + $0x8f0] sm:$0xff]
  %v315 = vld [vmem:[%s0 + $0x8f8] sm:$0xf]
  %v316 = vld [vmem:[%s0 + $0x8fc] sm:$0xff]
  %v317 = vld [vmem:[%s0 + $0x904] sm:$0xff]
  %v318 = vld [vmem:[%s0 + $0x90c] sm:$0xff]
  %v319 = vld [vmem:[%s0 + $0x914] sm:$0xff]
  %v320 = vld [vmem:[%s0 + $0x91c] sm:$0xff]
  %v321 = vld [vmem:[%s0 + $0x924] sm:$0xff]
  %v322 = vld [vmem:[%s0 + $0x92c] sm:$0xff]
  %v323 = vld [vmem:[%s0 + $0x934] sm:$0xff]
  %v324 = vld [vmem:[%s0 + $0x93c] sm:$0xff]
  %v325 = vld [vmem:[%s0 + $0x944] sm:$0xff]
  %v326 = vld [vmem:[%s0 + $0x94c] sm:$0xff]
  %v327 = vld [vmem:[%s0 + $0x954] sm:$0xff]
  %v328 = vld [vmem:[%s0 + $0x95c] sm:$0xf]
  %v329 = vld [vmem:[%s0 + $0x960] sm:$0xff]
  %v330 = vld [vmem:[%s0 + $0x968] sm:$0xff]
  %v331 = vld [vmem:[%s0 + $0x970] sm:$0xff]
  %v332 = vld [vmem:[%s0 + $0x978] sm:$0xff]
  %v333 = vld [vmem:[%s0 + $0x980] sm:$0xff]
  %v334 = vld [vmem:[%s0 + $0x988] sm:$0xff]
  %v335 = vld [vmem:[%s0 + $0x990] sm:$0xff]
  %v336 = vld [vmem:[%s0 + $0x998] sm:$0xff]
  %v337 = vld [vmem:[%s0 + $0x9a0] sm:$0xff]
  %v338 = vld [vmem:[%s0 + $0x9a8] sm:$0xff]
  %v339 = vld [vmem:[%s0 + $0x9b0] sm:$0xff]
  %v340 = vld [vmem:[%s0 + $0x9b8] sm:$0xff]
  %v341 = vld [vmem:[%s0 + $0x9c0] sm:$0xf]
  %v342 = vld [vmem:[%s1] sm:$0xf]
  %v343 = vld [vmem:[%s1 + $0x4] sm:$0xf]
  %v344 = vld [vmem:[%s1 + $0x8] sm:$0xf]
  %v345 = vld [vmem:[%s1 + $0xc] sm:$0xf]
  %v346 = vld [vmem:[%s1 + $0x10] sm:$0xf]
  %v347 = vld [vmem:[%s1 + $0x14] sm:$0xf]
  %v348 = vld [vmem:[%s1 + $0x18] sm:$0xf]
  %v349 = vld [vmem:[%s1 + $0x1c] sm:$0xf]
  %v350 = vld [vmem:[%s1 + $0x20] sm:$0xf]
  %v351 = vld [vmem:[%s1 + $0x24] sm:$0xf]
  %v352 = vld [vmem:[%s1 + $0x28] sm:$0xf]
  %v353 = vld [vmem:[%s1 + $0x2c] sm:$0xf]
  %v354 = vld [vmem:[%s1 + $0x30] sm:$0xf]
  %v355 = vld [vmem:[%s1 + $0x34] sm:$0xf]
  %v356 = vld [vmem:[%s1 + $0x38] sm:$0xf]
  %v357 = vld [vmem:[%s1 + $0x3c] sm:$0xf]
  %v358 = vld [vmem:[%s1 + $0x40] sm:$0xf]
  %v359 = vld [vmem:[%s1 + $0x44] sm:$0xf]
  %v360 = vld [vmem:[%s1 + $0x48] sm:$0xf]
  %v361 = vld [vmem:[%s1 + $0x4c] sm:$0xf]
  %v362 = vld [vmem:[%s1 + $0x50] sm:$0xf]
  %v363 = vld [vmem:[%s1 + $0x54] sm:$0xf]
  %v364 = vld [vmem:[%s1 + $0x58] sm:$0xf]
  %v365 = vld [vmem:[%s1 + $0x5c] sm:$0xf]
  %v366 = vld [vmem:[%s1 + $0x60] sm:$0xf]
  %v367 = vld [vmem:[%s1 + $0x64] sm:$0xf]
  %v368 = vld [vmem:[%s1 + $0x68] sm:$0xf]
  %v369 = vld [vmem:[%s1 + $0x6c] sm:$0xf]
  %v370 = vld [vmem:[%s1 + $0x70] sm:$0xf]
  %v371 = vld [vmem:[%s1 + $0x74] sm:$0xf]
  %v372 = vld [vmem:[%s1 + $0x78] sm:$0xf]
  %v373 = vld [vmem:[%s1 + $0x7c] sm:$0xf]
  %v374 = vld [vmem:[%s1 + $0x80] sm:$0xf]
  %v375 = vld [vmem:[%s1 + $0x84] sm:$0xf]
  %v376 = vld [vmem:[%s1 + $0x88] sm:$0xf]
  %v377 = vld [vmem:[%s1 + $0x8c] sm:$0xf]
  %v378 = vld [vmem:[%s1 + $0x90] sm:$0xf]
  %v379 = vld [vmem:[%s1 + $0x94] sm:$0xf]
  %v380 = vld [vmem:[%s1 + $0x98] sm:$0xf]
  %v381 = vld [vmem:[%s1 + $0x9c] sm:$0xf]
  %v382 = vld [vmem:[%s1 + $0xa0] sm:$0xf]
  %v383 = vld [vmem:[%s1 + $0xa4] sm:$0xf]
  %v384 = vld [vmem:[%s1 + $0xa8] sm:$0xf]
  %v385 = vld [vmem:[%s1 + $0xac] sm:$0xf]
  %v386 = vld [vmem:[%s1 + $0xb0] sm:$0xf]
  %v387 = vld [vmem:[%s1 + $0xb4] sm:$0xf]
  %v388 = vld [vmem:[%s1 + $0xb8] sm:$0xf]
  %v389 = vld [vmem:[%s1 + $0xbc] sm:$0xf]
  %v390 = vld [vmem:[%s1 + $0xc0] sm:$0xf]
  %v391 = vld [vmem:[%s1 + $0xc4] sm:$0xf]
  %v392 = vld [vmem:[%s1 + $0xc8] sm:$0xf]
  %v393 = vld [vmem:[%s1 + $0xcc] sm:$0xf]
  %v394 = vld [vmem:[%s1 + $0xd0] sm:$0xf]
  %v395 = vld [vmem:[%s1 + $0xd4] sm:$0xf]
  %v396 = vld [vmem:[%s1 + $0xd8] sm:$0xf]
  %v397 = vld [vmem:[%s1 + $0xdc] sm:$0xf]
  %v398 = vld [vmem:[%s1 + $0xe0] sm:$0xf]
  %v399 = vld [vmem:[%s1 + $0xe4] sm:$0xf]
  %v400 = vld [vmem:[%s1 + $0xe8] sm:$0xf]
  %v401 = vld [vmem:[%s1 + $0xec] sm:$0xf]
  %v402 = vld [vmem:[%s1 + $0xf0] sm:$0xf]
  %v403 = vld [vmem:[%s1 + $0xf4] sm:$0xf]
  %v404 = vld [vmem:[%s1 + $0xf8] sm:$0xf]
  %v405 = vld [vmem:[%s1 + $0xfc] sm:$0xf]
  %v406 = vld [vmem:[%s1 + $0x100] sm:$0xf]
  %v407 = vld [vmem:[%s1 + $0x104] sm:$0xf]
  %v408 = vld [vmem:[%s1 + $0x108] sm:$0xf]
  %v409 = vld [vmem:[%s1 + $0x10c] sm:$0xf]
  %v410 = vld [vmem:[%s1 + $0x110] sm:$0xf]
  %v411 = vld [vmem:[%s1 + $0x114] sm:$0xf]
  %v412 = vld [vmem:[%s1 + $0x118] sm:$0xf]
  %v413 = vld [vmem:[%s1 + $0x11c] sm:$0xf]
  %v414 = vld [vmem:[%s1 + $0x120] sm:$0xf]
  %v415 = vld [vmem:[%s1 + $0x124] sm:$0xf]
  %v416 = vld [vmem:[%s1 + $0x128] sm:$0xf]
  %v417 = vld [vmem:[%s1 + $0x12c] sm:$0xf]
  %v418 = vld [vmem:[%s1 + $0x130] sm:$0xf]
  %v419 = vld [vmem:[%s1 + $0x134] sm:$0xf]
  %v420 = vld [vmem:[%s1 + $0x138] sm:$0xf]
  %v421 = vld [vmem:[%s1 + $0x13c] sm:$0xf]
  %v422 = vld [vmem:[%s1 + $0x140] sm:$0xf]
  %v423 = vld [vmem:[%s1 + $0x144] sm:$0xf]
  %v424 = vld [vmem:[%s1 + $0x148] sm:$0xf]
  %v425 = vld [vmem:[%s1 + $0x14c] sm:$0xf]
  %v426 = vld [vmem:[%s1 + $0x150] sm:$0xf]
  %v427 = vld [vmem:[%s1 + $0x154] sm:$0xf]
  %v428 = vld [vmem:[%s1 + $0x158] sm:$0xf]
  %v429 = vld [vmem:[%s1 + $0x15c] sm:$0xf]
  %v430 = vld [vmem:[%s1 + $0x160] sm:$0xf]
  %v431 = vld [vmem:[%s1 + $0x164] sm:$0xf]
  %v432 = vld [vmem:[%s1 + $0x168] sm:$0xf]
  %v433 = vld [vmem:[%s1 + $0x16c] sm:$0xf]
  %v434 = vld [vmem:[%s1 + $0x170] sm:$0xf]
  %v435 = vld [vmem:[%s1 + $0x174] sm:$0xf]
  %v436 = vld [vmem:[%s1 + $0x178] sm:$0xf]
  %v437 = vld [vmem:[%s1 + $0x17c] sm:$0xf]
  %v438 = vld [vmem:[%s1 + $0x180] sm:$0xf]
  %v439 = vld [vmem:[%s1 + $0x184] sm:$0xf]
  %v440 = vld [vmem:[%s1 + $0x188] sm:$0xf]
  %v441 = vld [vmem:[%s1 + $0x18c] sm:$0xf]
  %v442 = vld [vmem:[%s1 + $0x190] sm:$0xf]
  %v443 = vld [vmem:[%s1 + $0x194] sm:$0xf]
  %v444 = vld [vmem:[%s1 + $0x198] sm:$0xf]
  %v445 = vld [vmem:[%s1 + $0x19c] sm:$0xf]
  %v446 = vld [vmem:[%s1 + $0x1a0] sm:$0xf]
  %v447 = vld [vmem:[%s1 + $0x1a4] sm:$0xf]
  %v448 = vld [vmem:[%s1 + $0x1a8] sm:$0xf]
  %v449 = vld [vmem:[%s1 + $0x1ac] sm:$0xf]
  %v450 = vld [vmem:[%s1 + $0x1b0] sm:$0xf]
  %v451 = vld [vmem:[%s1 + $0x1b4] sm:$0xf]
  %v452 = vld [vmem:[%s1 + $0x1b8] sm:$0xf]
  %v453 = vld [vmem:[%s1 + $0x1bc] sm:$0xf]
  %v454 = vld [vmem:[%s1 + $0x1c0] sm:$0xf]
  %v455 = vld [vmem:[%s1 + $0x1c4] sm:$0xf]
  %v456 = vld [vmem:[%s1 + $0x1c8] sm:$0xf]
  %v457 = vld [vmem:[%s1 + $0x1cc] sm:$0xf]
  %v458 = vld [vmem:[%s1 + $0x1d0] sm:$0xf]
  %v459 = vld [vmem:[%s1 + $0x1d4] sm:$0xf]
  %v460 = vld [vmem:[%s1 + $0x1d8] sm:$0xf]
  %v461 = vld [vmem:[%s1 + $0x1dc] sm:$0xf]
  %v462 = vld [vmem:[%s1 + $0x1e0] sm:$0xf]
  %v463 = vld [vmem:[%s1 + $0x1e4] sm:$0xf]
  %v464 = vld [vmem:[%s1 + $0x1e8] sm:$0xf]
  %v465 = vld [vmem:[%s1 + $0x1ec] sm:$0xf]
  %v466 = vld [vmem:[%s1 + $0x1f0] sm:$0xf]
  %v467 = vld [vmem:[%s1 + $0x1f4] sm:$0xf]
  %v468 = vld [vmem:[%s1 + $0x1f8] sm:$0xf]
  %v469 = vld [vmem:[%s1 + $0x1fc] sm:$0xf]
  %v470 = vld [vmem:[%s1 + $0x200] sm:$0xf]
  %v471 = vld [vmem:[%s1 + $0x204] sm:$0xf]
  %v472 = vld [vmem:[%s1 + $0x208] sm:$0xf]
  %v473 = vld [vmem:[%s1 + $0x20c] sm:$0xf]
  %v474 = vld [vmem:[%s1 + $0x210] sm:$0xf]
  %v475 = vld [vmem:[%s1 + $0x214] sm:$0xf]
  %v476 = vld [vmem:[%s1 + $0x218] sm:$0xf]
  %v477 = vld [vmem:[%s1 + $0x21c] sm:$0xf]
  %v478 = vld [vmem:[%s1 + $0x220] sm:$0xf]
  %v479 = vld [vmem:[%s1 + $0x224] sm:$0xf]
  %v480 = vld [vmem:[%s1 + $0x228] sm:$0xf]
  %v481 = vld [vmem:[%s1 + $0x22c] sm:$0xf]
  %v482 = vld [vmem:[%s1 + $0x230] sm:$0xf]
  %v483 = vld [vmem:[%s1 + $0x234] sm:$0xf]
  %v484 = vld [vmem:[%s1 + $0x238] sm:$0xf]
  %v485 = vld [vmem:[%s1 + $0x23c] sm:$0xf]
  %v486 = vld [vmem:[%s1 + $0x240] sm:$0xf]
  %v487 = vld [vmem:[%s1 + $0x244] sm:$0xf]
  %v488 = vld [vmem:[%s1 + $0x248] sm:$0xf]
  %v489 = vld [vmem:[%s1 + $0x24c] sm:$0xf]
  %v490 = vld [vmem:[%s1 + $0x250] sm:$0xf]
  %v491 = vld [vmem:[%s1 + $0x254] sm:$0xf]
  %v492 = vld [vmem:[%s1 + $0x258] sm:$0xf]
  %v493 = vld [vmem:[%s1 + $0x25c] sm:$0xf]
  %v494 = vld [vmem:[%s1 + $0x260] sm:$0xf]
  %v495 = vld [vmem:[%s1 + $0x264] sm:$0xf]
  %v496 = vld [vmem:[%s1 + $0x268] sm:$0xf]
  %v497 = vld [vmem:[%s1 + $0x26c] sm:$0xf]
  %v498 = vld [vmem:[%s1 + $0x270] sm:$0xf]
  %v499 = vld [vmem:[%s1 + $0x274] sm:$0xf]
  %v500 = vld [vmem:[%s1 + $0x278] sm:$0xf]
  %v501 = vld [vmem:[%s1 + $0x27c] sm:$0xf]
  %v502 = vld [vmem:[%s1 + $0x280] sm:$0xf]
  %v503 = vld [vmem:[%s1 + $0x284] sm:$0xf]
  %v504 = vld [vmem:[%s1 + $0x288] sm:$0xf]
  %v505 = vld [vmem:[%s1 + $0x28c] sm:$0xf]
  %v506 = vld [vmem:[%s1 + $0x290] sm:$0xf]
  %v507 = vld [vmem:[%s1 + $0x294] sm:$0xf]
  %v508 = vld [vmem:[%s1 + $0x298] sm:$0xf]
  %v509 = vld [vmem:[%s1 + $0x29c] sm:$0xf]
  %v510 = vld [vmem:[%s1 + $0x2a0] sm:$0xf]
  %v511 = vld [vmem:[%s1 + $0x2a4] sm:$0xf]
  %v512 = vld [vmem:[%s1 + $0x2a8] sm:$0xf]
  %v513 = vld [vmem:[%s1 + $0x2ac] sm:$0xf]
  %v514 = vld [vmem:[%s1 + $0x2b0] sm:$0xf]
  %v515 = vld [vmem:[%s1 + $0x2b4] sm:$0xf]
  %v516 = vld [vmem:[%s1 + $0x2b8] sm:$0xf]
  %v517 = vld [vmem:[%s1 + $0x2bc] sm:$0xf]
  %v518 = vld [vmem:[%s1 + $0x2c0] sm:$0xf]
  %v519 = vld [vmem:[%s1 + $0x2c4] sm:$0xf]
  %v520 = vld [vmem:[%s1 + $0x2c8] sm:$0xf]
  %v521 = vld [vmem:[%s1 + $0x2cc] sm:$0xf]
  %v522 = vld [vmem:[%s1 + $0x2d0] sm:$0xf]
  %v523 = vld [vmem:[%s1 + $0x2d4] sm:$0xf]
  %v524 = vld [vmem:[%s1 + $0x2d8] sm:$0xf]
  %v525 = vld [vmem:[%s1 + $0x2dc] sm:$0xf]
  %v526 = vld [vmem:[%s1 + $0x2e0] sm:$0xf]
  %v527 = vld [vmem:[%s1 + $0x2e4] sm:$0xf]
  %v528 = vld [vmem:[%s1 + $0x2e8] sm:$0xf]
  %v529 = vld [vmem:[%s1 + $0x2ec] sm:$0xf]
  %v530 = vld [vmem:[%s1 + $0x2f0] sm:$0xf]
  %v531 = vld [vmem:[%s1 + $0x2f4] sm:$0xf]
  %v532 = vld [vmem:[%s1 + $0x2f8] sm:$0xf]
  %v533 = vld [vmem:[%s1 + $0x2fc] sm:$0xf]
  %v534 = vld [vmem:[%s1 + $0x300] sm:$0xf]
  %v535 = vld [vmem:[%s1 + $0x304] sm:$0xf]
  %v536 = vld [vmem:[%s1 + $0x308] sm:$0xf]
  %v537 = vld [vmem:[%s1 + $0x30c] sm:$0xf]
  %v538 = vld [vmem:[%s1 + $0x310] sm:$0xf]
  %v539 = vld [vmem:[%s1 + $0x314] sm:$0xf]
  %v540 = vld [vmem:[%s1 + $0x318] sm:$0xf]
  %v541 = vld [vmem:[%s1 + $0x31c] sm:$0xf]
  %v542 = vld [vmem:[%s1 + $0x320] sm:$0xf]
  %v543 = vld [vmem:[%s1 + $0x324] sm:$0xf]
  %v544 = vld [vmem:[%s1 + $0x328] sm:$0xf]
  %v545 = vld [vmem:[%s1 + $0x32c] sm:$0xf]
  %v546 = vld [vmem:[%s1 + $0x330] sm:$0xf]
  %v547 = vld [vmem:[%s1 + $0x334] sm:$0xf]
  %v548 = vld [vmem:[%s1 + $0x338] sm:$0xf]
  %v549 = vld [vmem:[%s1 + $0x33c] sm:$0xf]
  %v550 = vld [vmem:[%s1 + $0x340] sm:$0xf]
  %v551 = vld [vmem:[%s1 + $0x344] sm:$0xf]
  %v552 = vld [vmem:[%s1 + $0x348] sm:$0xf]
  %v553 = vld [vmem:[%s1 + $0x34c] sm:$0xf]
  %v554 = vld [vmem:[%s1 + $0x350] sm:$0xf]
  %v555 = vld [vmem:[%s1 + $0x354] sm:$0xf]
  %v556 = vld [vmem:[%s1 + $0x358] sm:$0xf]
  %v557 = vld [vmem:[%s1 + $0x35c] sm:$0xf]
  %v558 = vld [vmem:[%s1 + $0x360] sm:$0xf]
  %v559 = vld [vmem:[%s1 + $0x364] sm:$0xf]
  %v560 = vld [vmem:[%s1 + $0x368] sm:$0xf]
  %v561 = vld [vmem:[%s1 + $0x36c] sm:$0xf]
  %v562 = vld [vmem:[%s1 + $0x370] sm:$0xf]
  %v563 = vld [vmem:[%s1 + $0x374] sm:$0xf]
  %v564 = vld [vmem:[%s1 + $0x378] sm:$0xf]
  %v565 = vld [vmem:[%s1 + $0x37c] sm:$0xf]
  %v566 = vld [vmem:[%s1 + $0x380] sm:$0xf]
  %v567 = vld [vmem:[%s1 + $0x384] sm:$0xf]
  %v568 = vld [vmem:[%s1 + $0x388] sm:$0xf]
  %v569 = vld [vmem:[%s1 + $0x38c] sm:$0xf]
  %v570 = vld [vmem:[%s1 + $0x390] sm:$0xf]
  %v571 = vld [vmem:[%s1 + $0x394] sm:$0xf]
  %v572 = vld [vmem:[%s1 + $0x398] sm:$0xf]
  %v573 = vld [vmem:[%s1 + $0x39c] sm:$0xf]
  %v574 = vld [vmem:[%s1 + $0x3a0] sm:$0xf]
  %v575 = vld [vmem:[%s1 + $0x3a4] sm:$0xf]
  %v576 = vld [vmem:[%s1 + $0x3a8] sm:$0xf]
  %v577 = vld [vmem:[%s1 + $0x3ac] sm:$0xf]
  %v578 = vld [vmem:[%s1 + $0x3b0] sm:$0xf]
  %v579 = vld [vmem:[%s1 + $0x3b4] sm:$0xf]
  %v580 = vld [vmem:[%s1 + $0x3b8] sm:$0xf]
  %v581 = vld [vmem:[%s1 + $0x3bc] sm:$0xf]
  %v582 = vld [vmem:[%s1 + $0x3c0] sm:$0xf]
  %v583 = vld [vmem:[%s1 + $0x3c4] sm:$0xf]
  %v584 = vld [vmem:[%s1 + $0x3c8] sm:$0xf]
  %v585 = vld [vmem:[%s1 + $0x3cc] sm:$0xf]
  %v586 = vld [vmem:[%s1 + $0x3d0] sm:$0xf]
  %v587 = vld [vmem:[%s1 + $0x3d4] sm:$0xf]
  %v588 = vld [vmem:[%s1 + $0x3d8] sm:$0xf]
  %v589 = vld [vmem:[%s1 + $0x3dc] sm:$0xf]
  %v590 = vld [vmem:[%s1 + $0x3e0] sm:$0xf]
  %v591 = vld [vmem:[%s1 + $0x3e4] sm:$0xf]
  %v592 = vld [vmem:[%s1 + $0x3e8] sm:$0xf]
  %v593 = vld [vmem:[%s1 + $0x3ec] sm:$0xf]
  %v594 = vld [vmem:[%s1 + $0x3f0] sm:$0xf]
  %v595 = vld [vmem:[%s1 + $0x3f4] sm:$0xf]
  %v596 = vld [vmem:[%s1 + $0x3f8] sm:$0xf]
  %v597 = vld [vmem:[%s1 + $0x3fc] sm:$0xf]
  %v598 = vld [vmem:[%s1 + $0x400] sm:$0xf]
  %v599 = vld [vmem:[%s1 + $0x404] sm:$0xf]
  %v600 = vld [vmem:[%s1 + $0x408] sm:$0xf]
  %v601 = vld [vmem:[%s1 + $0x40c] sm:$0xf]
  %v602 = vld [vmem:[%s1 + $0x410] sm:$0xf]
  %v603 = vld [vmem:[%s1 + $0x414] sm:$0xf]
  %v604 = vld [vmem:[%s1 + $0x418] sm:$0xf]
  %v605 = vld [vmem:[%s1 + $0x41c] sm:$0xf]
  %v606 = vld [vmem:[%s1 + $0x420] sm:$0xf]
  %v607 = vld [vmem:[%s1 + $0x424] sm:$0xf]
  %v608 = vld [vmem:[%s1 + $0x428] sm:$0xf]
  %v609 = vld [vmem:[%s1 + $0x42c] sm:$0xf]
  %v610 = vld [vmem:[%s1 + $0x430] sm:$0xf]
  %v611 = vld [vmem:[%s1 + $0x434] sm:$0xf]
  %v612 = vld [vmem:[%s1 + $0x438] sm:$0xf]
  %v613 = vld [vmem:[%s1 + $0x43c] sm:$0xf]
  %v614 = vld [vmem:[%s1 + $0x440] sm:$0xf]
  %v615 = vld [vmem:[%s1 + $0x444] sm:$0xf]
  %v616 = vld [vmem:[%s1 + $0x448] sm:$0xf]
  %v617 = vld [vmem:[%s1 + $0x44c] sm:$0xf]
  %v618 = vld [vmem:[%s1 + $0x450] sm:$0xf]
  %v619 = vld [vmem:[%s1 + $0x454] sm:$0xf]
  %v620 = vld [vmem:[%s1 + $0x458] sm:$0xf]
  %v621 = vld [vmem:[%s1 + $0x45c] sm:$0xf]
  %v622 = vld [vmem:[%s1 + $0x460] sm:$0xf]
  %v623 = vld [vmem:[%s1 + $0x464] sm:$0xf]
  %v624 = vld [vmem:[%s1 + $0x468] sm:$0xf]
  %v625 = vld [vmem:[%s1 + $0x46c] sm:$0xf]
  %v626 = vld [vmem:[%s1 + $0x470] sm:$0xf]
  %v627 = vld [vmem:[%s1 + $0x474] sm:$0xf]
  %v628 = vld [vmem:[%s1 + $0x478] sm:$0xf]
  %v629 = vld [vmem:[%s1 + $0x47c] sm:$0xf]
  %v630 = vld [vmem:[%s1 + $0x480] sm:$0xf]
  %v631 = vld [vmem:[%s1 + $0x484] sm:$0xf]
  %v632 = vld [vmem:[%s1 + $0x488] sm:$0xf]
  %v633 = vld [vmem:[%s1 + $0x48c] sm:$0xf]
  %v634 = vld [vmem:[%s1 + $0x490] sm:$0xf]
  %v635 = vld [vmem:[%s1 + $0x494] sm:$0xf]
  %v636 = vld [vmem:[%s1 + $0x498] sm:$0xf]
  %v637 = vld [vmem:[%s1 + $0x49c] sm:$0xf]
  %v638 = vld [vmem:[%s1 + $0x4a0] sm:$0xf]
  %v639 = vld [vmem:[%s1 + $0x4a4] sm:$0xf]
  %v640 = vld [vmem:[%s1 + $0x4a8] sm:$0xf]
  %v641 = vld [vmem:[%s1 + $0x4ac] sm:$0xf]
  %v642 = vld [vmem:[%s1 + $0x4b0] sm:$0xf]
  %v643 = vld [vmem:[%s1 + $0x4b4] sm:$0xf]
  %v644 = vld [vmem:[%s1 + $0x4b8] sm:$0xf]
  %v645 = vld [vmem:[%s1 + $0x4bc] sm:$0xf]
  %v646 = vld [vmem:[%s1 + $0x4c0] sm:$0xf]
  %v647 = vld [vmem:[%s1 + $0x4c4] sm:$0xf]
  %v648 = vld [vmem:[%s1 + $0x4c8] sm:$0xf]
  %v649 = vld [vmem:[%s1 + $0x4cc] sm:$0xf]
  %v650 = vld [vmem:[%s1 + $0x4d0] sm:$0xf]
  %v651 = vld [vmem:[%s1 + $0x4d4] sm:$0xf]
  %v652 = vld [vmem:[%s1 + $0x4d8] sm:$0xf]
  %v653 = vld [vmem:[%s1 + $0x4dc] sm:$0xf]
  %v654 = vld [vmem:[%s1 + $0x4e0] sm:$0xf]
  %v655 = vld [vmem:[%s1 + $0x4e4] sm:$0xf]
  %v656 = vld [vmem:[%s1 + $0x4e8] sm:$0xf]
  %v657 = vld [vmem:[%s1 + $0x4ec] sm:$0xf]
  %v658 = vld [vmem:[%s1 + $0x4f0] sm:$0xf]
  %v659 = vld [vmem:[%s1 + $0x4f4] sm:$0xf]
  %v660 = vld [vmem:[%s1 + $0x4f8] sm:$0xf]
  %v661 = vld [vmem:[%s1 + $0x4fc] sm:$0xf]
  %v662 = vld [vmem:[%s1 + $0x500] sm:$0xf]
  %v663 = vld [vmem:[%s1 + $0x504] sm:$0xf]
  %v664 = vld [vmem:[%s1 + $0x508] sm:$0xf]
  %v665 = vld [vmem:[%s1 + $0x50c] sm:$0xf]
  %v666 = vld [vmem:[%s1 + $0x510] sm:$0xf]
  %v667 = vld [vmem:[%s1 + $0x514] sm:$0xf]
  %v668 = vld [vmem:[%s1 + $0x518] sm:$0xf]
  %v669 = vld [vmem:[%s1 + $0x51c] sm:$0xf]
  %v670 = vld [vmem:[%s1 + $0x520] sm:$0xf]
  %v671 = vld [vmem:[%s1 + $0x524] sm:$0xf]
  %v672 = vld [vmem:[%s1 + $0x528] sm:$0xf]
  %v673 = vld [vmem:[%s1 + $0x52c] sm:$0xf]
  %v674 = vld [vmem:[%s1 + $0x530] sm:$0xf]
  %v675 = vld [vmem:[%s1 + $0x534] sm:$0xf]
  %v676 = vld [vmem:[%s1 + $0x538] sm:$0xf]
  %v677 = vld [vmem:[%s1 + $0x53c] sm:$0xf]
  %v678 = vld [vmem:[%s1 + $0x540] sm:$0xf]
  %v679 = vld [vmem:[%s1 + $0x544] sm:$0xf]
  %v680 = vld [vmem:[%s1 + $0x548] sm:$0xf]
  %v681 = vld [vmem:[%s1 + $0x54c] sm:$0xf]
  %v682 = vld [vmem:[%s1 + $0x550] sm:$0xf]
  %v683 = vld [vmem:[%s1 + $0x554] sm:$0xf]
  %v684 = vld [vmem:[%s1 + $0x558] sm:$0xf]
  %v685 = vld [vmem:[%s1 + $0x55c] sm:$0xf]
  %v686 = vld [vmem:[%s1 + $0x560] sm:$0xf]
  %v687 = vld [vmem:[%s1 + $0x564] sm:$0xf]
  %v688 = vld [vmem:[%s1 + $0x568] sm:$0xf]
  %v689 = vld [vmem:[%s1 + $0x56c] sm:$0xf]
  %v690 = vld [vmem:[%s1 + $0x570] sm:$0xf]
  %v691 = vld [vmem:[%s1 + $0x574] sm:$0xf]
  %v692 = vld [vmem:[%s1 + $0x578] sm:$0xf]
  %v693 = vld [vmem:[%s1 + $0x57c] sm:$0xf]
  %v694 = vld [vmem:[%s1 + $0x580] sm:$0xf]
  %v695 = vld [vmem:[%s1 + $0x584] sm:$0xf]
  %v696 = vld [vmem:[%s1 + $0x588] sm:$0xf]
  %v697 = vld [vmem:[%s1 + $0x58c] sm:$0xf]
  %v698 = vld [vmem:[%s1 + $0x590] sm:$0xf]
  %v699 = vld [vmem:[%s1 + $0x594] sm:$0xf]
  %v700 = vld [vmem:[%s1 + $0x598] sm:$0xf]
  %v701 = vld [vmem:[%s1 + $0x59c] sm:$0xf]
  %v702 = vld [vmem:[%s1 + $0x5a0] sm:$0xf]
  %v703 = vld [vmem:[%s1 + $0x5a4] sm:$0xf]
  %v704 = vld [vmem:[%s1 + $0x5a8] sm:$0xf]
  %v705 = vld [vmem:[%s1 + $0x5ac] sm:$0xf]
  %v706 = vld [vmem:[%s1 + $0x5b0] sm:$0xf]
  %v707 = vld [vmem:[%s1 + $0x5b4] sm:$0xf]
  %v708 = vld [vmem:[%s1 + $0x5b8] sm:$0xf]
  %v709 = vld [vmem:[%s1 + $0x5bc] sm:$0xf]
  %v710 = vld [vmem:[%s1 + $0x5c0] sm:$0xf]
  %v711 = vld [vmem:[%s1 + $0x5c4] sm:$0xf]
  %v712 = vld [vmem:[%s1 + $0x5c8] sm:$0xf]
  %v713 = vld [vmem:[%s1 + $0x5cc] sm:$0xf]
  %v714 = vld [vmem:[%s1 + $0x5d0] sm:$0xf]
  %v715 = vld [vmem:[%s1 + $0x5d4] sm:$0xf]
  %v716 = vld [vmem:[%s1 + $0x5d8] sm:$0xf]
  %v717 = vld [vmem:[%s1 + $0x5dc] sm:$0xf]
  %v718 = vld [vmem:[%s1 + $0x5e0] sm:$0xf]
  %v719 = vld [vmem:[%s1 + $0x5e4] sm:$0xf]
  %v720 = vld [vmem:[%s1 + $0x5e8] sm:$0xf]
  %v721 = vld [vmem:[%s1 + $0x5ec] sm:$0xf]
  %v722 = vld [vmem:[%s1 + $0x5f0] sm:$0xf]
  %v723 = vld [vmem:[%s1 + $0x5f4] sm:$0xf]
  %v724 = vld [vmem:[%s1 + $0x5f8] sm:$0xf]
  %v725 = vld [vmem:[%s1 + $0x5fc] sm:$0xf]
  %v726 = vld [vmem:[%s1 + $0x600] sm:$0xf]
  %v727 = vld [vmem:[%s1 + $0x604] sm:$0xf]
  %v728 = vld [vmem:[%s1 + $0x608] sm:$0xf]
  %v729 = vld [vmem:[%s1 + $0x60c] sm:$0xf]
  %v730 = vld [vmem:[%s1 + $0x610] sm:$0xf]
  %v731 = vld [vmem:[%s1 + $0x614] sm:$0xf]
  %v732 = vld [vmem:[%s1 + $0x618] sm:$0xf]
  %v733 = vld [vmem:[%s1 + $0x61c] sm:$0xf]
  %v734 = vld [vmem:[%s1 + $0x620] sm:$0xf]
  %v735 = vld [vmem:[%s1 + $0x624] sm:$0xf]
  %v736 = vld [vmem:[%s1 + $0x628] sm:$0xf]
  %v737 = vld [vmem:[%s1 + $0x62c] sm:$0xf]
  %v738 = vld [vmem:[%s1 + $0x630] sm:$0xf]
  %v739 = vld [vmem:[%s1 + $0x634] sm:$0xf]
  %v740 = vld [vmem:[%s1 + $0x638] sm:$0xf]
  %v741 = vld [vmem:[%s1 + $0x63c] sm:$0xf]
  %v1067 = vunpack.c.l.b16 %v17
  %v1068 = vunpack.c.h.b16 %v17
  %v1069 = vunpack.c.l.b16 %v18
  %v1070 = vunpack.c.h.b16 %v18
  %v1071 = vunpack.c.l.b16 %v19
  %v1072 = vunpack.c.h.b16 %v19
  %v1073 = vunpack.c.l.b16 %v20
  %v1074 = vunpack.c.h.b16 %v20
  %v1075 = vunpack.c.l.b16 %v21
  %v1076 = vunpack.c.h.b16 %v21
  %v1077 = vunpack.c.l.b16 %v22
  %v1078 = vunpack.c.h.b16 %v22
  %v1079 = vunpack.c.l.b16 %v23
  %v1080 = vunpack.c.h.b16 %v23
  %v1081 = vunpack.c.l.b16 %v24
  %v1082 = vunpack.c.h.b16 %v24
  %v1083 = vunpack.c.l.b16 %v25
  %v1084 = vunpack.c.h.b16 %v25
  %v1085 = vunpack.c.l.b16 %v26
  %v1086 = vunpack.c.h.b16 %v26
  %v1087 = vunpack.c.l.b16 %v27
  %v1088 = vunpack.c.h.b16 %v27
  %v1089 = vunpack.c.l.b16 %v28
  %v1090 = vunpack.c.h.b16 %v28
  %v1091 = vunpack.c.l.b16 %v29
  %v1092 = vunpack.c.l.b16 %v30
  %v1093 = vunpack.c.h.b16 %v30
  %v1094 = vunpack.c.l.b16 %v31
  %v1095 = vunpack.c.h.b16 %v31
  %v1096 = vunpack.c.l.b16 %v32
  %v1097 = vunpack.c.h.b16 %v32
  %v1098 = vunpack.c.l.b16 %v33
  %v1099 = vunpack.c.h.b16 %v33
  %v1100 = vunpack.c.l.b16 %v34
  %v1101 = vunpack.c.h.b16 %v34
  %v1102 = vunpack.c.l.b16 %v35
  %v1103 = vunpack.c.h.b16 %v35
  %v1104 = vunpack.c.l.b16 %v36
  %v1105 = vunpack.c.h.b16 %v36
  %v1106 = vunpack.c.l.b16 %v37
  %v1107 = vunpack.c.h.b16 %v37
  %v1108 = vunpack.c.l.b16 %v38
  %v1109 = vunpack.c.h.b16 %v38
  %v1110 = vunpack.c.l.b16 %v39
  %v1111 = vunpack.c.h.b16 %v39
  %v1112 = vunpack.c.l.b16 %v40
  %v1113 = vunpack.c.h.b16 %v40
  %v1114 = vunpack.c.l.b16 %v41
  %v1115 = vunpack.c.h.b16 %v41
  %v1116 = vunpack.c.l.b16 %v42
  %v1117 = vunpack.c.l.b16 %v43
  %v1118 = vunpack.c.h.b16 %v43
  %v1119 = vunpack.c.l.b16 %v44
  %v1120 = vunpack.c.h.b16 %v44
  %v1121 = vunpack.c.l.b16 %v45
  %v1122 = vunpack.c.h.b16 %v45
  %v1123 = vunpack.c.l.b16 %v46
  %v1124 = vunpack.c.h.b16 %v46
  %v1125 = vunpack.c.l.b16 %v47
  %v1126 = vunpack.c.h.b16 %v47
  %v1127 = vunpack.c.l.b16 %v48
  %v1128 = vunpack.c.h.b16 %v48
  %v1129 = vunpack.c.l.b16 %v49
  %v1130 = vunpack.c.h.b16 %v49
  %v1131 = vunpack.c.l.b16 %v50
  %v1132 = vunpack.c.h.b16 %v50
  %v1133 = vunpack.c.l.b16 %v51
  %v1134 = vunpack.c.h.b16 %v51
  %v1135 = vunpack.c.l.b16 %v52
  %v1136 = vunpack.c.h.b16 %v52
  %v1137 = vunpack.c.l.b16 %v53
  %v1138 = vunpack.c.h.b16 %v53
  %v1139 = vunpack.c.l.b16 %v54
  %v1140 = vunpack.c.h.b16 %v54
  %v1141 = vunpack.c.l.b16 %v55
  %v1142 = vunpack.c.l.b16 %v56
  %v1143 = vunpack.c.h.b16 %v56
  %v1144 = vunpack.c.l.b16 %v57
  %v1145 = vunpack.c.h.b16 %v57
  %v1146 = vunpack.c.l.b16 %v58
  %v1147 = vunpack.c.h.b16 %v58
  %v1148 = vunpack.c.l.b16 %v59
  %v1149 = vunpack.c.h.b16 %v59
  %v1150 = vunpack.c.l.b16 %v60
  %v1151 = vunpack.c.h.b16 %v60
  %v1152 = vunpack.c.l.b16 %v61
  %v1153 = vunpack.c.h.b16 %v61
  %v1154 = vunpack.c.l.b16 %v62
  %v1155 = vunpack.c.h.b16 %v62
  %v1156 = vunpack.c.l.b16 %v63
  %v1157 = vunpack.c.h.b16 %v63
  %v1158 = vunpack.c.l.b16 %v64
  %v1159 = vunpack.c.h.b16 %v64
  %v1160 = vunpack.c.l.b16 %v65
  %v1161 = vunpack.c.h.b16 %v65
  %v1162 = vunpack.c.l.b16 %v66
  %v1163 = vunpack.c.h.b16 %v66
  %v1164 = vunpack.c.l.b16 %v67
  %v1165 = vunpack.c.h.b16 %v67
  %v1166 = vunpack.c.l.b16 %v68
  %v1167 = vunpack.c.l.b16 %v69
  %v1168 = vunpack.c.h.b16 %v69
  %v1169 = vunpack.c.l.b16 %v70
  %v1170 = vunpack.c.h.b16 %v70
  %v1171 = vunpack.c.l.b16 %v71
  %v1172 = vunpack.c.h.b16 %v71
  %v1173 = vunpack.c.l.b16 %v72
  %v1174 = vunpack.c.h.b16 %v72
  %v1175 = vunpack.c.l.b16 %v73
  %v1176 = vunpack.c.h.b16 %v73
  %v1177 = vunpack.c.l.b16 %v74
  %v1178 = vunpack.c.h.b16 %v74
  %v1179 = vunpack.c.l.b16 %v75
  %v1180 = vunpack.c.h.b16 %v75
  %v1181 = vunpack.c.l.b16 %v76
  %v1182 = vunpack.c.h.b16 %v76
  %v1183 = vunpack.c.l.b16 %v77
  %v1184 = vunpack.c.h.b16 %v77
  %v1185 = vunpack.c.l.b16 %v78
  %v1186 = vunpack.c.h.b16 %v78
  %v1187 = vunpack.c.l.b16 %v79
  %v1188 = vunpack.c.h.b16 %v79
  %v1189 = vunpack.c.l.b16 %v80
  %v1190 = vunpack.c.h.b16 %v80
  %v1191 = vunpack.c.l.b16 %v81
  %v1192 = vunpack.c.l.b16 %v82
  %v1193 = vunpack.c.h.b16 %v82
  %v1194 = vunpack.c.l.b16 %v83
  %v1195 = vunpack.c.h.b16 %v83
  %v1196 = vunpack.c.l.b16 %v84
  %v1197 = vunpack.c.h.b16 %v84
  %v1198 = vunpack.c.l.b16 %v85
  %v1199 = vunpack.c.h.b16 %v85
  %v1200 = vunpack.c.l.b16 %v86
  %v1201 = vunpack.c.h.b16 %v86
  %v1202 = vunpack.c.l.b16 %v87
  %v1203 = vunpack.c.h.b16 %v87
  %v1204 = vunpack.c.l.b16 %v88
  %v1205 = vunpack.c.h.b16 %v88
  %v1206 = vunpack.c.l.b16 %v89
  %v1207 = vunpack.c.h.b16 %v89
  %v1208 = vunpack.c.l.b16 %v90
  %v1209 = vunpack.c.h.b16 %v90
  %v1210 = vunpack.c.l.b16 %v91
  %v1211 = vunpack.c.h.b16 %v91
  %v1212 = vunpack.c.l.b16 %v92
  %v1213 = vunpack.c.h.b16 %v92
  %v1214 = vunpack.c.l.b16 %v93
  %v1215 = vunpack.c.h.b16 %v93
  %v1216 = vunpack.c.l.b16 %v94
  %v1217 = vunpack.c.l.b16 %v95
  %v1218 = vunpack.c.h.b16 %v95
  %v1219 = vunpack.c.l.b16 %v96
  %v1220 = vunpack.c.h.b16 %v96
  %v1221 = vunpack.c.l.b16 %v97
  %v1222 = vunpack.c.h.b16 %v97
  %v1223 = vunpack.c.l.b16 %v98
  %v1224 = vunpack.c.h.b16 %v98
  %v1225 = vunpack.c.l.b16 %v99
  %v1226 = vunpack.c.h.b16 %v99
  %v1227 = vunpack.c.l.b16 %v100
  %v1228 = vunpack.c.h.b16 %v100
  %v1229 = vunpack.c.l.b16 %v101
  %v1230 = vunpack.c.h.b16 %v101
  %v1231 = vunpack.c.l.b16 %v102
  %v1232 = vunpack.c.h.b16 %v102
  %v1233 = vunpack.c.l.b16 %v103
  %v1234 = vunpack.c.h.b16 %v103
  %v1235 = vunpack.c.l.b16 %v104
  %v1236 = vunpack.c.h.b16 %v104
  %v1237 = vunpack.c.l.b16 %v105
  %v1238 = vunpack.c.h.b16 %v105
  %v1239 = vunpack.c.l.b16 %v106
  %v1240 = vunpack.c.h.b16 %v106
  %v1241 = vunpack.c.l.b16 %v107
  %v1242 = vunpack.c.l.b16 %v108
  %v1243 = vunpack.c.h.b16 %v108
  %v1244 = vunpack.c.l.b16 %v109
  %v1245 = vunpack.c.h.b16 %v109
  %v1246 = vunpack.c.l.b16 %v110
  %v1247 = vunpack.c.h.b16 %v110
  %v1248 = vunpack.c.l.b16 %v111
  %v1249 = vunpack.c.h.b16 %v111
  %v1250 = vunpack.c.l.b16 %v112
  %v1251 = vunpack.c.h.b16 %v112
  %v1252 = vunpack.c.l.b16 %v113
  %v1253 = vunpack.c.h.b16 %v113
  %v1254 = vunpack.c.l.b16 %v114
  %v1255 = vunpack.c.h.b16 %v114
  %v1256 = vunpack.c.l.b16 %v115
  %v1257 = vunpack.c.h.b16 %v115
  %v1258 = vunpack.c.l.b16 %v116
  %v1259 = vunpack.c.h.b16 %v116
  %v1260 = vunpack.c.l.b16 %v117
  %v1261 = vunpack.c.h.b16 %v117
  %v1262 = vunpack.c.l.b16 %v118
  %v1263 = vunpack.c.h.b16 %v118
  %v1264 = vunpack.c.l.b16 %v119
  %v1265 = vunpack.c.h.b16 %v119
  %v1266 = vunpack.c.l.b16 %v120
  %v1267 = vunpack.c.l.b16 %v121
  %v1268 = vunpack.c.h.b16 %v121
  %v1269 = vunpack.c.l.b16 %v122
  %v1270 = vunpack.c.h.b16 %v122
  %v1271 = vunpack.c.l.b16 %v123
  %v1272 = vunpack.c.h.b16 %v123
  %v1273 = vunpack.c.l.b16 %v124
  %v1274 = vunpack.c.h.b16 %v124
  %v1275 = vunpack.c.l.b16 %v125
  %v1276 = vunpack.c.h.b16 %v125
  %v1277 = vunpack.c.l.b16 %v126
  %v1278 = vunpack.c.h.b16 %v126
  %v1279 = vunpack.c.l.b16 %v127
  %v1280 = vunpack.c.h.b16 %v127
  %v1281 = vunpack.c.l.b16 %v128
  %v1282 = vunpack.c.h.b16 %v128
  %v1283 = vunpack.c.l.b16 %v129
  %v1284 = vunpack.c.h.b16 %v129
  %v1285 = vunpack.c.l.b16 %v130
  %v1286 = vunpack.c.h.b16 %v130
  %v1287 = vunpack.c.l.b16 %v131
  %v1288 = vunpack.c.h.b16 %v131
  %v1289 = vunpack.c.l.b16 %v132
  %v1290 = vunpack.c.h.b16 %v132
  %v1291 = vunpack.c.l.b16 %v133
  %v1292 = vunpack.c.l.b16 %v134
  %v1293 = vunpack.c.h.b16 %v134
  %v1294 = vunpack.c.l.b16 %v135
  %v1295 = vunpack.c.h.b16 %v135
  %v1296 = vunpack.c.l.b16 %v136
  %v1297 = vunpack.c.h.b16 %v136
  %v1298 = vunpack.c.l.b16 %v137
  %v1299 = vunpack.c.h.b16 %v137
  %v1300 = vunpack.c.l.b16 %v138
  %v1301 = vunpack.c.h.b16 %v138
  %v1302 = vunpack.c.l.b16 %v139
  %v1303 = vunpack.c.h.b16 %v139
  %v1304 = vunpack.c.l.b16 %v140
  %v1305 = vunpack.c.h.b16 %v140
  %v1306 = vunpack.c.l.b16 %v141
  %v1307 = vunpack.c.h.b16 %v141
  %v1308 = vunpack.c.l.b16 %v142
  %v1309 = vunpack.c.h.b16 %v142
  %v1310 = vunpack.c.l.b16 %v143
  %v1311 = vunpack.c.h.b16 %v143
  %v1312 = vunpack.c.l.b16 %v144
  %v1313 = vunpack.c.h.b16 %v144
  %v1314 = vunpack.c.l.b16 %v145
  %v1315 = vunpack.c.h.b16 %v145
  %v1316 = vunpack.c.l.b16 %v146
  %v1317 = vunpack.c.l.b16 %v147
  %v1318 = vunpack.c.h.b16 %v147
  %v1319 = vunpack.c.l.b16 %v148
  %v1320 = vunpack.c.h.b16 %v148
  %v1321 = vunpack.c.l.b16 %v149
  %v1322 = vunpack.c.h.b16 %v149
  %v1323 = vunpack.c.l.b16 %v150
  %v1324 = vunpack.c.h.b16 %v150
  %v1325 = vunpack.c.l.b16 %v151
  %v1326 = vunpack.c.h.b16 %v151
  %v1327 = vunpack.c.l.b16 %v152
  %v1328 = vunpack.c.h.b16 %v152
  %v1329 = vunpack.c.l.b16 %v153
  %v1330 = vunpack.c.h.b16 %v153
  %v1331 = vunpack.c.l.b16 %v154
  %v1332 = vunpack.c.h.b16 %v154
  %v1333 = vunpack.c.l.b16 %v155
  %v1334 = vunpack.c.h.b16 %v155
  %v1335 = vunpack.c.l.b16 %v156
  %v1336 = vunpack.c.h.b16 %v156
  %v1337 = vunpack.c.l.b16 %v157
  %v1338 = vunpack.c.h.b16 %v157
  %v1339 = vunpack.c.l.b16 %v158
  %v1340 = vunpack.c.h.b16 %v158
  %v1341 = vunpack.c.l.b16 %v159
  %v1342 = vunpack.c.l.b16 %v160
  %v1343 = vunpack.c.h.b16 %v160
  %v1344 = vunpack.c.l.b16 %v161
  %v1345 = vunpack.c.h.b16 %v161
  %v1346 = vunpack.c.l.b16 %v162
  %v1347 = vunpack.c.h.b16 %v162
  %v1348 = vunpack.c.l.b16 %v163
  %v1349 = vunpack.c.h.b16 %v163
  %v1350 = vunpack.c.l.b16 %v164
  %v1351 = vunpack.c.h.b16 %v164
  %v1352 = vunpack.c.l.b16 %v165
  %v1353 = vunpack.c.h.b16 %v165
  %v1354 = vunpack.c.l.b16 %v166
  %v1355 = vunpack.c.h.b16 %v166
  %v1356 = vunpack.c.l.b16 %v167
  %v1357 = vunpack.c.h.b16 %v167
  %v1358 = vunpack.c.l.b16 %v168
  %v1359 = vunpack.c.h.b16 %v168
  %v1360 = vunpack.c.l.b16 %v169
  %v1361 = vunpack.c.h.b16 %v169
  %v1362 = vunpack.c.l.b16 %v170
  %v1363 = vunpack.c.h.b16 %v170
  %v1364 = vunpack.c.l.b16 %v171
  %v1365 = vunpack.c.h.b16 %v171
  %v1366 = vunpack.c.l.b16 %v172
  %v1367 = vunpack.c.l.b16 %v173
  %v1368 = vunpack.c.h.b16 %v173
  %v1369 = vunpack.c.l.b16 %v174
  %v1370 = vunpack.c.h.b16 %v174
  %v1371 = vunpack.c.l.b16 %v175
  %v1372 = vunpack.c.h.b16 %v175
  %v1373 = vunpack.c.l.b16 %v176
  %v1374 = vunpack.c.h.b16 %v176
  %v1375 = vunpack.c.l.b16 %v177
  %v1376 = vunpack.c.h.b16 %v177
  %v1377 = vunpack.c.l.b16 %v178
  %v1378 = vunpack.c.h.b16 %v178
  %v1379 = vunpack.c.l.b16 %v179
  %v1380 = vunpack.c.h.b16 %v179
  %v1381 = vunpack.c.l.b16 %v180
  %v1382 = vunpack.c.h.b16 %v180
  %v1383 = vunpack.c.l.b16 %v181
  %v1384 = vunpack.c.h.b16 %v181
  %v1385 = vunpack.c.l.b16 %v182
  %v1386 = vunpack.c.h.b16 %v182
  %v1387 = vunpack.c.l.b16 %v183
  %v1388 = vunpack.c.h.b16 %v183
  %v1389 = vunpack.c.l.b16 %v184
  %v1390 = vunpack.c.h.b16 %v184
  %v1391 = vunpack.c.l.b16 %v185
  %v1392 = vunpack.c.l.b16 %v186
  %v1393 = vunpack.c.h.b16 %v186
  %v1394 = vunpack.c.l.b16 %v187
  %v1395 = vunpack.c.h.b16 %v187
  %v1396 = vunpack.c.l.b16 %v188
  %v1397 = vunpack.c.h.b16 %v188
  %v1398 = vunpack.c.l.b16 %v189
  %v1399 = vunpack.c.h.b16 %v189
  %v1400 = vunpack.c.l.b16 %v190
  %v1401 = vunpack.c.h.b16 %v190
  %v1402 = vunpack.c.l.b16 %v191
  %v1403 = vunpack.c.h.b16 %v191
  %v1404 = vunpack.c.l.b16 %v192
  %v1405 = vunpack.c.h.b16 %v192
  %v1406 = vunpack.c.l.b16 %v193
  %v1407 = vunpack.c.h.b16 %v193
  %v1408 = vunpack.c.l.b16 %v194
  %v1409 = vunpack.c.h.b16 %v194
  %v1410 = vunpack.c.l.b16 %v195
  %v1411 = vunpack.c.h.b16 %v195
  %v1412 = vunpack.c.l.b16 %v196
  %v1413 = vunpack.c.h.b16 %v196
  %v1414 = vunpack.c.l.b16 %v197
  %v1415 = vunpack.c.h.b16 %v197
  %v1416 = vunpack.c.l.b16 %v198
  %v1417 = vunpack.c.l.b16 %v199
  %v1418 = vunpack.c.h.b16 %v199
  %v1419 = vunpack.c.l.b16 %v200
  %v1420 = vunpack.c.h.b16 %v200
  %v1421 = vunpack.c.l.b16 %v201
  %v1422 = vunpack.c.h.b16 %v201
  %v1423 = vunpack.c.l.b16 %v202
  %v1424 = vunpack.c.h.b16 %v202
  %v1425 = vunpack.c.l.b16 %v203
  %v1426 = vunpack.c.h.b16 %v203
  %v1427 = vunpack.c.l.b16 %v204
  %v1428 = vunpack.c.h.b16 %v204
  %v1429 = vunpack.c.l.b16 %v205
  %v1430 = vunpack.c.h.b16 %v205
  %v1431 = vunpack.c.l.b16 %v206
  %v1432 = vunpack.c.h.b16 %v206
  %v1433 = vunpack.c.l.b16 %v207
  %v1434 = vunpack.c.h.b16 %v207
  %v1435 = vunpack.c.l.b16 %v208
  %v1436 = vunpack.c.h.b16 %v208
  %v1437 = vunpack.c.l.b16 %v209
  %v1438 = vunpack.c.h.b16 %v209
  %v1439 = vunpack.c.l.b16 %v210
  %v1440 = vunpack.c.h.b16 %v210
  %v1441 = vunpack.c.l.b16 %v211
  %v1442 = vunpack.c.l.b16 %v212
  %v1443 = vunpack.c.h.b16 %v212
  %v1444 = vunpack.c.l.b16 %v213
  %v1445 = vunpack.c.h.b16 %v213
  %v1446 = vunpack.c.l.b16 %v214
  %v1447 = vunpack.c.h.b16 %v214
  %v1448 = vunpack.c.l.b16 %v215
  %v1449 = vunpack.c.h.b16 %v215
  %v1450 = vunpack.c.l.b16 %v216
  %v1451 = vunpack.c.h.b16 %v216
  %v1452 = vunpack.c.l.b16 %v217
  %v1453 = vunpack.c.h.b16 %v217
  %v1454 = vunpack.c.l.b16 %v218
  %v1455 = vunpack.c.h.b16 %v218
  %v1456 = vunpack.c.l.b16 %v219
  %v1457 = vunpack.c.h.b16 %v219
  %v1458 = vunpack.c.l.b16 %v220
  %v1459 = vunpack.c.h.b16 %v220
  %v1460 = vunpack.c.l.b16 %v221
  %v1461 = vunpack.c.h.b16 %v221
  %v1462 = vunpack.c.l.b16 %v222
  %v1463 = vunpack.c.h.b16 %v222
  %v1464 = vunpack.c.l.b16 %v223
  %v1465 = vunpack.c.h.b16 %v223
  %v1466 = vunpack.c.l.b16 %v224
  %v1467 = vunpack.c.l.b16 %v225
  %v1468 = vunpack.c.h.b16 %v225
  %v1469 = vunpack.c.l.b16 %v226
  %v1470 = vunpack.c.h.b16 %v226
  %v1471 = vunpack.c.l.b16 %v227
  %v1472 = vunpack.c.h.b16 %v227
  %v1473 = vunpack.c.l.b16 %v228
  %v1474 = vunpack.c.h.b16 %v228
  %v1475 = vunpack.c.l.b16 %v229
  %v1476 = vunpack.c.h.b16 %v229
  %v1477 = vunpack.c.l.b16 %v230
  %v1478 = vunpack.c.h.b16 %v230
  %v1479 = vunpack.c.l.b16 %v231
  %v1480 = vunpack.c.h.b16 %v231
  %v1481 = vunpack.c.l.b16 %v232
  %v1482 = vunpack.c.h.b16 %v232
  %v1483 = vunpack.c.l.b16 %v233
  %v1484 = vunpack.c.h.b16 %v233
  %v1485 = vunpack.c.l.b16 %v234
  %v1486 = vunpack.c.h.b16 %v234
  %v1487 = vunpack.c.l.b16 %v235
  %v1488 = vunpack.c.h.b16 %v235
  %v1489 = vunpack.c.l.b16 %v236
  %v1490 = vunpack.c.h.b16 %v236
  %v1491 = vunpack.c.l.b16 %v237
  %v1492 = vunpack.c.l.b16 %v238
  %v1493 = vunpack.c.h.b16 %v238
  %v1494 = vunpack.c.l.b16 %v239
  %v1495 = vunpack.c.h.b16 %v239
  %v1496 = vunpack.c.l.b16 %v240
  %v1497 = vunpack.c.h.b16 %v240
  %v1498 = vunpack.c.l.b16 %v241
  %v1499 = vunpack.c.h.b16 %v241
  %v1500 = vunpack.c.l.b16 %v242
  %v1501 = vunpack.c.h.b16 %v242
  %v1502 = vunpack.c.l.b16 %v243
  %v1503 = vunpack.c.h.b16 %v243
  %v1504 = vunpack.c.l.b16 %v244
  %v1505 = vunpack.c.h.b16 %v244
  %v1506 = vunpack.c.l.b16 %v245
  %v1507 = vunpack.c.h.b16 %v245
  %v1508 = vunpack.c.l.b16 %v246
  %v1509 = vunpack.c.h.b16 %v246
  %v1510 = vunpack.c.l.b16 %v247
  %v1511 = vunpack.c.h.b16 %v247
  %v1512 = vunpack.c.l.b16 %v248
  %v1513 = vunpack.c.h.b16 %v248
  %v1514 = vunpack.c.l.b16 %v249
  %v1515 = vunpack.c.h.b16 %v249
  %v1516 = vunpack.c.l.b16 %v250
  %v1517 = vunpack.c.l.b16 %v251
  %v1518 = vunpack.c.h.b16 %v251
  %v1519 = vunpack.c.l.b16 %v252
  %v1520 = vunpack.c.h.b16 %v252
  %v1521 = vunpack.c.l.b16 %v253
  %v1522 = vunpack.c.h.b16 %v253
  %v1523 = vunpack.c.l.b16 %v254
  %v1524 = vunpack.c.h.b16 %v254
  %v1525 = vunpack.c.l.b16 %v255
  %v1526 = vunpack.c.h.b16 %v255
  %v1527 = vunpack.c.l.b16 %v256
  %v1528 = vunpack.c.h.b16 %v256
  %v1529 = vunpack.c.l.b16 %v257
  %v1530 = vunpack.c.h.b16 %v257
  %v1531 = vunpack.c.l.b16 %v258
  %v1532 = vunpack.c.h.b16 %v258
  %v1533 = vunpack.c.l.b16 %v259
  %v1534 = vunpack.c.h.b16 %v259
  %v1535 = vunpack.c.l.b16 %v260
  %v1536 = vunpack.c.h.b16 %v260
  %v1537 = vunpack.c.l.b16 %v261
  %v1538 = vunpack.c.h.b16 %v261
  %v1539 = vunpack.c.l.b16 %v262
  %v1540 = vunpack.c.h.b16 %v262
  %v1541 = vunpack.c.l.b16 %v263
  %v1542 = vunpack.c.l.b16 %v264
  %v1543 = vunpack.c.h.b16 %v264
  %v1544 = vunpack.c.l.b16 %v265
  %v1545 = vunpack.c.h.b16 %v265
  %v1546 = vunpack.c.l.b16 %v266
  %v1547 = vunpack.c.h.b16 %v266
  %v1548 = vunpack.c.l.b16 %v267
  %v1549 = vunpack.c.h.b16 %v267
  %v1550 = vunpack.c.l.b16 %v268
  %v1551 = vunpack.c.h.b16 %v268
  %v1552 = vunpack.c.l.b16 %v269
  %v1553 = vunpack.c.h.b16 %v269
  %v1554 = vunpack.c.l.b16 %v270
  %v1555 = vunpack.c.h.b16 %v270
  %v1556 = vunpack.c.l.b16 %v271
  %v1557 = vunpack.c.h.b16 %v271
  %v1558 = vunpack.c.l.b16 %v272
  %v1559 = vunpack.c.h.b16 %v272
  %v1560 = vunpack.c.l.b16 %v273
  %v1561 = vunpack.c.h.b16 %v273
  %v1562 = vunpack.c.l.b16 %v274
  %v1563 = vunpack.c.h.b16 %v274
  %v1564 = vunpack.c.l.b16 %v275
  %v1565 = vunpack.c.h.b16 %v275
  %v1566 = vunpack.c.l.b16 %v276
  %v1567 = vunpack.c.l.b16 %v277
  %v1568 = vunpack.c.h.b16 %v277
  %v1569 = vunpack.c.l.b16 %v278
  %v1570 = vunpack.c.h.b16 %v278
  %v1571 = vunpack.c.l.b16 %v279
  %v1572 = vunpack.c.h.b16 %v279
  %v1573 = vunpack.c.l.b16 %v280
  %v1574 = vunpack.c.h.b16 %v280
  %v1575 = vunpack.c.l.b16 %v281
  %v1576 = vunpack.c.h.b16 %v281
  %v1577 = vunpack.c.l.b16 %v282
  %v1578 = vunpack.c.h.b16 %v282
  %v1579 = vunpack.c.l.b16 %v283
  %v1580 = vunpack.c.h.b16 %v283
  %v1581 = vunpack.c.l.b16 %v284
  %v1582 = vunpack.c.h.b16 %v284
  %v1583 = vunpack.c.l.b16 %v285
  %v1584 = vunpack.c.h.b16 %v285
  %v1585 = vunpack.c.l.b16 %v286
  %v1586 = vunpack.c.h.b16 %v286
  %v1587 = vunpack.c.l.b16 %v287
  %v1588 = vunpack.c.h.b16 %v287
  %v1589 = vunpack.c.l.b16 %v288
  %v1590 = vunpack.c.h.b16 %v288
  %v1591 = vunpack.c.l.b16 %v289
  %v1592 = vunpack.c.l.b16 %v290
  %v1593 = vunpack.c.h.b16 %v290
  %v1594 = vunpack.c.l.b16 %v291
  %v1595 = vunpack.c.h.b16 %v291
  %v1596 = vunpack.c.l.b16 %v292
  %v1597 = vunpack.c.h.b16 %v292
  %v1598 = vunpack.c.l.b16 %v293
  %v1599 = vunpack.c.h.b16 %v293
  %v1600 = vunpack.c.l.b16 %v294
  %v1601 = vunpack.c.h.b16 %v294
  %v1602 = vunpack.c.l.b16 %v295
  %v1603 = vunpack.c.h.b16 %v295
  %v1604 = vunpack.c.l.b16 %v296
  %v1605 = vunpack.c.h.b16 %v296
  %v1606 = vunpack.c.l.b16 %v297
  %v1607 = vunpack.c.h.b16 %v297
  %v1608 = vunpack.c.l.b16 %v298
  %v1609 = vunpack.c.h.b16 %v298
  %v1610 = vunpack.c.l.b16 %v299
  %v1611 = vunpack.c.h.b16 %v299
  %v1612 = vunpack.c.l.b16 %v300
  %v1613 = vunpack.c.h.b16 %v300
  %v1614 = vunpack.c.l.b16 %v301
  %v1615 = vunpack.c.h.b16 %v301
  %v1616 = vunpack.c.l.b16 %v302
  %v1617 = vunpack.c.l.b16 %v303
  %v1618 = vunpack.c.h.b16 %v303
  %v1619 = vunpack.c.l.b16 %v304
  %v1620 = vunpack.c.h.b16 %v304
  %v1621 = vunpack.c.l.b16 %v305
  %v1622 = vunpack.c.h.b16 %v305
  %v1623 = vunpack.c.l.b16 %v306
  %v1624 = vunpack.c.h.b16 %v306
  %v1625 = vunpack.c.l.b16 %v307
  %v1626 = vunpack.c.h.b16 %v307
  %v1627 = vunpack.c.l.b16 %v308
  %v1628 = vunpack.c.h.b16 %v308
  %v1629 = vunpack.c.l.b16 %v309
  %v1630 = vunpack.c.h.b16 %v309
  %v1631 = vunpack.c.l.b16 %v310
  %v1632 = vunpack.c.h.b16 %v310
  %v1633 = vunpack.c.l.b16 %v311
  %v1634 = vunpack.c.h.b16 %v311
  %v1635 = vunpack.c.l.b16 %v312
  %v1636 = vunpack.c.h.b16 %v312
  %v1637 = vunpack.c.l.b16 %v313
  %v1638 = vunpack.c.h.b16 %v313
  %v1639 = vunpack.c.l.b16 %v314
  %v1640 = vunpack.c.h.b16 %v314
  %v1641 = vunpack.c.l.b16 %v315
  %v1642 = vunpack.c.l.b16 %v316
  %v1643 = vunpack.c.h.b16 %v316
  %v1644 = vunpack.c.l.b16 %v317
  %v1645 = vunpack.c.h.b16 %v317
  %v1646 = vunpack.c.l.b16 %v318
  %v1647 = vunpack.c.h.b16 %v318
  %v1648 = vunpack.c.l.b16 %v319
  %v1649 = vunpack.c.h.b16 %v319
  %v1650 = vunpack.c.l.b16 %v320
  %v1651 = vunpack.c.h.b16 %v320
  %v1652 = vunpack.c.l.b16 %v321
  %v1653 = vunpack.c.h.b16 %v321
  %v1654 = vunpack.c.l.b16 %v322
  %v1655 = vunpack.c.h.b16 %v322
  %v1656 = vunpack.c.l.b16 %v323
  %v1657 = vunpack.c.h.b16 %v323
  %v1658 = vunpack.c.l.b16 %v324
  %v1659 = vunpack.c.h.b16 %v324
  %v1660 = vunpack.c.l.b16 %v325
  %v1661 = vunpack.c.h.b16 %v325
  %v1662 = vunpack.c.l.b16 %v326
  %v1663 = vunpack.c.h.b16 %v326
  %v1664 = vunpack.c.l.b16 %v327
  %v1665 = vunpack.c.h.b16 %v327
  %v1666 = vunpack.c.l.b16 %v328
  %v1667 = vunpack.c.l.b16 %v329
  %v1668 = vunpack.c.h.b16 %v329
  %v1669 = vunpack.c.l.b16 %v330
  %v1670 = vunpack.c.h.b16 %v330
  %v1671 = vunpack.c.l.b16 %v331
  %v1672 = vunpack.c.h.b16 %v331
  %v1673 = vunpack.c.l.b16 %v332
  %v1674 = vunpack.c.h.b16 %v332
  %v1675 = vunpack.c.l.b16 %v333
  %v1676 = vunpack.c.h.b16 %v333
  %v1677 = vunpack.c.l.b16 %v334
  %v1678 = vunpack.c.h.b16 %v334
  %v1679 = vunpack.c.l.b16 %v335
  %v1680 = vunpack.c.h.b16 %v335
  %v1681 = vunpack.c.l.b16 %v336
  %v1682 = vunpack.c.h.b16 %v336
  %v1683 = vunpack.c.l.b16 %v337
  %v1684 = vunpack.c.h.b16 %v337
  %v1685 = vunpack.c.l.b16 %v338
  %v1686 = vunpack.c.h.b16 %v338
  %v1687 = vunpack.c.l.b16 %v339
  %v1688 = vunpack.c.h.b16 %v339
  %v1689 = vunpack.c.l.b16 %v340
  %v1690 = vunpack.c.h.b16 %v340
  %v1691 = vunpack.c.l.b16 %v341
  %v1692 = vpack.c.b16 %v1092, %v1067
  %v1693 = vpack.c.b16 %v1093, %v1068
  %v1694 = vpack.c.b16 %v1094, %v1069
  %v1695 = vpack.c.b16 %v1095, %v1070
  %v1696 = vpack.c.b16 %v1096, %v1071
  %v1697 = vpack.c.b16 %v1097, %v1072
  %v1698 = vpack.c.b16 %v1098, %v1073
  %v1699 = vpack.c.b16 %v1099, %v1074
  %v1700 = vpack.c.b16 %v1100, %v1075
  %v1701 = vpack.c.b16 %v1101, %v1076
  %v1702 = vpack.c.b16 %v1102, %v1077
  %v1703 = vpack.c.b16 %v1103, %v1078
  %v1704 = vpack.c.b16 %v1104, %v1079
  %v1705 = vpack.c.b16 %v1105, %v1080
  %v1706 = vpack.c.b16 %v1106, %v1081
  %v1707 = vpack.c.b16 %v1107, %v1082
  %v1708 = vpack.c.b16 %v1108, %v1083
  %v1709 = vpack.c.b16 %v1109, %v1084
  %v1710 = vpack.c.b16 %v1110, %v1085
  %v1711 = vpack.c.b16 %v1111, %v1086
  %v1712 = vpack.c.b16 %v1112, %v1087
  %v1713 = vpack.c.b16 %v1113, %v1088
  %v1714 = vpack.c.b16 %v1114, %v1089
  %v1715 = vpack.c.b16 %v1115, %v1090
  %v1716 = vpack.c.b16 %v1116, %v1091
  %v1717 = vpack.c.b16 %v1142, %v1117
  %v1718 = vpack.c.b16 %v1143, %v1118
  %v1719 = vpack.c.b16 %v1144, %v1119
  %v1720 = vpack.c.b16 %v1145, %v1120
  %v1721 = vpack.c.b16 %v1146, %v1121
  %v1722 = vpack.c.b16 %v1147, %v1122
  %v1723 = vpack.c.b16 %v1148, %v1123
  %v1724 = vpack.c.b16 %v1149, %v1124
  %v1725 = vpack.c.b16 %v1150, %v1125
  %v1726 = vpack.c.b16 %v1151, %v1126
  %v1727 = vpack.c.b16 %v1152, %v1127
  %v1728 = vpack.c.b16 %v1153, %v1128
  %v1729 = vpack.c.b16 %v1154, %v1129
  %v1730 = vpack.c.b16 %v1155, %v1130
  %v1731 = vpack.c.b16 %v1156, %v1131
  %v1732 = vpack.c.b16 %v1157, %v1132
  %v1733 = vpack.c.b16 %v1158, %v1133
  %v1734 = vpack.c.b16 %v1159, %v1134
  %v1735 = vpack.c.b16 %v1160, %v1135
  %v1736 = vpack.c.b16 %v1161, %v1136
  %v1737 = vpack.c.b16 %v1162, %v1137
  %v1738 = vpack.c.b16 %v1163, %v1138
  %v1739 = vpack.c.b16 %v1164, %v1139
  %v1740 = vpack.c.b16 %v1165, %v1140
  %v1741 = vpack.c.b16 %v1166, %v1141
  %v1742 = vpack.c.b16 %v1192, %v1167
  %v1743 = vpack.c.b16 %v1193, %v1168
  %v1744 = vpack.c.b16 %v1194, %v1169
  %v1745 = vpack.c.b16 %v1195, %v1170
  %v1746 = vpack.c.b16 %v1196, %v1171
  %v1747 = vpack.c.b16 %v1197, %v1172
  %v1748 = vpack.c.b16 %v1198, %v1173
  %v1749 = vpack.c.b16 %v1199, %v1174
  %v1750 = vpack.c.b16 %v1200, %v1175
  %v1751 = vpack.c.b16 %v1201, %v1176
  %v1752 = vpack.c.b16 %v1202, %v1177
  %v1753 = vpack.c.b16 %v1203, %v1178
  %v1754 = vpack.c.b16 %v1204, %v1179
  %v1755 = vpack.c.b16 %v1205, %v1180
  %v1756 = vpack.c.b16 %v1206, %v1181
  %v1757 = vpack.c.b16 %v1207, %v1182
  %v1758 = vpack.c.b16 %v1208, %v1183
  %v1759 = vpack.c.b16 %v1209, %v1184
  %v1760 = vpack.c.b16 %v1210, %v1185
  %v1761 = vpack.c.b16 %v1211, %v1186
  %v1762 = vpack.c.b16 %v1212, %v1187
  %v1763 = vpack.c.b16 %v1213, %v1188
  %v1764 = vpack.c.b16 %v1214, %v1189
  %v1765 = vpack.c.b16 %v1215, %v1190
  %v1766 = vpack.c.b16 %v1216, %v1191
  %v1767 = vpack.c.b16 %v1242, %v1217
  %v1768 = vpack.c.b16 %v1243, %v1218
  %v1769 = vpack.c.b16 %v1244, %v1219
  %v1770 = vpack.c.b16 %v1245, %v1220
  %v1771 = vpack.c.b16 %v1246, %v1221
  %v1772 = vpack.c.b16 %v1247, %v1222
  %v1773 = vpack.c.b16 %v1248, %v1223
  %v1774 = vpack.c.b16 %v1249, %v1224
  %v1775 = vpack.c.b16 %v1250, %v1225
  %v1776 = vpack.c.b16 %v1251, %v1226
  %v1777 = vpack.c.b16 %v1252, %v1227
  %v1778 = vpack.c.b16 %v1253, %v1228
  %v1779 = vpack.c.b16 %v1254, %v1229
  %v1780 = vpack.c.b16 %v1255, %v1230
  %v1781 = vpack.c.b16 %v1256, %v1231
  %v1782 = vpack.c.b16 %v1257, %v1232
  %v1783 = vpack.c.b16 %v1258, %v1233
  %v1784 = vpack.c.b16 %v1259, %v1234
  %v1785 = vpack.c.b16 %v1260, %v1235
  %v1786 = vpack.c.b16 %v1261, %v1236
  %v1787 = vpack.c.b16 %v1262, %v1237
  %v1788 = vpack.c.b16 %v1263, %v1238
  %v1789 = vpack.c.b16 %v1264, %v1239
  %v1790 = vpack.c.b16 %v1265, %v1240
  %v1791 = vpack.c.b16 %v1266, %v1241
  %v1792 = vpack.c.b16 %v1292, %v1267
  %v1793 = vpack.c.b16 %v1293, %v1268
  %v1794 = vpack.c.b16 %v1294, %v1269
  %v1795 = vpack.c.b16 %v1295, %v1270
  %v1796 = vpack.c.b16 %v1296, %v1271
  %v1797 = vpack.c.b16 %v1297, %v1272
  %v1798 = vpack.c.b16 %v1298, %v1273
  %v1799 = vpack.c.b16 %v1299, %v1274
  %v1800 = vpack.c.b16 %v1300, %v1275
  %v1801 = vpack.c.b16 %v1301, %v1276
  %v1802 = vpack.c.b16 %v1302, %v1277
  %v1803 = vpack.c.b16 %v1303, %v1278
  %v1804 = vpack.c.b16 %v1304, %v1279
  %v1805 = vpack.c.b16 %v1305, %v1280
  %v1806 = vpack.c.b16 %v1306, %v1281
  %v1807 = vpack.c.b16 %v1307, %v1282
  %v1808 = vpack.c.b16 %v1308, %v1283
  %v1809 = vpack.c.b16 %v1309, %v1284
  %v1810 = vpack.c.b16 %v1310, %v1285
  %v1811 = vpack.c.b16 %v1311, %v1286
  %v1812 = vpack.c.b16 %v1312, %v1287
  %v1813 = vpack.c.b16 %v1313, %v1288
  %v1814 = vpack.c.b16 %v1314, %v1289
  %v1815 = vpack.c.b16 %v1315, %v1290
  %v1816 = vpack.c.b16 %v1316, %v1291
  %v1817 = vpack.c.b16 %v1342, %v1317
  %v1818 = vpack.c.b16 %v1343, %v1318
  %v1819 = vpack.c.b16 %v1344, %v1319
  %v1820 = vpack.c.b16 %v1345, %v1320
  %v1821 = vpack.c.b16 %v1346, %v1321
  %v1822 = vpack.c.b16 %v1347, %v1322
  %v1823 = vpack.c.b16 %v1348, %v1323
  %v1824 = vpack.c.b16 %v1349, %v1324
  %v1825 = vpack.c.b16 %v1350, %v1325
  %v1826 = vpack.c.b16 %v1351, %v1326
  %v1827 = vpack.c.b16 %v1352, %v1327
  %v1828 = vpack.c.b16 %v1353, %v1328
  %v1829 = vpack.c.b16 %v1354, %v1329
  %v1830 = vpack.c.b16 %v1355, %v1330
  %v1831 = vpack.c.b16 %v1356, %v1331
  %v1832 = vpack.c.b16 %v1357, %v1332
  %v1833 = vpack.c.b16 %v1358, %v1333
  %v1834 = vpack.c.b16 %v1359, %v1334
  %v1835 = vpack.c.b16 %v1360, %v1335
  %v1836 = vpack.c.b16 %v1361, %v1336
  %v1837 = vpack.c.b16 %v1362, %v1337
  %v1838 = vpack.c.b16 %v1363, %v1338
  %v1839 = vpack.c.b16 %v1364, %v1339
  %v1840 = vpack.c.b16 %v1365, %v1340
  %v1841 = vpack.c.b16 %v1366, %v1341
  %v1842 = vpack.c.b16 %v1392, %v1367
  %v1843 = vpack.c.b16 %v1393, %v1368
  %v1844 = vpack.c.b16 %v1394, %v1369
  %v1845 = vpack.c.b16 %v1395, %v1370
  %v1846 = vpack.c.b16 %v1396, %v1371
  %v1847 = vpack.c.b16 %v1397, %v1372
  %v1848 = vpack.c.b16 %v1398, %v1373
  %v1849 = vpack.c.b16 %v1399, %v1374
  %v1850 = vpack.c.b16 %v1400, %v1375
  %v1851 = vpack.c.b16 %v1401, %v1376
  %v1852 = vpack.c.b16 %v1402, %v1377
  %v1853 = vpack.c.b16 %v1403, %v1378
  %v1854 = vpack.c.b16 %v1404, %v1379
  %v1855 = vpack.c.b16 %v1405, %v1380
  %v1856 = vpack.c.b16 %v1406, %v1381
  %v1857 = vpack.c.b16 %v1407, %v1382
  %v1858 = vpack.c.b16 %v1408, %v1383
  %v1859 = vpack.c.b16 %v1409, %v1384
  %v1860 = vpack.c.b16 %v1410, %v1385
  %v1861 = vpack.c.b16 %v1411, %v1386
  %v1862 = vpack.c.b16 %v1412, %v1387
  %v1863 = vpack.c.b16 %v1413, %v1388
  %v1864 = vpack.c.b16 %v1414, %v1389
  %v1865 = vpack.c.b16 %v1415, %v1390
  %v1866 = vpack.c.b16 %v1416, %v1391
  %v1867 = vpack.c.b16 %v1442, %v1417
  %v1868 = vpack.c.b16 %v1443, %v1418
  %v1869 = vpack.c.b16 %v1444, %v1419
  %v1870 = vpack.c.b16 %v1445, %v1420
  %v1871 = vpack.c.b16 %v1446, %v1421
  %v1872 = vpack.c.b16 %v1447, %v1422
  %v1873 = vpack.c.b16 %v1448, %v1423
  %v1874 = vpack.c.b16 %v1449, %v1424
  %v1875 = vpack.c.b16 %v1450, %v1425
  %v1876 = vpack.c.b16 %v1451, %v1426
  %v1877 = vpack.c.b16 %v1452, %v1427
  %v1878 = vpack.c.b16 %v1453, %v1428
  %v1879 = vpack.c.b16 %v1454, %v1429
  %v1880 = vpack.c.b16 %v1455, %v1430
  %v1881 = vpack.c.b16 %v1456, %v1431
  %v1882 = vpack.c.b16 %v1457, %v1432
  %v1883 = vpack.c.b16 %v1458, %v1433
  %v1884 = vpack.c.b16 %v1459, %v1434
  %v1885 = vpack.c.b16 %v1460, %v1435
  %v1886 = vpack.c.b16 %v1461, %v1436
  %v1887 = vpack.c.b16 %v1462, %v1437
  %v1888 = vpack.c.b16 %v1463, %v1438
  %v1889 = vpack.c.b16 %v1464, %v1439
  %v1890 = vpack.c.b16 %v1465, %v1440
  %v1891 = vpack.c.b16 %v1466, %v1441
  %v1892 = vpack.c.b16 %v1492, %v1467
  %v1893 = vpack.c.b16 %v1493, %v1468
  %v1894 = vpack.c.b16 %v1494, %v1469
  %v1895 = vpack.c.b16 %v1495, %v1470
  %v1896 = vpack.c.b16 %v1496, %v1471
  %v1897 = vpack.c.b16 %v1497, %v1472
  %v1898 = vpack.c.b16 %v1498, %v1473
  %v1899 = vpack.c.b16 %v1499, %v1474
  %v1900 = vpack.c.b16 %v1500, %v1475
  %v1901 = vpack.c.b16 %v1501, %v1476
  %v1902 = vpack.c.b16 %v1502, %v1477
  %v1903 = vpack.c.b16 %v1503, %v1478
  %v1904 = vpack.c.b16 %v1504, %v1479
  %v1905 = vpack.c.b16 %v1505, %v1480
  %v1906 = vpack.c.b16 %v1506, %v1481
  %v1907 = vpack.c.b16 %v1507, %v1482
  %v1908 = vpack.c.b16 %v1508, %v1483
  %v1909 = vpack.c.b16 %v1509, %v1484
  %v1910 = vpack.c.b16 %v1510, %v1485
  %v1911 = vpack.c.b16 %v1511, %v1486
  %v1912 = vpack.c.b16 %v1512, %v1487
  %v1913 = vpack.c.b16 %v1513, %v1488
  %v1914 = vpack.c.b16 %v1514, %v1489
  %v1915 = vpack.c.b16 %v1515, %v1490
  %v1916 = vpack.c.b16 %v1516, %v1491
  %v1917 = vpack.c.b16 %v1542, %v1517
  %v1918 = vpack.c.b16 %v1543, %v1518
  %v1919 = vpack.c.b16 %v1544, %v1519
  %v1920 = vpack.c.b16 %v1545, %v1520
  %v1921 = vpack.c.b16 %v1546, %v1521
  %v1922 = vpack.c.b16 %v1547, %v1522
  %v1923 = vpack.c.b16 %v1548, %v1523
  %v1924 = vpack.c.b16 %v1549, %v1524
  %v1925 = vpack.c.b16 %v1550, %v1525
  %v1926 = vpack.c.b16 %v1551, %v1526
  %v1927 = vpack.c.b16 %v1552, %v1527
  %v1928 = vpack.c.b16 %v1553, %v1528
  %v1929 = vpack.c.b16 %v1554, %v1529
  %v1930 = vpack.c.b16 %v1555, %v1530
  %v1931 = vpack.c.b16 %v1556, %v1531
  %v1932 = vpack.c.b16 %v1557, %v1532
  %v1933 = vpack.c.b16 %v1558, %v1533
  %v1934 = vpack.c.b16 %v1559, %v1534
  %v1935 = vpack.c.b16 %v1560, %v1535
  %v1936 = vpack.c.b16 %v1561, %v1536
  %v1937 = vpack.c.b16 %v1562, %v1537
  %v1938 = vpack.c.b16 %v1563, %v1538
  %v1939 = vpack.c.b16 %v1564, %v1539
  %v1940 = vpack.c.b16 %v1565, %v1540
  %v1941 = vpack.c.b16 %v1566, %v1541
  %v1942 = vpack.c.b16 %v1592, %v1567
  %v1943 = vpack.c.b16 %v1593, %v1568
  %v1944 = vpack.c.b16 %v1594, %v1569
  %v1945 = vpack.c.b16 %v1595, %v1570
  %v1946 = vpack.c.b16 %v1596, %v1571
  %v1947 = vpack.c.b16 %v1597, %v1572
  %v1948 = vpack.c.b16 %v1598, %v1573
  %v1949 = vpack.c.b16 %v1599, %v1574
  %v1950 = vpack.c.b16 %v1600, %v1575
  %v1951 = vpack.c.b16 %v1601, %v1576
  %v1952 = vpack.c.b16 %v1602, %v1577
  %v1953 = vpack.c.b16 %v1603, %v1578
  %v1954 = vpack.c.b16 %v1604, %v1579
  %v1955 = vpack.c.b16 %v1605, %v1580
  %v1956 = vpack.c.b16 %v1606, %v1581
  %v1957 = vpack.c.b16 %v1607, %v1582
  %v1958 = vpack.c.b16 %v1608, %v1583
  %v1959 = vpack.c.b16 %v1609, %v1584
  %v1960 = vpack.c.b16 %v1610, %v1585
  %v1961 = vpack.c.b16 %v1611, %v1586
  %v1962 = vpack.c.b16 %v1612, %v1587
  %v1963 = vpack.c.b16 %v1613, %v1588
  %v1964 = vpack.c.b16 %v1614, %v1589
  %v1965 = vpack.c.b16 %v1615, %v1590
  %v1966 = vpack.c.b16 %v1616, %v1591
  %v1967 = vpack.c.b16 %v1642, %v1617
  %v1968 = vpack.c.b16 %v1643, %v1618
  %v1969 = vpack.c.b16 %v1644, %v1619
  %v1970 = vpack.c.b16 %v1645, %v1620
  %v1971 = vpack.c.b16 %v1646, %v1621
  %v1972 = vpack.c.b16 %v1647, %v1622
  %v1973 = vpack.c.b16 %v1648, %v1623
  %v1974 = vpack.c.b16 %v1649, %v1624
  %v1975 = vpack.c.b16 %v1650, %v1625
  %v1976 = vpack.c.b16 %v1651, %v1626
  %v1977 = vpack.c.b16 %v1652, %v1627
  %v1978 = vpack.c.b16 %v1653, %v1628
  %v1979 = vpack.c.b16 %v1654, %v1629
  %v1980 = vpack.c.b16 %v1655, %v1630
  %v1981 = vpack.c.b16 %v1656, %v1631
  %v1982 = vpack.c.b16 %v1657, %v1632
  %v1983 = vpack.c.b16 %v1658, %v1633
  %v1984 = vpack.c.b16 %v1659, %v1634
  %v1985 = vpack.c.b16 %v1660, %v1635
  %v1986 = vpack.c.b16 %v1661, %v1636
  %v1987 = vpack.c.b16 %v1662, %v1637
  %v1988 = vpack.c.b16 %v1663, %v1638
  %v1989 = vpack.c.b16 %v1664, %v1639
  %v1990 = vpack.c.b16 %v1665, %v1640
  %v1991 = vpack.c.b16 %v1666, %v1641
  %v1992 = vpack.c.b16 %v1667, %v1667
  %v1993 = vpack.c.b16 %v1668, %v1668
  %v1994 = vpack.c.b16 %v1669, %v1669
  %v1995 = vpack.c.b16 %v1670, %v1670
  %v1996 = vpack.c.b16 %v1671, %v1671
  %v1997 = vpack.c.b16 %v1672, %v1672
  %v1998 = vpack.c.b16 %v1673, %v1673
  %v1999 = vpack.c.b16 %v1674, %v1674
  %v2000 = vpack.c.b16 %v1675, %v1675
  %v2001 = vpack.c.b16 %v1676, %v1676
  %v2002 = vpack.c.b16 %v1677, %v1677
  %v2003 = vpack.c.b16 %v1678, %v1678
  %v2004 = vpack.c.b16 %v1679, %v1679
  %v2005 = vpack.c.b16 %v1680, %v1680
  %v2006 = vpack.c.b16 %v1681, %v1681
  %v2007 = vpack.c.b16 %v1682, %v1682
  %v2008 = vpack.c.b16 %v1683, %v1683
  %v2009 = vpack.c.b16 %v1684, %v1684
  %v2010 = vpack.c.b16 %v1685, %v1685
  %v2011 = vpack.c.b16 %v1686, %v1686
  %v2012 = vpack.c.b16 %v1687, %v1687
  %v2013 = vpack.c.b16 %v1688, %v1688
  %v2014 = vpack.c.b16 %v1689, %v1689
  %v2015 = vpack.c.b16 %v1690, %v1690
  %v2016 = vpack.c.b16 %v1691, %v1691
  %v2742 = vunpack.c.l.b16 %v342
  %v2743 = vunpack.c.l.b16 %v343
  %v2744 = vunpack.c.l.b16 %v344
  %v2745 = vunpack.c.l.b16 %v345
  %v2746 = vunpack.c.l.b16 %v346
  %v2747 = vunpack.c.l.b16 %v347
  %v2748 = vunpack.c.l.b16 %v348
  %v2749 = vunpack.c.l.b16 %v349
  %v2750 = vunpack.c.l.b16 %v350
  %v2751 = vunpack.c.l.b16 %v351
  %v2752 = vunpack.c.l.b16 %v352
  %v2753 = vunpack.c.l.b16 %v353
  %v2754 = vunpack.c.l.b16 %v354
  %v2755 = vunpack.c.l.b16 %v355
  %v2756 = vunpack.c.l.b16 %v356
  %v2757 = vunpack.c.l.b16 %v357
  %v2758 = vunpack.c.l.b16 %v358
  %v2759 = vunpack.c.l.b16 %v359
  %v2760 = vunpack.c.l.b16 %v360
  %v2761 = vunpack.c.l.b16 %v361
  %v2762 = vunpack.c.l.b16 %v362
  %v2763 = vunpack.c.l.b16 %v363
  %v2764 = vunpack.c.l.b16 %v364
  %v2765 = vunpack.c.l.b16 %v365
  %v2766 = vunpack.c.l.b16 %v366
  %v2767 = vunpack.c.l.b16 %v367
  %v2768 = vunpack.c.l.b16 %v368
  %v2769 = vunpack.c.l.b16 %v369
  %v2770 = vunpack.c.l.b16 %v370
  %v2771 = vunpack.c.l.b16 %v371
  %v2772 = vunpack.c.l.b16 %v372
  %v2773 = vunpack.c.l.b16 %v373
  %v2774 = vunpack.c.l.b16 %v374
  %v2775 = vunpack.c.l.b16 %v375
  %v2776 = vunpack.c.l.b16 %v376
  %v2777 = vunpack.c.l.b16 %v377
  %v2778 = vunpack.c.l.b16 %v378
  %v2779 = vunpack.c.l.b16 %v379
  %v2780 = vunpack.c.l.b16 %v380
  %v2781 = vunpack.c.l.b16 %v381
  %v2782 = vunpack.c.l.b16 %v382
  %v2783 = vunpack.c.l.b16 %v383
  %v2784 = vunpack.c.l.b16 %v384
  %v2785 = vunpack.c.l.b16 %v385
  %v2786 = vunpack.c.l.b16 %v386
  %v2787 = vunpack.c.l.b16 %v387
  %v2788 = vunpack.c.l.b16 %v388
  %v2789 = vunpack.c.l.b16 %v389
  %v2790 = vunpack.c.l.b16 %v390
  %v2791 = vunpack.c.l.b16 %v391
  %v2792 = vunpack.c.l.b16 %v392
  %v2793 = vunpack.c.l.b16 %v393
  %v2794 = vunpack.c.l.b16 %v394
  %v2795 = vunpack.c.l.b16 %v395
  %v2796 = vunpack.c.l.b16 %v396
  %v2797 = vunpack.c.l.b16 %v397
  %v2798 = vunpack.c.l.b16 %v398
  %v2799 = vunpack.c.l.b16 %v399
  %v2800 = vunpack.c.l.b16 %v400
  %v2801 = vunpack.c.l.b16 %v401
  %v2802 = vunpack.c.l.b16 %v402
  %v2803 = vunpack.c.l.b16 %v403
  %v2804 = vunpack.c.l.b16 %v404
  %v2805 = vunpack.c.l.b16 %v405
  %v2806 = vunpack.c.l.b16 %v406
  %v2807 = vunpack.c.l.b16 %v407
  %v2808 = vunpack.c.l.b16 %v408
  %v2809 = vunpack.c.l.b16 %v409
  %v2810 = vunpack.c.l.b16 %v410
  %v2811 = vunpack.c.l.b16 %v411
  %v2812 = vunpack.c.l.b16 %v412
  %v2813 = vunpack.c.l.b16 %v413
  %v2814 = vunpack.c.l.b16 %v414
  %v2815 = vunpack.c.l.b16 %v415
  %v2816 = vunpack.c.l.b16 %v416
  %v2817 = vunpack.c.l.b16 %v417
  %v2818 = vunpack.c.l.b16 %v418
  %v2819 = vunpack.c.l.b16 %v419
  %v2820 = vunpack.c.l.b16 %v420
  %v2821 = vunpack.c.l.b16 %v421
  %v2822 = vunpack.c.l.b16 %v422
  %v2823 = vunpack.c.l.b16 %v423
  %v2824 = vunpack.c.l.b16 %v424
  %v2825 = vunpack.c.l.b16 %v425
  %v2826 = vunpack.c.l.b16 %v426
  %v2827 = vunpack.c.l.b16 %v427
  %v2828 = vunpack.c.l.b16 %v428
  %v2829 = vunpack.c.l.b16 %v429
  %v2830 = vunpack.c.l.b16 %v430
  %v2831 = vunpack.c.l.b16 %v431
  %v2832 = vunpack.c.l.b16 %v432
  %v2833 = vunpack.c.l.b16 %v433
  %v2834 = vunpack.c.l.b16 %v434
  %v2835 = vunpack.c.l.b16 %v435
  %v2836 = vunpack.c.l.b16 %v436
  %v2837 = vunpack.c.l.b16 %v437
  %v2838 = vunpack.c.l.b16 %v438
  %v2839 = vunpack.c.l.b16 %v439
  %v2840 = vunpack.c.l.b16 %v440
  %v2841 = vunpack.c.l.b16 %v441
  %v2842 = vunpack.c.l.b16 %v442
  %v2843 = vunpack.c.l.b16 %v443
  %v2844 = vunpack.c.l.b16 %v444
  %v2845 = vunpack.c.l.b16 %v445
  %v2846 = vunpack.c.l.b16 %v446
  %v2847 = vunpack.c.l.b16 %v447
  %v2848 = vunpack.c.l.b16 %v448
  %v2849 = vunpack.c.l.b16 %v449
  %v2850 = vunpack.c.l.b16 %v450
  %v2851 = vunpack.c.l.b16 %v451
  %v2852 = vunpack.c.l.b16 %v452
  %v2853 = vunpack.c.l.b16 %v453
  %v2854 = vunpack.c.l.b16 %v454
  %v2855 = vunpack.c.l.b16 %v455
  %v2856 = vunpack.c.l.b16 %v456
  %v2857 = vunpack.c.l.b16 %v457
  %v2858 = vunpack.c.l.b16 %v458
  %v2859 = vunpack.c.l.b16 %v459
  %v2860 = vunpack.c.l.b16 %v460
  %v2861 = vunpack.c.l.b16 %v461
  %v2862 = vunpack.c.l.b16 %v462
  %v2863 = vunpack.c.l.b16 %v463
  %v2864 = vunpack.c.l.b16 %v464
  %v2865 = vunpack.c.l.b16 %v465
  %v2866 = vunpack.c.l.b16 %v466
  %v2867 = vunpack.c.l.b16 %v467
  %v2868 = vunpack.c.l.b16 %v468
  %v2869 = vunpack.c.l.b16 %v469
  %v2870 = vunpack.c.l.b16 %v470
  %v2871 = vunpack.c.l.b16 %v471
  %v2872 = vunpack.c.l.b16 %v472
  %v2873 = vunpack.c.l.b16 %v473
  %v2874 = vunpack.c.l.b16 %v474
  %v2875 = vunpack.c.l.b16 %v475
  %v2876 = vunpack.c.l.b16 %v476
  %v2877 = vunpack.c.l.b16 %v477
  %v2878 = vunpack.c.l.b16 %v478
  %v2879 = vunpack.c.l.b16 %v479
  %v2880 = vunpack.c.l.b16 %v480
  %v2881 = vunpack.c.l.b16 %v481
  %v2882 = vunpack.c.l.b16 %v482
  %v2883 = vunpack.c.l.b16 %v483
  %v2884 = vunpack.c.l.b16 %v484
  %v2885 = vunpack.c.l.b16 %v485
  %v2886 = vunpack.c.l.b16 %v486
  %v2887 = vunpack.c.l.b16 %v487
  %v2888 = vunpack.c.l.b16 %v488
  %v2889 = vunpack.c.l.b16 %v489
  %v2890 = vunpack.c.l.b16 %v490
  %v2891 = vunpack.c.l.b16 %v491
  %v2892 = vunpack.c.l.b16 %v492
  %v2893 = vunpack.c.l.b16 %v493
  %v2894 = vunpack.c.l.b16 %v494
  %v2895 = vunpack.c.l.b16 %v495
  %v2896 = vunpack.c.l.b16 %v496
  %v2897 = vunpack.c.l.b16 %v497
  %v2898 = vunpack.c.l.b16 %v498
  %v2899 = vunpack.c.l.b16 %v499
  %v2900 = vunpack.c.l.b16 %v500
  %v2901 = vunpack.c.l.b16 %v501
  %v2902 = vunpack.c.l.b16 %v502
  %v2903 = vunpack.c.l.b16 %v503
  %v2904 = vunpack.c.l.b16 %v504
  %v2905 = vunpack.c.l.b16 %v505
  %v2906 = vunpack.c.l.b16 %v506
  %v2907 = vunpack.c.l.b16 %v507
  %v2908 = vunpack.c.l.b16 %v508
  %v2909 = vunpack.c.l.b16 %v509
  %v2910 = vunpack.c.l.b16 %v510
  %v2911 = vunpack.c.l.b16 %v511
  %v2912 = vunpack.c.l.b16 %v512
  %v2913 = vunpack.c.l.b16 %v513
  %v2914 = vunpack.c.l.b16 %v514
  %v2915 = vunpack.c.l.b16 %v515
  %v2916 = vunpack.c.l.b16 %v516
  %v2917 = vunpack.c.l.b16 %v517
  %v2918 = vunpack.c.l.b16 %v518
  %v2919 = vunpack.c.l.b16 %v519
  %v2920 = vunpack.c.l.b16 %v520
  %v2921 = vunpack.c.l.b16 %v521
  %v2922 = vunpack.c.l.b16 %v522
  %v2923 = vunpack.c.l.b16 %v523
  %v2924 = vunpack.c.l.b16 %v524
  %v2925 = vunpack.c.l.b16 %v525
  %v2926 = vunpack.c.l.b16 %v526
  %v2927 = vunpack.c.l.b16 %v527
  %v2928 = vunpack.c.l.b16 %v528
  %v2929 = vunpack.c.l.b16 %v529
  %v2930 = vunpack.c.l.b16 %v530
  %v2931 = vunpack.c.l.b16 %v531
  %v2932 = vunpack.c.l.b16 %v532
  %v2933 = vunpack.c.l.b16 %v533
  %v2934 = vunpack.c.l.b16 %v534
  %v2935 = vunpack.c.l.b16 %v535
  %v2936 = vunpack.c.l.b16 %v536
  %v2937 = vunpack.c.l.b16 %v537
  %v2938 = vunpack.c.l.b16 %v538
  %v2939 = vunpack.c.l.b16 %v539
  %v2940 = vunpack.c.l.b16 %v540
  %v2941 = vunpack.c.l.b16 %v541
  %v2942 = vunpack.c.l.b16 %v542
  %v2943 = vunpack.c.l.b16 %v543
  %v2944 = vunpack.c.l.b16 %v544
  %v2945 = vunpack.c.l.b16 %v545
  %v2946 = vunpack.c.l.b16 %v546
  %v2947 = vunpack.c.l.b16 %v547
  %v2948 = vunpack.c.l.b16 %v548
  %v2949 = vunpack.c.l.b16 %v549
  %v2950 = vunpack.c.l.b16 %v550
  %v2951 = vunpack.c.l.b16 %v551
  %v2952 = vunpack.c.l.b16 %v552
  %v2953 = vunpack.c.l.b16 %v553
  %v2954 = vunpack.c.l.b16 %v554
  %v2955 = vunpack.c.l.b16 %v555
  %v2956 = vunpack.c.l.b16 %v556
  %v2957 = vunpack.c.l.b16 %v557
  %v2958 = vunpack.c.l.b16 %v558
  %v2959 = vunpack.c.l.b16 %v559
  %v2960 = vunpack.c.l.b16 %v560
  %v2961 = vunpack.c.l.b16 %v561
  %v2962 = vunpack.c.l.b16 %v562
  %v2963 = vunpack.c.l.b16 %v563
  %v2964 = vunpack.c.l.b16 %v564
  %v2965 = vunpack.c.l.b16 %v565
  %v2966 = vunpack.c.l.b16 %v566
  %v2967 = vunpack.c.l.b16 %v567
  %v2968 = vunpack.c.l.b16 %v568
  %v2969 = vunpack.c.l.b16 %v569
  %v2970 = vunpack.c.l.b16 %v570
  %v2971 = vunpack.c.l.b16 %v571
  %v2972 = vunpack.c.l.b16 %v572
  %v2973 = vunpack.c.l.b16 %v573
  %v2974 = vunpack.c.l.b16 %v574
  %v2975 = vunpack.c.l.b16 %v575
  %v2976 = vunpack.c.l.b16 %v576
  %v2977 = vunpack.c.l.b16 %v577
  %v2978 = vunpack.c.l.b16 %v578
  %v2979 = vunpack.c.l.b16 %v579
  %v2980 = vunpack.c.l.b16 %v580
  %v2981 = vunpack.c.l.b16 %v581
  %v2982 = vunpack.c.l.b16 %v582
  %v2983 = vunpack.c.l.b16 %v583
  %v2984 = vunpack.c.l.b16 %v584
  %v2985 = vunpack.c.l.b16 %v585
  %v2986 = vunpack.c.l.b16 %v586
  %v2987 = vunpack.c.l.b16 %v587
  %v2988 = vunpack.c.l.b16 %v588
  %v2989 = vunpack.c.l.b16 %v589
  %v2990 = vunpack.c.l.b16 %v590
  %v2991 = vunpack.c.l.b16 %v591
  %v2992 = vunpack.c.l.b16 %v592
  %v2993 = vunpack.c.l.b16 %v593
  %v2994 = vunpack.c.l.b16 %v594
  %v2995 = vunpack.c.l.b16 %v595
  %v2996 = vunpack.c.l.b16 %v596
  %v2997 = vunpack.c.l.b16 %v597
  %v2998 = vunpack.c.l.b16 %v598
  %v2999 = vunpack.c.l.b16 %v599
  %v3000 = vunpack.c.l.b16 %v600
  %v3001 = vunpack.c.l.b16 %v601
  %v3002 = vunpack.c.l.b16 %v602
  %v3003 = vunpack.c.l.b16 %v603
  %v3004 = vunpack.c.l.b16 %v604
  %v3005 = vunpack.c.l.b16 %v605
  %v3006 = vunpack.c.l.b16 %v606
  %v3007 = vunpack.c.l.b16 %v607
  %v3008 = vunpack.c.l.b16 %v608
  %v3009 = vunpack.c.l.b16 %v609
  %v3010 = vunpack.c.l.b16 %v610
  %v3011 = vunpack.c.l.b16 %v611
  %v3012 = vunpack.c.l.b16 %v612
  %v3013 = vunpack.c.l.b16 %v613
  %v3014 = vunpack.c.l.b16 %v614
  %v3015 = vunpack.c.l.b16 %v615
  %v3016 = vunpack.c.l.b16 %v616
  %v3017 = vunpack.c.l.b16 %v617
  %v3018 = vunpack.c.l.b16 %v618
  %v3019 = vunpack.c.l.b16 %v619
  %v3020 = vunpack.c.l.b16 %v620
  %v3021 = vunpack.c.l.b16 %v621
  %v3022 = vunpack.c.l.b16 %v622
  %v3023 = vunpack.c.l.b16 %v623
  %v3024 = vunpack.c.l.b16 %v624
  %v3025 = vunpack.c.l.b16 %v625
  %v3026 = vunpack.c.l.b16 %v626
  %v3027 = vunpack.c.l.b16 %v627
  %v3028 = vunpack.c.l.b16 %v628
  %v3029 = vunpack.c.l.b16 %v629
  %v3030 = vunpack.c.l.b16 %v630
  %v3031 = vunpack.c.l.b16 %v631
  %v3032 = vunpack.c.l.b16 %v632
  %v3033 = vunpack.c.l.b16 %v633
  %v3034 = vunpack.c.l.b16 %v634
  %v3035 = vunpack.c.l.b16 %v635
  %v3036 = vunpack.c.l.b16 %v636
  %v3037 = vunpack.c.l.b16 %v637
  %v3038 = vunpack.c.l.b16 %v638
  %v3039 = vunpack.c.l.b16 %v639
  %v3040 = vunpack.c.l.b16 %v640
  %v3041 = vunpack.c.l.b16 %v641
  %v3042 = vunpack.c.l.b16 %v642
  %v3043 = vunpack.c.l.b16 %v643
  %v3044 = vunpack.c.l.b16 %v644
  %v3045 = vunpack.c.l.b16 %v645
  %v3046 = vunpack.c.l.b16 %v646
  %v3047 = vunpack.c.l.b16 %v647
  %v3048 = vunpack.c.l.b16 %v648
  %v3049 = vunpack.c.l.b16 %v649
  %v3050 = vunpack.c.l.b16 %v650
  %v3051 = vunpack.c.l.b16 %v651
  %v3052 = vunpack.c.l.b16 %v652
  %v3053 = vunpack.c.l.b16 %v653
  %v3054 = vunpack.c.l.b16 %v654
  %v3055 = vunpack.c.l.b16 %v655
  %v3056 = vunpack.c.l.b16 %v656
  %v3057 = vunpack.c.l.b16 %v657
  %v3058 = vunpack.c.l.b16 %v658
  %v3059 = vunpack.c.l.b16 %v659
  %v3060 = vunpack.c.l.b16 %v660
  %v3061 = vunpack.c.l.b16 %v661
  %v3062 = vunpack.c.l.b16 %v662
  %v3063 = vunpack.c.l.b16 %v663
  %v3064 = vunpack.c.l.b16 %v664
  %v3065 = vunpack.c.l.b16 %v665
  %v3066 = vunpack.c.l.b16 %v666
  %v3067 = vunpack.c.l.b16 %v667
  %v3068 = vunpack.c.l.b16 %v668
  %v3069 = vunpack.c.l.b16 %v669
  %v3070 = vunpack.c.l.b16 %v670
  %v3071 = vunpack.c.l.b16 %v671
  %v3072 = vunpack.c.l.b16 %v672
  %v3073 = vunpack.c.l.b16 %v673
  %v3074 = vunpack.c.l.b16 %v674
  %v3075 = vunpack.c.l.b16 %v675
  %v3076 = vunpack.c.l.b16 %v676
  %v3077 = vunpack.c.l.b16 %v677
  %v3078 = vunpack.c.l.b16 %v678
  %v3079 = vunpack.c.l.b16 %v679
  %v3080 = vunpack.c.l.b16 %v680
  %v3081 = vunpack.c.l.b16 %v681
  %v3082 = vunpack.c.l.b16 %v682
  %v3083 = vunpack.c.l.b16 %v683
  %v3084 = vunpack.c.l.b16 %v684
  %v3085 = vunpack.c.l.b16 %v685
  %v3086 = vunpack.c.l.b16 %v686
  %v3087 = vunpack.c.l.b16 %v687
  %v3088 = vunpack.c.l.b16 %v688
  %v3089 = vunpack.c.l.b16 %v689
  %v3090 = vunpack.c.l.b16 %v690
  %v3091 = vunpack.c.l.b16 %v691
  %v3092 = vunpack.c.l.b16 %v692
  %v3093 = vunpack.c.l.b16 %v693
  %v3094 = vunpack.c.l.b16 %v694
  %v3095 = vunpack.c.l.b16 %v695
  %v3096 = vunpack.c.l.b16 %v696
  %v3097 = vunpack.c.l.b16 %v697
  %v3098 = vunpack.c.l.b16 %v698
  %v3099 = vunpack.c.l.b16 %v699
  %v3100 = vunpack.c.l.b16 %v700
  %v3101 = vunpack.c.l.b16 %v701
  %v3102 = vunpack.c.l.b16 %v702
  %v3103 = vunpack.c.l.b16 %v703
  %v3104 = vunpack.c.l.b16 %v704
  %v3105 = vunpack.c.l.b16 %v705
  %v3106 = vunpack.c.l.b16 %v706
  %v3107 = vunpack.c.l.b16 %v707
  %v3108 = vunpack.c.l.b16 %v708
  %v3109 = vunpack.c.l.b16 %v709
  %v3110 = vunpack.c.l.b16 %v710
  %v3111 = vunpack.c.l.b16 %v711
  %v3112 = vunpack.c.l.b16 %v712
  %v3113 = vunpack.c.l.b16 %v713
  %v3114 = vunpack.c.l.b16 %v714
  %v3115 = vunpack.c.l.b16 %v715
  %v3116 = vunpack.c.l.b16 %v716
  %v3117 = vunpack.c.l.b16 %v717
  %v3118 = vunpack.c.l.b16 %v718
  %v3119 = vunpack.c.l.b16 %v719
  %v3120 = vunpack.c.l.b16 %v720
  %v3121 = vunpack.c.l.b16 %v721
  %v3122 = vunpack.c.l.b16 %v722
  %v3123 = vunpack.c.l.b16 %v723
  %v3124 = vunpack.c.l.b16 %v724
  %v3125 = vunpack.c.l.b16 %v725
  %v3126 = vunpack.c.l.b16 %v726
  %v3127 = vunpack.c.l.b16 %v727
  %v3128 = vunpack.c.l.b16 %v728
  %v3129 = vunpack.c.l.b16 %v729
  %v3130 = vunpack.c.l.b16 %v730
  %v3131 = vunpack.c.l.b16 %v731
  %v3132 = vunpack.c.l.b16 %v732
  %v3133 = vunpack.c.l.b16 %v733
  %v3134 = vunpack.c.l.b16 %v734
  %v3135 = vunpack.c.l.b16 %v735
  %v3136 = vunpack.c.l.b16 %v736
  %v3137 = vunpack.c.l.b16 %v737
  %v3138 = vunpack.c.l.b16 %v738
  %v3139 = vunpack.c.l.b16 %v739
  %v3140 = vunpack.c.l.b16 %v740
  %v3141 = vunpack.c.l.b16 %v741
  %v3142 = vpack.c.b16 %v2743, %v2742
  %v3143 = vpack.c.b16 %v2745, %v2744
  %v3144 = vpack.c.b16 %v2747, %v2746
  %v3145 = vpack.c.b16 %v2749, %v2748
  %v3146 = vpack.c.b16 %v2751, %v2750
  %v3147 = vpack.c.b16 %v2753, %v2752
  %v3148 = vpack.c.b16 %v2755, %v2754
  %v3149 = vpack.c.b16 %v2757, %v2756
  %v3150 = vpack.c.b16 %v2759, %v2758
  %v3151 = vpack.c.b16 %v2761, %v2760
  %v3152 = vpack.c.b16 %v2763, %v2762
  %v3153 = vpack.c.b16 %v2765, %v2764
  %v3154 = vpack.c.b16 %v2767, %v2766
  %v3155 = vpack.c.b16 %v2769, %v2768
  %v3156 = vpack.c.b16 %v2771, %v2770
  %v3157 = vpack.c.b16 %v2773, %v2772
  %v3158 = vpack.c.b16 %v2775, %v2774
  %v3159 = vpack.c.b16 %v2777, %v2776
  %v3160 = vpack.c.b16 %v2779, %v2778
  %v3161 = vpack.c.b16 %v2781, %v2780
  %v3162 = vpack.c.b16 %v2783, %v2782
  %v3163 = vpack.c.b16 %v2785, %v2784
  %v3164 = vpack.c.b16 %v2787, %v2786
  %v3165 = vpack.c.b16 %v2789, %v2788
  %v3166 = vpack.c.b16 %v2791, %v2790
  %v3167 = vpack.c.b16 %v2793, %v2792
  %v3168 = vpack.c.b16 %v2795, %v2794
  %v3169 = vpack.c.b16 %v2797, %v2796
  %v3170 = vpack.c.b16 %v2799, %v2798
  %v3171 = vpack.c.b16 %v2801, %v2800
  %v3172 = vpack.c.b16 %v2803, %v2802
  %v3173 = vpack.c.b16 %v2805, %v2804
  %v3174 = vpack.c.b16 %v2807, %v2806
  %v3175 = vpack.c.b16 %v2809, %v2808
  %v3176 = vpack.c.b16 %v2811, %v2810
  %v3177 = vpack.c.b16 %v2813, %v2812
  %v3178 = vpack.c.b16 %v2815, %v2814
  %v3179 = vpack.c.b16 %v2817, %v2816
  %v3180 = vpack.c.b16 %v2819, %v2818
  %v3181 = vpack.c.b16 %v2821, %v2820
  %v3182 = vpack.c.b16 %v2823, %v2822
  %v3183 = vpack.c.b16 %v2825, %v2824
  %v3184 = vpack.c.b16 %v2827, %v2826
  %v3185 = vpack.c.b16 %v2829, %v2828
  %v3186 = vpack.c.b16 %v2831, %v2830
  %v3187 = vpack.c.b16 %v2833, %v2832
  %v3188 = vpack.c.b16 %v2835, %v2834
  %v3189 = vpack.c.b16 %v2837, %v2836
  %v3190 = vpack.c.b16 %v2839, %v2838
  %v3191 = vpack.c.b16 %v2841, %v2840
  %v3192 = vpack.c.b16 %v2843, %v2842
  %v3193 = vpack.c.b16 %v2845, %v2844
  %v3194 = vpack.c.b16 %v2847, %v2846
  %v3195 = vpack.c.b16 %v2849, %v2848
  %v3196 = vpack.c.b16 %v2851, %v2850
  %v3197 = vpack.c.b16 %v2853, %v2852
  %v3198 = vpack.c.b16 %v2855, %v2854
  %v3199 = vpack.c.b16 %v2857, %v2856
  %v3200 = vpack.c.b16 %v2859, %v2858
  %v3201 = vpack.c.b16 %v2861, %v2860
  %v3202 = vpack.c.b16 %v2863, %v2862
  %v3203 = vpack.c.b16 %v2865, %v2864
  %v3204 = vpack.c.b16 %v2867, %v2866
  %v3205 = vpack.c.b16 %v2869, %v2868
  %v3206 = vpack.c.b16 %v2871, %v2870
  %v3207 = vpack.c.b16 %v2873, %v2872
  %v3208 = vpack.c.b16 %v2875, %v2874
  %v3209 = vpack.c.b16 %v2877, %v2876
  %v3210 = vpack.c.b16 %v2879, %v2878
  %v3211 = vpack.c.b16 %v2881, %v2880
  %v3212 = vpack.c.b16 %v2883, %v2882
  %v3213 = vpack.c.b16 %v2885, %v2884
  %v3214 = vpack.c.b16 %v2887, %v2886
  %v3215 = vpack.c.b16 %v2889, %v2888
  %v3216 = vpack.c.b16 %v2891, %v2890
  %v3217 = vpack.c.b16 %v2893, %v2892
  %v3218 = vpack.c.b16 %v2895, %v2894
  %v3219 = vpack.c.b16 %v2897, %v2896
  %v3220 = vpack.c.b16 %v2899, %v2898
  %v3221 = vpack.c.b16 %v2901, %v2900
  %v3222 = vpack.c.b16 %v2903, %v2902
  %v3223 = vpack.c.b16 %v2905, %v2904
  %v3224 = vpack.c.b16 %v2907, %v2906
  %v3225 = vpack.c.b16 %v2909, %v2908
  %v3226 = vpack.c.b16 %v2911, %v2910
  %v3227 = vpack.c.b16 %v2913, %v2912
  %v3228 = vpack.c.b16 %v2915, %v2914
  %v3229 = vpack.c.b16 %v2917, %v2916
  %v3230 = vpack.c.b16 %v2919, %v2918
  %v3231 = vpack.c.b16 %v2921, %v2920
  %v3232 = vpack.c.b16 %v2923, %v2922
  %v3233 = vpack.c.b16 %v2925, %v2924
  %v3234 = vpack.c.b16 %v2927, %v2926
  %v3235 = vpack.c.b16 %v2929, %v2928
  %v3236 = vpack.c.b16 %v2931, %v2930
  %v3237 = vpack.c.b16 %v2933, %v2932
  %v3238 = vpack.c.b16 %v2935, %v2934
  %v3239 = vpack.c.b16 %v2937, %v2936
  %v3240 = vpack.c.b16 %v2939, %v2938
  %v3241 = vpack.c.b16 %v2941, %v2940
  %v3242 = vpack.c.b16 %v2943, %v2942
  %v3243 = vpack.c.b16 %v2945, %v2944
  %v3244 = vpack.c.b16 %v2947, %v2946
  %v3245 = vpack.c.b16 %v2949, %v2948
  %v3246 = vpack.c.b16 %v2951, %v2950
  %v3247 = vpack.c.b16 %v2953, %v2952
  %v3248 = vpack.c.b16 %v2955, %v2954
  %v3249 = vpack.c.b16 %v2957, %v2956
  %v3250 = vpack.c.b16 %v2959, %v2958
  %v3251 = vpack.c.b16 %v2961, %v2960
  %v3252 = vpack.c.b16 %v2963, %v2962
  %v3253 = vpack.c.b16 %v2965, %v2964
  %v3254 = vpack.c.b16 %v2967, %v2966
  %v3255 = vpack.c.b16 %v2969, %v2968
  %v3256 = vpack.c.b16 %v2971, %v2970
  %v3257 = vpack.c.b16 %v2973, %v2972
  %v3258 = vpack.c.b16 %v2975, %v2974
  %v3259 = vpack.c.b16 %v2977, %v2976
  %v3260 = vpack.c.b16 %v2979, %v2978
  %v3261 = vpack.c.b16 %v2981, %v2980
  %v3262 = vpack.c.b16 %v2983, %v2982
  %v3263 = vpack.c.b16 %v2985, %v2984
  %v3264 = vpack.c.b16 %v2987, %v2986
  %v3265 = vpack.c.b16 %v2989, %v2988
  %v3266 = vpack.c.b16 %v2991, %v2990
  %v3267 = vpack.c.b16 %v2993, %v2992
  %v3268 = vpack.c.b16 %v2995, %v2994
  %v3269 = vpack.c.b16 %v2997, %v2996
  %v3270 = vpack.c.b16 %v2999, %v2998
  %v3271 = vpack.c.b16 %v3001, %v3000
  %v3272 = vpack.c.b16 %v3003, %v3002
  %v3273 = vpack.c.b16 %v3005, %v3004
  %v3274 = vpack.c.b16 %v3007, %v3006
  %v3275 = vpack.c.b16 %v3009, %v3008
  %v3276 = vpack.c.b16 %v3011, %v3010
  %v3277 = vpack.c.b16 %v3013, %v3012
  %v3278 = vpack.c.b16 %v3015, %v3014
  %v3279 = vpack.c.b16 %v3017, %v3016
  %v3280 = vpack.c.b16 %v3019, %v3018
  %v3281 = vpack.c.b16 %v3021, %v3020
  %v3282 = vpack.c.b16 %v3023, %v3022
  %v3283 = vpack.c.b16 %v3025, %v3024
  %v3284 = vpack.c.b16 %v3027, %v3026
  %v3285 = vpack.c.b16 %v3029, %v3028
  %v3286 = vpack.c.b16 %v3031, %v3030
  %v3287 = vpack.c.b16 %v3033, %v3032
  %v3288 = vpack.c.b16 %v3035, %v3034
  %v3289 = vpack.c.b16 %v3037, %v3036
  %v3290 = vpack.c.b16 %v3039, %v3038
  %v3291 = vpack.c.b16 %v3041, %v3040
  %v3292 = vpack.c.b16 %v3043, %v3042
  %v3293 = vpack.c.b16 %v3045, %v3044
  %v3294 = vpack.c.b16 %v3047, %v3046
  %v3295 = vpack.c.b16 %v3049, %v3048
  %v3296 = vpack.c.b16 %v3051, %v3050
  %v3297 = vpack.c.b16 %v3053, %v3052
  %v3298 = vpack.c.b16 %v3055, %v3054
  %v3299 = vpack.c.b16 %v3057, %v3056
  %v3300 = vpack.c.b16 %v3059, %v3058
  %v3301 = vpack.c.b16 %v3061, %v3060
  %v3302 = vpack.c.b16 %v3063, %v3062
  %v3303 = vpack.c.b16 %v3065, %v3064
  %v3304 = vpack.c.b16 %v3067, %v3066
  %v3305 = vpack.c.b16 %v3069, %v3068
  %v3306 = vpack.c.b16 %v3071, %v3070
  %v3307 = vpack.c.b16 %v3073, %v3072
  %v3308 = vpack.c.b16 %v3075, %v3074
  %v3309 = vpack.c.b16 %v3077, %v3076
  %v3310 = vpack.c.b16 %v3079, %v3078
  %v3311 = vpack.c.b16 %v3081, %v3080
  %v3312 = vpack.c.b16 %v3083, %v3082
  %v3313 = vpack.c.b16 %v3085, %v3084
  %v3314 = vpack.c.b16 %v3087, %v3086
  %v3315 = vpack.c.b16 %v3089, %v3088
  %v3316 = vpack.c.b16 %v3091, %v3090
  %v3317 = vpack.c.b16 %v3093, %v3092
  %v3318 = vpack.c.b16 %v3095, %v3094
  %v3319 = vpack.c.b16 %v3097, %v3096
  %v3320 = vpack.c.b16 %v3099, %v3098
  %v3321 = vpack.c.b16 %v3101, %v3100
  %v3322 = vpack.c.b16 %v3103, %v3102
  %v3323 = vpack.c.b16 %v3105, %v3104
  %v3324 = vpack.c.b16 %v3107, %v3106
  %v3325 = vpack.c.b16 %v3109, %v3108
  %v3326 = vpack.c.b16 %v3111, %v3110
  %v3327 = vpack.c.b16 %v3113, %v3112
  %v3328 = vpack.c.b16 %v3115, %v3114
  %v3329 = vpack.c.b16 %v3117, %v3116
  %v3330 = vpack.c.b16 %v3119, %v3118
  %v3331 = vpack.c.b16 %v3121, %v3120
  %v3332 = vpack.c.b16 %v3123, %v3122
  %v3333 = vpack.c.b16 %v3125, %v3124
  %v3334 = vpack.c.b16 %v3127, %v3126
  %v3335 = vpack.c.b16 %v3129, %v3128
  %v3336 = vpack.c.b16 %v3131, %v3130
  %v3337 = vpack.c.b16 %v3133, %v3132
  %v3338 = vpack.c.b16 %v3135, %v3134
  %v3339 = vpack.c.b16 %v3137, %v3136
  %v3340 = vpack.c.b16 %v3139, %v3138
  %v3341 = vpack.c.b16 %v3141, %v3140
  %3542 = vmatpush.bf16.msra.mxu0 %v3149
  %3543 = vmatpush.bf16.msra.mxu0 %v3148
  %3544 = vmatpush.bf16.msra.mxu0 %v3147
  %3545 = vmatpush.bf16.msra.mxu0 %v3146
  %3546 = vmatpush.bf16.msra.mxu0 %v3145
  %3547 = vmatpush.bf16.msra.mxu0 %v3144
  %3548 = vmatpush.bf16.msra.mxu0 %v3143
  %3549 = vmatpush.bf16.msra.mxu0 %v3142
  %3550 = vmatmul.bf16.gmra.mxu0 %v1692
  %v3551 = vpop.f32.mrf.mxu0
  %v3552 = vadd.f32 0.0, %v3551
  %v3553 = vpop.f32.mrf.mxu0
  %v3554 = vadd.f32 0.0, %v3553
  %3555 = vmatmul.bf16.gmra.mxu0 %v1717
  %v3556 = vpop.f32.mrf.mxu0
  %v3557 = vadd.f32 0.0, %v3556
  %v3558 = vpop.f32.mrf.mxu0
  %v3559 = vadd.f32 0.0, %v3558
  %3560 = vmatmul.bf16.gmra.mxu0 %v1742
  %v3561 = vpop.f32.mrf.mxu0
  %v3562 = vadd.f32 0.0, %v3561
  %v3563 = vpop.f32.mrf.mxu0
  %v3564 = vadd.f32 0.0, %v3563
  %3565 = vmatmul.bf16.gmra.mxu0 %v1767
  %v3566 = vpop.f32.mrf.mxu0
  %v3567 = vadd.f32 0.0, %v3566
  %v3568 = vpop.f32.mrf.mxu0
  %v3569 = vadd.f32 0.0, %v3568
  %3570 = vmatmul.bf16.gmra.mxu0 %v1792
  %v3571 = vpop.f32.mrf.mxu0
  %v3572 = vadd.f32 0.0, %v3571
  %v3573 = vpop.f32.mrf.mxu0
  %v3574 = vadd.f32 0.0, %v3573
  %3575 = vmatmul.bf16.gmra.mxu0 %v1817
  %v3576 = vpop.f32.mrf.mxu0
  %v3577 = vadd.f32 0.0, %v3576
  %v3578 = vpop.f32.mrf.mxu0
  %v3579 = vadd.f32 0.0, %v3578
  %3580 = vmatmul.bf16.gmra.mxu0 %v1842
  %v3581 = vpop.f32.mrf.mxu0
  %v3582 = vadd.f32 0.0, %v3581
  %v3583 = vpop.f32.mrf.mxu0
  %v3584 = vadd.f32 0.0, %v3583
  %3585 = vmatmul.bf16.gmra.mxu0 %v1867
  %v3586 = vpop.f32.mrf.mxu0
  %v3587 = vadd.f32 0.0, %v3586
  %v3588 = vpop.f32.mrf.mxu0
  %v3589 = vadd.f32 0.0, %v3588
  %3590 = vmatmul.bf16.gmra.mxu0 %v1892
  %v3591 = vpop.f32.mrf.mxu0
  %v3592 = vadd.f32 0.0, %v3591
  %v3593 = vpop.f32.mrf.mxu0
  %v3594 = vadd.f32 0.0, %v3593
  %3595 = vmatmul.bf16.gmra.mxu0 %v1917
  %v3596 = vpop.f32.mrf.mxu0
  %v3597 = vadd.f32 0.0, %v3596
  %v3598 = vpop.f32.mrf.mxu0
  %v3599 = vadd.f32 0.0, %v3598
  %3600 = vmatmul.bf16.gmra.mxu0 %v1942
  %v3601 = vpop.f32.mrf.mxu0
  %v3602 = vadd.f32 0.0, %v3601
  %v3603 = vpop.f32.mrf.mxu0
  %v3604 = vadd.f32 0.0, %v3603
  %3605 = vmatmul.bf16.gmra.mxu0 %v1967
  %v3606 = vpop.f32.mrf.mxu0
  %v3607 = vadd.f32 0.0, %v3606
  %v3608 = vpop.f32.mrf.mxu0
  %v3609 = vadd.f32 0.0, %v3608
  %3610 = vmatmul.bf16.gmra.mxu0 %v1992
  %v3611 = vpop.f32.mrf.mxu0
  %v3612 = vadd.f32 0.0, %v3611
  %v3613 = vpop.f32.mrf.mxu0
  %3614 = vdwg.mxu0
  %3615 = vmatpush.bf16.msra.mxu0 %v3157
  %3616 = vmatpush.bf16.msra.mxu0 %v3156
  %3617 = vmatpush.bf16.msra.mxu0 %v3155
  %3618 = vmatpush.bf16.msra.mxu0 %v3154
  %3619 = vmatpush.bf16.msra.mxu0 %v3153
  %3620 = vmatpush.bf16.msra.mxu0 %v3152
  %3621 = vmatpush.bf16.msra.mxu0 %v3151
  %3622 = vmatpush.bf16.msra.mxu0 %v3150
  %3623 = vmatmul.bf16.gmra.mxu0 %v1693
  %v3624 = vpop.f32.mrf.mxu0
  %v3625 = vadd.f32 %v3552, %v3624
  %v3626 = vpop.f32.mrf.mxu0
  %v3627 = vadd.f32 %v3554, %v3626
  %3628 = vmatmul.bf16.gmra.mxu0 %v1718
  %v3629 = vpop.f32.mrf.mxu0
  %v3630 = vadd.f32 %v3557, %v3629
  %v3631 = vpop.f32.mrf.mxu0
  %v3632 = vadd.f32 %v3559, %v3631
  %3633 = vmatmul.bf16.gmra.mxu0 %v1743
  %v3634 = vpop.f32.mrf.mxu0
  %v3635 = vadd.f32 %v3562, %v3634
  %v3636 = vpop.f32.mrf.mxu0
  %v3637 = vadd.f32 %v3564, %v3636
  %3638 = vmatmul.bf16.gmra.mxu0 %v1768
  %v3639 = vpop.f32.mrf.mxu0
  %v3640 = vadd.f32 %v3567, %v3639
  %v3641 = vpop.f32.mrf.mxu0
  %v3642 = vadd.f32 %v3569, %v3641
  %3643 = vmatmul.bf16.gmra.mxu0 %v1793
  %v3644 = vpop.f32.mrf.mxu0
  %v3645 = vadd.f32 %v3572, %v3644
  %v3646 = vpop.f32.mrf.mxu0
  %v3647 = vadd.f32 %v3574, %v3646
  %3648 = vmatmul.bf16.gmra.mxu0 %v1818
  %v3649 = vpop.f32.mrf.mxu0
  %v3650 = vadd.f32 %v3577, %v3649
  %v3651 = vpop.f32.mrf.mxu0
  %v3652 = vadd.f32 %v3579, %v3651
  %3653 = vmatmul.bf16.gmra.mxu0 %v1843
  %v3654 = vpop.f32.mrf.mxu0
  %v3655 = vadd.f32 %v3582, %v3654
  %v3656 = vpop.f32.mrf.mxu0
  %v3657 = vadd.f32 %v3584, %v3656
  %3658 = vmatmul.bf16.gmra.mxu0 %v1868
  %v3659 = vpop.f32.mrf.mxu0
  %v3660 = vadd.f32 %v3587, %v3659
  %v3661 = vpop.f32.mrf.mxu0
  %v3662 = vadd.f32 %v3589, %v3661
  %3663 = vmatmul.bf16.gmra.mxu0 %v1893
  %v3664 = vpop.f32.mrf.mxu0
  %v3665 = vadd.f32 %v3592, %v3664
  %v3666 = vpop.f32.mrf.mxu0
  %v3667 = vadd.f32 %v3594, %v3666
  %3668 = vmatmul.bf16.gmra.mxu0 %v1918
  %v3669 = vpop.f32.mrf.mxu0
  %v3670 = vadd.f32 %v3597, %v3669
  %v3671 = vpop.f32.mrf.mxu0
  %v3672 = vadd.f32 %v3599, %v3671
  %3673 = vmatmul.bf16.gmra.mxu0 %v1943
  %v3674 = vpop.f32.mrf.mxu0
  %v3675 = vadd.f32 %v3602, %v3674
  %v3676 = vpop.f32.mrf.mxu0
  %v3677 = vadd.f32 %v3604, %v3676
  %3678 = vmatmul.bf16.gmra.mxu0 %v1968
  %v3679 = vpop.f32.mrf.mxu0
  %v3680 = vadd.f32 %v3607, %v3679
  %v3681 = vpop.f32.mrf.mxu0
  %v3682 = vadd.f32 %v3609, %v3681
  %3683 = vmatmul.bf16.gmra.mxu0 %v1993
  %v3684 = vpop.f32.mrf.mxu0
  %v3685 = vadd.f32 %v3612, %v3684
  %v3686 = vpop.f32.mrf.mxu0
  %3687 = vdwg.mxu0
  %3688 = vmatpush.bf16.msra.mxu0 %v3165
  %3689 = vmatpush.bf16.msra.mxu0 %v3164
  %3690 = vmatpush.bf16.msra.mxu0 %v3163
  %3691 = vmatpush.bf16.msra.mxu0 %v3162
  %3692 = vmatpush.bf16.msra.mxu0 %v3161
  %3693 = vmatpush.bf16.msra.mxu0 %v3160
  %3694 = vmatpush.bf16.msra.mxu0 %v3159
  %3695 = vmatpush.bf16.msra.mxu0 %v3158
  %3696 = vmatmul.bf16.gmra.mxu0 %v1694
  %v3697 = vpop.f32.mrf.mxu0
  %v3698 = vadd.f32 %v3625, %v3697
  %v3699 = vpop.f32.mrf.mxu0
  %v3700 = vadd.f32 %v3627, %v3699
  %3701 = vmatmul.bf16.gmra.mxu0 %v1719
  %v3702 = vpop.f32.mrf.mxu0
  %v3703 = vadd.f32 %v3630, %v3702
  %v3704 = vpop.f32.mrf.mxu0
  %v3705 = vadd.f32 %v3632, %v3704
  %3706 = vmatmul.bf16.gmra.mxu0 %v1744
  %v3707 = vpop.f32.mrf.mxu0
  %v3708 = vadd.f32 %v3635, %v3707
  %v3709 = vpop.f32.mrf.mxu0
  %v3710 = vadd.f32 %v3637, %v3709
  %3711 = vmatmul.bf16.gmra.mxu0 %v1769
  %v3712 = vpop.f32.mrf.mxu0
  %v3713 = vadd.f32 %v3640, %v3712
  %v3714 = vpop.f32.mrf.mxu0
  %v3715 = vadd.f32 %v3642, %v3714
  %3716 = vmatmul.bf16.gmra.mxu0 %v1794
  %v3717 = vpop.f32.mrf.mxu0
  %v3718 = vadd.f32 %v3645, %v3717
  %v3719 = vpop.f32.mrf.mxu0
  %v3720 = vadd.f32 %v3647, %v3719
  %3721 = vmatmul.bf16.gmra.mxu0 %v1819
  %v3722 = vpop.f32.mrf.mxu0
  %v3723 = vadd.f32 %v3650, %v3722
  %v3724 = vpop.f32.mrf.mxu0
  %v3725 = vadd.f32 %v3652, %v3724
  %3726 = vmatmul.bf16.gmra.mxu0 %v1844
  %v3727 = vpop.f32.mrf.mxu0
  %v3728 = vadd.f32 %v3655, %v3727
  %v3729 = vpop.f32.mrf.mxu0
  %v3730 = vadd.f32 %v3657, %v3729
  %3731 = vmatmul.bf16.gmra.mxu0 %v1869
  %v3732 = vpop.f32.mrf.mxu0
  %v3733 = vadd.f32 %v3660, %v3732
  %v3734 = vpop.f32.mrf.mxu0
  %v3735 = vadd.f32 %v3662, %v3734
  %3736 = vmatmul.bf16.gmra.mxu0 %v1894
  %v3737 = vpop.f32.mrf.mxu0
  %v3738 = vadd.f32 %v3665, %v3737
  %v3739 = vpop.f32.mrf.mxu0
  %v3740 = vadd.f32 %v3667, %v3739
  %3741 = vmatmul.bf16.gmra.mxu0 %v1919
  %v3742 = vpop.f32.mrf.mxu0
  %v3743 = vadd.f32 %v3670, %v3742
  %v3744 = vpop.f32.mrf.mxu0
  %v3745 = vadd.f32 %v3672, %v3744
  %3746 = vmatmul.bf16.gmra.mxu0 %v1944
  %v3747 = vpop.f32.mrf.mxu0
  %v3748 = vadd.f32 %v3675, %v3747
  %v3749 = vpop.f32.mrf.mxu0
  %v3750 = vadd.f32 %v3677, %v3749
  %3751 = vmatmul.bf16.gmra.mxu0 %v1969
  %v3752 = vpop.f32.mrf.mxu0
  %v3753 = vadd.f32 %v3680, %v3752
  %v3754 = vpop.f32.mrf.mxu0
  %v3755 = vadd.f32 %v3682, %v3754
  %3756 = vmatmul.bf16.gmra.mxu0 %v1994
  %v3757 = vpop.f32.mrf.mxu0
  %v3758 = vadd.f32 %v3685, %v3757
  %v3759 = vpop.f32.mrf.mxu0
  %3760 = vdwg.mxu0
  %3761 = vmatpush.bf16.msra.mxu0 %v3173
  %3762 = vmatpush.bf16.msra.mxu0 %v3172
  %3763 = vmatpush.bf16.msra.mxu0 %v3171
  %3764 = vmatpush.bf16.msra.mxu0 %v3170
  %3765 = vmatpush.bf16.msra.mxu0 %v3169
  %3766 = vmatpush.bf16.msra.mxu0 %v3168
  %3767 = vmatpush.bf16.msra.mxu0 %v3167
  %3768 = vmatpush.bf16.msra.mxu0 %v3166
  %3769 = vmatmul.bf16.gmra.mxu0 %v1695
  %v3770 = vpop.f32.mrf.mxu0
  %v3771 = vadd.f32 %v3698, %v3770
  %v3772 = vpop.f32.mrf.mxu0
  %v3773 = vadd.f32 %v3700, %v3772
  %3774 = vmatmul.bf16.gmra.mxu0 %v1720
  %v3775 = vpop.f32.mrf.mxu0
  %v3776 = vadd.f32 %v3703, %v3775
  %v3777 = vpop.f32.mrf.mxu0
  %v3778 = vadd.f32 %v3705, %v3777
  %3779 = vmatmul.bf16.gmra.mxu0 %v1745
  %v3780 = vpop.f32.mrf.mxu0
  %v3781 = vadd.f32 %v3708, %v3780
  %v3782 = vpop.f32.mrf.mxu0
  %v3783 = vadd.f32 %v3710, %v3782
  %3784 = vmatmul.bf16.gmra.mxu0 %v1770
  %v3785 = vpop.f32.mrf.mxu0
  %v3786 = vadd.f32 %v3713, %v3785
  %v3787 = vpop.f32.mrf.mxu0
  %v3788 = vadd.f32 %v3715, %v3787
  %3789 = vmatmul.bf16.gmra.mxu0 %v1795
  %v3790 = vpop.f32.mrf.mxu0
  %v3791 = vadd.f32 %v3718, %v3790
  %v3792 = vpop.f32.mrf.mxu0
  %v3793 = vadd.f32 %v3720, %v3792
  %3794 = vmatmul.bf16.gmra.mxu0 %v1820
  %v3795 = vpop.f32.mrf.mxu0
  %v3796 = vadd.f32 %v3723, %v3795
  %v3797 = vpop.f32.mrf.mxu0
  %v3798 = vadd.f32 %v3725, %v3797
  %3799 = vmatmul.bf16.gmra.mxu0 %v1845
  %v3800 = vpop.f32.mrf.mxu0
  %v3801 = vadd.f32 %v3728, %v3800
  %v3802 = vpop.f32.mrf.mxu0
  %v3803 = vadd.f32 %v3730, %v3802
  %3804 = vmatmul.bf16.gmra.mxu0 %v1870
  %v3805 = vpop.f32.mrf.mxu0
  %v3806 = vadd.f32 %v3733, %v3805
  %v3807 = vpop.f32.mrf.mxu0
  %v3808 = vadd.f32 %v3735, %v3807
  %3809 = vmatmul.bf16.gmra.mxu0 %v1895
  %v3810 = vpop.f32.mrf.mxu0
  %v3811 = vadd.f32 %v3738, %v3810
  %v3812 = vpop.f32.mrf.mxu0
  %v3813 = vadd.f32 %v3740, %v3812
  %3814 = vmatmul.bf16.gmra.mxu0 %v1920
  %v3815 = vpop.f32.mrf.mxu0
  %v3816 = vadd.f32 %v3743, %v3815
  %v3817 = vpop.f32.mrf.mxu0
  %v3818 = vadd.f32 %v3745, %v3817
  %3819 = vmatmul.bf16.gmra.mxu0 %v1945
  %v3820 = vpop.f32.mrf.mxu0
  %v3821 = vadd.f32 %v3748, %v3820
  %v3822 = vpop.f32.mrf.mxu0
  %v3823 = vadd.f32 %v3750, %v3822
  %3824 = vmatmul.bf16.gmra.mxu0 %v1970
  %v3825 = vpop.f32.mrf.mxu0
  %v3826 = vadd.f32 %v3753, %v3825
  %v3827 = vpop.f32.mrf.mxu0
  %v3828 = vadd.f32 %v3755, %v3827
  %3829 = vmatmul.bf16.gmra.mxu0 %v1995
  %v3830 = vpop.f32.mrf.mxu0
  %v3831 = vadd.f32 %v3758, %v3830
  %v3832 = vpop.f32.mrf.mxu0
  %3833 = vdwg.mxu0
  %3834 = vmatpush.bf16.msra.mxu0 %v3181
  %3835 = vmatpush.bf16.msra.mxu0 %v3180
  %3836 = vmatpush.bf16.msra.mxu0 %v3179
  %3837 = vmatpush.bf16.msra.mxu0 %v3178
  %3838 = vmatpush.bf16.msra.mxu0 %v3177
  %3839 = vmatpush.bf16.msra.mxu0 %v3176
  %3840 = vmatpush.bf16.msra.mxu0 %v3175
  %3841 = vmatpush.bf16.msra.mxu0 %v3174
  %3842 = vmatmul.bf16.gmra.mxu0 %v1696
  %v3843 = vpop.f32.mrf.mxu0
  %v3844 = vadd.f32 %v3771, %v3843
  %v3845 = vpop.f32.mrf.mxu0
  %v3846 = vadd.f32 %v3773, %v3845
  %3847 = vmatmul.bf16.gmra.mxu0 %v1721
  %v3848 = vpop.f32.mrf.mxu0
  %v3849 = vadd.f32 %v3776, %v3848
  %v3850 = vpop.f32.mrf.mxu0
  %v3851 = vadd.f32 %v3778, %v3850
  %3852 = vmatmul.bf16.gmra.mxu0 %v1746
  %v3853 = vpop.f32.mrf.mxu0
  %v3854 = vadd.f32 %v3781, %v3853
  %v3855 = vpop.f32.mrf.mxu0
  %v3856 = vadd.f32 %v3783, %v3855
  %3857 = vmatmul.bf16.gmra.mxu0 %v1771
  %v3858 = vpop.f32.mrf.mxu0
  %v3859 = vadd.f32 %v3786, %v3858
  %v3860 = vpop.f32.mrf.mxu0
  %v3861 = vadd.f32 %v3788, %v3860
  %3862 = vmatmul.bf16.gmra.mxu0 %v1796
  %v3863 = vpop.f32.mrf.mxu0
  %v3864 = vadd.f32 %v3791, %v3863
  %v3865 = vpop.f32.mrf.mxu0
  %v3866 = vadd.f32 %v3793, %v3865
  %3867 = vmatmul.bf16.gmra.mxu0 %v1821
  %v3868 = vpop.f32.mrf.mxu0
  %v3869 = vadd.f32 %v3796, %v3868
  %v3870 = vpop.f32.mrf.mxu0
  %v3871 = vadd.f32 %v3798, %v3870
  %3872 = vmatmul.bf16.gmra.mxu0 %v1846
  %v3873 = vpop.f32.mrf.mxu0
  %v3874 = vadd.f32 %v3801, %v3873
  %v3875 = vpop.f32.mrf.mxu0
  %v3876 = vadd.f32 %v3803, %v3875
  %3877 = vmatmul.bf16.gmra.mxu0 %v1871
  %v3878 = vpop.f32.mrf.mxu0
  %v3879 = vadd.f32 %v3806, %v3878
  %v3880 = vpop.f32.mrf.mxu0
  %v3881 = vadd.f32 %v3808, %v3880
  %3882 = vmatmul.bf16.gmra.mxu0 %v1896
  %v3883 = vpop.f32.mrf.mxu0
  %v3884 = vadd.f32 %v3811, %v3883
  %v3885 = vpop.f32.mrf.mxu0
  %v3886 = vadd.f32 %v3813, %v3885
  %3887 = vmatmul.bf16.gmra.mxu0 %v1921
  %v3888 = vpop.f32.mrf.mxu0
  %v3889 = vadd.f32 %v3816, %v3888
  %v3890 = vpop.f32.mrf.mxu0
  %v3891 = vadd.f32 %v3818, %v3890
  %3892 = vmatmul.bf16.gmra.mxu0 %v1946
  %v3893 = vpop.f32.mrf.mxu0
  %v3894 = vadd.f32 %v3821, %v3893
  %v3895 = vpop.f32.mrf.mxu0
  %v3896 = vadd.f32 %v3823, %v3895
  %3897 = vmatmul.bf16.gmra.mxu0 %v1971
  %v3898 = vpop.f32.mrf.mxu0
  %v3899 = vadd.f32 %v3826, %v3898
  %v3900 = vpop.f32.mrf.mxu0
  %v3901 = vadd.f32 %v3828, %v3900
  %3902 = vmatmul.bf16.gmra.mxu0 %v1996
  %v3903 = vpop.f32.mrf.mxu0
  %v3904 = vadd.f32 %v3831, %v3903
  %v3905 = vpop.f32.mrf.mxu0
  %3906 = vdwg.mxu0
  %3907 = vmatpush.bf16.msra.mxu0 %v3189
  %3908 = vmatpush.bf16.msra.mxu0 %v3188
  %3909 = vmatpush.bf16.msra.mxu0 %v3187
  %3910 = vmatpush.bf16.msra.mxu0 %v3186
  %3911 = vmatpush.bf16.msra.mxu0 %v3185
  %3912 = vmatpush.bf16.msra.mxu0 %v3184
  %3913 = vmatpush.bf16.msra.mxu0 %v3183
  %3914 = vmatpush.bf16.msra.mxu0 %v3182
  %3915 = vmatmul.bf16.gmra.mxu0 %v1697
  %v3916 = vpop.f32.mrf.mxu0
  %v3917 = vadd.f32 %v3844, %v3916
  %v3918 = vpop.f32.mrf.mxu0
  %v3919 = vadd.f32 %v3846, %v3918
  %3920 = vmatmul.bf16.gmra.mxu0 %v1722
  %v3921 = vpop.f32.mrf.mxu0
  %v3922 = vadd.f32 %v3849, %v3921
  %v3923 = vpop.f32.mrf.mxu0
  %v3924 = vadd.f32 %v3851, %v3923
  %3925 = vmatmul.bf16.gmra.mxu0 %v1747
  %v3926 = vpop.f32.mrf.mxu0
  %v3927 = vadd.f32 %v3854, %v3926
  %v3928 = vpop.f32.mrf.mxu0
  %v3929 = vadd.f32 %v3856, %v3928
  %3930 = vmatmul.bf16.gmra.mxu0 %v1772
  %v3931 = vpop.f32.mrf.mxu0
  %v3932 = vadd.f32 %v3859, %v3931
  %v3933 = vpop.f32.mrf.mxu0
  %v3934 = vadd.f32 %v3861, %v3933
  %3935 = vmatmul.bf16.gmra.mxu0 %v1797
  %v3936 = vpop.f32.mrf.mxu0
  %v3937 = vadd.f32 %v3864, %v3936
  %v3938 = vpop.f32.mrf.mxu0
  %v3939 = vadd.f32 %v3866, %v3938
  %3940 = vmatmul.bf16.gmra.mxu0 %v1822
  %v3941 = vpop.f32.mrf.mxu0
  %v3942 = vadd.f32 %v3869, %v3941
  %v3943 = vpop.f32.mrf.mxu0
  %v3944 = vadd.f32 %v3871, %v3943
  %3945 = vmatmul.bf16.gmra.mxu0 %v1847
  %v3946 = vpop.f32.mrf.mxu0
  %v3947 = vadd.f32 %v3874, %v3946
  %v3948 = vpop.f32.mrf.mxu0
  %v3949 = vadd.f32 %v3876, %v3948
  %3950 = vmatmul.bf16.gmra.mxu0 %v1872
  %v3951 = vpop.f32.mrf.mxu0
  %v3952 = vadd.f32 %v3879, %v3951
  %v3953 = vpop.f32.mrf.mxu0
  %v3954 = vadd.f32 %v3881, %v3953
  %3955 = vmatmul.bf16.gmra.mxu0 %v1897
  %v3956 = vpop.f32.mrf.mxu0
  %v3957 = vadd.f32 %v3884, %v3956
  %v3958 = vpop.f32.mrf.mxu0
  %v3959 = vadd.f32 %v3886, %v3958
  %3960 = vmatmul.bf16.gmra.mxu0 %v1922
  %v3961 = vpop.f32.mrf.mxu0
  %v3962 = vadd.f32 %v3889, %v3961
  %v3963 = vpop.f32.mrf.mxu0
  %v3964 = vadd.f32 %v3891, %v3963
  %3965 = vmatmul.bf16.gmra.mxu0 %v1947
  %v3966 = vpop.f32.mrf.mxu0
  %v3967 = vadd.f32 %v3894, %v3966
  %v3968 = vpop.f32.mrf.mxu0
  %v3969 = vadd.f32 %v3896, %v3968
  %3970 = vmatmul.bf16.gmra.mxu0 %v1972
  %v3971 = vpop.f32.mrf.mxu0
  %v3972 = vadd.f32 %v3899, %v3971
  %v3973 = vpop.f32.mrf.mxu0
  %v3974 = vadd.f32 %v3901, %v3973
  %3975 = vmatmul.bf16.gmra.mxu0 %v1997
  %v3976 = vpop.f32.mrf.mxu0
  %v3977 = vadd.f32 %v3904, %v3976
  %v3978 = vpop.f32.mrf.mxu0
  %3979 = vdwg.mxu0
  %3980 = vmatpush.bf16.msra.mxu0 %v3197
  %3981 = vmatpush.bf16.msra.mxu0 %v3196
  %3982 = vmatpush.bf16.msra.mxu0 %v3195
  %3983 = vmatpush.bf16.msra.mxu0 %v3194
  %3984 = vmatpush.bf16.msra.mxu0 %v3193
  %3985 = vmatpush.bf16.msra.mxu0 %v3192
  %3986 = vmatpush.bf16.msra.mxu0 %v3191
  %3987 = vmatpush.bf16.msra.mxu0 %v3190
  %3988 = vmatmul.bf16.gmra.mxu0 %v1698
  %v3989 = vpop.f32.mrf.mxu0
  %v3990 = vadd.f32 %v3917, %v3989
  %v3991 = vpop.f32.mrf.mxu0
  %v3992 = vadd.f32 %v3919, %v3991
  %3993 = vmatmul.bf16.gmra.mxu0 %v1723
  %v3994 = vpop.f32.mrf.mxu0
  %v3995 = vadd.f32 %v3922, %v3994
  %v3996 = vpop.f32.mrf.mxu0
  %v3997 = vadd.f32 %v3924, %v3996
  %3998 = vmatmul.bf16.gmra.mxu0 %v1748
  %v3999 = vpop.f32.mrf.mxu0
  %v4000 = vadd.f32 %v3927, %v3999
  %v4001 = vpop.f32.mrf.mxu0
  %v4002 = vadd.f32 %v3929, %v4001
  %4003 = vmatmul.bf16.gmra.mxu0 %v1773
  %v4004 = vpop.f32.mrf.mxu0
  %v4005 = vadd.f32 %v3932, %v4004
  %v4006 = vpop.f32.mrf.mxu0
  %v4007 = vadd.f32 %v3934, %v4006
  %4008 = vmatmul.bf16.gmra.mxu0 %v1798
  %v4009 = vpop.f32.mrf.mxu0
  %v4010 = vadd.f32 %v3937, %v4009
  %v4011 = vpop.f32.mrf.mxu0
  %v4012 = vadd.f32 %v3939, %v4011
  %4013 = vmatmul.bf16.gmra.mxu0 %v1823
  %v4014 = vpop.f32.mrf.mxu0
  %v4015 = vadd.f32 %v3942, %v4014
  %v4016 = vpop.f32.mrf.mxu0
  %v4017 = vadd.f32 %v3944, %v4016
  %4018 = vmatmul.bf16.gmra.mxu0 %v1848
  %v4019 = vpop.f32.mrf.mxu0
  %v4020 = vadd.f32 %v3947, %v4019
  %v4021 = vpop.f32.mrf.mxu0
  %v4022 = vadd.f32 %v3949, %v4021
  %4023 = vmatmul.bf16.gmra.mxu0 %v1873
  %v4024 = vpop.f32.mrf.mxu0
  %v4025 = vadd.f32 %v3952, %v4024
  %v4026 = vpop.f32.mrf.mxu0
  %v4027 = vadd.f32 %v3954, %v4026
  %4028 = vmatmul.bf16.gmra.mxu0 %v1898
  %v4029 = vpop.f32.mrf.mxu0
  %v4030 = vadd.f32 %v3957, %v4029
  %v4031 = vpop.f32.mrf.mxu0
  %v4032 = vadd.f32 %v3959, %v4031
  %4033 = vmatmul.bf16.gmra.mxu0 %v1923
  %v4034 = vpop.f32.mrf.mxu0
  %v4035 = vadd.f32 %v3962, %v4034
  %v4036 = vpop.f32.mrf.mxu0
  %v4037 = vadd.f32 %v3964, %v4036
  %4038 = vmatmul.bf16.gmra.mxu0 %v1948
  %v4039 = vpop.f32.mrf.mxu0
  %v4040 = vadd.f32 %v3967, %v4039
  %v4041 = vpop.f32.mrf.mxu0
  %v4042 = vadd.f32 %v3969, %v4041
  %4043 = vmatmul.bf16.gmra.mxu0 %v1973
  %v4044 = vpop.f32.mrf.mxu0
  %v4045 = vadd.f32 %v3972, %v4044
  %v4046 = vpop.f32.mrf.mxu0
  %v4047 = vadd.f32 %v3974, %v4046
  %4048 = vmatmul.bf16.gmra.mxu0 %v1998
  %v4049 = vpop.f32.mrf.mxu0
  %v4050 = vadd.f32 %v3977, %v4049
  %v4051 = vpop.f32.mrf.mxu0
  %4052 = vdwg.mxu0
  %4053 = vmatpush.bf16.msra.mxu0 %v3205
  %4054 = vmatpush.bf16.msra.mxu0 %v3204
  %4055 = vmatpush.bf16.msra.mxu0 %v3203
  %4056 = vmatpush.bf16.msra.mxu0 %v3202
  %4057 = vmatpush.bf16.msra.mxu0 %v3201
  %4058 = vmatpush.bf16.msra.mxu0 %v3200
  %4059 = vmatpush.bf16.msra.mxu0 %v3199
  %4060 = vmatpush.bf16.msra.mxu0 %v3198
  %4061 = vmatmul.bf16.gmra.mxu0 %v1699
  %v4062 = vpop.f32.mrf.mxu0
  %v4063 = vadd.f32 %v3990, %v4062
  %v4064 = vpop.f32.mrf.mxu0
  %v4065 = vadd.f32 %v3992, %v4064
  %4066 = vmatmul.bf16.gmra.mxu0 %v1724
  %v4067 = vpop.f32.mrf.mxu0
  %v4068 = vadd.f32 %v3995, %v4067
  %v4069 = vpop.f32.mrf.mxu0
  %v4070 = vadd.f32 %v3997, %v4069
  %4071 = vmatmul.bf16.gmra.mxu0 %v1749
  %v4072 = vpop.f32.mrf.mxu0
  %v4073 = vadd.f32 %v4000, %v4072
  %v4074 = vpop.f32.mrf.mxu0
  %v4075 = vadd.f32 %v4002, %v4074
  %4076 = vmatmul.bf16.gmra.mxu0 %v1774
  %v4077 = vpop.f32.mrf.mxu0
  %v4078 = vadd.f32 %v4005, %v4077
  %v4079 = vpop.f32.mrf.mxu0
  %v4080 = vadd.f32 %v4007, %v4079
  %4081 = vmatmul.bf16.gmra.mxu0 %v1799
  %v4082 = vpop.f32.mrf.mxu0
  %v4083 = vadd.f32 %v4010, %v4082
  %v4084 = vpop.f32.mrf.mxu0
  %v4085 = vadd.f32 %v4012, %v4084
  %4086 = vmatmul.bf16.gmra.mxu0 %v1824
  %v4087 = vpop.f32.mrf.mxu0
  %v4088 = vadd.f32 %v4015, %v4087
  %v4089 = vpop.f32.mrf.mxu0
  %v4090 = vadd.f32 %v4017, %v4089
  %4091 = vmatmul.bf16.gmra.mxu0 %v1849
  %v4092 = vpop.f32.mrf.mxu0
  %v4093 = vadd.f32 %v4020, %v4092
  %v4094 = vpop.f32.mrf.mxu0
  %v4095 = vadd.f32 %v4022, %v4094
  %4096 = vmatmul.bf16.gmra.mxu0 %v1874
  %v4097 = vpop.f32.mrf.mxu0
  %v4098 = vadd.f32 %v4025, %v4097
  %v4099 = vpop.f32.mrf.mxu0
  %v4100 = vadd.f32 %v4027, %v4099
  %4101 = vmatmul.bf16.gmra.mxu0 %v1899
  %v4102 = vpop.f32.mrf.mxu0
  %v4103 = vadd.f32 %v4030, %v4102
  %v4104 = vpop.f32.mrf.mxu0
  %v4105 = vadd.f32 %v4032, %v4104
  %4106 = vmatmul.bf16.gmra.mxu0 %v1924
  %v4107 = vpop.f32.mrf.mxu0
  %v4108 = vadd.f32 %v4035, %v4107
  %v4109 = vpop.f32.mrf.mxu0
  %v4110 = vadd.f32 %v4037, %v4109
  %4111 = vmatmul.bf16.gmra.mxu0 %v1949
  %v4112 = vpop.f32.mrf.mxu0
  %v4113 = vadd.f32 %v4040, %v4112
  %v4114 = vpop.f32.mrf.mxu0
  %v4115 = vadd.f32 %v4042, %v4114
  %4116 = vmatmul.bf16.gmra.mxu0 %v1974
  %v4117 = vpop.f32.mrf.mxu0
  %v4118 = vadd.f32 %v4045, %v4117
  %v4119 = vpop.f32.mrf.mxu0
  %v4120 = vadd.f32 %v4047, %v4119
  %4121 = vmatmul.bf16.gmra.mxu0 %v1999
  %v4122 = vpop.f32.mrf.mxu0
  %v4123 = vadd.f32 %v4050, %v4122
  %v4124 = vpop.f32.mrf.mxu0
  %4125 = vdwg.mxu0
  %4126 = vmatpush.bf16.msra.mxu0 %v3213
  %4127 = vmatpush.bf16.msra.mxu0 %v3212
  %4128 = vmatpush.bf16.msra.mxu0 %v3211
  %4129 = vmatpush.bf16.msra.mxu0 %v3210
  %4130 = vmatpush.bf16.msra.mxu0 %v3209
  %4131 = vmatpush.bf16.msra.mxu0 %v3208
  %4132 = vmatpush.bf16.msra.mxu0 %v3207
  %4133 = vmatpush.bf16.msra.mxu0 %v3206
  %4134 = vmatmul.bf16.gmra.mxu0 %v1700
  %v4135 = vpop.f32.mrf.mxu0
  %v4136 = vadd.f32 %v4063, %v4135
  %v4137 = vpop.f32.mrf.mxu0
  %v4138 = vadd.f32 %v4065, %v4137
  %4139 = vmatmul.bf16.gmra.mxu0 %v1725
  %v4140 = vpop.f32.mrf.mxu0
  %v4141 = vadd.f32 %v4068, %v4140
  %v4142 = vpop.f32.mrf.mxu0
  %v4143 = vadd.f32 %v4070, %v4142
  %4144 = vmatmul.bf16.gmra.mxu0 %v1750
  %v4145 = vpop.f32.mrf.mxu0
  %v4146 = vadd.f32 %v4073, %v4145
  %v4147 = vpop.f32.mrf.mxu0
  %v4148 = vadd.f32 %v4075, %v4147
  %4149 = vmatmul.bf16.gmra.mxu0 %v1775
  %v4150 = vpop.f32.mrf.mxu0
  %v4151 = vadd.f32 %v4078, %v4150
  %v4152 = vpop.f32.mrf.mxu0
  %v4153 = vadd.f32 %v4080, %v4152
  %4154 = vmatmul.bf16.gmra.mxu0 %v1800
  %v4155 = vpop.f32.mrf.mxu0
  %v4156 = vadd.f32 %v4083, %v4155
  %v4157 = vpop.f32.mrf.mxu0
  %v4158 = vadd.f32 %v4085, %v4157
  %4159 = vmatmul.bf16.gmra.mxu0 %v1825
  %v4160 = vpop.f32.mrf.mxu0
  %v4161 = vadd.f32 %v4088, %v4160
  %v4162 = vpop.f32.mrf.mxu0
  %v4163 = vadd.f32 %v4090, %v4162
  %4164 = vmatmul.bf16.gmra.mxu0 %v1850
  %v4165 = vpop.f32.mrf.mxu0
  %v4166 = vadd.f32 %v4093, %v4165
  %v4167 = vpop.f32.mrf.mxu0
  %v4168 = vadd.f32 %v4095, %v4167
  %4169 = vmatmul.bf16.gmra.mxu0 %v1875
  %v4170 = vpop.f32.mrf.mxu0
  %v4171 = vadd.f32 %v4098, %v4170
  %v4172 = vpop.f32.mrf.mxu0
  %v4173 = vadd.f32 %v4100, %v4172
  %4174 = vmatmul.bf16.gmra.mxu0 %v1900
  %v4175 = vpop.f32.mrf.mxu0
  %v4176 = vadd.f32 %v4103, %v4175
  %v4177 = vpop.f32.mrf.mxu0
  %v4178 = vadd.f32 %v4105, %v4177
  %4179 = vmatmul.bf16.gmra.mxu0 %v1925
  %v4180 = vpop.f32.mrf.mxu0
  %v4181 = vadd.f32 %v4108, %v4180
  %v4182 = vpop.f32.mrf.mxu0
  %v4183 = vadd.f32 %v4110, %v4182
  %4184 = vmatmul.bf16.gmra.mxu0 %v1950
  %v4185 = vpop.f32.mrf.mxu0
  %v4186 = vadd.f32 %v4113, %v4185
  %v4187 = vpop.f32.mrf.mxu0
  %v4188 = vadd.f32 %v4115, %v4187
  %4189 = vmatmul.bf16.gmra.mxu0 %v1975
  %v4190 = vpop.f32.mrf.mxu0
  %v4191 = vadd.f32 %v4118, %v4190
  %v4192 = vpop.f32.mrf.mxu0
  %v4193 = vadd.f32 %v4120, %v4192
  %4194 = vmatmul.bf16.gmra.mxu0 %v2000
  %v4195 = vpop.f32.mrf.mxu0
  %v4196 = vadd.f32 %v4123, %v4195
  %v4197 = vpop.f32.mrf.mxu0
  %4198 = vdwg.mxu0
  %4199 = vmatpush.bf16.msra.mxu0 %v3221
  %4200 = vmatpush.bf16.msra.mxu0 %v3220
  %4201 = vmatpush.bf16.msra.mxu0 %v3219
  %4202 = vmatpush.bf16.msra.mxu0 %v3218
  %4203 = vmatpush.bf16.msra.mxu0 %v3217
  %4204 = vmatpush.bf16.msra.mxu0 %v3216
  %4205 = vmatpush.bf16.msra.mxu0 %v3215
  %4206 = vmatpush.bf16.msra.mxu0 %v3214
  %4207 = vmatmul.bf16.gmra.mxu0 %v1701
  %v4208 = vpop.f32.mrf.mxu0
  %v4209 = vadd.f32 %v4136, %v4208
  %v4210 = vpop.f32.mrf.mxu0
  %v4211 = vadd.f32 %v4138, %v4210
  %4212 = vmatmul.bf16.gmra.mxu0 %v1726
  %v4213 = vpop.f32.mrf.mxu0
  %v4214 = vadd.f32 %v4141, %v4213
  %v4215 = vpop.f32.mrf.mxu0
  %v4216 = vadd.f32 %v4143, %v4215
  %4217 = vmatmul.bf16.gmra.mxu0 %v1751
  %v4218 = vpop.f32.mrf.mxu0
  %v4219 = vadd.f32 %v4146, %v4218
  %v4220 = vpop.f32.mrf.mxu0
  %v4221 = vadd.f32 %v4148, %v4220
  %4222 = vmatmul.bf16.gmra.mxu0 %v1776
  %v4223 = vpop.f32.mrf.mxu0
  %v4224 = vadd.f32 %v4151, %v4223
  %v4225 = vpop.f32.mrf.mxu0
  %v4226 = vadd.f32 %v4153, %v4225
  %4227 = vmatmul.bf16.gmra.mxu0 %v1801
  %v4228 = vpop.f32.mrf.mxu0
  %v4229 = vadd.f32 %v4156, %v4228
  %v4230 = vpop.f32.mrf.mxu0
  %v4231 = vadd.f32 %v4158, %v4230
  %4232 = vmatmul.bf16.gmra.mxu0 %v1826
  %v4233 = vpop.f32.mrf.mxu0
  %v4234 = vadd.f32 %v4161, %v4233
  %v4235 = vpop.f32.mrf.mxu0
  %v4236 = vadd.f32 %v4163, %v4235
  %4237 = vmatmul.bf16.gmra.mxu0 %v1851
  %v4238 = vpop.f32.mrf.mxu0
  %v4239 = vadd.f32 %v4166, %v4238
  %v4240 = vpop.f32.mrf.mxu0
  %v4241 = vadd.f32 %v4168, %v4240
  %4242 = vmatmul.bf16.gmra.mxu0 %v1876
  %v4243 = vpop.f32.mrf.mxu0
  %v4244 = vadd.f32 %v4171, %v4243
  %v4245 = vpop.f32.mrf.mxu0
  %v4246 = vadd.f32 %v4173, %v4245
  %4247 = vmatmul.bf16.gmra.mxu0 %v1901
  %v4248 = vpop.f32.mrf.mxu0
  %v4249 = vadd.f32 %v4176, %v4248
  %v4250 = vpop.f32.mrf.mxu0
  %v4251 = vadd.f32 %v4178, %v4250
  %4252 = vmatmul.bf16.gmra.mxu0 %v1926
  %v4253 = vpop.f32.mrf.mxu0
  %v4254 = vadd.f32 %v4181, %v4253
  %v4255 = vpop.f32.mrf.mxu0
  %v4256 = vadd.f32 %v4183, %v4255
  %4257 = vmatmul.bf16.gmra.mxu0 %v1951
  %v4258 = vpop.f32.mrf.mxu0
  %v4259 = vadd.f32 %v4186, %v4258
  %v4260 = vpop.f32.mrf.mxu0
  %v4261 = vadd.f32 %v4188, %v4260
  %4262 = vmatmul.bf16.gmra.mxu0 %v1976
  %v4263 = vpop.f32.mrf.mxu0
  %v4264 = vadd.f32 %v4191, %v4263
  %v4265 = vpop.f32.mrf.mxu0
  %v4266 = vadd.f32 %v4193, %v4265
  %4267 = vmatmul.bf16.gmra.mxu0 %v2001
  %v4268 = vpop.f32.mrf.mxu0
  %v4269 = vadd.f32 %v4196, %v4268
  %v4270 = vpop.f32.mrf.mxu0
  %4271 = vdwg.mxu0
  %4272 = vmatpush.bf16.msra.mxu0 %v3229
  %4273 = vmatpush.bf16.msra.mxu0 %v3228
  %4274 = vmatpush.bf16.msra.mxu0 %v3227
  %4275 = vmatpush.bf16.msra.mxu0 %v3226
  %4276 = vmatpush.bf16.msra.mxu0 %v3225
  %4277 = vmatpush.bf16.msra.mxu0 %v3224
  %4278 = vmatpush.bf16.msra.mxu0 %v3223
  %4279 = vmatpush.bf16.msra.mxu0 %v3222
  %4280 = vmatmul.bf16.gmra.mxu0 %v1702
  %v4281 = vpop.f32.mrf.mxu0
  %v4282 = vadd.f32 %v4209, %v4281
  %v4283 = vpop.f32.mrf.mxu0
  %v4284 = vadd.f32 %v4211, %v4283
  %4285 = vmatmul.bf16.gmra.mxu0 %v1727
  %v4286 = vpop.f32.mrf.mxu0
  %v4287 = vadd.f32 %v4214, %v4286
  %v4288 = vpop.f32.mrf.mxu0
  %v4289 = vadd.f32 %v4216, %v4288
  %4290 = vmatmul.bf16.gmra.mxu0 %v1752
  %v4291 = vpop.f32.mrf.mxu0
  %v4292 = vadd.f32 %v4219, %v4291
  %v4293 = vpop.f32.mrf.mxu0
  %v4294 = vadd.f32 %v4221, %v4293
  %4295 = vmatmul.bf16.gmra.mxu0 %v1777
  %v4296 = vpop.f32.mrf.mxu0
  %v4297 = vadd.f32 %v4224, %v4296
  %v4298 = vpop.f32.mrf.mxu0
  %v4299 = vadd.f32 %v4226, %v4298
  %4300 = vmatmul.bf16.gmra.mxu0 %v1802
  %v4301 = vpop.f32.mrf.mxu0
  %v4302 = vadd.f32 %v4229, %v4301
  %v4303 = vpop.f32.mrf.mxu0
  %v4304 = vadd.f32 %v4231, %v4303
  %4305 = vmatmul.bf16.gmra.mxu0 %v1827
  %v4306 = vpop.f32.mrf.mxu0
  %v4307 = vadd.f32 %v4234, %v4306
  %v4308 = vpop.f32.mrf.mxu0
  %v4309 = vadd.f32 %v4236, %v4308
  %4310 = vmatmul.bf16.gmra.mxu0 %v1852
  %v4311 = vpop.f32.mrf.mxu0
  %v4312 = vadd.f32 %v4239, %v4311
  %v4313 = vpop.f32.mrf.mxu0
  %v4314 = vadd.f32 %v4241, %v4313
  %4315 = vmatmul.bf16.gmra.mxu0 %v1877
  %v4316 = vpop.f32.mrf.mxu0
  %v4317 = vadd.f32 %v4244, %v4316
  %v4318 = vpop.f32.mrf.mxu0
  %v4319 = vadd.f32 %v4246, %v4318
  %4320 = vmatmul.bf16.gmra.mxu0 %v1902
  %v4321 = vpop.f32.mrf.mxu0
  %v4322 = vadd.f32 %v4249, %v4321
  %v4323 = vpop.f32.mrf.mxu0
  %v4324 = vadd.f32 %v4251, %v4323
  %4325 = vmatmul.bf16.gmra.mxu0 %v1927
  %v4326 = vpop.f32.mrf.mxu0
  %v4327 = vadd.f32 %v4254, %v4326
  %v4328 = vpop.f32.mrf.mxu0
  %v4329 = vadd.f32 %v4256, %v4328
  %4330 = vmatmul.bf16.gmra.mxu0 %v1952
  %v4331 = vpop.f32.mrf.mxu0
  %v4332 = vadd.f32 %v4259, %v4331
  %v4333 = vpop.f32.mrf.mxu0
  %v4334 = vadd.f32 %v4261, %v4333
  %4335 = vmatmul.bf16.gmra.mxu0 %v1977
  %v4336 = vpop.f32.mrf.mxu0
  %v4337 = vadd.f32 %v4264, %v4336
  %v4338 = vpop.f32.mrf.mxu0
  %v4339 = vadd.f32 %v4266, %v4338
  %4340 = vmatmul.bf16.gmra.mxu0 %v2002
  %v4341 = vpop.f32.mrf.mxu0
  %v4342 = vadd.f32 %v4269, %v4341
  %v4343 = vpop.f32.mrf.mxu0
  %4344 = vdwg.mxu0
  %4345 = vmatpush.bf16.msra.mxu0 %v3237
  %4346 = vmatpush.bf16.msra.mxu0 %v3236
  %4347 = vmatpush.bf16.msra.mxu0 %v3235
  %4348 = vmatpush.bf16.msra.mxu0 %v3234
  %4349 = vmatpush.bf16.msra.mxu0 %v3233
  %4350 = vmatpush.bf16.msra.mxu0 %v3232
  %4351 = vmatpush.bf16.msra.mxu0 %v3231
  %4352 = vmatpush.bf16.msra.mxu0 %v3230
  %4353 = vmatmul.bf16.gmra.mxu0 %v1703
  %v4354 = vpop.f32.mrf.mxu0
  %v4355 = vadd.f32 %v4282, %v4354
  %v4356 = vpop.f32.mrf.mxu0
  %v4357 = vadd.f32 %v4284, %v4356
  %4358 = vmatmul.bf16.gmra.mxu0 %v1728
  %v4359 = vpop.f32.mrf.mxu0
  %v4360 = vadd.f32 %v4287, %v4359
  %v4361 = vpop.f32.mrf.mxu0
  %v4362 = vadd.f32 %v4289, %v4361
  %4363 = vmatmul.bf16.gmra.mxu0 %v1753
  %v4364 = vpop.f32.mrf.mxu0
  %v4365 = vadd.f32 %v4292, %v4364
  %v4366 = vpop.f32.mrf.mxu0
  %v4367 = vadd.f32 %v4294, %v4366
  %4368 = vmatmul.bf16.gmra.mxu0 %v1778
  %v4369 = vpop.f32.mrf.mxu0
  %v4370 = vadd.f32 %v4297, %v4369
  %v4371 = vpop.f32.mrf.mxu0
  %v4372 = vadd.f32 %v4299, %v4371
  %4373 = vmatmul.bf16.gmra.mxu0 %v1803
  %v4374 = vpop.f32.mrf.mxu0
  %v4375 = vadd.f32 %v4302, %v4374
  %v4376 = vpop.f32.mrf.mxu0
  %v4377 = vadd.f32 %v4304, %v4376
  %4378 = vmatmul.bf16.gmra.mxu0 %v1828
  %v4379 = vpop.f32.mrf.mxu0
  %v4380 = vadd.f32 %v4307, %v4379
  %v4381 = vpop.f32.mrf.mxu0
  %v4382 = vadd.f32 %v4309, %v4381
  %4383 = vmatmul.bf16.gmra.mxu0 %v1853
  %v4384 = vpop.f32.mrf.mxu0
  %v4385 = vadd.f32 %v4312, %v4384
  %v4386 = vpop.f32.mrf.mxu0
  %v4387 = vadd.f32 %v4314, %v4386
  %4388 = vmatmul.bf16.gmra.mxu0 %v1878
  %v4389 = vpop.f32.mrf.mxu0
  %v4390 = vadd.f32 %v4317, %v4389
  %v4391 = vpop.f32.mrf.mxu0
  %v4392 = vadd.f32 %v4319, %v4391
  %4393 = vmatmul.bf16.gmra.mxu0 %v1903
  %v4394 = vpop.f32.mrf.mxu0
  %v4395 = vadd.f32 %v4322, %v4394
  %v4396 = vpop.f32.mrf.mxu0
  %v4397 = vadd.f32 %v4324, %v4396
  %4398 = vmatmul.bf16.gmra.mxu0 %v1928
  %v4399 = vpop.f32.mrf.mxu0
  %v4400 = vadd.f32 %v4327, %v4399
  %v4401 = vpop.f32.mrf.mxu0
  %v4402 = vadd.f32 %v4329, %v4401
  %4403 = vmatmul.bf16.gmra.mxu0 %v1953
  %v4404 = vpop.f32.mrf.mxu0
  %v4405 = vadd.f32 %v4332, %v4404
  %v4406 = vpop.f32.mrf.mxu0
  %v4407 = vadd.f32 %v4334, %v4406
  %4408 = vmatmul.bf16.gmra.mxu0 %v1978
  %v4409 = vpop.f32.mrf.mxu0
  %v4410 = vadd.f32 %v4337, %v4409
  %v4411 = vpop.f32.mrf.mxu0
  %v4412 = vadd.f32 %v4339, %v4411
  %4413 = vmatmul.bf16.gmra.mxu0 %v2003
  %v4414 = vpop.f32.mrf.mxu0
  %v4415 = vadd.f32 %v4342, %v4414
  %v4416 = vpop.f32.mrf.mxu0
  %4417 = vdwg.mxu0
  %4418 = vmatpush.bf16.msra.mxu0 %v3245
  %4419 = vmatpush.bf16.msra.mxu0 %v3244
  %4420 = vmatpush.bf16.msra.mxu0 %v3243
  %4421 = vmatpush.bf16.msra.mxu0 %v3242
  %4422 = vmatpush.bf16.msra.mxu0 %v3241
  %4423 = vmatpush.bf16.msra.mxu0 %v3240
  %4424 = vmatpush.bf16.msra.mxu0 %v3239
  %4425 = vmatpush.bf16.msra.mxu0 %v3238
  %4426 = vmatmul.bf16.gmra.mxu0 %v1704
  %v4427 = vpop.f32.mrf.mxu0
  %v4428 = vadd.f32 %v4355, %v4427
  %v4429 = vpop.f32.mrf.mxu0
  %v4430 = vadd.f32 %v4357, %v4429
  %4431 = vmatmul.bf16.gmra.mxu0 %v1729
  %v4432 = vpop.f32.mrf.mxu0
  %v4433 = vadd.f32 %v4360, %v4432
  %v4434 = vpop.f32.mrf.mxu0
  %v4435 = vadd.f32 %v4362, %v4434
  %4436 = vmatmul.bf16.gmra.mxu0 %v1754
  %v4437 = vpop.f32.mrf.mxu0
  %v4438 = vadd.f32 %v4365, %v4437
  %v4439 = vpop.f32.mrf.mxu0
  %v4440 = vadd.f32 %v4367, %v4439
  %4441 = vmatmul.bf16.gmra.mxu0 %v1779
  %v4442 = vpop.f32.mrf.mxu0
  %v4443 = vadd.f32 %v4370, %v4442
  %v4444 = vpop.f32.mrf.mxu0
  %v4445 = vadd.f32 %v4372, %v4444
  %4446 = vmatmul.bf16.gmra.mxu0 %v1804
  %v4447 = vpop.f32.mrf.mxu0
  %v4448 = vadd.f32 %v4375, %v4447
  %v4449 = vpop.f32.mrf.mxu0
  %v4450 = vadd.f32 %v4377, %v4449
  %4451 = vmatmul.bf16.gmra.mxu0 %v1829
  %v4452 = vpop.f32.mrf.mxu0
  %v4453 = vadd.f32 %v4380, %v4452
  %v4454 = vpop.f32.mrf.mxu0
  %v4455 = vadd.f32 %v4382, %v4454
  %4456 = vmatmul.bf16.gmra.mxu0 %v1854
  %v4457 = vpop.f32.mrf.mxu0
  %v4458 = vadd.f32 %v4385, %v4457
  %v4459 = vpop.f32.mrf.mxu0
  %v4460 = vadd.f32 %v4387, %v4459
  %4461 = vmatmul.bf16.gmra.mxu0 %v1879
  %v4462 = vpop.f32.mrf.mxu0
  %v4463 = vadd.f32 %v4390, %v4462
  %v4464 = vpop.f32.mrf.mxu0
  %v4465 = vadd.f32 %v4392, %v4464
  %4466 = vmatmul.bf16.gmra.mxu0 %v1904
  %v4467 = vpop.f32.mrf.mxu0
  %v4468 = vadd.f32 %v4395, %v4467
  %v4469 = vpop.f32.mrf.mxu0
  %v4470 = vadd.f32 %v4397, %v4469
  %4471 = vmatmul.bf16.gmra.mxu0 %v1929
  %v4472 = vpop.f32.mrf.mxu0
  %v4473 = vadd.f32 %v4400, %v4472
  %v4474 = vpop.f32.mrf.mxu0
  %v4475 = vadd.f32 %v4402, %v4474
  %4476 = vmatmul.bf16.gmra.mxu0 %v1954
  %v4477 = vpop.f32.mrf.mxu0
  %v4478 = vadd.f32 %v4405, %v4477
  %v4479 = vpop.f32.mrf.mxu0
  %v4480 = vadd.f32 %v4407, %v4479
  %4481 = vmatmul.bf16.gmra.mxu0 %v1979
  %v4482 = vpop.f32.mrf.mxu0
  %v4483 = vadd.f32 %v4410, %v4482
  %v4484 = vpop.f32.mrf.mxu0
  %v4485 = vadd.f32 %v4412, %v4484
  %4486 = vmatmul.bf16.gmra.mxu0 %v2004
  %v4487 = vpop.f32.mrf.mxu0
  %v4488 = vadd.f32 %v4415, %v4487
  %v4489 = vpop.f32.mrf.mxu0
  %4490 = vdwg.mxu0
  %4491 = vmatpush.bf16.msra.mxu0 %v3253
  %4492 = vmatpush.bf16.msra.mxu0 %v3252
  %4493 = vmatpush.bf16.msra.mxu0 %v3251
  %4494 = vmatpush.bf16.msra.mxu0 %v3250
  %4495 = vmatpush.bf16.msra.mxu0 %v3249
  %4496 = vmatpush.bf16.msra.mxu0 %v3248
  %4497 = vmatpush.bf16.msra.mxu0 %v3247
  %4498 = vmatpush.bf16.msra.mxu0 %v3246
  %4499 = vmatmul.bf16.gmra.mxu0 %v1705
  %v4500 = vpop.f32.mrf.mxu0
  %v4501 = vadd.f32 %v4428, %v4500
  %v4502 = vpop.f32.mrf.mxu0
  %v4503 = vadd.f32 %v4430, %v4502
  %4504 = vmatmul.bf16.gmra.mxu0 %v1730
  %v4505 = vpop.f32.mrf.mxu0
  %v4506 = vadd.f32 %v4433, %v4505
  %v4507 = vpop.f32.mrf.mxu0
  %v4508 = vadd.f32 %v4435, %v4507
  %4509 = vmatmul.bf16.gmra.mxu0 %v1755
  %v4510 = vpop.f32.mrf.mxu0
  %v4511 = vadd.f32 %v4438, %v4510
  %v4512 = vpop.f32.mrf.mxu0
  %v4513 = vadd.f32 %v4440, %v4512
  %4514 = vmatmul.bf16.gmra.mxu0 %v1780
  %v4515 = vpop.f32.mrf.mxu0
  %v4516 = vadd.f32 %v4443, %v4515
  %v4517 = vpop.f32.mrf.mxu0
  %v4518 = vadd.f32 %v4445, %v4517
  %4519 = vmatmul.bf16.gmra.mxu0 %v1805
  %v4520 = vpop.f32.mrf.mxu0
  %v4521 = vadd.f32 %v4448, %v4520
  %v4522 = vpop.f32.mrf.mxu0
  %v4523 = vadd.f32 %v4450, %v4522
  %4524 = vmatmul.bf16.gmra.mxu0 %v1830
  %v4525 = vpop.f32.mrf.mxu0
  %v4526 = vadd.f32 %v4453, %v4525
  %v4527 = vpop.f32.mrf.mxu0
  %v4528 = vadd.f32 %v4455, %v4527
  %4529 = vmatmul.bf16.gmra.mxu0 %v1855
  %v4530 = vpop.f32.mrf.mxu0
  %v4531 = vadd.f32 %v4458, %v4530
  %v4532 = vpop.f32.mrf.mxu0
  %v4533 = vadd.f32 %v4460, %v4532
  %4534 = vmatmul.bf16.gmra.mxu0 %v1880
  %v4535 = vpop.f32.mrf.mxu0
  %v4536 = vadd.f32 %v4463, %v4535
  %v4537 = vpop.f32.mrf.mxu0
  %v4538 = vadd.f32 %v4465, %v4537
  %4539 = vmatmul.bf16.gmra.mxu0 %v1905
  %v4540 = vpop.f32.mrf.mxu0
  %v4541 = vadd.f32 %v4468, %v4540
  %v4542 = vpop.f32.mrf.mxu0
  %v4543 = vadd.f32 %v4470, %v4542
  %4544 = vmatmul.bf16.gmra.mxu0 %v1930
  %v4545 = vpop.f32.mrf.mxu0
  %v4546 = vadd.f32 %v4473, %v4545
  %v4547 = vpop.f32.mrf.mxu0
  %v4548 = vadd.f32 %v4475, %v4547
  %4549 = vmatmul.bf16.gmra.mxu0 %v1955
  %v4550 = vpop.f32.mrf.mxu0
  %v4551 = vadd.f32 %v4478, %v4550
  %v4552 = vpop.f32.mrf.mxu0
  %v4553 = vadd.f32 %v4480, %v4552
  %4554 = vmatmul.bf16.gmra.mxu0 %v1980
  %v4555 = vpop.f32.mrf.mxu0
  %v4556 = vadd.f32 %v4483, %v4555
  %v4557 = vpop.f32.mrf.mxu0
  %v4558 = vadd.f32 %v4485, %v4557
  %4559 = vmatmul.bf16.gmra.mxu0 %v2005
  %v4560 = vpop.f32.mrf.mxu0
  %v4561 = vadd.f32 %v4488, %v4560
  %v4562 = vpop.f32.mrf.mxu0
  %4563 = vdwg.mxu0
  %4564 = vmatpush.bf16.msra.mxu0 %v3261
  %4565 = vmatpush.bf16.msra.mxu0 %v3260
  %4566 = vmatpush.bf16.msra.mxu0 %v3259
  %4567 = vmatpush.bf16.msra.mxu0 %v3258
  %4568 = vmatpush.bf16.msra.mxu0 %v3257
  %4569 = vmatpush.bf16.msra.mxu0 %v3256
  %4570 = vmatpush.bf16.msra.mxu0 %v3255
  %4571 = vmatpush.bf16.msra.mxu0 %v3254
  %4572 = vmatmul.bf16.gmra.mxu0 %v1706
  %v4573 = vpop.f32.mrf.mxu0
  %v4574 = vadd.f32 %v4501, %v4573
  %v4575 = vpop.f32.mrf.mxu0
  %v4576 = vadd.f32 %v4503, %v4575
  %4577 = vmatmul.bf16.gmra.mxu0 %v1731
  %v4578 = vpop.f32.mrf.mxu0
  %v4579 = vadd.f32 %v4506, %v4578
  %v4580 = vpop.f32.mrf.mxu0
  %v4581 = vadd.f32 %v4508, %v4580
  %4582 = vmatmul.bf16.gmra.mxu0 %v1756
  %v4583 = vpop.f32.mrf.mxu0
  %v4584 = vadd.f32 %v4511, %v4583
  %v4585 = vpop.f32.mrf.mxu0
  %v4586 = vadd.f32 %v4513, %v4585
  %4587 = vmatmul.bf16.gmra.mxu0 %v1781
  %v4588 = vpop.f32.mrf.mxu0
  %v4589 = vadd.f32 %v4516, %v4588
  %v4590 = vpop.f32.mrf.mxu0
  %v4591 = vadd.f32 %v4518, %v4590
  %4592 = vmatmul.bf16.gmra.mxu0 %v1806
  %v4593 = vpop.f32.mrf.mxu0
  %v4594 = vadd.f32 %v4521, %v4593
  %v4595 = vpop.f32.mrf.mxu0
  %v4596 = vadd.f32 %v4523, %v4595
  %4597 = vmatmul.bf16.gmra.mxu0 %v1831
  %v4598 = vpop.f32.mrf.mxu0
  %v4599 = vadd.f32 %v4526, %v4598
  %v4600 = vpop.f32.mrf.mxu0
  %v4601 = vadd.f32 %v4528, %v4600
  %4602 = vmatmul.bf16.gmra.mxu0 %v1856
  %v4603 = vpop.f32.mrf.mxu0
  %v4604 = vadd.f32 %v4531, %v4603
  %v4605 = vpop.f32.mrf.mxu0
  %v4606 = vadd.f32 %v4533, %v4605
  %4607 = vmatmul.bf16.gmra.mxu0 %v1881
  %v4608 = vpop.f32.mrf.mxu0
  %v4609 = vadd.f32 %v4536, %v4608
  %v4610 = vpop.f32.mrf.mxu0
  %v4611 = vadd.f32 %v4538, %v4610
  %4612 = vmatmul.bf16.gmra.mxu0 %v1906
  %v4613 = vpop.f32.mrf.mxu0
  %v4614 = vadd.f32 %v4541, %v4613
  %v4615 = vpop.f32.mrf.mxu0
  %v4616 = vadd.f32 %v4543, %v4615
  %4617 = vmatmul.bf16.gmra.mxu0 %v1931
  %v4618 = vpop.f32.mrf.mxu0
  %v4619 = vadd.f32 %v4546, %v4618
  %v4620 = vpop.f32.mrf.mxu0
  %v4621 = vadd.f32 %v4548, %v4620
  %4622 = vmatmul.bf16.gmra.mxu0 %v1956
  %v4623 = vpop.f32.mrf.mxu0
  %v4624 = vadd.f32 %v4551, %v4623
  %v4625 = vpop.f32.mrf.mxu0
  %v4626 = vadd.f32 %v4553, %v4625
  %4627 = vmatmul.bf16.gmra.mxu0 %v1981
  %v4628 = vpop.f32.mrf.mxu0
  %v4629 = vadd.f32 %v4556, %v4628
  %v4630 = vpop.f32.mrf.mxu0
  %v4631 = vadd.f32 %v4558, %v4630
  %4632 = vmatmul.bf16.gmra.mxu0 %v2006
  %v4633 = vpop.f32.mrf.mxu0
  %v4634 = vadd.f32 %v4561, %v4633
  %v4635 = vpop.f32.mrf.mxu0
  %4636 = vdwg.mxu0
  %4637 = vmatpush.bf16.msra.mxu0 %v3269
  %4638 = vmatpush.bf16.msra.mxu0 %v3268
  %4639 = vmatpush.bf16.msra.mxu0 %v3267
  %4640 = vmatpush.bf16.msra.mxu0 %v3266
  %4641 = vmatpush.bf16.msra.mxu0 %v3265
  %4642 = vmatpush.bf16.msra.mxu0 %v3264
  %4643 = vmatpush.bf16.msra.mxu0 %v3263
  %4644 = vmatpush.bf16.msra.mxu0 %v3262
  %4645 = vmatmul.bf16.gmra.mxu0 %v1707
  %v4646 = vpop.f32.mrf.mxu0
  %v4647 = vadd.f32 %v4574, %v4646
  %v4648 = vpop.f32.mrf.mxu0
  %v4649 = vadd.f32 %v4576, %v4648
  %4650 = vmatmul.bf16.gmra.mxu0 %v1732
  %v4651 = vpop.f32.mrf.mxu0
  %v4652 = vadd.f32 %v4579, %v4651
  %v4653 = vpop.f32.mrf.mxu0
  %v4654 = vadd.f32 %v4581, %v4653
  %4655 = vmatmul.bf16.gmra.mxu0 %v1757
  %v4656 = vpop.f32.mrf.mxu0
  %v4657 = vadd.f32 %v4584, %v4656
  %v4658 = vpop.f32.mrf.mxu0
  %v4659 = vadd.f32 %v4586, %v4658
  %4660 = vmatmul.bf16.gmra.mxu0 %v1782
  %v4661 = vpop.f32.mrf.mxu0
  %v4662 = vadd.f32 %v4589, %v4661
  %v4663 = vpop.f32.mrf.mxu0
  %v4664 = vadd.f32 %v4591, %v4663
  %4665 = vmatmul.bf16.gmra.mxu0 %v1807
  %v4666 = vpop.f32.mrf.mxu0
  %v4667 = vadd.f32 %v4594, %v4666
  %v4668 = vpop.f32.mrf.mxu0
  %v4669 = vadd.f32 %v4596, %v4668
  %4670 = vmatmul.bf16.gmra.mxu0 %v1832
  %v4671 = vpop.f32.mrf.mxu0
  %v4672 = vadd.f32 %v4599, %v4671
  %v4673 = vpop.f32.mrf.mxu0
  %v4674 = vadd.f32 %v4601, %v4673
  %4675 = vmatmul.bf16.gmra.mxu0 %v1857
  %v4676 = vpop.f32.mrf.mxu0
  %v4677 = vadd.f32 %v4604, %v4676
  %v4678 = vpop.f32.mrf.mxu0
  %v4679 = vadd.f32 %v4606, %v4678
  %4680 = vmatmul.bf16.gmra.mxu0 %v1882
  %v4681 = vpop.f32.mrf.mxu0
  %v4682 = vadd.f32 %v4609, %v4681
  %v4683 = vpop.f32.mrf.mxu0
  %v4684 = vadd.f32 %v4611, %v4683
  %4685 = vmatmul.bf16.gmra.mxu0 %v1907
  %v4686 = vpop.f32.mrf.mxu0
  %v4687 = vadd.f32 %v4614, %v4686
  %v4688 = vpop.f32.mrf.mxu0
  %v4689 = vadd.f32 %v4616, %v4688
  %4690 = vmatmul.bf16.gmra.mxu0 %v1932
  %v4691 = vpop.f32.mrf.mxu0
  %v4692 = vadd.f32 %v4619, %v4691
  %v4693 = vpop.f32.mrf.mxu0
  %v4694 = vadd.f32 %v4621, %v4693
  %4695 = vmatmul.bf16.gmra.mxu0 %v1957
  %v4696 = vpop.f32.mrf.mxu0
  %v4697 = vadd.f32 %v4624, %v4696
  %v4698 = vpop.f32.mrf.mxu0
  %v4699 = vadd.f32 %v4626, %v4698
  %4700 = vmatmul.bf16.gmra.mxu0 %v1982
  %v4701 = vpop.f32.mrf.mxu0
  %v4702 = vadd.f32 %v4629, %v4701
  %v4703 = vpop.f32.mrf.mxu0
  %v4704 = vadd.f32 %v4631, %v4703
  %4705 = vmatmul.bf16.gmra.mxu0 %v2007
  %v4706 = vpop.f32.mrf.mxu0
  %v4707 = vadd.f32 %v4634, %v4706
  %v4708 = vpop.f32.mrf.mxu0
  %4709 = vdwg.mxu0
  %4710 = vmatpush.bf16.msra.mxu0 %v3277
  %4711 = vmatpush.bf16.msra.mxu0 %v3276
  %4712 = vmatpush.bf16.msra.mxu0 %v3275
  %4713 = vmatpush.bf16.msra.mxu0 %v3274
  %4714 = vmatpush.bf16.msra.mxu0 %v3273
  %4715 = vmatpush.bf16.msra.mxu0 %v3272
  %4716 = vmatpush.bf16.msra.mxu0 %v3271
  %4717 = vmatpush.bf16.msra.mxu0 %v3270
  %4718 = vmatmul.bf16.gmra.mxu0 %v1708
  %v4719 = vpop.f32.mrf.mxu0
  %v4720 = vadd.f32 %v4647, %v4719
  %v4721 = vpop.f32.mrf.mxu0
  %v4722 = vadd.f32 %v4649, %v4721
  %4723 = vmatmul.bf16.gmra.mxu0 %v1733
  %v4724 = vpop.f32.mrf.mxu0
  %v4725 = vadd.f32 %v4652, %v4724
  %v4726 = vpop.f32.mrf.mxu0
  %v4727 = vadd.f32 %v4654, %v4726
  %4728 = vmatmul.bf16.gmra.mxu0 %v1758
  %v4729 = vpop.f32.mrf.mxu0
  %v4730 = vadd.f32 %v4657, %v4729
  %v4731 = vpop.f32.mrf.mxu0
  %v4732 = vadd.f32 %v4659, %v4731
  %4733 = vmatmul.bf16.gmra.mxu0 %v1783
  %v4734 = vpop.f32.mrf.mxu0
  %v4735 = vadd.f32 %v4662, %v4734
  %v4736 = vpop.f32.mrf.mxu0
  %v4737 = vadd.f32 %v4664, %v4736
  %4738 = vmatmul.bf16.gmra.mxu0 %v1808
  %v4739 = vpop.f32.mrf.mxu0
  %v4740 = vadd.f32 %v4667, %v4739
  %v4741 = vpop.f32.mrf.mxu0
  %v4742 = vadd.f32 %v4669, %v4741
  %4743 = vmatmul.bf16.gmra.mxu0 %v1833
  %v4744 = vpop.f32.mrf.mxu0
  %v4745 = vadd.f32 %v4672, %v4744
  %v4746 = vpop.f32.mrf.mxu0
  %v4747 = vadd.f32 %v4674, %v4746
  %4748 = vmatmul.bf16.gmra.mxu0 %v1858
  %v4749 = vpop.f32.mrf.mxu0
  %v4750 = vadd.f32 %v4677, %v4749
  %v4751 = vpop.f32.mrf.mxu0
  %v4752 = vadd.f32 %v4679, %v4751
  %4753 = vmatmul.bf16.gmra.mxu0 %v1883
  %v4754 = vpop.f32.mrf.mxu0
  %v4755 = vadd.f32 %v4682, %v4754
  %v4756 = vpop.f32.mrf.mxu0
  %v4757 = vadd.f32 %v4684, %v4756
  %4758 = vmatmul.bf16.gmra.mxu0 %v1908
  %v4759 = vpop.f32.mrf.mxu0
  %v4760 = vadd.f32 %v4687, %v4759
  %v4761 = vpop.f32.mrf.mxu0
  %v4762 = vadd.f32 %v4689, %v4761
  %4763 = vmatmul.bf16.gmra.mxu0 %v1933
  %v4764 = vpop.f32.mrf.mxu0
  %v4765 = vadd.f32 %v4692, %v4764
  %v4766 = vpop.f32.mrf.mxu0
  %v4767 = vadd.f32 %v4694, %v4766
  %4768 = vmatmul.bf16.gmra.mxu0 %v1958
  %v4769 = vpop.f32.mrf.mxu0
  %v4770 = vadd.f32 %v4697, %v4769
  %v4771 = vpop.f32.mrf.mxu0
  %v4772 = vadd.f32 %v4699, %v4771
  %4773 = vmatmul.bf16.gmra.mxu0 %v1983
  %v4774 = vpop.f32.mrf.mxu0
  %v4775 = vadd.f32 %v4702, %v4774
  %v4776 = vpop.f32.mrf.mxu0
  %v4777 = vadd.f32 %v4704, %v4776
  %4778 = vmatmul.bf16.gmra.mxu0 %v2008
  %v4779 = vpop.f32.mrf.mxu0
  %v4780 = vadd.f32 %v4707, %v4779
  %v4781 = vpop.f32.mrf.mxu0
  %4782 = vdwg.mxu0
  %4783 = vmatpush.bf16.msra.mxu0 %v3285
  %4784 = vmatpush.bf16.msra.mxu0 %v3284
  %4785 = vmatpush.bf16.msra.mxu0 %v3283
  %4786 = vmatpush.bf16.msra.mxu0 %v3282
  %4787 = vmatpush.bf16.msra.mxu0 %v3281
  %4788 = vmatpush.bf16.msra.mxu0 %v3280
  %4789 = vmatpush.bf16.msra.mxu0 %v3279
  %4790 = vmatpush.bf16.msra.mxu0 %v3278
  %4791 = vmatmul.bf16.gmra.mxu0 %v1709
  %v4792 = vpop.f32.mrf.mxu0
  %v4793 = vadd.f32 %v4720, %v4792
  %v4794 = vpop.f32.mrf.mxu0
  %v4795 = vadd.f32 %v4722, %v4794
  %4796 = vmatmul.bf16.gmra.mxu0 %v1734
  %v4797 = vpop.f32.mrf.mxu0
  %v4798 = vadd.f32 %v4725, %v4797
  %v4799 = vpop.f32.mrf.mxu0
  %v4800 = vadd.f32 %v4727, %v4799
  %4801 = vmatmul.bf16.gmra.mxu0 %v1759
  %v4802 = vpop.f32.mrf.mxu0
  %v4803 = vadd.f32 %v4730, %v4802
  %v4804 = vpop.f32.mrf.mxu0
  %v4805 = vadd.f32 %v4732, %v4804
  %4806 = vmatmul.bf16.gmra.mxu0 %v1784
  %v4807 = vpop.f32.mrf.mxu0
  %v4808 = vadd.f32 %v4735, %v4807
  %v4809 = vpop.f32.mrf.mxu0
  %v4810 = vadd.f32 %v4737, %v4809
  %4811 = vmatmul.bf16.gmra.mxu0 %v1809
  %v4812 = vpop.f32.mrf.mxu0
  %v4813 = vadd.f32 %v4740, %v4812
  %v4814 = vpop.f32.mrf.mxu0
  %v4815 = vadd.f32 %v4742, %v4814
  %4816 = vmatmul.bf16.gmra.mxu0 %v1834
  %v4817 = vpop.f32.mrf.mxu0
  %v4818 = vadd.f32 %v4745, %v4817
  %v4819 = vpop.f32.mrf.mxu0
  %v4820 = vadd.f32 %v4747, %v4819
  %4821 = vmatmul.bf16.gmra.mxu0 %v1859
  %v4822 = vpop.f32.mrf.mxu0
  %v4823 = vadd.f32 %v4750, %v4822
  %v4824 = vpop.f32.mrf.mxu0
  %v4825 = vadd.f32 %v4752, %v4824
  %4826 = vmatmul.bf16.gmra.mxu0 %v1884
  %v4827 = vpop.f32.mrf.mxu0
  %v4828 = vadd.f32 %v4755, %v4827
  %v4829 = vpop.f32.mrf.mxu0
  %v4830 = vadd.f32 %v4757, %v4829
  %4831 = vmatmul.bf16.gmra.mxu0 %v1909
  %v4832 = vpop.f32.mrf.mxu0
  %v4833 = vadd.f32 %v4760, %v4832
  %v4834 = vpop.f32.mrf.mxu0
  %v4835 = vadd.f32 %v4762, %v4834
  %4836 = vmatmul.bf16.gmra.mxu0 %v1934
  %v4837 = vpop.f32.mrf.mxu0
  %v4838 = vadd.f32 %v4765, %v4837
  %v4839 = vpop.f32.mrf.mxu0
  %v4840 = vadd.f32 %v4767, %v4839
  %4841 = vmatmul.bf16.gmra.mxu0 %v1959
  %v4842 = vpop.f32.mrf.mxu0
  %v4843 = vadd.f32 %v4770, %v4842
  %v4844 = vpop.f32.mrf.mxu0
  %v4845 = vadd.f32 %v4772, %v4844
  %4846 = vmatmul.bf16.gmra.mxu0 %v1984
  %v4847 = vpop.f32.mrf.mxu0
  %v4848 = vadd.f32 %v4775, %v4847
  %v4849 = vpop.f32.mrf.mxu0
  %v4850 = vadd.f32 %v4777, %v4849
  %4851 = vmatmul.bf16.gmra.mxu0 %v2009
  %v4852 = vpop.f32.mrf.mxu0
  %v4853 = vadd.f32 %v4780, %v4852
  %v4854 = vpop.f32.mrf.mxu0
  %4855 = vdwg.mxu0
  %4856 = vmatpush.bf16.msra.mxu0 %v3293
  %4857 = vmatpush.bf16.msra.mxu0 %v3292
  %4858 = vmatpush.bf16.msra.mxu0 %v3291
  %4859 = vmatpush.bf16.msra.mxu0 %v3290
  %4860 = vmatpush.bf16.msra.mxu0 %v3289
  %4861 = vmatpush.bf16.msra.mxu0 %v3288
  %4862 = vmatpush.bf16.msra.mxu0 %v3287
  %4863 = vmatpush.bf16.msra.mxu0 %v3286
  %4864 = vmatmul.bf16.gmra.mxu0 %v1710
  %v4865 = vpop.f32.mrf.mxu0
  %v4866 = vadd.f32 %v4793, %v4865
  %v4867 = vpop.f32.mrf.mxu0
  %v4868 = vadd.f32 %v4795, %v4867
  %4869 = vmatmul.bf16.gmra.mxu0 %v1735
  %v4870 = vpop.f32.mrf.mxu0
  %v4871 = vadd.f32 %v4798, %v4870
  %v4872 = vpop.f32.mrf.mxu0
  %v4873 = vadd.f32 %v4800, %v4872
  %4874 = vmatmul.bf16.gmra.mxu0 %v1760
  %v4875 = vpop.f32.mrf.mxu0
  %v4876 = vadd.f32 %v4803, %v4875
  %v4877 = vpop.f32.mrf.mxu0
  %v4878 = vadd.f32 %v4805, %v4877
  %4879 = vmatmul.bf16.gmra.mxu0 %v1785
  %v4880 = vpop.f32.mrf.mxu0
  %v4881 = vadd.f32 %v4808, %v4880
  %v4882 = vpop.f32.mrf.mxu0
  %v4883 = vadd.f32 %v4810, %v4882
  %4884 = vmatmul.bf16.gmra.mxu0 %v1810
  %v4885 = vpop.f32.mrf.mxu0
  %v4886 = vadd.f32 %v4813, %v4885
  %v4887 = vpop.f32.mrf.mxu0
  %v4888 = vadd.f32 %v4815, %v4887
  %4889 = vmatmul.bf16.gmra.mxu0 %v1835
  %v4890 = vpop.f32.mrf.mxu0
  %v4891 = vadd.f32 %v4818, %v4890
  %v4892 = vpop.f32.mrf.mxu0
  %v4893 = vadd.f32 %v4820, %v4892
  %4894 = vmatmul.bf16.gmra.mxu0 %v1860
  %v4895 = vpop.f32.mrf.mxu0
  %v4896 = vadd.f32 %v4823, %v4895
  %v4897 = vpop.f32.mrf.mxu0
  %v4898 = vadd.f32 %v4825, %v4897
  %4899 = vmatmul.bf16.gmra.mxu0 %v1885
  %v4900 = vpop.f32.mrf.mxu0
  %v4901 = vadd.f32 %v4828, %v4900
  %v4902 = vpop.f32.mrf.mxu0
  %v4903 = vadd.f32 %v4830, %v4902
  %4904 = vmatmul.bf16.gmra.mxu0 %v1910
  %v4905 = vpop.f32.mrf.mxu0
  %v4906 = vadd.f32 %v4833, %v4905
  %v4907 = vpop.f32.mrf.mxu0
  %v4908 = vadd.f32 %v4835, %v4907
  %4909 = vmatmul.bf16.gmra.mxu0 %v1935
  %v4910 = vpop.f32.mrf.mxu0
  %v4911 = vadd.f32 %v4838, %v4910
  %v4912 = vpop.f32.mrf.mxu0
  %v4913 = vadd.f32 %v4840, %v4912
  %4914 = vmatmul.bf16.gmra.mxu0 %v1960
  %v4915 = vpop.f32.mrf.mxu0
  %v4916 = vadd.f32 %v4843, %v4915
  %v4917 = vpop.f32.mrf.mxu0
  %v4918 = vadd.f32 %v4845, %v4917
  %4919 = vmatmul.bf16.gmra.mxu0 %v1985
  %v4920 = vpop.f32.mrf.mxu0
  %v4921 = vadd.f32 %v4848, %v4920
  %v4922 = vpop.f32.mrf.mxu0
  %v4923 = vadd.f32 %v4850, %v4922
  %4924 = vmatmul.bf16.gmra.mxu0 %v2010
  %v4925 = vpop.f32.mrf.mxu0
  %v4926 = vadd.f32 %v4853, %v4925
  %v4927 = vpop.f32.mrf.mxu0
  %4928 = vdwg.mxu0
  %4929 = vmatpush.bf16.msra.mxu0 %v3301
  %4930 = vmatpush.bf16.msra.mxu0 %v3300
  %4931 = vmatpush.bf16.msra.mxu0 %v3299
  %4932 = vmatpush.bf16.msra.mxu0 %v3298
  %4933 = vmatpush.bf16.msra.mxu0 %v3297
  %4934 = vmatpush.bf16.msra.mxu0 %v3296
  %4935 = vmatpush.bf16.msra.mxu0 %v3295
  %4936 = vmatpush.bf16.msra.mxu0 %v3294
  %4937 = vmatmul.bf16.gmra.mxu0 %v1711
  %v4938 = vpop.f32.mrf.mxu0
  %v4939 = vadd.f32 %v4866, %v4938
  %v4940 = vpop.f32.mrf.mxu0
  %v4941 = vadd.f32 %v4868, %v4940
  %4942 = vmatmul.bf16.gmra.mxu0 %v1736
  %v4943 = vpop.f32.mrf.mxu0
  %v4944 = vadd.f32 %v4871, %v4943
  %v4945 = vpop.f32.mrf.mxu0
  %v4946 = vadd.f32 %v4873, %v4945
  %4947 = vmatmul.bf16.gmra.mxu0 %v1761
  %v4948 = vpop.f32.mrf.mxu0
  %v4949 = vadd.f32 %v4876, %v4948
  %v4950 = vpop.f32.mrf.mxu0
  %v4951 = vadd.f32 %v4878, %v4950
  %4952 = vmatmul.bf16.gmra.mxu0 %v1786
  %v4953 = vpop.f32.mrf.mxu0
  %v4954 = vadd.f32 %v4881, %v4953
  %v4955 = vpop.f32.mrf.mxu0
  %v4956 = vadd.f32 %v4883, %v4955
  %4957 = vmatmul.bf16.gmra.mxu0 %v1811
  %v4958 = vpop.f32.mrf.mxu0
  %v4959 = vadd.f32 %v4886, %v4958
  %v4960 = vpop.f32.mrf.mxu0
  %v4961 = vadd.f32 %v4888, %v4960
  %4962 = vmatmul.bf16.gmra.mxu0 %v1836
  %v4963 = vpop.f32.mrf.mxu0
  %v4964 = vadd.f32 %v4891, %v4963
  %v4965 = vpop.f32.mrf.mxu0
  %v4966 = vadd.f32 %v4893, %v4965
  %4967 = vmatmul.bf16.gmra.mxu0 %v1861
  %v4968 = vpop.f32.mrf.mxu0
  %v4969 = vadd.f32 %v4896, %v4968
  %v4970 = vpop.f32.mrf.mxu0
  %v4971 = vadd.f32 %v4898, %v4970
  %4972 = vmatmul.bf16.gmra.mxu0 %v1886
  %v4973 = vpop.f32.mrf.mxu0
  %v4974 = vadd.f32 %v4901, %v4973
  %v4975 = vpop.f32.mrf.mxu0
  %v4976 = vadd.f32 %v4903, %v4975
  %4977 = vmatmul.bf16.gmra.mxu0 %v1911
  %v4978 = vpop.f32.mrf.mxu0
  %v4979 = vadd.f32 %v4906, %v4978
  %v4980 = vpop.f32.mrf.mxu0
  %v4981 = vadd.f32 %v4908, %v4980
  %4982 = vmatmul.bf16.gmra.mxu0 %v1936
  %v4983 = vpop.f32.mrf.mxu0
  %v4984 = vadd.f32 %v4911, %v4983
  %v4985 = vpop.f32.mrf.mxu0
  %v4986 = vadd.f32 %v4913, %v4985
  %4987 = vmatmul.bf16.gmra.mxu0 %v1961
  %v4988 = vpop.f32.mrf.mxu0
  %v4989 = vadd.f32 %v4916, %v4988
  %v4990 = vpop.f32.mrf.mxu0
  %v4991 = vadd.f32 %v4918, %v4990
  %4992 = vmatmul.bf16.gmra.mxu0 %v1986
  %v4993 = vpop.f32.mrf.mxu0
  %v4994 = vadd.f32 %v4921, %v4993
  %v4995 = vpop.f32.mrf.mxu0
  %v4996 = vadd.f32 %v4923, %v4995
  %4997 = vmatmul.bf16.gmra.mxu0 %v2011
  %v4998 = vpop.f32.mrf.mxu0
  %v4999 = vadd.f32 %v4926, %v4998
  %v5000 = vpop.f32.mrf.mxu0
  %5001 = vdwg.mxu0
  %5002 = vmatpush.bf16.msra.mxu0 %v3309
  %5003 = vmatpush.bf16.msra.mxu0 %v3308
  %5004 = vmatpush.bf16.msra.mxu0 %v3307
  %5005 = vmatpush.bf16.msra.mxu0 %v3306
  %5006 = vmatpush.bf16.msra.mxu0 %v3305
  %5007 = vmatpush.bf16.msra.mxu0 %v3304
  %5008 = vmatpush.bf16.msra.mxu0 %v3303
  %5009 = vmatpush.bf16.msra.mxu0 %v3302
  %5010 = vmatmul.bf16.gmra.mxu0 %v1712
  %v5011 = vpop.f32.mrf.mxu0
  %v5012 = vadd.f32 %v4939, %v5011
  %v5013 = vpop.f32.mrf.mxu0
  %v5014 = vadd.f32 %v4941, %v5013
  %5015 = vmatmul.bf16.gmra.mxu0 %v1737
  %v5016 = vpop.f32.mrf.mxu0
  %v5017 = vadd.f32 %v4944, %v5016
  %v5018 = vpop.f32.mrf.mxu0
  %v5019 = vadd.f32 %v4946, %v5018
  %5020 = vmatmul.bf16.gmra.mxu0 %v1762
  %v5021 = vpop.f32.mrf.mxu0
  %v5022 = vadd.f32 %v4949, %v5021
  %v5023 = vpop.f32.mrf.mxu0
  %v5024 = vadd.f32 %v4951, %v5023
  %5025 = vmatmul.bf16.gmra.mxu0 %v1787
  %v5026 = vpop.f32.mrf.mxu0
  %v5027 = vadd.f32 %v4954, %v5026
  %v5028 = vpop.f32.mrf.mxu0
  %v5029 = vadd.f32 %v4956, %v5028
  %5030 = vmatmul.bf16.gmra.mxu0 %v1812
  %v5031 = vpop.f32.mrf.mxu0
  %v5032 = vadd.f32 %v4959, %v5031
  %v5033 = vpop.f32.mrf.mxu0
  %v5034 = vadd.f32 %v4961, %v5033
  %5035 = vmatmul.bf16.gmra.mxu0 %v1837
  %v5036 = vpop.f32.mrf.mxu0
  %v5037 = vadd.f32 %v4964, %v5036
  %v5038 = vpop.f32.mrf.mxu0
  %v5039 = vadd.f32 %v4966, %v5038
  %5040 = vmatmul.bf16.gmra.mxu0 %v1862
  %v5041 = vpop.f32.mrf.mxu0
  %v5042 = vadd.f32 %v4969, %v5041
  %v5043 = vpop.f32.mrf.mxu0
  %v5044 = vadd.f32 %v4971, %v5043
  %5045 = vmatmul.bf16.gmra.mxu0 %v1887
  %v5046 = vpop.f32.mrf.mxu0
  %v5047 = vadd.f32 %v4974, %v5046
  %v5048 = vpop.f32.mrf.mxu0
  %v5049 = vadd.f32 %v4976, %v5048
  %5050 = vmatmul.bf16.gmra.mxu0 %v1912
  %v5051 = vpop.f32.mrf.mxu0
  %v5052 = vadd.f32 %v4979, %v5051
  %v5053 = vpop.f32.mrf.mxu0
  %v5054 = vadd.f32 %v4981, %v5053
  %5055 = vmatmul.bf16.gmra.mxu0 %v1937
  %v5056 = vpop.f32.mrf.mxu0
  %v5057 = vadd.f32 %v4984, %v5056
  %v5058 = vpop.f32.mrf.mxu0
  %v5059 = vadd.f32 %v4986, %v5058
  %5060 = vmatmul.bf16.gmra.mxu0 %v1962
  %v5061 = vpop.f32.mrf.mxu0
  %v5062 = vadd.f32 %v4989, %v5061
  %v5063 = vpop.f32.mrf.mxu0
  %v5064 = vadd.f32 %v4991, %v5063
  %5065 = vmatmul.bf16.gmra.mxu0 %v1987
  %v5066 = vpop.f32.mrf.mxu0
  %v5067 = vadd.f32 %v4994, %v5066
  %v5068 = vpop.f32.mrf.mxu0
  %v5069 = vadd.f32 %v4996, %v5068
  %5070 = vmatmul.bf16.gmra.mxu0 %v2012
  %v5071 = vpop.f32.mrf.mxu0
  %v5072 = vadd.f32 %v4999, %v5071
  %v5073 = vpop.f32.mrf.mxu0
  %5074 = vdwg.mxu0
  %5075 = vmatpush.bf16.msra.mxu0 %v3317
  %5076 = vmatpush.bf16.msra.mxu0 %v3316
  %5077 = vmatpush.bf16.msra.mxu0 %v3315
  %5078 = vmatpush.bf16.msra.mxu0 %v3314
  %5079 = vmatpush.bf16.msra.mxu0 %v3313
  %5080 = vmatpush.bf16.msra.mxu0 %v3312
  %5081 = vmatpush.bf16.msra.mxu0 %v3311
  %5082 = vmatpush.bf16.msra.mxu0 %v3310
  %5083 = vmatmul.bf16.gmra.mxu0 %v1713
  %v5084 = vpop.f32.mrf.mxu0
  %v5085 = vadd.f32 %v5012, %v5084
  %v5086 = vpop.f32.mrf.mxu0
  %v5087 = vadd.f32 %v5014, %v5086
  %5088 = vmatmul.bf16.gmra.mxu0 %v1738
  %v5089 = vpop.f32.mrf.mxu0
  %v5090 = vadd.f32 %v5017, %v5089
  %v5091 = vpop.f32.mrf.mxu0
  %v5092 = vadd.f32 %v5019, %v5091
  %5093 = vmatmul.bf16.gmra.mxu0 %v1763
  %v5094 = vpop.f32.mrf.mxu0
  %v5095 = vadd.f32 %v5022, %v5094
  %v5096 = vpop.f32.mrf.mxu0
  %v5097 = vadd.f32 %v5024, %v5096
  %5098 = vmatmul.bf16.gmra.mxu0 %v1788
  %v5099 = vpop.f32.mrf.mxu0
  %v5100 = vadd.f32 %v5027, %v5099
  %v5101 = vpop.f32.mrf.mxu0
  %v5102 = vadd.f32 %v5029, %v5101
  %5103 = vmatmul.bf16.gmra.mxu0 %v1813
  %v5104 = vpop.f32.mrf.mxu0
  %v5105 = vadd.f32 %v5032, %v5104
  %v5106 = vpop.f32.mrf.mxu0
  %v5107 = vadd.f32 %v5034, %v5106
  %5108 = vmatmul.bf16.gmra.mxu0 %v1838
  %v5109 = vpop.f32.mrf.mxu0
  %v5110 = vadd.f32 %v5037, %v5109
  %v5111 = vpop.f32.mrf.mxu0
  %v5112 = vadd.f32 %v5039, %v5111
  %5113 = vmatmul.bf16.gmra.mxu0 %v1863
  %v5114 = vpop.f32.mrf.mxu0
  %v5115 = vadd.f32 %v5042, %v5114
  %v5116 = vpop.f32.mrf.mxu0
  %v5117 = vadd.f32 %v5044, %v5116
  %5118 = vmatmul.bf16.gmra.mxu0 %v1888
  %v5119 = vpop.f32.mrf.mxu0
  %v5120 = vadd.f32 %v5047, %v5119
  %v5121 = vpop.f32.mrf.mxu0
  %v5122 = vadd.f32 %v5049, %v5121
  %5123 = vmatmul.bf16.gmra.mxu0 %v1913
  %v5124 = vpop.f32.mrf.mxu0
  %v5125 = vadd.f32 %v5052, %v5124
  %v5126 = vpop.f32.mrf.mxu0
  %v5127 = vadd.f32 %v5054, %v5126
  %5128 = vmatmul.bf16.gmra.mxu0 %v1938
  %v5129 = vpop.f32.mrf.mxu0
  %v5130 = vadd.f32 %v5057, %v5129
  %v5131 = vpop.f32.mrf.mxu0
  %v5132 = vadd.f32 %v5059, %v5131
  %5133 = vmatmul.bf16.gmra.mxu0 %v1963
  %v5134 = vpop.f32.mrf.mxu0
  %v5135 = vadd.f32 %v5062, %v5134
  %v5136 = vpop.f32.mrf.mxu0
  %v5137 = vadd.f32 %v5064, %v5136
  %5138 = vmatmul.bf16.gmra.mxu0 %v1988
  %v5139 = vpop.f32.mrf.mxu0
  %v5140 = vadd.f32 %v5067, %v5139
  %v5141 = vpop.f32.mrf.mxu0
  %v5142 = vadd.f32 %v5069, %v5141
  %5143 = vmatmul.bf16.gmra.mxu0 %v2013
  %v5144 = vpop.f32.mrf.mxu0
  %v5145 = vadd.f32 %v5072, %v5144
  %v5146 = vpop.f32.mrf.mxu0
  %5147 = vdwg.mxu0
  %5148 = vmatpush.bf16.msra.mxu0 %v3325
  %5149 = vmatpush.bf16.msra.mxu0 %v3324
  %5150 = vmatpush.bf16.msra.mxu0 %v3323
  %5151 = vmatpush.bf16.msra.mxu0 %v3322
  %5152 = vmatpush.bf16.msra.mxu0 %v3321
  %5153 = vmatpush.bf16.msra.mxu0 %v3320
  %5154 = vmatpush.bf16.msra.mxu0 %v3319
  %5155 = vmatpush.bf16.msra.mxu0 %v3318
  %5156 = vmatmul.bf16.gmra.mxu0 %v1714
  %v5157 = vpop.f32.mrf.mxu0
  %v5158 = vadd.f32 %v5085, %v5157
  %v5159 = vpop.f32.mrf.mxu0
  %v5160 = vadd.f32 %v5087, %v5159
  %5161 = vmatmul.bf16.gmra.mxu0 %v1739
  %v5162 = vpop.f32.mrf.mxu0
  %v5163 = vadd.f32 %v5090, %v5162
  %v5164 = vpop.f32.mrf.mxu0
  %v5165 = vadd.f32 %v5092, %v5164
  %5166 = vmatmul.bf16.gmra.mxu0 %v1764
  %v5167 = vpop.f32.mrf.mxu0
  %v5168 = vadd.f32 %v5095, %v5167
  %v5169 = vpop.f32.mrf.mxu0
  %v5170 = vadd.f32 %v5097, %v5169
  %5171 = vmatmul.bf16.gmra.mxu0 %v1789
  %v5172 = vpop.f32.mrf.mxu0
  %v5173 = vadd.f32 %v5100, %v5172
  %v5174 = vpop.f32.mrf.mxu0
  %v5175 = vadd.f32 %v5102, %v5174
  %5176 = vmatmul.bf16.gmra.mxu0 %v1814
  %v5177 = vpop.f32.mrf.mxu0
  %v5178 = vadd.f32 %v5105, %v5177
  %v5179 = vpop.f32.mrf.mxu0
  %v5180 = vadd.f32 %v5107, %v5179
  %5181 = vmatmul.bf16.gmra.mxu0 %v1839
  %v5182 = vpop.f32.mrf.mxu0
  %v5183 = vadd.f32 %v5110, %v5182
  %v5184 = vpop.f32.mrf.mxu0
  %v5185 = vadd.f32 %v5112, %v5184
  %5186 = vmatmul.bf16.gmra.mxu0 %v1864
  %v5187 = vpop.f32.mrf.mxu0
  %v5188 = vadd.f32 %v5115, %v5187
  %v5189 = vpop.f32.mrf.mxu0
  %v5190 = vadd.f32 %v5117, %v5189
  %5191 = vmatmul.bf16.gmra.mxu0 %v1889
  %v5192 = vpop.f32.mrf.mxu0
  %v5193 = vadd.f32 %v5120, %v5192
  %v5194 = vpop.f32.mrf.mxu0
  %v5195 = vadd.f32 %v5122, %v5194
  %5196 = vmatmul.bf16.gmra.mxu0 %v1914
  %v5197 = vpop.f32.mrf.mxu0
  %v5198 = vadd.f32 %v5125, %v5197
  %v5199 = vpop.f32.mrf.mxu0
  %v5200 = vadd.f32 %v5127, %v5199
  %5201 = vmatmul.bf16.gmra.mxu0 %v1939
  %v5202 = vpop.f32.mrf.mxu0
  %v5203 = vadd.f32 %v5130, %v5202
  %v5204 = vpop.f32.mrf.mxu0
  %v5205 = vadd.f32 %v5132, %v5204
  %5206 = vmatmul.bf16.gmra.mxu0 %v1964
  %v5207 = vpop.f32.mrf.mxu0
  %v5208 = vadd.f32 %v5135, %v5207
  %v5209 = vpop.f32.mrf.mxu0
  %v5210 = vadd.f32 %v5137, %v5209
  %5211 = vmatmul.bf16.gmra.mxu0 %v1989
  %v5212 = vpop.f32.mrf.mxu0
  %v5213 = vadd.f32 %v5140, %v5212
  %v5214 = vpop.f32.mrf.mxu0
  %v5215 = vadd.f32 %v5142, %v5214
  %5216 = vmatmul.bf16.gmra.mxu0 %v2014
  %v5217 = vpop.f32.mrf.mxu0
  %v5218 = vadd.f32 %v5145, %v5217
  %v5219 = vpop.f32.mrf.mxu0
  %5220 = vdwg.mxu0
  %5221 = vmatpush.bf16.msra.mxu0 %v3333
  %5222 = vmatpush.bf16.msra.mxu0 %v3332
  %5223 = vmatpush.bf16.msra.mxu0 %v3331
  %5224 = vmatpush.bf16.msra.mxu0 %v3330
  %5225 = vmatpush.bf16.msra.mxu0 %v3329
  %5226 = vmatpush.bf16.msra.mxu0 %v3328
  %5227 = vmatpush.bf16.msra.mxu0 %v3327
  %5228 = vmatpush.bf16.msra.mxu0 %v3326
  %5229 = vmatmul.bf16.gmra.mxu0 %v1715
  %v5230 = vpop.f32.mrf.mxu0
  %v5231 = vadd.f32 %v5158, %v5230
  %v5232 = vpop.f32.mrf.mxu0
  %v5233 = vadd.f32 %v5160, %v5232
  %5234 = vmatmul.bf16.gmra.mxu0 %v1740
  %v5235 = vpop.f32.mrf.mxu0
  %v5236 = vadd.f32 %v5163, %v5235
  %v5237 = vpop.f32.mrf.mxu0
  %v5238 = vadd.f32 %v5165, %v5237
  %5239 = vmatmul.bf16.gmra.mxu0 %v1765
  %v5240 = vpop.f32.mrf.mxu0
  %v5241 = vadd.f32 %v5168, %v5240
  %v5242 = vpop.f32.mrf.mxu0
  %v5243 = vadd.f32 %v5170, %v5242
  %5244 = vmatmul.bf16.gmra.mxu0 %v1790
  %v5245 = vpop.f32.mrf.mxu0
  %v5246 = vadd.f32 %v5173, %v5245
  %v5247 = vpop.f32.mrf.mxu0
  %v5248 = vadd.f32 %v5175, %v5247
  %5249 = vmatmul.bf16.gmra.mxu0 %v1815
  %v5250 = vpop.f32.mrf.mxu0
  %v5251 = vadd.f32 %v5178, %v5250
  %v5252 = vpop.f32.mrf.mxu0
  %v5253 = vadd.f32 %v5180, %v5252
  %5254 = vmatmul.bf16.gmra.mxu0 %v1840
  %v5255 = vpop.f32.mrf.mxu0
  %v5256 = vadd.f32 %v5183, %v5255
  %v5257 = vpop.f32.mrf.mxu0
  %v5258 = vadd.f32 %v5185, %v5257
  %5259 = vmatmul.bf16.gmra.mxu0 %v1865
  %v5260 = vpop.f32.mrf.mxu0
  %v5261 = vadd.f32 %v5188, %v5260
  %v5262 = vpop.f32.mrf.mxu0
  %v5263 = vadd.f32 %v5190, %v5262
  %5264 = vmatmul.bf16.gmra.mxu0 %v1890
  %v5265 = vpop.f32.mrf.mxu0
  %v5266 = vadd.f32 %v5193, %v5265
  %v5267 = vpop.f32.mrf.mxu0
  %v5268 = vadd.f32 %v5195, %v5267
  %5269 = vmatmul.bf16.gmra.mxu0 %v1915
  %v5270 = vpop.f32.mrf.mxu0
  %v5271 = vadd.f32 %v5198, %v5270
  %v5272 = vpop.f32.mrf.mxu0
  %v5273 = vadd.f32 %v5200, %v5272
  %5274 = vmatmul.bf16.gmra.mxu0 %v1940
  %v5275 = vpop.f32.mrf.mxu0
  %v5276 = vadd.f32 %v5203, %v5275
  %v5277 = vpop.f32.mrf.mxu0
  %v5278 = vadd.f32 %v5205, %v5277
  %5279 = vmatmul.bf16.gmra.mxu0 %v1965
  %v5280 = vpop.f32.mrf.mxu0
  %v5281 = vadd.f32 %v5208, %v5280
  %v5282 = vpop.f32.mrf.mxu0
  %v5283 = vadd.f32 %v5210, %v5282
  %5284 = vmatmul.bf16.gmra.mxu0 %v1990
  %v5285 = vpop.f32.mrf.mxu0
  %v5286 = vadd.f32 %v5213, %v5285
  %v5287 = vpop.f32.mrf.mxu0
  %v5288 = vadd.f32 %v5215, %v5287
  %5289 = vmatmul.bf16.gmra.mxu0 %v2015
  %v5290 = vpop.f32.mrf.mxu0
  %v5291 = vadd.f32 %v5218, %v5290
  %v5292 = vpop.f32.mrf.mxu0
  %5293 = vdwg.mxu0
  %5294 = vmatpush.bf16.msra.mxu0 %v3341
  %5295 = vmatpush.bf16.msra.mxu0 %v3340
  %5296 = vmatpush.bf16.msra.mxu0 %v3339
  %5297 = vmatpush.bf16.msra.mxu0 %v3338
  %5298 = vmatpush.bf16.msra.mxu0 %v3337
  %5299 = vmatpush.bf16.msra.mxu0 %v3336
  %5300 = vmatpush.bf16.msra.mxu0 %v3335
  %5301 = vmatpush.bf16.msra.mxu0 %v3334
  %5302 = vmatmul.bf16.gmra.mxu0 %v1716
  %v5303 = vpop.f32.mrf.mxu0
  %v5304 = vadd.f32 %v5231, %v5303
  %v5305 = vpop.f32.mrf.mxu0
  %v5306 = vadd.f32 %v5233, %v5305
  %5307 = vmatmul.bf16.gmra.mxu0 %v1741
  %v5308 = vpop.f32.mrf.mxu0
  %v5309 = vadd.f32 %v5236, %v5308
  %v5310 = vpop.f32.mrf.mxu0
  %v5311 = vadd.f32 %v5238, %v5310
  %5312 = vmatmul.bf16.gmra.mxu0 %v1766
  %v5313 = vpop.f32.mrf.mxu0
  %v5314 = vadd.f32 %v5241, %v5313
  %v5315 = vpop.f32.mrf.mxu0
  %v5316 = vadd.f32 %v5243, %v5315
  %5317 = vmatmul.bf16.gmra.mxu0 %v1791
  %v5318 = vpop.f32.mrf.mxu0
  %v5319 = vadd.f32 %v5246, %v5318
  %v5320 = vpop.f32.mrf.mxu0
  %v5321 = vadd.f32 %v5248, %v5320
  %5322 = vmatmul.bf16.gmra.mxu0 %v1816
  %v5323 = vpop.f32.mrf.mxu0
  %v5324 = vadd.f32 %v5251, %v5323
  %v5325 = vpop.f32.mrf.mxu0
  %v5326 = vadd.f32 %v5253, %v5325
  %5327 = vmatmul.bf16.gmra.mxu0 %v1841
  %v5328 = vpop.f32.mrf.mxu0
  %v5329 = vadd.f32 %v5256, %v5328
  %v5330 = vpop.f32.mrf.mxu0
  %v5331 = vadd.f32 %v5258, %v5330
  %5332 = vmatmul.bf16.gmra.mxu0 %v1866
  %v5333 = vpop.f32.mrf.mxu0
  %v5334 = vadd.f32 %v5261, %v5333
  %v5335 = vpop.f32.mrf.mxu0
  %v5336 = vadd.f32 %v5263, %v5335
  %5337 = vmatmul.bf16.gmra.mxu0 %v1891
  %v5338 = vpop.f32.mrf.mxu0
  %v5339 = vadd.f32 %v5266, %v5338
  %v5340 = vpop.f32.mrf.mxu0
  %v5341 = vadd.f32 %v5268, %v5340
  %5342 = vmatmul.bf16.gmra.mxu0 %v1916
  %v5343 = vpop.f32.mrf.mxu0
  %v5344 = vadd.f32 %v5271, %v5343
  %v5345 = vpop.f32.mrf.mxu0
  %v5346 = vadd.f32 %v5273, %v5345
  %5347 = vmatmul.bf16.gmra.mxu0 %v1941
  %v5348 = vpop.f32.mrf.mxu0
  %v5349 = vadd.f32 %v5276, %v5348
  %v5350 = vpop.f32.mrf.mxu0
  %v5351 = vadd.f32 %v5278, %v5350
  %5352 = vmatmul.bf16.gmra.mxu0 %v1966
  %v5353 = vpop.f32.mrf.mxu0
  %v5354 = vadd.f32 %v5281, %v5353
  %v5355 = vpop.f32.mrf.mxu0
  %v5356 = vadd.f32 %v5283, %v5355
  %5357 = vmatmul.bf16.gmra.mxu0 %v1991
  %v5358 = vpop.f32.mrf.mxu0
  %v5359 = vadd.f32 %v5286, %v5358
  %v5360 = vpop.f32.mrf.mxu0
  %v5361 = vadd.f32 %v5288, %v5360
  %5362 = vmatmul.bf16.gmra.mxu0 %v2016
  %v5363 = vpop.f32.mrf.mxu0
  %v5364 = vadd.f32 %v5291, %v5363
  %v5365 = vpop.f32.mrf.mxu0
  %5366 = vdwg.mxu0
  %v5367 = vld [vmem:[%s2] sm:$0x1]
  %v5368 = vld [vmem:[%s3] sm:$0x1]
  %v5369 = vadd.f32 %v5304, %v5306
  %v5370 = vadd.f32 %v5369, %v5309
  %v5371 = vadd.f32 %v5370, %v5311
  %v5372 = vadd.f32 %v5371, %v5314
  %v5373 = vadd.f32 %v5372, %v5316
  %v5374 = vadd.f32 %v5373, %v5319
  %v5375 = vadd.f32 %v5374, %v5321
  %v5376 = vadd.f32 %v5375, %v5324
  %v5377 = vadd.f32 %v5376, %v5326
  %v5378 = vadd.f32 %v5377, %v5329
  %v5379 = vadd.f32 %v5378, %v5331
  %v5380 = vadd.f32 %v5379, %v5334
  %v5381 = vadd.f32 %v5380, %v5336
  %v5382 = vadd.f32 %v5381, %v5339
  %v5383 = vadd.f32 %v5382, %v5341
  %v5384 = vadd.f32 %v5383, %v5344
  %v5385 = vadd.f32 %v5384, %v5346
  %v5386 = vadd.f32 %v5385, %v5349
  %v5387 = vadd.f32 %v5386, %v5351
  %v5388 = vadd.f32 %v5387, %v5354
  %v5389 = vadd.f32 %v5388, %v5356
  %v5390 = vadd.f32 %v5389, %v5359
  %v5391 = vadd.f32 %v5390, %v5361
  %v5392 = vadd.f32 %v5391, %v5364
  %v5393 = vrot.slane %v5392, 4
  %v5394 = vadd.f32 %v5392, %v5393
  %v5395 = vrot.slane %v5394, 2
  %v5396 = vadd.f32 %v5394, %v5395
  %v5397 = vrot.slane %v5396, 1
  %v5398 = vadd.f32 %v5396, %v5397
  %v5399 = vrcp.pop 200.0
  %v5400 = vmul.f32 200.0, %v5399
  %v5401 = vsub.f32 1.0, %v5400
  %v5402 = vmul.f32 %v5399, %v5401
  %v5403 = vadd.f32 %v5399, %v5402
  %vm5404 = vweird.f32 %v5399
  %v5405 = vsel %vm5404, %v5399, %v5403
  %v5406 = vmul.f32 %v5398, %v5405
  %v5407 = vsub.f32 %v5304, %v5406
  %v5408 = vsub.f32 %v5306, %v5406
  %v5409 = vsub.f32 %v5309, %v5406
  %v5410 = vsub.f32 %v5311, %v5406
  %v5411 = vsub.f32 %v5314, %v5406
  %v5412 = vsub.f32 %v5316, %v5406
  %v5413 = vsub.f32 %v5319, %v5406
  %v5414 = vsub.f32 %v5321, %v5406
  %v5415 = vsub.f32 %v5324, %v5406
  %v5416 = vsub.f32 %v5326, %v5406
  %v5417 = vsub.f32 %v5329, %v5406
  %v5418 = vsub.f32 %v5331, %v5406
  %v5419 = vsub.f32 %v5334, %v5406
  %v5420 = vsub.f32 %v5336, %v5406
  %v5421 = vsub.f32 %v5339, %v5406
  %v5422 = vsub.f32 %v5341, %v5406
  %v5423 = vsub.f32 %v5344, %v5406
  %v5424 = vsub.f32 %v5346, %v5406
  %v5425 = vsub.f32 %v5349, %v5406
  %v5426 = vsub.f32 %v5351, %v5406
  %v5427 = vsub.f32 %v5354, %v5406
  %v5428 = vsub.f32 %v5356, %v5406
  %v5429 = vsub.f32 %v5359, %v5406
  %v5430 = vsub.f32 %v5361, %v5406
  %v5431 = vsub.f32 %v5364, %v5406
  %v5432 = vmul.f32 %v5407, %v5407
  %v5433 = vmul.f32 %v5408, %v5408
  %v5434 = vmul.f32 %v5409, %v5409
  %v5435 = vmul.f32 %v5410, %v5410
  %v5436 = vmul.f32 %v5411, %v5411
  %v5437 = vmul.f32 %v5412, %v5412
  %v5438 = vmul.f32 %v5413, %v5413
  %v5439 = vmul.f32 %v5414, %v5414
  %v5440 = vmul.f32 %v5415, %v5415
  %v5441 = vmul.f32 %v5416, %v5416
  %v5442 = vmul.f32 %v5417, %v5417
  %v5443 = vmul.f32 %v5418, %v5418
  %v5444 = vmul.f32 %v5419, %v5419
  %v5445 = vmul.f32 %v5420, %v5420
  %v5446 = vmul.f32 %v5421, %v5421
  %v5447 = vmul.f32 %v5422, %v5422
  %v5448 = vmul.f32 %v5423, %v5423
  %v5449 = vmul.f32 %v5424, %v5424
  %v5450 = vmul.f32 %v5425, %v5425
  %v5451 = vmul.f32 %v5426, %v5426
  %v5452 = vmul.f32 %v5427, %v5427
  %v5453 = vmul.f32 %v5428, %v5428
  %v5454 = vmul.f32 %v5429, %v5429
  %v5455 = vmul.f32 %v5430, %v5430
  %v5456 = vmul.f32 %v5431, %v5431
  %v5457 = vadd.f32 %v5432, %v5433
  %v5458 = vadd.f32 %v5457, %v5434
  %v5459 = vadd.f32 %v5458, %v5435
  %v5460 = vadd.f32 %v5459, %v5436
  %v5461 = vadd.f32 %v5460, %v5437
  %v5462 = vadd.f32 %v5461, %v5438
  %v5463 = vadd.f32 %v5462, %v5439
  %v5464 = vadd.f32 %v5463, %v5440
  %v5465 = vadd.f32 %v5464, %v5441
  %v5466 = vadd.f32 %v5465, %v5442
  %v5467 = vadd.f32 %v5466, %v5443
  %v5468 = vadd.f32 %v5467, %v5444
  %v5469 = vadd.f32 %v5468, %v5445
  %v5470 = vadd.f32 %v5469, %v5446
  %v5471 = vadd.f32 %v5470, %v5447
  %v5472 = vadd.f32 %v5471, %v5448
  %v5473 = vadd.f32 %v5472, %v5449
  %v5474 = vadd.f32 %v5473, %v5450
  %v5475 = vadd.f32 %v5474, %v5451
  %v5476 = vadd.f32 %v5475, %v5452
  %v5477 = vadd.f32 %v5476, %v5453
  %v5478 = vadd.f32 %v5477, %v5454
  %v5479 = vadd.f32 %v5478, %v5455
  %v5480 = vadd.f32 %v5479, %v5456
  %v5481 = vrot.slane %v5480, 4
  %v5482 = vadd.f32 %v5480, %v5481
  %v5483 = vrot.slane %v5482, 2
  %v5484 = vadd.f32 %v5482, %v5483
  %v5485 = vrot.slane %v5484, 1
  %v5486 = vadd.f32 %v5484, %v5485
  %v5487 = vmul.f32 %v5486, %v5405
  %v5488 = vadd.f32 %v5487, 1e-05
  %v5489 = vrsqrt.pop %v5488
  %v5490 = vmul.f32 %v5489, %v5488
  %v5491 = vmul.f32 %v5490, %v5489
  %v5492 = vmul.f32 0.5, %v5491
  %v5493 = vsub.f32 1.5, %v5492
  %v5494 = vmul.f32 %v5489, %v5493
  %vm5495 = vweird.f32 %v5488
  %vm5496 = vweird.f32 %v5489
  %vm5497 = vmor %vm5495, %vm5496
  %v5498 = vsel %vm5497, %v5489, %v5494
  %v5499 = vmul.f32 %v5367, %v5498
  %v5501 = vperm.slane %v5499, 0
  %v5503 = vmul.f32 %v5304, %v5501
  %v5504 = vmul.f32 %v5306, %v5501
  %v5505 = vmul.f32 %v5309, %v5501
  %v5506 = vmul.f32 %v5311, %v5501
  %v5507 = vmul.f32 %v5314, %v5501
  %v5508 = vmul.f32 %v5316, %v5501
  %v5509 = vmul.f32 %v5319, %v5501
  %v5510 = vmul.f32 %v5321, %v5501
  %v5511 = vmul.f32 %v5324, %v5501
  %v5512 = vmul.f32 %v5326, %v5501
  %v5513 = vmul.f32 %v5329, %v5501
  %v5514 = vmul.f32 %v5331, %v5501
  %v5515 = vmul.f32 %v5334, %v5501
  %v5516 = vmul.f32 %v5336, %v5501
  %v5517 = vmul.f32 %v5339, %v5501
  %v5518 = vmul.f32 %v5341, %v5501
  %v5519 = vmul.f32 %v5344, %v5501
  %v5520 = vmul.f32 %v5346, %v5501
  %v5521 = vmul.f32 %v5349, %v5501
  %v5522 = vmul.f32 %v5351, %v5501
  %v5523 = vmul.f32 %v5354, %v5501
  %v5524 = vmul.f32 %v5356, %v5501
  %v5525 = vmul.f32 %v5359, %v5501
  %v5526 = vmul.f32 %v5361, %v5501
  %v5527 = vmul.f32 %v5364, %v5501
  %v5528 = vmul.f32 %v5406, %v5499
  %v5529 = vsub.f32 %v5368, %v5528
  %v5531 = vperm.slane %v5529, 0
  %v5533 = vadd.f32 %v5503, %v5531
  %v5534 = vadd.f32 %v5504, %v5531
  %v5535 = vadd.f32 %v5505, %v5531
  %v5536 = vadd.f32 %v5506, %v5531
  %v5537 = vadd.f32 %v5507, %v5531
  %v5538 = vadd.f32 %v5508, %v5531
  %v5539 = vadd.f32 %v5509, %v5531
  %v5540 = vadd.f32 %v5510, %v5531
  %v5541 = vadd.f32 %v5511, %v5531
  %v5542 = vadd.f32 %v5512, %v5531
  %v5543 = vadd.f32 %v5513, %v5531
  %v5544 = vadd.f32 %v5514, %v5531
  %v5545 = vadd.f32 %v5515, %v5531
  %v5546 = vadd.f32 %v5516, %v5531
  %v5547 = vadd.f32 %v5517, %v5531
  %v5548 = vadd.f32 %v5518, %v5531
  %v5549 = vadd.f32 %v5519, %v5531
  %v5550 = vadd.f32 %v5520, %v5531
  %v5551 = vadd.f32 %v5521, %v5531
  %v5552 = vadd.f32 %v5522, %v5531
  %v5553 = vadd.f32 %v5523, %v5531
  %v5554 = vadd.f32 %v5524, %v5531
  %v5555 = vadd.f32 %v5525, %v5531
  %v5556 = vadd.f32 %v5526, %v5531
  %v5557 = vadd.f32 %v5527, %v5531
  %v5558 = vmax.f32 %v5533, 0.0
  %v5559 = vmax.f32 %v5534, 0.0
  %v5560 = vmax.f32 %v5535, 0.0
  %v5561 = vmax.f32 %v5536, 0.0
  %v5562 = vmax.f32 %v5537, 0.0
  %v5563 = vmax.f32 %v5538, 0.0
  %v5564 = vmax.f32 %v5539, 0.0
  %v5565 = vmax.f32 %v5540, 0.0
  %v5566 = vmax.f32 %v5541, 0.0
  %v5567 = vmax.f32 %v5542, 0.0
  %v5568 = vmax.f32 %v5543, 0.0
  %v5569 = vmax.f32 %v5544, 0.0
  %v5570 = vmax.f32 %v5545, 0.0
  %v5571 = vmax.f32 %v5546, 0.0
  %v5572 = vmax.f32 %v5547, 0.0
  %v5573 = vmax.f32 %v5548, 0.0
  %v5574 = vmax.f32 %v5549, 0.0
  %v5575 = vmax.f32 %v5550, 0.0
  %v5576 = vmax.f32 %v5551, 0.0
  %v5577 = vmax.f32 %v5552, 0.0
  %v5578 = vmax.f32 %v5553, 0.0
  %v5579 = vmax.f32 %v5554, 0.0
  %v5580 = vmax.f32 %v5555, 0.0
  %v5581 = vmax.f32 %v5556, 0.0
  %v5582 = vmax.f32 %v5557, 0.0
  %vm5590 = vcmask 1045504
  %v5591 = vrot.slane %v5564, 2
  %v5592 = vrot.slane %v5565, 2
  %v5593 = vsel %vm5590, %v5591, %v5592
  %v5594 = vrot.slane %v5566, 2
  %v5595 = vsel %vm5590, %v5592, %v5594
  %v5596 = vrot.slane %v5567, 2
  %v5597 = vsel %vm5590, %v5594, %v5596
  %v5598 = vrot.slane %v5568, 2
  %v5599 = vsel %vm5590, %v5596, %v5598
  %v5600 = vrot.slane %v5569, 2
  %v5601 = vsel %vm5590, %v5598, %v5600
  %v5602 = vrot.slane %v5570, 2
  %v5603 = vsel %vm5590, %v5600, %v5602
  %v5611 = vmax.f32 %v5558, %v5593
  %v5612 = vmax.f32 %v5559, %v5595
  %v5613 = vmax.f32 %v5560, %v5597
  %v5614 = vmax.f32 %v5561, %v5599
  %v5615 = vmax.f32 %v5562, %v5601
  %v5616 = vmax.f32 %v5563, %v5603
  %v5617 = vmax.f32 %v5564, %v5602
  %v5625 = vrot.slane %v5576, 2
  %v5626 = vrot.slane %v5577, 2
  %v5627 = vsel %vm5590, %v5625, %v5626
  %v5628 = vrot.slane %v5578, 2
  %v5629 = vsel %vm5590, %v5626, %v5628
  %v5630 = vrot.slane %v5579, 2
  %v5631 = vsel %vm5590, %v5628, %v5630
  %v5632 = vrot.slane %v5580, 2
  %v5633 = vsel %vm5590, %v5630, %v5632
  %v5634 = vrot.slane %v5581, 2
  %v5635 = vsel %vm5590, %v5632, %v5634
  %v5636 = vrot.slane %v5582, 2
  %v5637 = vsel %vm5590, %v5634, %v5636
  %v5645 = vmax.f32 %v5570, %v5627
  %v5646 = vmax.f32 %v5571, %v5629
  %v5647 = vmax.f32 %v5572, %v5631
  %v5648 = vmax.f32 %v5573, %v5633
  %v5649 = vmax.f32 %v5574, %v5635
  %v5650 = vmax.f32 %v5575, %v5637
  %v5651 = vmax.f32 %v5576, %v5636
  %vm5659 = vcmask 1043456
  %v5660 = vrot.slane %v5645, 4
  %v5661 = vrot.slane %v5646, 4
  %v5662 = vsel %vm5659, %v5660, %v5661
  %v5663 = vrot.slane %v5647, 4
  %v5664 = vsel %vm5659, %v5661, %v5663
  %v5665 = vrot.slane %v5648, 4
  %v5666 = vsel %vm5659, %v5663, %v5665
  %v5667 = vrot.slane %v5649, 4
  %v5668 = vsel %vm5659, %v5665, %v5667
  %v5669 = vrot.slane %v5650, 4
  %v5670 = vsel %vm5659, %v5667, %v5669
  %v5671 = vrot.slane %v5651, 4
  %v5672 = vsel %vm5659, %v5669, %v5671
  %v5680 = vmax.f32 %v5611, %v5662
  %v5681 = vmax.f32 %v5612, %v5664
  %v5682 = vmax.f32 %v5613, %v5666
  %v5683 = vmax.f32 %v5614, %v5668
  %v5684 = vmax.f32 %v5615, %v5670
  %v5685 = vmax.f32 %v5616, %v5672
  %v5686 = vmax.f32 %v5617, %v5671
  %v5687 = vpack.c.bf16 %v5680, %v5680
  %v5688 = vpack.c.bf16 %v5681, %v5681
  %v5689 = vpack.c.bf16 %v5682, %v5682
  %v5690 = vpack.c.bf16 %v5683, %v5683
  %v5691 = vpack.c.bf16 %v5684, %v5684
  %v5692 = vpack.c.bf16 %v5685, %v5685
  %v5693 = vpack.c.bf16 %v5686, %v5686
  %5694 = vst [vmem:[%s4] sm:$0xf] %v5687
  %5695 = vst [vmem:[%s4 + $0x4] sm:$0xf] %v5688
  %5696 = vst [vmem:[%s4 + $0x8] sm:$0xf] %v5689
  %5697 = vst [vmem:[%s4 + $0xc] sm:$0xf] %v5690
  %5698 = vst [vmem:[%s4 + $0x10] sm:$0xf] %v5691
  %5699 = vst [vmem:[%s4 + $0x14] sm:$0xf] %v5692
  %5700 = vst [vmem:[%s4 + $0x18] sm:$0x1] %v5693
  // Predicated region
  $region18: #{dann_rep_forward.4} parent=0 // pred_check
    _
  $region19: #{dann_rep_forward.4} parent=0 // pred_check_branch
    %5702 = sbr.rel (0) target = $region21
  $region20: #{dann_rep_forward.4} parent=0 // pred_region
    _
  $region21: #{dann_rep_forward.4} parent=0 // pred_fallthru
    _
  // Predicated region
  $region22: #{dann_rep_forward.4} parent=0 // pred_check
    _
  $region23: #{dann_rep_forward.4} parent=0 // pred_check_branch
    %5704 = sbr.rel (0) target = $region25
  $region24: #{dann_rep_forward.4} parent=0 // pred_region
    _
  $region25: #{dann_rep_forward.4} parent=0 // pred_fallthru
    _

// kernel: dann_rep_forward.5
$region0: #{dann_rep_forward.5}
  #allocation0 [shape = 'u32[]', space=smem, size = 0x4, offset = 0x4, fixed_abs, tag = 'smem constant byte address 0x4 - core index']
  #allocation1 [shape = 'u32[72,128]{1,0:T(1,128)}', space=vmem, size = 0x9000, scoped, tag = 'internal scratch']
  %s0 = inlined_call_operand.vmem [shape: bf16[2,3200], index: 0, kind: input, shape index: {}]
  %s1 = inlined_call_operand.vmem [shape: bf16[3200,384], index: 1, kind: input, shape index: {}]
  %s2 = inlined_call_operand.vmem [shape: f32[1,384], index: 2, kind: input, shape index: {}]
  %s3 = inlined_call_operand.vmem [shape: f32[1,384], index: 3, kind: input, shape index: {}]
  %s4 = inlined_call_operand.vmem [shape: bf16[128,128], index: 4, kind: input, shape index: {}]
  %s5 = inlined_call_operand.vmem [shape: f32[1,128], index: 5, kind: input, shape index: {}]
  %s6 = inlined_call_operand.vmem [shape: f32[1,128], index: 6, kind: input, shape index: {}]
  %s7 = inlined_call_operand.vmem [shape: bf16[384,256], index: 7, kind: input, shape index: {}]
  %s8 = inlined_call_operand.vmem [shape: bf16[128,256], index: 8, kind: input, shape index: {}]
  %s9 = inlined_call_operand.vmem [shape: f32[1,256], index: 9, kind: input, shape index: {}]
  %s10 = inlined_call_operand.vmem [shape: f32[2,128], index: 10, kind: output, shape index: {}]
  %s11 = sld [smem:[#allocation0]]
  $region50: #{dann_rep_forward.5} parent=0
    _
  %s13 = ssub.s32 1, %s11
  %s14 = scalar_select 0, %s13, %s11
  // Predicated region
  $region2: #{dann_rep_forward.5} parent=0 // pred_check
    _
  $region3: #{dann_rep_forward.5} parent=0 // pred_check_branch
    %16 = sbr.rel (0) target = $region5
  $region4: #{dann_rep_forward.5} parent=0 // pred_region
    _
  $region5: #{dann_rep_forward.5} parent=0 // pred_fallthru
    _
  // Predicated region
  $region6: #{dann_rep_forward.5} parent=0 // pred_check
    _
  $region7: #{dann_rep_forward.5} parent=0 // pred_check_branch
    %18 = sbr.rel (0) target = $region9
  $region8: #{dann_rep_forward.5} parent=0 // pred_region
    _
  $region9: #{dann_rep_forward.5} parent=0 // pred_fallthru
    _
  // Predicated region
  $region10: #{dann_rep_forward.5} parent=0 // pred_check
    _
  $region11: #{dann_rep_forward.5} parent=0 // pred_check_branch
    %20 = sbr.rel (0) target = $region13
  $region12: #{dann_rep_forward.5} parent=0 // pred_region
    _
  $region13: #{dann_rep_forward.5} parent=0 // pred_fallthru
    _
  // Predicated region
  $region14: #{dann_rep_forward.5} parent=0 // pred_check
    _
  $region15: #{dann_rep_forward.5} parent=0 // pred_check_branch
    %22 = sbr.rel (0) target = $region17
  $region16: #{dann_rep_forward.5} parent=0 // pred_region
    _
  $region17: #{dann_rep_forward.5} parent=0 // pred_fallthru
    _
  // Predicated region
  $region18: #{dann_rep_forward.5} parent=0 // pred_check
    _
  $region19: #{dann_rep_forward.5} parent=0 // pred_check_branch
    %24 = sbr.rel (0) target = $region21
  $region20: #{dann_rep_forward.5} parent=0 // pred_region
    _
  $region21: #{dann_rep_forward.5} parent=0 // pred_fallthru
    _
  // Predicated region
  $region22: #{dann_rep_forward.5} parent=0 // pred_check
    _
  $region23: #{dann_rep_forward.5} parent=0 // pred_check_branch
    %26 = sbr.rel (0) target = $region25
  $region24: #{dann_rep_forward.5} parent=0 // pred_region
    _
  $region25: #{dann_rep_forward.5} parent=0 // pred_fallthru
    _
  // Predicated region
  $region26: #{dann_rep_forward.5} parent=0 // pred_check
    _
  $region27: #{dann_rep_forward.5} parent=0 // pred_check_branch
    %28 = sbr.rel (0) target = $region29
  $region28: #{dann_rep_forward.5} parent=0 // pred_region
    _
  $region29: #{dann_rep_forward.5} parent=0 // pred_fallthru
    _
  // Predicated region
  $region30: #{dann_rep_forward.5} parent=0 // pred_check
    _
  $region31: #{dann_rep_forward.5} parent=0 // pred_check_branch
    %30 = sbr.rel (0) target = $region33
  $region32: #{dann_rep_forward.5} parent=0 // pred_region
    _
  $region33: #{dann_rep_forward.5} parent=0 // pred_fallthru
    _
  // Predicated region
  $region34: #{dann_rep_forward.5} parent=0 // pred_check
    _
  $region35: #{dann_rep_forward.5} parent=0 // pred_check_branch
    %32 = sbr.rel (0) target = $region37
  $region36: #{dann_rep_forward.5} parent=0 // pred_region
    _
  $region37: #{dann_rep_forward.5} parent=0 // pred_fallthru
    _
  // Predicated region
  $region38: #{dann_rep_forward.5} parent=0 // pred_check
    _
  $region39: #{dann_rep_forward.5} parent=0 // pred_check_branch
    %34 = sbr.rel (0) target = $region41
  $region40: #{dann_rep_forward.5} parent=0 // pred_region
    _
  $region41: #{dann_rep_forward.5} parent=0 // pred_fallthru
    _
  %v35 = vld [vmem:[%s0] sm:$0xff]
  %v36 = vld [vmem:[%s0 + $0x8] sm:$0xff]
  %v37 = vld [vmem:[%s0 + $0x10] sm:$0xff]
  %v38 = vld [vmem:[%s0 + $0x18] sm:$0x1]
  %v39 = vld [vmem:[%s1] sm:$0xff]
  %v40 = vld [vmem:[%s1 + $0x8] sm:$0xf]
  %v41 = vld [vmem:[%s1 + $0xc] sm:$0xff]
  %v42 = vld [vmem:[%s1 + $0x14] sm:$0xf]
  %v43 = vld [vmem:[%s1 + $0x18] sm:$0xff]
  %v44 = vld [vmem:[%s1 + $0x20] sm:$0xf]
  %v45 = vld [vmem:[%s1 + $0x24] sm:$0xff]
  %v46 = vld [vmem:[%s1 + $0x2c] sm:$0xf]
  %v47 = vld [vmem:[%s1 + $0x30] sm:$0xff]
  %v48 = vld [vmem:[%s1 + $0x38] sm:$0xf]
  %v49 = vld [vmem:[%s1 + $0x3c] sm:$0xff]
  %v50 = vld [vmem:[%s1 + $0x44] sm:$0xf]
  %v51 = vld [vmem:[%s1 + $0x48] sm:$0xff]
  %v52 = vld [vmem:[%s1 + $0x50] sm:$0xf]
  %v53 = vld [vmem:[%s1 + $0x54] sm:$0xff]
  %v54 = vld [vmem:[%s1 + $0x5c] sm:$0xf]
  %v55 = vld [vmem:[%s1 + $0x60] sm:$0xff]
  %v56 = vld [vmem:[%s1 + $0x68] sm:$0xf]
  %v57 = vld [vmem:[%s1 + $0x6c] sm:$0xff]
  %v58 = vld [vmem:[%s1 + $0x74] sm:$0xf]
  %v59 = vld [vmem:[%s1 + $0x78] sm:$0xff]
  %v60 = vld [vmem:[%s1 + $0x80] sm:$0xf]
  %v61 = vld [vmem:[%s1 + $0x84] sm:$0xff]
  %v62 = vld [vmem:[%s1 + $0x8c] sm:$0xf]
  %v63 = vld [vmem:[%s1 + $0x90] sm:$0xff]
  %v64 = vld [vmem:[%s1 + $0x98] sm:$0xf]
  %v65 = vld [vmem:[%s1 + $0x9c] sm:$0xff]
  %v66 = vld [vmem:[%s1 + $0xa4] sm:$0xf]
  %v67 = vld [vmem:[%s1 + $0xa8] sm:$0xff]
  %v68 = vld [vmem:[%s1 + $0xb0] sm:$0xf]
  %v69 = vld [vmem:[%s1 + $0xb4] sm:$0xff]
  %v70 = vld [vmem:[%s1 + $0xbc] sm:$0xf]
  %v71 = vld [vmem:[%s1 + $0xc0] sm:$0xff]
  %v72 = vld [vmem:[%s1 + $0xc8] sm:$0xf]
  %v73 = vld [vmem:[%s1 + $0xcc] sm:$0xff]
  %v74 = vld [vmem:[%s1 + $0xd4] sm:$0xf]
  %v75 = vld [vmem:[%s1 + $0xd8] sm:$0xff]
  %v76 = vld [vmem:[%s1 + $0xe0] sm:$0xf]
  %v77 = vld [vmem:[%s1 + $0xe4] sm:$0xff]
  %v78 = vld [vmem:[%s1 + $0xec] sm:$0xf]
  %v79 = vld [vmem:[%s1 + $0xf0] sm:$0xff]
  %v80 = vld [vmem:[%s1 + $0xf8] sm:$0xf]
  %v81 = vld [vmem:[%s1 + $0xfc] sm:$0xff]
  %v82 = vld [vmem:[%s1 + $0x104] sm:$0xf]
  %v83 = vld [vmem:[%s1 + $0x108] sm:$0xff]
  %v84 = vld [vmem:[%s1 + $0x110] sm:$0xf]
  %v85 = vld [vmem:[%s1 + $0x114] sm:$0xff]
  %v86 = vld [vmem:[%s1 + $0x11c] sm:$0xf]
  %v87 = vld [vmem:[%s1 + $0x120] sm:$0xff]
  %v88 = vld [vmem:[%s1 + $0x128] sm:$0xf]
  %v89 = vld [vmem:[%s1 + $0x12c] sm:$0xff]
  %v90 = vld [vmem:[%s1 + $0x134] sm:$0xf]
  %v91 = vld [vmem:[%s1 + $0x138] sm:$0xff]
  %v92 = vld [vmem:[%s1 + $0x140] sm:$0xf]
  %v93 = vld [vmem:[%s1 + $0x144] sm:$0xff]
  %v94 = vld [vmem:[%s1 + $0x14c] sm:$0xf]
  %v95 = vld [vmem:[%s1 + $0x150] sm:$0xff]
  %v96 = vld [vmem:[%s1 + $0x158] sm:$0xf]
  %v97 = vld [vmem:[%s1 + $0x15c] sm:$0xff]
  %v98 = vld [vmem:[%s1 + $0x164] sm:$0xf]
  %v99 = vld [vmem:[%s1 + $0x168] sm:$0xff]
  %v100 = vld [vmem:[%s1 + $0x170] sm:$0xf]
  %v101 = vld [vmem:[%s1 + $0x174] sm:$0xff]
  %v102 = vld [vmem:[%s1 + $0x17c] sm:$0xf]
  %v103 = vld [vmem:[%s1 + $0x180] sm:$0xff]
  %v104 = vld [vmem:[%s1 + $0x188] sm:$0xf]
  %v105 = vld [vmem:[%s1 + $0x18c] sm:$0xff]
  %v106 = vld [vmem:[%s1 + $0x194] sm:$0xf]
  %v107 = vld [vmem:[%s1 + $0x198] sm:$0xff]
  %v108 = vld [vmem:[%s1 + $0x1a0] sm:$0xf]
  %v109 = vld [vmem:[%s1 + $0x1a4] sm:$0xff]
  %v110 = vld [vmem:[%s1 + $0x1ac] sm:$0xf]
  %v111 = vld [vmem:[%s1 + $0x1b0] sm:$0xff]
  %v112 = vld [vmem:[%s1 + $0x1b8] sm:$0xf]
  %v113 = vld [vmem:[%s1 + $0x1bc] sm:$0xff]
  %v114 = vld [vmem:[%s1 + $0x1c4] sm:$0xf]
  %v115 = vld [vmem:[%s1 + $0x1c8] sm:$0xff]
  %v116 = vld [vmem:[%s1 + $0x1d0] sm:$0xf]
  %v117 = vld [vmem:[%s1 + $0x1d4] sm:$0xff]
  %v118 = vld [vmem:[%s1 + $0x1dc] sm:$0xf]
  %v119 = vld [vmem:[%s1 + $0x1e0] sm:$0xff]
  %v120 = vld [vmem:[%s1 + $0x1e8] sm:$0xf]
  %v121 = vld [vmem:[%s1 + $0x1ec] sm:$0xff]
  %v122 = vld [vmem:[%s1 + $0x1f4] sm:$0xf]
  %v123 = vld [vmem:[%s1 + $0x1f8] sm:$0xff]
  %v124 = vld [vmem:[%s1 + $0x200] sm:$0xf]
  %v125 = vld [vmem:[%s1 + $0x204] sm:$0xff]
  %v126 = vld [vmem:[%s1 + $0x20c] sm:$0xf]
  %v127 = vld [vmem:[%s1 + $0x210] sm:$0xff]
  %v128 = vld [vmem:[%s1 + $0x218] sm:$0xf]
  %v129 = vld [vmem:[%s1 + $0x21c] sm:$0xff]
  %v130 = vld [vmem:[%s1 + $0x224] sm:$0xf]
  %v131 = vld [vmem:[%s1 + $0x228] sm:$0xff]
  %v132 = vld [vmem:[%s1 + $0x230] sm:$0xf]
  %v133 = vld [vmem:[%s1 + $0x234] sm:$0xff]
  %v134 = vld [vmem:[%s1 + $0x23c] sm:$0xf]
  %v135 = vld [vmem:[%s1 + $0x240] sm:$0xff]
  %v136 = vld [vmem:[%s1 + $0x248] sm:$0xf]
  %v137 = vld [vmem:[%s1 + $0x24c] sm:$0xff]
  %v138 = vld [vmem:[%s1 + $0x254] sm:$0xf]
  %v139 = vld [vmem:[%s1 + $0x258] sm:$0xff]
  %v140 = vld [vmem:[%s1 + $0x260] sm:$0xf]
  %v141 = vld [vmem:[%s1 + $0x264] sm:$0xff]
  %v142 = vld [vmem:[%s1 + $0x26c] sm:$0xf]
  %v143 = vld [vmem:[%s1 + $0x270] sm:$0xff]
  %v144 = vld [vmem:[%s1 + $0x278] sm:$0xf]
  %v145 = vld [vmem:[%s1 + $0x27c] sm:$0xff]
  %v146 = vld [vmem:[%s1 + $0x284] sm:$0xf]
  %v147 = vld [vmem:[%s1 + $0x288] sm:$0xff]
  %v148 = vld [vmem:[%s1 + $0x290] sm:$0xf]
  %v149 = vld [vmem:[%s1 + $0x294] sm:$0xff]
  %v150 = vld [vmem:[%s1 + $0x29c] sm:$0xf]
  %v151 = vld [vmem:[%s1 + $0x2a0] sm:$0xff]
  %v152 = vld [vmem:[%s1 + $0x2a8] sm:$0xf]
  %v153 = vld [vmem:[%s1 + $0x2ac] sm:$0xff]
  %v154 = vld [vmem:[%s1 + $0x2b4] sm:$0xf]
  %v155 = vld [vmem:[%s1 + $0x2b8] sm:$0xff]
  %v156 = vld [vmem:[%s1 + $0x2c0] sm:$0xf]
  %v157 = vld [vmem:[%s1 + $0x2c4] sm:$0xff]
  %v158 = vld [vmem:[%s1 + $0x2cc] sm:$0xf]
  %v159 = vld [vmem:[%s1 + $0x2d0] sm:$0xff]
  %v160 = vld [vmem:[%s1 + $0x2d8] sm:$0xf]
  %v161 = vld [vmem:[%s1 + $0x2dc] sm:$0xff]
  %v162 = vld [vmem:[%s1 + $0x2e4] sm:$0xf]
  %v163 = vld [vmem:[%s1 + $0x2e8] sm:$0xff]
  %v164 = vld [vmem:[%s1 + $0x2f0] sm:$0xf]
  %v165 = vld [vmem:[%s1 + $0x2f4] sm:$0xff]
  %v166 = vld [vmem:[%s1 + $0x2fc] sm:$0xf]
  %v167 = vld [vmem:[%s1 + $0x300] sm:$0xff]
  %v168 = vld [vmem:[%s1 + $0x308] sm:$0xf]
  %v169 = vld [vmem:[%s1 + $0x30c] sm:$0xff]
  %v170 = vld [vmem:[%s1 + $0x314] sm:$0xf]
  %v171 = vld [vmem:[%s1 + $0x318] sm:$0xff]
  %v172 = vld [vmem:[%s1 + $0x320] sm:$0xf]
  %v173 = vld [vmem:[%s1 + $0x324] sm:$0xff]
  %v174 = vld [vmem:[%s1 + $0x32c] sm:$0xf]
  %v175 = vld [vmem:[%s1 + $0x330] sm:$0xff]
  %v176 = vld [vmem:[%s1 + $0x338] sm:$0xf]
  %v177 = vld [vmem:[%s1 + $0x33c] sm:$0xff]
  %v178 = vld [vmem:[%s1 + $0x344] sm:$0xf]
  %v179 = vld [vmem:[%s1 + $0x348] sm:$0xff]
  %v180 = vld [vmem:[%s1 + $0x350] sm:$0xf]
  %v181 = vld [vmem:[%s1 + $0x354] sm:$0xff]
  %v182 = vld [vmem:[%s1 + $0x35c] sm:$0xf]
  %v183 = vld [vmem:[%s1 + $0x360] sm:$0xff]
  %v184 = vld [vmem:[%s1 + $0x368] sm:$0xf]
  %v185 = vld [vmem:[%s1 + $0x36c] sm:$0xff]
  %v186 = vld [vmem:[%s1 + $0x374] sm:$0xf]
  %v187 = vld [vmem:[%s1 + $0x378] sm:$0xff]
  %v188 = vld [vmem:[%s1 + $0x380] sm:$0xf]
  %v189 = vld [vmem:[%s1 + $0x384] sm:$0xff]
  %v190 = vld [vmem:[%s1 + $0x38c] sm:$0xf]
  %v191 = vld [vmem:[%s1 + $0x390] sm:$0xff]
  %v192 = vld [vmem:[%s1 + $0x398] sm:$0xf]
  %v193 = vld [vmem:[%s1 + $0x39c] sm:$0xff]
  %v194 = vld [vmem:[%s1 + $0x3a4] sm:$0xf]
  %v195 = vld [vmem:[%s1 + $0x3a8] sm:$0xff]
  %v196 = vld [vmem:[%s1 + $0x3b0] sm:$0xf]
  %v197 = vld [vmem:[%s1 + $0x3b4] sm:$0xff]
  %v198 = vld [vmem:[%s1 + $0x3bc] sm:$0xf]
  %v199 = vld [vmem:[%s1 + $0x3c0] sm:$0xff]
  %v200 = vld [vmem:[%s1 + $0x3c8] sm:$0xf]
  %v201 = vld [vmem:[%s1 + $0x3cc] sm:$0xff]
  %v202 = vld [vmem:[%s1 + $0x3d4] sm:$0xf]
  %v203 = vld [vmem:[%s1 + $0x3d8] sm:$0xff]
  %v204 = vld [vmem:[%s1 + $0x3e0] sm:$0xf]
  %v205 = vld [vmem:[%s1 + $0x3e4] sm:$0xff]
  %v206 = vld [vmem:[%s1 + $0x3ec] sm:$0xf]
  %v207 = vld [vmem:[%s1 + $0x3f0] sm:$0xff]
  %v208 = vld [vmem:[%s1 + $0x3f8] sm:$0xf]
  %v209 = vld [vmem:[%s1 + $0x3fc] sm:$0xff]
  %v210 = vld [vmem:[%s1 + $0x404] sm:$0xf]
  %v211 = vld [vmem:[%s1 + $0x408] sm:$0xff]
  %v212 = vld [vmem:[%s1 + $0x410] sm:$0xf]
  %v213 = vld [vmem:[%s1 + $0x414] sm:$0xff]
  %v214 = vld [vmem:[%s1 + $0x41c] sm:$0xf]
  %v215 = vld [vmem:[%s1 + $0x420] sm:$0xff]
  %v216 = vld [vmem:[%s1 + $0x428] sm:$0xf]
  %v217 = vld [vmem:[%s1 + $0x42c] sm:$0xff]
  %v218 = vld [vmem:[%s1 + $0x434] sm:$0xf]
  %v219 = vld [vmem:[%s1 + $0x438] sm:$0xff]
  %v220 = vld [vmem:[%s1 + $0x440] sm:$0xf]
  %v221 = vld [vmem:[%s1 + $0x444] sm:$0xff]
  %v222 = vld [vmem:[%s1 + $0x44c] sm:$0xf]
  %v223 = vld [vmem:[%s1 + $0x450] sm:$0xff]
  %v224 = vld [vmem:[%s1 + $0x458] sm:$0xf]
  %v225 = vld [vmem:[%s1 + $0x45c] sm:$0xff]
  %v226 = vld [vmem:[%s1 + $0x464] sm:$0xf]
  %v227 = vld [vmem:[%s1 + $0x468] sm:$0xff]
  %v228 = vld [vmem:[%s1 + $0x470] sm:$0xf]
  %v229 = vld [vmem:[%s1 + $0x474] sm:$0xff]
  %v230 = vld [vmem:[%s1 + $0x47c] sm:$0xf]
  %v231 = vld [vmem:[%s1 + $0x480] sm:$0xff]
  %v232 = vld [vmem:[%s1 + $0x488] sm:$0xf]
  %v233 = vld [vmem:[%s1 + $0x48c] sm:$0xff]
  %v234 = vld [vmem:[%s1 + $0x494] sm:$0xf]
  %v235 = vld [vmem:[%s1 + $0x498] sm:$0xff]
  %v236 = vld [vmem:[%s1 + $0x4a0] sm:$0xf]
  %v237 = vld [vmem:[%s1 + $0x4a4] sm:$0xff]
  %v238 = vld [vmem:[%s1 + $0x4ac] sm:$0xf]
  %v239 = vld [vmem:[%s1 + $0x4b0] sm:$0xff]
  %v240 = vld [vmem:[%s1 + $0x4b8] sm:$0xf]
  %v241 = vld [vmem:[%s1 + $0x4bc] sm:$0xff]
  %v242 = vld [vmem:[%s1 + $0x4c4] sm:$0xf]
  %v243 = vld [vmem:[%s1 + $0x4c8] sm:$0xff]
  %v244 = vld [vmem:[%s1 + $0x4d0] sm:$0xf]
  %v245 = vld [vmem:[%s1 + $0x4d4] sm:$0xff]
  %v246 = vld [vmem:[%s1 + $0x4dc] sm:$0xf]
  %v247 = vld [vmem:[%s1 + $0x4e0] sm:$0xff]
  %v248 = vld [vmem:[%s1 + $0x4e8] sm:$0xf]
  %v249 = vld [vmem:[%s1 + $0x4ec] sm:$0xff]
  %v250 = vld [vmem:[%s1 + $0x4f4] sm:$0xf]
  %v251 = vld [vmem:[%s1 + $0x4f8] sm:$0xff]
  %v252 = vld [vmem:[%s1 + $0x500] sm:$0xf]
  %v253 = vld [vmem:[%s1 + $0x504] sm:$0xff]
  %v254 = vld [vmem:[%s1 + $0x50c] sm:$0xf]
  %v255 = vld [vmem:[%s1 + $0x510] sm:$0xff]
  %v256 = vld [vmem:[%s1 + $0x518] sm:$0xf]
  %v257 = vld [vmem:[%s1 + $0x51c] sm:$0xff]
  %v258 = vld [vmem:[%s1 + $0x524] sm:$0xf]
  %v259 = vld [vmem:[%s1 + $0x528] sm:$0xff]
  %v260 = vld [vmem:[%s1 + $0x530] sm:$0xf]
  %v261 = vld [vmem:[%s1 + $0x534] sm:$0xff]
  %v262 = vld [vmem:[%s1 + $0x53c] sm:$0xf]
  %v263 = vld [vmem:[%s1 + $0x540] sm:$0xff]
  %v264 = vld [vmem:[%s1 + $0x548] sm:$0xf]
  %v265 = vld [vmem:[%s1 + $0x54c] sm:$0xff]
  %v266 = vld [vmem:[%s1 + $0x554] sm:$0xf]
  %v267 = vld [vmem:[%s1 + $0x558] sm:$0xff]
  %v268 = vld [vmem:[%s1 + $0x560] sm:$0xf]
  %v269 = vld [vmem:[%s1 + $0x564] sm:$0xff]
  %v270 = vld [vmem:[%s1 + $0x56c] sm:$0xf]
  %v271 = vld [vmem:[%s1 + $0x570] sm:$0xff]
  %v272 = vld [vmem:[%s1 + $0x578] sm:$0xf]
  %v273 = vld [vmem:[%s1 + $0x57c] sm:$0xff]
  %v274 = vld [vmem:[%s1 + $0x584] sm:$0xf]
  %v275 = vld [vmem:[%s1 + $0x588] sm:$0xff]
  %v276 = vld [vmem:[%s1 + $0x590] sm:$0xf]
  %v277 = vld [vmem:[%s1 + $0x594] sm:$0xff]
  %v278 = vld [vmem:[%s1 + $0x59c] sm:$0xf]
  %v279 = vld [vmem:[%s1 + $0x5a0] sm:$0xff]
  %v280 = vld [vmem:[%s1 + $0x5a8] sm:$0xf]
  %v281 = vld [vmem:[%s1 + $0x5ac] sm:$0xff]
  %v282 = vld [vmem:[%s1 + $0x5b4] sm:$0xf]
  %v283 = vld [vmem:[%s1 + $0x5b8] sm:$0xff]
  %v284 = vld [vmem:[%s1 + $0x5c0] sm:$0xf]
  %v285 = vld [vmem:[%s1 + $0x5c4] sm:$0xff]
  %v286 = vld [vmem:[%s1 + $0x5cc] sm:$0xf]
  %v287 = vld [vmem:[%s1 + $0x5d0] sm:$0xff]
  %v288 = vld [vmem:[%s1 + $0x5d8] sm:$0xf]
  %v289 = vld [vmem:[%s1 + $0x5dc] sm:$0xff]
  %v290 = vld [vmem:[%s1 + $0x5e4] sm:$0xf]
  %v291 = vld [vmem:[%s1 + $0x5e8] sm:$0xff]
  %v292 = vld [vmem:[%s1 + $0x5f0] sm:$0xf]
  %v293 = vld [vmem:[%s1 + $0x5f4] sm:$0xff]
  %v294 = vld [vmem:[%s1 + $0x5fc] sm:$0xf]
  %v295 = vld [vmem:[%s1 + $0x600] sm:$0xff]
  %v296 = vld [vmem:[%s1 + $0x608] sm:$0xf]
  %v297 = vld [vmem:[%s1 + $0x60c] sm:$0xff]
  %v298 = vld [vmem:[%s1 + $0x614] sm:$0xf]
  %v299 = vld [vmem:[%s1 + $0x618] sm:$0xff]
  %v300 = vld [vmem:[%s1 + $0x620] sm:$0xf]
  %v301 = vld [vmem:[%s1 + $0x624] sm:$0xff]
  %v302 = vld [vmem:[%s1 + $0x62c] sm:$0xf]
  %v303 = vld [vmem:[%s1 + $0x630] sm:$0xff]
  %v304 = vld [vmem:[%s1 + $0x638] sm:$0xf]
  %v305 = vld [vmem:[%s1 + $0x63c] sm:$0xff]
  %v306 = vld [vmem:[%s1 + $0x644] sm:$0xf]
  %v307 = vld [vmem:[%s1 + $0x648] sm:$0xff]
  %v308 = vld [vmem:[%s1 + $0x650] sm:$0xf]
  %v309 = vld [vmem:[%s1 + $0x654] sm:$0xff]
  %v310 = vld [vmem:[%s1 + $0x65c] sm:$0xf]
  %v311 = vld [vmem:[%s1 + $0x660] sm:$0xff]
  %v312 = vld [vmem:[%s1 + $0x668] sm:$0xf]
  %v313 = vld [vmem:[%s1 + $0x66c] sm:$0xff]
  %v314 = vld [vmem:[%s1 + $0x674] sm:$0xf]
  %v315 = vld [vmem:[%s1 + $0x678] sm:$0xff]
  %v316 = vld [vmem:[%s1 + $0x680] sm:$0xf]
  %v317 = vld [vmem:[%s1 + $0x684] sm:$0xff]
  %v318 = vld [vmem:[%s1 + $0x68c] sm:$0xf]
  %v319 = vld [vmem:[%s1 + $0x690] sm:$0xff]
  %v320 = vld [vmem:[%s1 + $0x698] sm:$0xf]
  %v321 = vld [vmem:[%s1 + $0x69c] sm:$0xff]
  %v322 = vld [vmem:[%s1 + $0x6a4] sm:$0xf]
  %v323 = vld [vmem:[%s1 + $0x6a8] sm:$0xff]
  %v324 = vld [vmem:[%s1 + $0x6b0] sm:$0xf]
  %v325 = vld [vmem:[%s1 + $0x6b4] sm:$0xff]
  %v326 = vld [vmem:[%s1 + $0x6bc] sm:$0xf]
  %v327 = vld [vmem:[%s1 + $0x6c0] sm:$0xff]
  %v328 = vld [vmem:[%s1 + $0x6c8] sm:$0xf]
  %v329 = vld [vmem:[%s1 + $0x6cc] sm:$0xff]
  %v330 = vld [vmem:[%s1 + $0x6d4] sm:$0xf]
  %v331 = vld [vmem:[%s1 + $0x6d8] sm:$0xff]
  %v332 = vld [vmem:[%s1 + $0x6e0] sm:$0xf]
  %v333 = vld [vmem:[%s1 + $0x6e4] sm:$0xff]
  %v334 = vld [vmem:[%s1 + $0x6ec] sm:$0xf]
  %v335 = vld [vmem:[%s1 + $0x6f0] sm:$0xff]
  %v336 = vld [vmem:[%s1 + $0x6f8] sm:$0xf]
  %v337 = vld [vmem:[%s1 + $0x6fc] sm:$0xff]
  %v338 = vld [vmem:[%s1 + $0x704] sm:$0xf]
  %v339 = vld [vmem:[%s1 + $0x708] sm:$0xff]
  %v340 = vld [vmem:[%s1 + $0x710] sm:$0xf]
  %v341 = vld [vmem:[%s1 + $0x714] sm:$0xff]
  %v342 = vld [vmem:[%s1 + $0x71c] sm:$0xf]
  %v343 = vld [vmem:[%s1 + $0x720] sm:$0xff]
  %v344 = vld [vmem:[%s1 + $0x728] sm:$0xf]
  %v345 = vld [vmem:[%s1 + $0x72c] sm:$0xff]
  %v346 = vld [vmem:[%s1 + $0x734] sm:$0xf]
  %v347 = vld [vmem:[%s1 + $0x738] sm:$0xff]
  %v348 = vld [vmem:[%s1 + $0x740] sm:$0xf]
  %v349 = vld [vmem:[%s1 + $0x744] sm:$0xff]
  %v350 = vld [vmem:[%s1 + $0x74c] sm:$0xf]
  %v351 = vld [vmem:[%s1 + $0x750] sm:$0xff]
  %v352 = vld [vmem:[%s1 + $0x758] sm:$0xf]
  %v353 = vld [vmem:[%s1 + $0x75c] sm:$0xff]
  %v354 = vld [vmem:[%s1 + $0x764] sm:$0xf]
  %v355 = vld [vmem:[%s1 + $0x768] sm:$0xff]
  %v356 = vld [vmem:[%s1 + $0x770] sm:$0xf]
  %v357 = vld [vmem:[%s1 + $0x774] sm:$0xff]
  %v358 = vld [vmem:[%s1 + $0x77c] sm:$0xf]
  %v359 = vld [vmem:[%s1 + $0x780] sm:$0xff]
  %v360 = vld [vmem:[%s1 + $0x788] sm:$0xf]
  %v361 = vld [vmem:[%s1 + $0x78c] sm:$0xff]
  %v362 = vld [vmem:[%s1 + $0x794] sm:$0xf]
  %v363 = vld [vmem:[%s1 + $0x798] sm:$0xff]
  %v364 = vld [vmem:[%s1 + $0x7a0] sm:$0xf]
  %v365 = vld [vmem:[%s1 + $0x7a4] sm:$0xff]
  %v366 = vld [vmem:[%s1 + $0x7ac] sm:$0xf]
  %v367 = vld [vmem:[%s1 + $0x7b0] sm:$0xff]
  %v368 = vld [vmem:[%s1 + $0x7b8] sm:$0xf]
  %v369 = vld [vmem:[%s1 + $0x7bc] sm:$0xff]
  %v370 = vld [vmem:[%s1 + $0x7c4] sm:$0xf]
  %v371 = vld [vmem:[%s1 + $0x7c8] sm:$0xff]
  %v372 = vld [vmem:[%s1 + $0x7d0] sm:$0xf]
  %v373 = vld [vmem:[%s1 + $0x7d4] sm:$0xff]
  %v374 = vld [vmem:[%s1 + $0x7dc] sm:$0xf]
  %v375 = vld [vmem:[%s1 + $0x7e0] sm:$0xff]
  %v376 = vld [vmem:[%s1 + $0x7e8] sm:$0xf]
  %v377 = vld [vmem:[%s1 + $0x7ec] sm:$0xff]
  %v378 = vld [vmem:[%s1 + $0x7f4] sm:$0xf]
  %v379 = vld [vmem:[%s1 + $0x7f8] sm:$0xff]
  %v380 = vld [vmem:[%s1 + $0x800] sm:$0xf]
  %v381 = vld [vmem:[%s1 + $0x804] sm:$0xff]
  %v382 = vld [vmem:[%s1 + $0x80c] sm:$0xf]
  %v383 = vld [vmem:[%s1 + $0x810] sm:$0xff]
  %v384 = vld [vmem:[%s1 + $0x818] sm:$0xf]
  %v385 = vld [vmem:[%s1 + $0x81c] sm:$0xff]
  %v386 = vld [vmem:[%s1 + $0x824] sm:$0xf]
  %v387 = vld [vmem:[%s1 + $0x828] sm:$0xff]
  %v388 = vld [vmem:[%s1 + $0x830] sm:$0xf]
  %v389 = vld [vmem:[%s1 + $0x834] sm:$0xff]
  %v390 = vld [vmem:[%s1 + $0x83c] sm:$0xf]
  %v391 = vld [vmem:[%s1 + $0x840] sm:$0xff]
  %v392 = vld [vmem:[%s1 + $0x848] sm:$0xf]
  %v393 = vld [vmem:[%s1 + $0x84c] sm:$0xff]
  %v394 = vld [vmem:[%s1 + $0x854] sm:$0xf]
  %v395 = vld [vmem:[%s1 + $0x858] sm:$0xff]
  %v396 = vld [vmem:[%s1 + $0x860] sm:$0xf]
  %v397 = vld [vmem:[%s1 + $0x864] sm:$0xff]
  %v398 = vld [vmem:[%s1 + $0x86c] sm:$0xf]
  %v399 = vld [vmem:[%s1 + $0x870] sm:$0xff]
  %v400 = vld [vmem:[%s1 + $0x878] sm:$0xf]
  %v401 = vld [vmem:[%s1 + $0x87c] sm:$0xff]
  %v402 = vld [vmem:[%s1 + $0x884] sm:$0xf]
  %v403 = vld [vmem:[%s1 + $0x888] sm:$0xff]
  %v404 = vld [vmem:[%s1 + $0x890] sm:$0xf]
  %v405 = vld [vmem:[%s1 + $0x894] sm:$0xff]
  %v406 = vld [vmem:[%s1 + $0x89c] sm:$0xf]
  %v407 = vld [vmem:[%s1 + $0x8a0] sm:$0xff]
  %v408 = vld [vmem:[%s1 + $0x8a8] sm:$0xf]
  %v409 = vld [vmem:[%s1 + $0x8ac] sm:$0xff]
  %v410 = vld [vmem:[%s1 + $0x8b4] sm:$0xf]
  %v411 = vld [vmem:[%s1 + $0x8b8] sm:$0xff]
  %v412 = vld [vmem:[%s1 + $0x8c0] sm:$0xf]
  %v413 = vld [vmem:[%s1 + $0x8c4] sm:$0xff]
  %v414 = vld [vmem:[%s1 + $0x8cc] sm:$0xf]
  %v415 = vld [vmem:[%s1 + $0x8d0] sm:$0xff]
  %v416 = vld [vmem:[%s1 + $0x8d8] sm:$0xf]
  %v417 = vld [vmem:[%s1 + $0x8dc] sm:$0xff]
  %v418 = vld [vmem:[%s1 + $0x8e4] sm:$0xf]
  %v419 = vld [vmem:[%s1 + $0x8e8] sm:$0xff]
  %v420 = vld [vmem:[%s1 + $0x8f0] sm:$0xf]
  %v421 = vld [vmem:[%s1 + $0x8f4] sm:$0xff]
  %v422 = vld [vmem:[%s1 + $0x8fc] sm:$0xf]
  %v423 = vld [vmem:[%s1 + $0x900] sm:$0xff]
  %v424 = vld [vmem:[%s1 + $0x908] sm:$0xf]
  %v425 = vld [vmem:[%s1 + $0x90c] sm:$0xff]
  %v426 = vld [vmem:[%s1 + $0x914] sm:$0xf]
  %v427 = vld [vmem:[%s1 + $0x918] sm:$0xff]
  %v428 = vld [vmem:[%s1 + $0x920] sm:$0xf]
  %v429 = vld [vmem:[%s1 + $0x924] sm:$0xff]
  %v430 = vld [vmem:[%s1 + $0x92c] sm:$0xf]
  %v431 = vld [vmem:[%s1 + $0x930] sm:$0xff]
  %v432 = vld [vmem:[%s1 + $0x938] sm:$0xf]
  %v433 = vld [vmem:[%s1 + $0x93c] sm:$0xff]
  %v434 = vld [vmem:[%s1 + $0x944] sm:$0xf]
  %v435 = vld [vmem:[%s1 + $0x948] sm:$0xff]
  %v436 = vld [vmem:[%s1 + $0x950] sm:$0xf]
  %v437 = vld [vmem:[%s1 + $0x954] sm:$0xff]
  %v438 = vld [vmem:[%s1 + $0x95c] sm:$0xf]
  %v439 = vld [vmem:[%s1 + $0x960] sm:$0xff]
  %v440 = vld [vmem:[%s1 + $0x968] sm:$0xf]
  %v441 = vld [vmem:[%s1 + $0x96c] sm:$0xff]
  %v442 = vld [vmem:[%s1 + $0x974] sm:$0xf]
  %v443 = vld [vmem:[%s1 + $0x978] sm:$0xff]
  %v444 = vld [vmem:[%s1 + $0x980] sm:$0xf]
  %v445 = vld [vmem:[%s1 + $0x984] sm:$0xff]
  %v446 = vld [vmem:[%s1 + $0x98c] sm:$0xf]
  %v447 = vld [vmem:[%s1 + $0x990] sm:$0xff]
  %v448 = vld [vmem:[%s1 + $0x998] sm:$0xf]
  %v449 = vld [vmem:[%s1 + $0x99c] sm:$0xff]
  %v450 = vld [vmem:[%s1 + $0x9a4] sm:$0xf]
  %v451 = vld [vmem:[%s1 + $0x9a8] sm:$0xff]
  %v452 = vld [vmem:[%s1 + $0x9b0] sm:$0xf]
  %v453 = vld [vmem:[%s1 + $0x9b4] sm:$0xff]
  %v454 = vld [vmem:[%s1 + $0x9bc] sm:$0xf]
  %v455 = vld [vmem:[%s1 + $0x9c0] sm:$0xff]
  %v456 = vld [vmem:[%s1 + $0x9c8] sm:$0xf]
  %v457 = vld [vmem:[%s1 + $0x9cc] sm:$0xff]
  %v458 = vld [vmem:[%s1 + $0x9d4] sm:$0xf]
  %v459 = vld [vmem:[%s1 + $0x9d8] sm:$0xff]
  %v460 = vld [vmem:[%s1 + $0x9e0] sm:$0xf]
  %v461 = vld [vmem:[%s1 + $0x9e4] sm:$0xff]
  %v462 = vld [vmem:[%s1 + $0x9ec] sm:$0xf]
  %v463 = vld [vmem:[%s1 + $0x9f0] sm:$0xff]
  %v464 = vld [vmem:[%s1 + $0x9f8] sm:$0xf]
  %v465 = vld [vmem:[%s1 + $0x9fc] sm:$0xff]
  %v466 = vld [vmem:[%s1 + $0xa04] sm:$0xf]
  %v467 = vld [vmem:[%s1 + $0xa08] sm:$0xff]
  %v468 = vld [vmem:[%s1 + $0xa10] sm:$0xf]
  %v469 = vld [vmem:[%s1 + $0xa14] sm:$0xff]
  %v470 = vld [vmem:[%s1 + $0xa1c] sm:$0xf]
  %v471 = vld [vmem:[%s1 + $0xa20] sm:$0xff]
  %v472 = vld [vmem:[%s1 + $0xa28] sm:$0xf]
  %v473 = vld [vmem:[%s1 + $0xa2c] sm:$0xff]
  %v474 = vld [vmem:[%s1 + $0xa34] sm:$0xf]
  %v475 = vld [vmem:[%s1 + $0xa38] sm:$0xff]
  %v476 = vld [vmem:[%s1 + $0xa40] sm:$0xf]
  %v477 = vld [vmem:[%s1 + $0xa44] sm:$0xff]
  %v478 = vld [vmem:[%s1 + $0xa4c] sm:$0xf]
  %v479 = vld [vmem:[%s1 + $0xa50] sm:$0xff]
  %v480 = vld [vmem:[%s1 + $0xa58] sm:$0xf]
  %v481 = vld [vmem:[%s1 + $0xa5c] sm:$0xff]
  %v482 = vld [vmem:[%s1 + $0xa64] sm:$0xf]
  %v483 = vld [vmem:[%s1 + $0xa68] sm:$0xff]
  %v484 = vld [vmem:[%s1 + $0xa70] sm:$0xf]
  %v485 = vld [vmem:[%s1 + $0xa74] sm:$0xff]
  %v486 = vld [vmem:[%s1 + $0xa7c] sm:$0xf]
  %v487 = vld [vmem:[%s1 + $0xa80] sm:$0xff]
  %v488 = vld [vmem:[%s1 + $0xa88] sm:$0xf]
  %v489 = vld [vmem:[%s1 + $0xa8c] sm:$0xff]
  %v490 = vld [vmem:[%s1 + $0xa94] sm:$0xf]
  %v491 = vld [vmem:[%s1 + $0xa98] sm:$0xff]
  %v492 = vld [vmem:[%s1 + $0xaa0] sm:$0xf]
  %v493 = vld [vmem:[%s1 + $0xaa4] sm:$0xff]
  %v494 = vld [vmem:[%s1 + $0xaac] sm:$0xf]
  %v495 = vld [vmem:[%s1 + $0xab0] sm:$0xff]
  %v496 = vld [vmem:[%s1 + $0xab8] sm:$0xf]
  %v497 = vld [vmem:[%s1 + $0xabc] sm:$0xff]
  %v498 = vld [vmem:[%s1 + $0xac4] sm:$0xf]
  %v499 = vld [vmem:[%s1 + $0xac8] sm:$0xff]
  %v500 = vld [vmem:[%s1 + $0xad0] sm:$0xf]
  %v501 = vld [vmem:[%s1 + $0xad4] sm:$0xff]
  %v502 = vld [vmem:[%s1 + $0xadc] sm:$0xf]
  %v503 = vld [vmem:[%s1 + $0xae0] sm:$0xff]
  %v504 = vld [vmem:[%s1 + $0xae8] sm:$0xf]
  %v505 = vld [vmem:[%s1 + $0xaec] sm:$0xff]
  %v506 = vld [vmem:[%s1 + $0xaf4] sm:$0xf]
  %v507 = vld [vmem:[%s1 + $0xaf8] sm:$0xff]
  %v508 = vld [vmem:[%s1 + $0xb00] sm:$0xf]
  %v509 = vld [vmem:[%s1 + $0xb04] sm:$0xff]
  %v510 = vld [vmem:[%s1 + $0xb0c] sm:$0xf]
  %v511 = vld [vmem:[%s1 + $0xb10] sm:$0xff]
  %v512 = vld [vmem:[%s1 + $0xb18] sm:$0xf]
  %v513 = vld [vmem:[%s1 + $0xb1c] sm:$0xff]
  %v514 = vld [vmem:[%s1 + $0xb24] sm:$0xf]
  %v515 = vld [vmem:[%s1 + $0xb28] sm:$0xff]
  %v516 = vld [vmem:[%s1 + $0xb30] sm:$0xf]
  %v517 = vld [vmem:[%s1 + $0xb34] sm:$0xff]
  %v518 = vld [vmem:[%s1 + $0xb3c] sm:$0xf]
  %v519 = vld [vmem:[%s1 + $0xb40] sm:$0xff]
  %v520 = vld [vmem:[%s1 + $0xb48] sm:$0xf]
  %v521 = vld [vmem:[%s1 + $0xb4c] sm:$0xff]
  %v522 = vld [vmem:[%s1 + $0xb54] sm:$0xf]
  %v523 = vld [vmem:[%s1 + $0xb58] sm:$0xff]
  %v524 = vld [vmem:[%s1 + $0xb60] sm:$0xf]
  %v525 = vld [vmem:[%s1 + $0xb64] sm:$0xff]
  %v526 = vld [vmem:[%s1 + $0xb6c] sm:$0xf]
  %v527 = vld [vmem:[%s1 + $0xb70] sm:$0xff]
  %v528 = vld [vmem:[%s1 + $0xb78] sm:$0xf]
  %v529 = vld [vmem:[%s1 + $0xb7c] sm:$0xff]
  %v530 = vld [vmem:[%s1 + $0xb84] sm:$0xf]
  %v531 = vld [vmem:[%s1 + $0xb88] sm:$0xff]
  %v532 = vld [vmem:[%s1 + $0xb90] sm:$0xf]
  %v533 = vld [vmem:[%s1 + $0xb94] sm:$0xff]
  %v534 = vld [vmem:[%s1 + $0xb9c] sm:$0xf]
  %v535 = vld [vmem:[%s1 + $0xba0] sm:$0xff]
  %v536 = vld [vmem:[%s1 + $0xba8] sm:$0xf]
  %v537 = vld [vmem:[%s1 + $0xbac] sm:$0xff]
  %v538 = vld [vmem:[%s1 + $0xbb4] sm:$0xf]
  %v539 = vld [vmem:[%s1 + $0xbb8] sm:$0xff]
  %v540 = vld [vmem:[%s1 + $0xbc0] sm:$0xf]
  %v541 = vld [vmem:[%s1 + $0xbc4] sm:$0xff]
  %v542 = vld [vmem:[%s1 + $0xbcc] sm:$0xf]
  %v543 = vld [vmem:[%s1 + $0xbd0] sm:$0xff]
  %v544 = vld [vmem:[%s1 + $0xbd8] sm:$0xf]
  %v545 = vld [vmem:[%s1 + $0xbdc] sm:$0xff]
  %v546 = vld [vmem:[%s1 + $0xbe4] sm:$0xf]
  %v547 = vld [vmem:[%s1 + $0xbe8] sm:$0xff]
  %v548 = vld [vmem:[%s1 + $0xbf0] sm:$0xf]
  %v549 = vld [vmem:[%s1 + $0xbf4] sm:$0xff]
  %v550 = vld [vmem:[%s1 + $0xbfc] sm:$0xf]
  %v551 = vld [vmem:[%s1 + $0xc00] sm:$0xff]
  %v552 = vld [vmem:[%s1 + $0xc08] sm:$0xf]
  %v553 = vld [vmem:[%s1 + $0xc0c] sm:$0xff]
  %v554 = vld [vmem:[%s1 + $0xc14] sm:$0xf]
  %v555 = vld [vmem:[%s1 + $0xc18] sm:$0xff]
  %v556 = vld [vmem:[%s1 + $0xc20] sm:$0xf]
  %v557 = vld [vmem:[%s1 + $0xc24] sm:$0xff]
  %v558 = vld [vmem:[%s1 + $0xc2c] sm:$0xf]
  %v559 = vld [vmem:[%s1 + $0xc30] sm:$0xff]
  %v560 = vld [vmem:[%s1 + $0xc38] sm:$0xf]
  %v561 = vld [vmem:[%s1 + $0xc3c] sm:$0xff]
  %v562 = vld [vmem:[%s1 + $0xc44] sm:$0xf]
  %v563 = vld [vmem:[%s1 + $0xc48] sm:$0xff]
  %v564 = vld [vmem:[%s1 + $0xc50] sm:$0xf]
  %v565 = vld [vmem:[%s1 + $0xc54] sm:$0xff]
  %v566 = vld [vmem:[%s1 + $0xc5c] sm:$0xf]
  %v567 = vld [vmem:[%s1 + $0xc60] sm:$0xff]
  %v568 = vld [vmem:[%s1 + $0xc68] sm:$0xf]
  %v569 = vld [vmem:[%s1 + $0xc6c] sm:$0xff]
  %v570 = vld [vmem:[%s1 + $0xc74] sm:$0xf]
  %v571 = vld [vmem:[%s1 + $0xc78] sm:$0xff]
  %v572 = vld [vmem:[%s1 + $0xc80] sm:$0xf]
  %v573 = vld [vmem:[%s1 + $0xc84] sm:$0xff]
  %v574 = vld [vmem:[%s1 + $0xc8c] sm:$0xf]
  %v575 = vld [vmem:[%s1 + $0xc90] sm:$0xff]
  %v576 = vld [vmem:[%s1 + $0xc98] sm:$0xf]
  %v577 = vld [vmem:[%s1 + $0xc9c] sm:$0xff]
  %v578 = vld [vmem:[%s1 + $0xca4] sm:$0xf]
  %v579 = vld [vmem:[%s1 + $0xca8] sm:$0xff]
  %v580 = vld [vmem:[%s1 + $0xcb0] sm:$0xf]
  %v581 = vld [vmem:[%s1 + $0xcb4] sm:$0xff]
  %v582 = vld [vmem:[%s1 + $0xcbc] sm:$0xf]
  %v583 = vld [vmem:[%s1 + $0xcc0] sm:$0xff]
  %v584 = vld [vmem:[%s1 + $0xcc8] sm:$0xf]
  %v585 = vld [vmem:[%s1 + $0xccc] sm:$0xff]
  %v586 = vld [vmem:[%s1 + $0xcd4] sm:$0xf]
  %v587 = vld [vmem:[%s1 + $0xcd8] sm:$0xff]
  %v588 = vld [vmem:[%s1 + $0xce0] sm:$0xf]
  %v589 = vld [vmem:[%s1 + $0xce4] sm:$0xff]
  %v590 = vld [vmem:[%s1 + $0xcec] sm:$0xf]
  %v591 = vld [vmem:[%s1 + $0xcf0] sm:$0xff]
  %v592 = vld [vmem:[%s1 + $0xcf8] sm:$0xf]
  %v593 = vld [vmem:[%s1 + $0xcfc] sm:$0xff]
  %v594 = vld [vmem:[%s1 + $0xd04] sm:$0xf]
  %v595 = vld [vmem:[%s1 + $0xd08] sm:$0xff]
  %v596 = vld [vmem:[%s1 + $0xd10] sm:$0xf]
  %v597 = vld [vmem:[%s1 + $0xd14] sm:$0xff]
  %v598 = vld [vmem:[%s1 + $0xd1c] sm:$0xf]
  %v599 = vld [vmem:[%s1 + $0xd20] sm:$0xff]
  %v600 = vld [vmem:[%s1 + $0xd28] sm:$0xf]
  %v601 = vld [vmem:[%s1 + $0xd2c] sm:$0xff]
  %v602 = vld [vmem:[%s1 + $0xd34] sm:$0xf]
  %v603 = vld [vmem:[%s1 + $0xd38] sm:$0xff]
  %v604 = vld [vmem:[%s1 + $0xd40] sm:$0xf]
  %v605 = vld [vmem:[%s1 + $0xd44] sm:$0xff]
  %v606 = vld [vmem:[%s1 + $0xd4c] sm:$0xf]
  %v607 = vld [vmem:[%s1 + $0xd50] sm:$0xff]
  %v608 = vld [vmem:[%s1 + $0xd58] sm:$0xf]
  %v609 = vld [vmem:[%s1 + $0xd5c] sm:$0xff]
  %v610 = vld [vmem:[%s1 + $0xd64] sm:$0xf]
  %v611 = vld [vmem:[%s1 + $0xd68] sm:$0xff]
  %v612 = vld [vmem:[%s1 + $0xd70] sm:$0xf]
  %v613 = vld [vmem:[%s1 + $0xd74] sm:$0xff]
  %v614 = vld [vmem:[%s1 + $0xd7c] sm:$0xf]
  %v615 = vld [vmem:[%s1 + $0xd80] sm:$0xff]
  %v616 = vld [vmem:[%s1 + $0xd88] sm:$0xf]
  %v617 = vld [vmem:[%s1 + $0xd8c] sm:$0xff]
  %v618 = vld [vmem:[%s1 + $0xd94] sm:$0xf]
  %v619 = vld [vmem:[%s1 + $0xd98] sm:$0xff]
  %v620 = vld [vmem:[%s1 + $0xda0] sm:$0xf]
  %v621 = vld [vmem:[%s1 + $0xda4] sm:$0xff]
  %v622 = vld [vmem:[%s1 + $0xdac] sm:$0xf]
  %v623 = vld [vmem:[%s1 + $0xdb0] sm:$0xff]
  %v624 = vld [vmem:[%s1 + $0xdb8] sm:$0xf]
  %v625 = vld [vmem:[%s1 + $0xdbc] sm:$0xff]
  %v626 = vld [vmem:[%s1 + $0xdc4] sm:$0xf]
  %v627 = vld [vmem:[%s1 + $0xdc8] sm:$0xff]
  %v628 = vld [vmem:[%s1 + $0xdd0] sm:$0xf]
  %v629 = vld [vmem:[%s1 + $0xdd4] sm:$0xff]
  %v630 = vld [vmem:[%s1 + $0xddc] sm:$0xf]
  %v631 = vld [vmem:[%s1 + $0xde0] sm:$0xff]
  %v632 = vld [vmem:[%s1 + $0xde8] sm:$0xf]
  %v633 = vld [vmem:[%s1 + $0xdec] sm:$0xff]
  %v634 = vld [vmem:[%s1 + $0xdf4] sm:$0xf]
  %v635 = vld [vmem:[%s1 + $0xdf8] sm:$0xff]
  %v636 = vld [vmem:[%s1 + $0xe00] sm:$0xf]
  %v637 = vld [vmem:[%s1 + $0xe04] sm:$0xff]
  %v638 = vld [vmem:[%s1 + $0xe0c] sm:$0xf]
  %v639 = vld [vmem:[%s1 + $0xe10] sm:$0xff]
  %v640 = vld [vmem:[%s1 + $0xe18] sm:$0xf]
  %v641 = vld [vmem:[%s1 + $0xe1c] sm:$0xff]
  %v642 = vld [vmem:[%s1 + $0xe24] sm:$0xf]
  %v643 = vld [vmem:[%s1 + $0xe28] sm:$0xff]
  %v644 = vld [vmem:[%s1 + $0xe30] sm:$0xf]
  %v645 = vld [vmem:[%s1 + $0xe34] sm:$0xff]
  %v646 = vld [vmem:[%s1 + $0xe3c] sm:$0xf]
  %v647 = vld [vmem:[%s1 + $0xe40] sm:$0xff]
  %v648 = vld [vmem:[%s1 + $0xe48] sm:$0xf]
  %v649 = vld [vmem:[%s1 + $0xe4c] sm:$0xff]
  %v650 = vld [vmem:[%s1 + $0xe54] sm:$0xf]
  %v651 = vld [vmem:[%s1 + $0xe58] sm:$0xff]
  %v652 = vld [vmem:[%s1 + $0xe60] sm:$0xf]
  %v653 = vld [vmem:[%s1 + $0xe64] sm:$0xff]
  %v654 = vld [vmem:[%s1 + $0xe6c] sm:$0xf]
  %v655 = vld [vmem:[%s1 + $0xe70] sm:$0xff]
  %v656 = vld [vmem:[%s1 + $0xe78] sm:$0xf]
  %v657 = vld [vmem:[%s1 + $0xe7c] sm:$0xff]
  %v658 = vld [vmem:[%s1 + $0xe84] sm:$0xf]
  %v659 = vld [vmem:[%s1 + $0xe88] sm:$0xff]
  %v660 = vld [vmem:[%s1 + $0xe90] sm:$0xf]
  %v661 = vld [vmem:[%s1 + $0xe94] sm:$0xff]
  %v662 = vld [vmem:[%s1 + $0xe9c] sm:$0xf]
  %v663 = vld [vmem:[%s1 + $0xea0] sm:$0xff]
  %v664 = vld [vmem:[%s1 + $0xea8] sm:$0xf]
  %v665 = vld [vmem:[%s1 + $0xeac] sm:$0xff]
  %v666 = vld [vmem:[%s1 + $0xeb4] sm:$0xf]
  %v667 = vld [vmem:[%s1 + $0xeb8] sm:$0xff]
  %v668 = vld [vmem:[%s1 + $0xec0] sm:$0xf]
  %v669 = vld [vmem:[%s1 + $0xec4] sm:$0xff]
  %v670 = vld [vmem:[%s1 + $0xecc] sm:$0xf]
  %v671 = vld [vmem:[%s1 + $0xed0] sm:$0xff]
  %v672 = vld [vmem:[%s1 + $0xed8] sm:$0xf]
  %v673 = vld [vmem:[%s1 + $0xedc] sm:$0xff]
  %v674 = vld [vmem:[%s1 + $0xee4] sm:$0xf]
  %v675 = vld [vmem:[%s1 + $0xee8] sm:$0xff]
  %v676 = vld [vmem:[%s1 + $0xef0] sm:$0xf]
  %v677 = vld [vmem:[%s1 + $0xef4] sm:$0xff]
  %v678 = vld [vmem:[%s1 + $0xefc] sm:$0xf]
  %v679 = vld [vmem:[%s1 + $0xf00] sm:$0xff]
  %v680 = vld [vmem:[%s1 + $0xf08] sm:$0xf]
  %v681 = vld [vmem:[%s1 + $0xf0c] sm:$0xff]
  %v682 = vld [vmem:[%s1 + $0xf14] sm:$0xf]
  %v683 = vld [vmem:[%s1 + $0xf18] sm:$0xff]
  %v684 = vld [vmem:[%s1 + $0xf20] sm:$0xf]
  %v685 = vld [vmem:[%s1 + $0xf24] sm:$0xff]
  %v686 = vld [vmem:[%s1 + $0xf2c] sm:$0xf]
  %v687 = vld [vmem:[%s1 + $0xf30] sm:$0xff]
  %v688 = vld [vmem:[%s1 + $0xf38] sm:$0xf]
  %v689 = vld [vmem:[%s1 + $0xf3c] sm:$0xff]
  %v690 = vld [vmem:[%s1 + $0xf44] sm:$0xf]
  %v691 = vld [vmem:[%s1 + $0xf48] sm:$0xff]
  %v692 = vld [vmem:[%s1 + $0xf50] sm:$0xf]
  %v693 = vld [vmem:[%s1 + $0xf54] sm:$0xff]
  %v694 = vld [vmem:[%s1 + $0xf5c] sm:$0xf]
  %v695 = vld [vmem:[%s1 + $0xf60] sm:$0xff]
  %v696 = vld [vmem:[%s1 + $0xf68] sm:$0xf]
  %v697 = vld [vmem:[%s1 + $0xf6c] sm:$0xff]
  %v698 = vld [vmem:[%s1 + $0xf74] sm:$0xf]
  %v699 = vld [vmem:[%s1 + $0xf78] sm:$0xff]
  %v700 = vld [vmem:[%s1 + $0xf80] sm:$0xf]
  %v701 = vld [vmem:[%s1 + $0xf84] sm:$0xff]
  %v702 = vld [vmem:[%s1 + $0xf8c] sm:$0xf]
  %v703 = vld [vmem:[%s1 + $0xf90] sm:$0xff]
  %v704 = vld [vmem:[%s1 + $0xf98] sm:$0xf]
  %v705 = vld [vmem:[%s1 + $0xf9c] sm:$0xff]
  %v706 = vld [vmem:[%s1 + $0xfa4] sm:$0xf]
  %v707 = vld [vmem:[%s1 + $0xfa8] sm:$0xff]
  %v708 = vld [vmem:[%s1 + $0xfb0] sm:$0xf]
  %v709 = vld [vmem:[%s1 + $0xfb4] sm:$0xff]
  %v710 = vld [vmem:[%s1 + $0xfbc] sm:$0xf]
  %v711 = vld [vmem:[%s1 + $0xfc0] sm:$0xff]
  %v712 = vld [vmem:[%s1 + $0xfc8] sm:$0xf]
  %v713 = vld [vmem:[%s1 + $0xfcc] sm:$0xff]
  %v714 = vld [vmem:[%s1 + $0xfd4] sm:$0xf]
  %v715 = vld [vmem:[%s1 + $0xfd8] sm:$0xff]
  %v716 = vld [vmem:[%s1 + $0xfe0] sm:$0xf]
  %v717 = vld [vmem:[%s1 + $0xfe4] sm:$0xff]
  %v718 = vld [vmem:[%s1 + $0xfec] sm:$0xf]
  %v719 = vld [vmem:[%s1 + $0xff0] sm:$0xff]
  %v720 = vld [vmem:[%s1 + $0xff8] sm:$0xf]
  %v721 = vld [vmem:[%s1 + $0xffc] sm:$0xff]
  %v722 = vld [vmem:[%s1 + $0x1004] sm:$0xf]
  %v723 = vld [vmem:[%s1 + $0x1008] sm:$0xff]
  %v724 = vld [vmem:[%s1 + $0x1010] sm:$0xf]
  %v725 = vld [vmem:[%s1 + $0x1014] sm:$0xff]
  %v726 = vld [vmem:[%s1 + $0x101c] sm:$0xf]
  %v727 = vld [vmem:[%s1 + $0x1020] sm:$0xff]
  %v728 = vld [vmem:[%s1 + $0x1028] sm:$0xf]
  %v729 = vld [vmem:[%s1 + $0x102c] sm:$0xff]
  %v730 = vld [vmem:[%s1 + $0x1034] sm:$0xf]
  %v731 = vld [vmem:[%s1 + $0x1038] sm:$0xff]
  %v732 = vld [vmem:[%s1 + $0x1040] sm:$0xf]
  %v733 = vld [vmem:[%s1 + $0x1044] sm:$0xff]
  %v734 = vld [vmem:[%s1 + $0x104c] sm:$0xf]
  %v735 = vld [vmem:[%s1 + $0x1050] sm:$0xff]
  %v736 = vld [vmem:[%s1 + $0x1058] sm:$0xf]
  %v737 = vld [vmem:[%s1 + $0x105c] sm:$0xff]
  %v738 = vld [vmem:[%s1 + $0x1064] sm:$0xf]
  %v739 = vld [vmem:[%s1 + $0x1068] sm:$0xff]
  %v740 = vld [vmem:[%s1 + $0x1070] sm:$0xf]
  %v741 = vld [vmem:[%s1 + $0x1074] sm:$0xff]
  %v742 = vld [vmem:[%s1 + $0x107c] sm:$0xf]
  %v743 = vld [vmem:[%s1 + $0x1080] sm:$0xff]
  %v744 = vld [vmem:[%s1 + $0x1088] sm:$0xf]
  %v745 = vld [vmem:[%s1 + $0x108c] sm:$0xff]
  %v746 = vld [vmem:[%s1 + $0x1094] sm:$0xf]
  %v747 = vld [vmem:[%s1 + $0x1098] sm:$0xff]
  %v748 = vld [vmem:[%s1 + $0x10a0] sm:$0xf]
  %v749 = vld [vmem:[%s1 + $0x10a4] sm:$0xff]
  %v750 = vld [vmem:[%s1 + $0x10ac] sm:$0xf]
  %v751 = vld [vmem:[%s1 + $0x10b0] sm:$0xff]
  %v752 = vld [vmem:[%s1 + $0x10b8] sm:$0xf]
  %v753 = vld [vmem:[%s1 + $0x10bc] sm:$0xff]
  %v754 = vld [vmem:[%s1 + $0x10c4] sm:$0xf]
  %v755 = vld [vmem:[%s1 + $0x10c8] sm:$0xff]
  %v756 = vld [vmem:[%s1 + $0x10d0] sm:$0xf]
  %v757 = vld [vmem:[%s1 + $0x10d4] sm:$0xff]
  %v758 = vld [vmem:[%s1 + $0x10dc] sm:$0xf]
  %v759 = vld [vmem:[%s1 + $0x10e0] sm:$0xff]
  %v760 = vld [vmem:[%s1 + $0x10e8] sm:$0xf]
  %v761 = vld [vmem:[%s1 + $0x10ec] sm:$0xff]
  %v762 = vld [vmem:[%s1 + $0x10f4] sm:$0xf]
  %v763 = vld [vmem:[%s1 + $0x10f8] sm:$0xff]
  %v764 = vld [vmem:[%s1 + $0x1100] sm:$0xf]
  %v765 = vld [vmem:[%s1 + $0x1104] sm:$0xff]
  %v766 = vld [vmem:[%s1 + $0x110c] sm:$0xf]
  %v767 = vld [vmem:[%s1 + $0x1110] sm:$0xff]
  %v768 = vld [vmem:[%s1 + $0x1118] sm:$0xf]
  %v769 = vld [vmem:[%s1 + $0x111c] sm:$0xff]
  %v770 = vld [vmem:[%s1 + $0x1124] sm:$0xf]
  %v771 = vld [vmem:[%s1 + $0x1128] sm:$0xff]
  %v772 = vld [vmem:[%s1 + $0x1130] sm:$0xf]
  %v773 = vld [vmem:[%s1 + $0x1134] sm:$0xff]
  %v774 = vld [vmem:[%s1 + $0x113c] sm:$0xf]
  %v775 = vld [vmem:[%s1 + $0x1140] sm:$0xff]
  %v776 = vld [vmem:[%s1 + $0x1148] sm:$0xf]
  %v777 = vld [vmem:[%s1 + $0x114c] sm:$0xff]
  %v778 = vld [vmem:[%s1 + $0x1154] sm:$0xf]
  %v779 = vld [vmem:[%s1 + $0x1158] sm:$0xff]
  %v780 = vld [vmem:[%s1 + $0x1160] sm:$0xf]
  %v781 = vld [vmem:[%s1 + $0x1164] sm:$0xff]
  %v782 = vld [vmem:[%s1 + $0x116c] sm:$0xf]
  %v783 = vld [vmem:[%s1 + $0x1170] sm:$0xff]
  %v784 = vld [vmem:[%s1 + $0x1178] sm:$0xf]
  %v785 = vld [vmem:[%s1 + $0x117c] sm:$0xff]
  %v786 = vld [vmem:[%s1 + $0x1184] sm:$0xf]
  %v787 = vld [vmem:[%s1 + $0x1188] sm:$0xff]
  %v788 = vld [vmem:[%s1 + $0x1190] sm:$0xf]
  %v789 = vld [vmem:[%s1 + $0x1194] sm:$0xff]
  %v790 = vld [vmem:[%s1 + $0x119c] sm:$0xf]
  %v791 = vld [vmem:[%s1 + $0x11a0] sm:$0xff]
  %v792 = vld [vmem:[%s1 + $0x11a8] sm:$0xf]
  %v793 = vld [vmem:[%s1 + $0x11ac] sm:$0xff]
  %v794 = vld [vmem:[%s1 + $0x11b4] sm:$0xf]
  %v795 = vld [vmem:[%s1 + $0x11b8] sm:$0xff]
  %v796 = vld [vmem:[%s1 + $0x11c0] sm:$0xf]
  %v797 = vld [vmem:[%s1 + $0x11c4] sm:$0xff]
  %v798 = vld [vmem:[%s1 + $0x11cc] sm:$0xf]
  %v799 = vld [vmem:[%s1 + $0x11d0] sm:$0xff]
  %v800 = vld [vmem:[%s1 + $0x11d8] sm:$0xf]
  %v801 = vld [vmem:[%s1 + $0x11dc] sm:$0xff]
  %v802 = vld [vmem:[%s1 + $0x11e4] sm:$0xf]
  %v803 = vld [vmem:[%s1 + $0x11e8] sm:$0xff]
  %v804 = vld [vmem:[%s1 + $0x11f0] sm:$0xf]
  %v805 = vld [vmem:[%s1 + $0x11f4] sm:$0xff]
  %v806 = vld [vmem:[%s1 + $0x11fc] sm:$0xf]
  %v807 = vld [vmem:[%s1 + $0x1200] sm:$0xff]
  %v808 = vld [vmem:[%s1 + $0x1208] sm:$0xf]
  %v809 = vld [vmem:[%s1 + $0x120c] sm:$0xff]
  %v810 = vld [vmem:[%s1 + $0x1214] sm:$0xf]
  %v811 = vld [vmem:[%s1 + $0x1218] sm:$0xff]
  %v812 = vld [vmem:[%s1 + $0x1220] sm:$0xf]
  %v813 = vld [vmem:[%s1 + $0x1224] sm:$0xff]
  %v814 = vld [vmem:[%s1 + $0x122c] sm:$0xf]
  %v815 = vld [vmem:[%s1 + $0x1230] sm:$0xff]
  %v816 = vld [vmem:[%s1 + $0x1238] sm:$0xf]
  %v817 = vld [vmem:[%s1 + $0x123c] sm:$0xff]
  %v818 = vld [vmem:[%s1 + $0x1244] sm:$0xf]
  %v819 = vld [vmem:[%s1 + $0x1248] sm:$0xff]
  %v820 = vld [vmem:[%s1 + $0x1250] sm:$0xf]
  %v821 = vld [vmem:[%s1 + $0x1254] sm:$0xff]
  %v822 = vld [vmem:[%s1 + $0x125c] sm:$0xf]
  %v823 = vld [vmem:[%s1 + $0x1260] sm:$0xff]
  %v824 = vld [vmem:[%s1 + $0x1268] sm:$0xf]
  %v825 = vld [vmem:[%s1 + $0x126c] sm:$0xff]
  %v826 = vld [vmem:[%s1 + $0x1274] sm:$0xf]
  %v827 = vld [vmem:[%s1 + $0x1278] sm:$0xff]
  %v828 = vld [vmem:[%s1 + $0x1280] sm:$0xf]
  %v829 = vld [vmem:[%s1 + $0x1284] sm:$0xff]
  %v830 = vld [vmem:[%s1 + $0x128c] sm:$0xf]
  %v831 = vld [vmem:[%s1 + $0x1290] sm:$0xff]
  %v832 = vld [vmem:[%s1 + $0x1298] sm:$0xf]
  %v833 = vld [vmem:[%s1 + $0x129c] sm:$0xff]
  %v834 = vld [vmem:[%s1 + $0x12a4] sm:$0xf]
  %v835 = vld [vmem:[%s1 + $0x12a8] sm:$0xff]
  %v836 = vld [vmem:[%s1 + $0x12b0] sm:$0xf]
  %v837 = vld [vmem:[%s1 + $0x12b4] sm:$0xff]
  %v838 = vld [vmem:[%s1 + $0x12bc] sm:$0xf]
  %840 = vst [vmem:[#allocation1] ss:$9 sm:$0xff] %v35
  %v841 = vld [vmem:[#allocation1] sm:$0xff]
  %v842 = vld [vmem:[#allocation1 + $0x9] sm:$0xff]
  %v843 = vld [vmem:[#allocation1 + $0x12] sm:$0xff]
  %v844 = vld [vmem:[#allocation1 + $0x1b] sm:$0xff]
  %v845 = vld [vmem:[#allocation1 + $0x24] sm:$0xff]
  %v846 = vld [vmem:[#allocation1 + $0x2d] sm:$0xff]
  %v847 = vld [vmem:[#allocation1 + $0x36] sm:$0xff]
  %v848 = vld [vmem:[#allocation1 + $0x3f] sm:$0xff]
  %850 = vst [vmem:[#allocation1] ss:$9 sm:$0xff] %v36
  %v851 = vld [vmem:[#allocation1] sm:$0xff]
  %v852 = vld [vmem:[#allocation1 + $0x9] sm:$0xff]
  %v853 = vld [vmem:[#allocation1 + $0x12] sm:$0xff]
  %v854 = vld [vmem:[#allocation1 + $0x1b] sm:$0xff]
  %v855 = vld [vmem:[#allocation1 + $0x24] sm:$0xff]
  %v856 = vld [vmem:[#allocation1 + $0x2d] sm:$0xff]
  %v857 = vld [vmem:[#allocation1 + $0x36] sm:$0xff]
  %v858 = vld [vmem:[#allocation1 + $0x3f] sm:$0xff]
  %860 = vst [vmem:[#allocation1] ss:$9 sm:$0xff] %v37
  %v861 = vld [vmem:[#allocation1] sm:$0xff]
  %v862 = vld [vmem:[#allocation1 + $0x9] sm:$0xff]
  %v863 = vld [vmem:[#allocation1 + $0x12] sm:$0xff]
  %v864 = vld [vmem:[#allocation1 + $0x1b] sm:$0xff]
  %v865 = vld [vmem:[#allocation1 + $0x24] sm:$0xff]
  %v866 = vld [vmem:[#allocation1 + $0x2d] sm:$0xff]
  %v867 = vld [vmem:[#allocation1 + $0x36] sm:$0xff]
  %v868 = vld [vmem:[#allocation1 + $0x3f] sm:$0xff]
  %870 = vst [vmem:[#allocation1] ss:$9 sm:$0xff] %v38
  %v871 = vld [vmem:[#allocation1] sm:$0xff]
  %v1697 = vunpack.c.l.b16 %v39
  %v1698 = vunpack.c.h.b16 %v39
  %v1699 = vunpack.c.l.b16 %v40
  %v1700 = vunpack.c.l.b16 %v41
  %v1701 = vunpack.c.h.b16 %v41
  %v1702 = vunpack.c.l.b16 %v42
  %v1703 = vunpack.c.l.b16 %v43
  %v1704 = vunpack.c.h.b16 %v43
  %v1705 = vunpack.c.l.b16 %v44
  %v1706 = vunpack.c.l.b16 %v45
  %v1707 = vunpack.c.h.b16 %v45
  %v1708 = vunpack.c.l.b16 %v46
  %v1709 = vunpack.c.l.b16 %v47
  %v1710 = vunpack.c.h.b16 %v47
  %v1711 = vunpack.c.l.b16 %v48
  %v1712 = vunpack.c.l.b16 %v49
  %v1713 = vunpack.c.h.b16 %v49
  %v1714 = vunpack.c.l.b16 %v50
  %v1715 = vunpack.c.l.b16 %v51
  %v1716 = vunpack.c.h.b16 %v51
  %v1717 = vunpack.c.l.b16 %v52
  %v1718 = vunpack.c.l.b16 %v53
  %v1719 = vunpack.c.h.b16 %v53
  %v1720 = vunpack.c.l.b16 %v54
  %v1721 = vunpack.c.l.b16 %v55
  %v1722 = vunpack.c.h.b16 %v55
  %v1723 = vunpack.c.l.b16 %v56
  %v1724 = vunpack.c.l.b16 %v57
  %v1725 = vunpack.c.h.b16 %v57
  %v1726 = vunpack.c.l.b16 %v58
  %v1727 = vunpack.c.l.b16 %v59
  %v1728 = vunpack.c.h.b16 %v59
  %v1729 = vunpack.c.l.b16 %v60
  %v1730 = vunpack.c.l.b16 %v61
  %v1731 = vunpack.c.h.b16 %v61
  %v1732 = vunpack.c.l.b16 %v62
  %v1733 = vunpack.c.l.b16 %v63
  %v1734 = vunpack.c.h.b16 %v63
  %v1735 = vunpack.c.l.b16 %v64
  %v1736 = vunpack.c.l.b16 %v65
  %v1737 = vunpack.c.h.b16 %v65
  %v1738 = vunpack.c.l.b16 %v66
  %v1739 = vunpack.c.l.b16 %v67
  %v1740 = vunpack.c.h.b16 %v67
  %v1741 = vunpack.c.l.b16 %v68
  %v1742 = vunpack.c.l.b16 %v69
  %v1743 = vunpack.c.h.b16 %v69
  %v1744 = vunpack.c.l.b16 %v70
  %v1745 = vunpack.c.l.b16 %v71
  %v1746 = vunpack.c.h.b16 %v71
  %v1747 = vunpack.c.l.b16 %v72
  %v1748 = vunpack.c.l.b16 %v73
  %v1749 = vunpack.c.h.b16 %v73
  %v1750 = vunpack.c.l.b16 %v74
  %v1751 = vunpack.c.l.b16 %v75
  %v1752 = vunpack.c.h.b16 %v75
  %v1753 = vunpack.c.l.b16 %v76
  %v1754 = vunpack.c.l.b16 %v77
  %v1755 = vunpack.c.h.b16 %v77
  %v1756 = vunpack.c.l.b16 %v78
  %v1757 = vunpack.c.l.b16 %v79
  %v1758 = vunpack.c.h.b16 %v79
  %v1759 = vunpack.c.l.b16 %v80
  %v1760 = vunpack.c.l.b16 %v81
  %v1761 = vunpack.c.h.b16 %v81
  %v1762 = vunpack.c.l.b16 %v82
  %v1763 = vunpack.c.l.b16 %v83
  %v1764 = vunpack.c.h.b16 %v83
  %v1765 = vunpack.c.l.b16 %v84
  %v1766 = vunpack.c.l.b16 %v85
  %v1767 = vunpack.c.h.b16 %v85
  %v1768 = vunpack.c.l.b16 %v86
  %v1769 = vunpack.c.l.b16 %v87
  %v1770 = vunpack.c.h.b16 %v87
  %v1771 = vunpack.c.l.b16 %v88
  %v1772 = vunpack.c.l.b16 %v89
  %v1773 = vunpack.c.h.b16 %v89
  %v1774 = vunpack.c.l.b16 %v90
  %v1775 = vunpack.c.l.b16 %v91
  %v1776 = vunpack.c.h.b16 %v91
  %v1777 = vunpack.c.l.b16 %v92
  %v1778 = vunpack.c.l.b16 %v93
  %v1779 = vunpack.c.h.b16 %v93
  %v1780 = vunpack.c.l.b16 %v94
  %v1781 = vunpack.c.l.b16 %v95
  %v1782 = vunpack.c.h.b16 %v95
  %v1783 = vunpack.c.l.b16 %v96
  %v1784 = vunpack.c.l.b16 %v97
  %v1785 = vunpack.c.h.b16 %v97
  %v1786 = vunpack.c.l.b16 %v98
  %v1787 = vunpack.c.l.b16 %v99
  %v1788 = vunpack.c.h.b16 %v99
  %v1789 = vunpack.c.l.b16 %v100
  %v1790 = vunpack.c.l.b16 %v101
  %v1791 = vunpack.c.h.b16 %v101
  %v1792 = vunpack.c.l.b16 %v102
  %v1793 = vunpack.c.l.b16 %v103
  %v1794 = vunpack.c.h.b16 %v103
  %v1795 = vunpack.c.l.b16 %v104
  %v1796 = vunpack.c.l.b16 %v105
  %v1797 = vunpack.c.h.b16 %v105
  %v1798 = vunpack.c.l.b16 %v106
  %v1799 = vunpack.c.l.b16 %v107
  %v1800 = vunpack.c.h.b16 %v107
  %v1801 = vunpack.c.l.b16 %v108
  %v1802 = vunpack.c.l.b16 %v109
  %v1803 = vunpack.c.h.b16 %v109
  %v1804 = vunpack.c.l.b16 %v110
  %v1805 = vunpack.c.l.b16 %v111
  %v1806 = vunpack.c.h.b16 %v111
  %v1807 = vunpack.c.l.b16 %v112
  %v1808 = vunpack.c.l.b16 %v113
  %v1809 = vunpack.c.h.b16 %v113
  %v1810 = vunpack.c.l.b16 %v114
  %v1811 = vunpack.c.l.b16 %v115
  %v1812 = vunpack.c.h.b16 %v115
  %v1813 = vunpack.c.l.b16 %v116
  %v1814 = vunpack.c.l.b16 %v117
  %v1815 = vunpack.c.h.b16 %v117
  %v1816 = vunpack.c.l.b16 %v118
  %v1817 = vunpack.c.l.b16 %v119
  %v1818 = vunpack.c.h.b16 %v119
  %v1819 = vunpack.c.l.b16 %v120
  %v1820 = vunpack.c.l.b16 %v121
  %v1821 = vunpack.c.h.b16 %v121
  %v1822 = vunpack.c.l.b16 %v122
  %v1823 = vunpack.c.l.b16 %v123
  %v1824 = vunpack.c.h.b16 %v123
  %v1825 = vunpack.c.l.b16 %v124
  %v1826 = vunpack.c.l.b16 %v125
  %v1827 = vunpack.c.h.b16 %v125
  %v1828 = vunpack.c.l.b16 %v126
  %v1829 = vunpack.c.l.b16 %v127
  %v1830 = vunpack.c.h.b16 %v127
  %v1831 = vunpack.c.l.b16 %v128
  %v1832 = vunpack.c.l.b16 %v129
  %v1833 = vunpack.c.h.b16 %v129
  %v1834 = vunpack.c.l.b16 %v130
  %v1835 = vunpack.c.l.b16 %v131
  %v1836 = vunpack.c.h.b16 %v131
  %v1837 = vunpack.c.l.b16 %v132
  %v1838 = vunpack.c.l.b16 %v133
  %v1839 = vunpack.c.h.b16 %v133
  %v1840 = vunpack.c.l.b16 %v134
  %v1841 = vunpack.c.l.b16 %v135
  %v1842 = vunpack.c.h.b16 %v135
  %v1843 = vunpack.c.l.b16 %v136
  %v1844 = vunpack.c.l.b16 %v137
  %v1845 = vunpack.c.h.b16 %v137
  %v1846 = vunpack.c.l.b16 %v138
  %v1847 = vunpack.c.l.b16 %v139
  %v1848 = vunpack.c.h.b16 %v139
  %v1849 = vunpack.c.l.b16 %v140
  %v1850 = vunpack.c.l.b16 %v141
  %v1851 = vunpack.c.h.b16 %v141
  %v1852 = vunpack.c.l.b16 %v142
  %v1853 = vunpack.c.l.b16 %v143
  %v1854 = vunpack.c.h.b16 %v143
  %v1855 = vunpack.c.l.b16 %v144
  %v1856 = vunpack.c.l.b16 %v145
  %v1857 = vunpack.c.h.b16 %v145
  %v1858 = vunpack.c.l.b16 %v146
  %v1859 = vunpack.c.l.b16 %v147
  %v1860 = vunpack.c.h.b16 %v147
  %v1861 = vunpack.c.l.b16 %v148
  %v1862 = vunpack.c.l.b16 %v149
  %v1863 = vunpack.c.h.b16 %v149
  %v1864 = vunpack.c.l.b16 %v150
  %v1865 = vunpack.c.l.b16 %v151
  %v1866 = vunpack.c.h.b16 %v151
  %v1867 = vunpack.c.l.b16 %v152
  %v1868 = vunpack.c.l.b16 %v153
  %v1869 = vunpack.c.h.b16 %v153
  %v1870 = vunpack.c.l.b16 %v154
  %v1871 = vunpack.c.l.b16 %v155
  %v1872 = vunpack.c.h.b16 %v155
  %v1873 = vunpack.c.l.b16 %v156
  %v1874 = vunpack.c.l.b16 %v157
  %v1875 = vunpack.c.h.b16 %v157
  %v1876 = vunpack.c.l.b16 %v158
  %v1877 = vunpack.c.l.b16 %v159
  %v1878 = vunpack.c.h.b16 %v159
  %v1879 = vunpack.c.l.b16 %v160
  %v1880 = vunpack.c.l.b16 %v161
  %v1881 = vunpack.c.h.b16 %v161
  %v1882 = vunpack.c.l.b16 %v162
  %v1883 = vunpack.c.l.b16 %v163
  %v1884 = vunpack.c.h.b16 %v163
  %v1885 = vunpack.c.l.b16 %v164
  %v1886 = vunpack.c.l.b16 %v165
  %v1887 = vunpack.c.h.b16 %v165
  %v1888 = vunpack.c.l.b16 %v166
  %v1889 = vunpack.c.l.b16 %v167
  %v1890 = vunpack.c.h.b16 %v167
  %v1891 = vunpack.c.l.b16 %v168
  %v1892 = vunpack.c.l.b16 %v169
  %v1893 = vunpack.c.h.b16 %v169
  %v1894 = vunpack.c.l.b16 %v170
  %v1895 = vunpack.c.l.b16 %v171
  %v1896 = vunpack.c.h.b16 %v171
  %v1897 = vunpack.c.l.b16 %v172
  %v1898 = vunpack.c.l.b16 %v173
  %v1899 = vunpack.c.h.b16 %v173
  %v1900 = vunpack.c.l.b16 %v174
  %v1901 = vunpack.c.l.b16 %v175
  %v1902 = vunpack.c.h.b16 %v175
  %v1903 = vunpack.c.l.b16 %v176
  %v1904 = vunpack.c.l.b16 %v177
  %v1905 = vunpack.c.h.b16 %v177
  %v1906 = vunpack.c.l.b16 %v178
  %v1907 = vunpack.c.l.b16 %v179
  %v1908 = vunpack.c.h.b16 %v179
  %v1909 = vunpack.c.l.b16 %v180
  %v1910 = vunpack.c.l.b16 %v181
  %v1911 = vunpack.c.h.b16 %v181
  %v1912 = vunpack.c.l.b16 %v182
  %v1913 = vunpack.c.l.b16 %v183
  %v1914 = vunpack.c.h.b16 %v183
  %v1915 = vunpack.c.l.b16 %v184
  %v1916 = vunpack.c.l.b16 %v185
  %v1917 = vunpack.c.h.b16 %v185
  %v1918 = vunpack.c.l.b16 %v186
  %v1919 = vunpack.c.l.b16 %v187
  %v1920 = vunpack.c.h.b16 %v187
  %v1921 = vunpack.c.l.b16 %v188
  %v1922 = vunpack.c.l.b16 %v189
  %v1923 = vunpack.c.h.b16 %v189
  %v1924 = vunpack.c.l.b16 %v190
  %v1925 = vunpack.c.l.b16 %v191
  %v1926 = vunpack.c.h.b16 %v191
  %v1927 = vunpack.c.l.b16 %v192
  %v1928 = vunpack.c.l.b16 %v193
  %v1929 = vunpack.c.h.b16 %v193
  %v1930 = vunpack.c.l.b16 %v194
  %v1931 = vunpack.c.l.b16 %v195
  %v1932 = vunpack.c.h.b16 %v195
  %v1933 = vunpack.c.l.b16 %v196
  %v1934 = vunpack.c.l.b16 %v197
  %v1935 = vunpack.c.h.b16 %v197
  %v1936 = vunpack.c.l.b16 %v198
  %v1937 = vunpack.c.l.b16 %v199
  %v1938 = vunpack.c.h.b16 %v199
  %v1939 = vunpack.c.l.b16 %v200
  %v1940 = vunpack.c.l.b16 %v201
  %v1941 = vunpack.c.h.b16 %v201
  %v1942 = vunpack.c.l.b16 %v202
  %v1943 = vunpack.c.l.b16 %v203
  %v1944 = vunpack.c.h.b16 %v203
  %v1945 = vunpack.c.l.b16 %v204
  %v1946 = vunpack.c.l.b16 %v205
  %v1947 = vunpack.c.h.b16 %v205
  %v1948 = vunpack.c.l.b16 %v206
  %v1949 = vunpack.c.l.b16 %v207
  %v1950 = vunpack.c.h.b16 %v207
  %v1951 = vunpack.c.l.b16 %v208
  %v1952 = vunpack.c.l.b16 %v209
  %v1953 = vunpack.c.h.b16 %v209
  %v1954 = vunpack.c.l.b16 %v210
  %v1955 = vunpack.c.l.b16 %v211
  %v1956 = vunpack.c.h.b16 %v211
  %v1957 = vunpack.c.l.b16 %v212
  %v1958 = vunpack.c.l.b16 %v213
  %v1959 = vunpack.c.h.b16 %v213
  %v1960 = vunpack.c.l.b16 %v214
  %v1961 = vunpack.c.l.b16 %v215
  %v1962 = vunpack.c.h.b16 %v215
  %v1963 = vunpack.c.l.b16 %v216
  %v1964 = vunpack.c.l.b16 %v217
  %v1965 = vunpack.c.h.b16 %v217
  %v1966 = vunpack.c.l.b16 %v218
  %v1967 = vunpack.c.l.b16 %v219
  %v1968 = vunpack.c.h.b16 %v219
  %v1969 = vunpack.c.l.b16 %v220
  %v1970 = vunpack.c.l.b16 %v221
  %v1971 = vunpack.c.h.b16 %v221
  %v1972 = vunpack.c.l.b16 %v222
  %v1973 = vunpack.c.l.b16 %v223
  %v1974 = vunpack.c.h.b16 %v223
  %v1975 = vunpack.c.l.b16 %v224
  %v1976 = vunpack.c.l.b16 %v225
  %v1977 = vunpack.c.h.b16 %v225
  %v1978 = vunpack.c.l.b16 %v226
  %v1979 = vunpack.c.l.b16 %v227
  %v1980 = vunpack.c.h.b16 %v227
  %v1981 = vunpack.c.l.b16 %v228
  %v1982 = vunpack.c.l.b16 %v229
  %v1983 = vunpack.c.h.b16 %v229
  %v1984 = vunpack.c.l.b16 %v230
  %v1985 = vunpack.c.l.b16 %v231
  %v1986 = vunpack.c.h.b16 %v231
  %v1987 = vunpack.c.l.b16 %v232
  %v1988 = vunpack.c.l.b16 %v233
  %v1989 = vunpack.c.h.b16 %v233
  %v1990 = vunpack.c.l.b16 %v234
  %v1991 = vunpack.c.l.b16 %v235
  %v1992 = vunpack.c.h.b16 %v235
  %v1993 = vunpack.c.l.b16 %v236
  %v1994 = vunpack.c.l.b16 %v237
  %v1995 = vunpack.c.h.b16 %v237
  %v1996 = vunpack.c.l.b16 %v238
  %v1997 = vunpack.c.l.b16 %v239
  %v1998 = vunpack.c.h.b16 %v239
  %v1999 = vunpack.c.l.b16 %v240
  %v2000 = vunpack.c.l.b16 %v241
  %v2001 = vunpack.c.h.b16 %v241
  %v2002 = vunpack.c.l.b16 %v242
  %v2003 = vunpack.c.l.b16 %v243
  %v2004 = vunpack.c.h.b16 %v243
  %v2005 = vunpack.c.l.b16 %v244
  %v2006 = vunpack.c.l.b16 %v245
  %v2007 = vunpack.c.h.b16 %v245
  %v2008 = vunpack.c.l.b16 %v246
  %v2009 = vunpack.c.l.b16 %v247
  %v2010 = vunpack.c.h.b16 %v247
  %v2011 = vunpack.c.l.b16 %v248
  %v2012 = vunpack.c.l.b16 %v249
  %v2013 = vunpack.c.h.b16 %v249
  %v2014 = vunpack.c.l.b16 %v250
  %v2015 = vunpack.c.l.b16 %v251
  %v2016 = vunpack.c.h.b16 %v251
  %v2017 = vunpack.c.l.b16 %v252
  %v2018 = vunpack.c.l.b16 %v253
  %v2019 = vunpack.c.h.b16 %v253
  %v2020 = vunpack.c.l.b16 %v254
  %v2021 = vunpack.c.l.b16 %v255
  %v2022 = vunpack.c.h.b16 %v255
  %v2023 = vunpack.c.l.b16 %v256
  %v2024 = vunpack.c.l.b16 %v257
  %v2025 = vunpack.c.h.b16 %v257
  %v2026 = vunpack.c.l.b16 %v258
  %v2027 = vunpack.c.l.b16 %v259
  %v2028 = vunpack.c.h.b16 %v259
  %v2029 = vunpack.c.l.b16 %v260
  %v2030 = vunpack.c.l.b16 %v261
  %v2031 = vunpack.c.h.b16 %v261
  %v2032 = vunpack.c.l.b16 %v262
  %v2033 = vunpack.c.l.b16 %v263
  %v2034 = vunpack.c.h.b16 %v263
  %v2035 = vunpack.c.l.b16 %v264
  %v2036 = vunpack.c.l.b16 %v265
  %v2037 = vunpack.c.h.b16 %v265
  %v2038 = vunpack.c.l.b16 %v266
  %v2039 = vunpack.c.l.b16 %v267
  %v2040 = vunpack.c.h.b16 %v267
  %v2041 = vunpack.c.l.b16 %v268
  %v2042 = vunpack.c.l.b16 %v269
  %v2043 = vunpack.c.h.b16 %v269
  %v2044 = vunpack.c.l.b16 %v270
  %v2045 = vunpack.c.l.b16 %v271
  %v2046 = vunpack.c.h.b16 %v271
  %v2047 = vunpack.c.l.b16 %v272
  %v2048 = vunpack.c.l.b16 %v273
  %v2049 = vunpack.c.h.b16 %v273
  %v2050 = vunpack.c.l.b16 %v274
  %v2051 = vunpack.c.l.b16 %v275
  %v2052 = vunpack.c.h.b16 %v275
  %v2053 = vunpack.c.l.b16 %v276
  %v2054 = vunpack.c.l.b16 %v277
  %v2055 = vunpack.c.h.b16 %v277
  %v2056 = vunpack.c.l.b16 %v278
  %v2057 = vunpack.c.l.b16 %v279
  %v2058 = vunpack.c.h.b16 %v279
  %v2059 = vunpack.c.l.b16 %v280
  %v2060 = vunpack.c.l.b16 %v281
  %v2061 = vunpack.c.h.b16 %v281
  %v2062 = vunpack.c.l.b16 %v282
  %v2063 = vunpack.c.l.b16 %v283
  %v2064 = vunpack.c.h.b16 %v283
  %v2065 = vunpack.c.l.b16 %v284
  %v2066 = vunpack.c.l.b16 %v285
  %v2067 = vunpack.c.h.b16 %v285
  %v2068 = vunpack.c.l.b16 %v286
  %v2069 = vunpack.c.l.b16 %v287
  %v2070 = vunpack.c.h.b16 %v287
  %v2071 = vunpack.c.l.b16 %v288
  %v2072 = vunpack.c.l.b16 %v289
  %v2073 = vunpack.c.h.b16 %v289
  %v2074 = vunpack.c.l.b16 %v290
  %v2075 = vunpack.c.l.b16 %v291
  %v2076 = vunpack.c.h.b16 %v291
  %v2077 = vunpack.c.l.b16 %v292
  %v2078 = vunpack.c.l.b16 %v293
  %v2079 = vunpack.c.h.b16 %v293
  %v2080 = vunpack.c.l.b16 %v294
  %v2081 = vunpack.c.l.b16 %v295
  %v2082 = vunpack.c.h.b16 %v295
  %v2083 = vunpack.c.l.b16 %v296
  %v2084 = vunpack.c.l.b16 %v297
  %v2085 = vunpack.c.h.b16 %v297
  %v2086 = vunpack.c.l.b16 %v298
  %v2087 = vunpack.c.l.b16 %v299
  %v2088 = vunpack.c.h.b16 %v299
  %v2089 = vunpack.c.l.b16 %v300
  %v2090 = vunpack.c.l.b16 %v301
  %v2091 = vunpack.c.h.b16 %v301
  %v2092 = vunpack.c.l.b16 %v302
  %v2093 = vunpack.c.l.b16 %v303
  %v2094 = vunpack.c.h.b16 %v303
  %v2095 = vunpack.c.l.b16 %v304
  %v2096 = vunpack.c.l.b16 %v305
  %v2097 = vunpack.c.h.b16 %v305
  %v2098 = vunpack.c.l.b16 %v306
  %v2099 = vunpack.c.l.b16 %v307
  %v2100 = vunpack.c.h.b16 %v307
  %v2101 = vunpack.c.l.b16 %v308
  %v2102 = vunpack.c.l.b16 %v309
  %v2103 = vunpack.c.h.b16 %v309
  %v2104 = vunpack.c.l.b16 %v310
  %v2105 = vunpack.c.l.b16 %v311
  %v2106 = vunpack.c.h.b16 %v311
  %v2107 = vunpack.c.l.b16 %v312
  %v2108 = vunpack.c.l.b16 %v313
  %v2109 = vunpack.c.h.b16 %v313
  %v2110 = vunpack.c.l.b16 %v314
  %v2111 = vunpack.c.l.b16 %v315
  %v2112 = vunpack.c.h.b16 %v315
  %v2113 = vunpack.c.l.b16 %v316
  %v2114 = vunpack.c.l.b16 %v317
  %v2115 = vunpack.c.h.b16 %v317
  %v2116 = vunpack.c.l.b16 %v318
  %v2117 = vunpack.c.l.b16 %v319
  %v2118 = vunpack.c.h.b16 %v319
  %v2119 = vunpack.c.l.b16 %v320
  %v2120 = vunpack.c.l.b16 %v321
  %v2121 = vunpack.c.h.b16 %v321
  %v2122 = vunpack.c.l.b16 %v322
  %v2123 = vunpack.c.l.b16 %v323
  %v2124 = vunpack.c.h.b16 %v323
  %v2125 = vunpack.c.l.b16 %v324
  %v2126 = vunpack.c.l.b16 %v325
  %v2127 = vunpack.c.h.b16 %v325
  %v2128 = vunpack.c.l.b16 %v326
  %v2129 = vunpack.c.l.b16 %v327
  %v2130 = vunpack.c.h.b16 %v327
  %v2131 = vunpack.c.l.b16 %v328
  %v2132 = vunpack.c.l.b16 %v329
  %v2133 = vunpack.c.h.b16 %v329
  %v2134 = vunpack.c.l.b16 %v330
  %v2135 = vunpack.c.l.b16 %v331
  %v2136 = vunpack.c.h.b16 %v331
  %v2137 = vunpack.c.l.b16 %v332
  %v2138 = vunpack.c.l.b16 %v333
  %v2139 = vunpack.c.h.b16 %v333
  %v2140 = vunpack.c.l.b16 %v334
  %v2141 = vunpack.c.l.b16 %v335
  %v2142 = vunpack.c.h.b16 %v335
  %v2143 = vunpack.c.l.b16 %v336
  %v2144 = vunpack.c.l.b16 %v337
  %v2145 = vunpack.c.h.b16 %v337
  %v2146 = vunpack.c.l.b16 %v338
  %v2147 = vunpack.c.l.b16 %v339
  %v2148 = vunpack.c.h.b16 %v339
  %v2149 = vunpack.c.l.b16 %v340
  %v2150 = vunpack.c.l.b16 %v341
  %v2151 = vunpack.c.h.b16 %v341
  %v2152 = vunpack.c.l.b16 %v342
  %v2153 = vunpack.c.l.b16 %v343
  %v2154 = vunpack.c.h.b16 %v343
  %v2155 = vunpack.c.l.b16 %v344
  %v2156 = vunpack.c.l.b16 %v345
  %v2157 = vunpack.c.h.b16 %v345
  %v2158 = vunpack.c.l.b16 %v346
  %v2159 = vunpack.c.l.b16 %v347
  %v2160 = vunpack.c.h.b16 %v347
  %v2161 = vunpack.c.l.b16 %v348
  %v2162 = vunpack.c.l.b16 %v349
  %v2163 = vunpack.c.h.b16 %v349
  %v2164 = vunpack.c.l.b16 %v350
  %v2165 = vunpack.c.l.b16 %v351
  %v2166 = vunpack.c.h.b16 %v351
  %v2167 = vunpack.c.l.b16 %v352
  %v2168 = vunpack.c.l.b16 %v353
  %v2169 = vunpack.c.h.b16 %v353
  %v2170 = vunpack.c.l.b16 %v354
  %v2171 = vunpack.c.l.b16 %v355
  %v2172 = vunpack.c.h.b16 %v355
  %v2173 = vunpack.c.l.b16 %v356
  %v2174 = vunpack.c.l.b16 %v357
  %v2175 = vunpack.c.h.b16 %v357
  %v2176 = vunpack.c.l.b16 %v358
  %v2177 = vunpack.c.l.b16 %v359
  %v2178 = vunpack.c.h.b16 %v359
  %v2179 = vunpack.c.l.b16 %v360
  %v2180 = vunpack.c.l.b16 %v361
  %v2181 = vunpack.c.h.b16 %v361
  %v2182 = vunpack.c.l.b16 %v362
  %v2183 = vunpack.c.l.b16 %v363
  %v2184 = vunpack.c.h.b16 %v363
  %v2185 = vunpack.c.l.b16 %v364
  %v2186 = vunpack.c.l.b16 %v365
  %v2187 = vunpack.c.h.b16 %v365
  %v2188 = vunpack.c.l.b16 %v366
  %v2189 = vunpack.c.l.b16 %v367
  %v2190 = vunpack.c.h.b16 %v367
  %v2191 = vunpack.c.l.b16 %v368
  %v2192 = vunpack.c.l.b16 %v369
  %v2193 = vunpack.c.h.b16 %v369
  %v2194 = vunpack.c.l.b16 %v370
  %v2195 = vunpack.c.l.b16 %v371
  %v2196 = vunpack.c.h.b16 %v371
  %v2197 = vunpack.c.l.b16 %v372
  %v2198 = vunpack.c.l.b16 %v373
  %v2199 = vunpack.c.h.b16 %v373
  %v2200 = vunpack.c.l.b16 %v374
  %v2201 = vunpack.c.l.b16 %v375
  %v2202 = vunpack.c.h.b16 %v375
  %v2203 = vunpack.c.l.b16 %v376
  %v2204 = vunpack.c.l.b16 %v377
  %v2205 = vunpack.c.h.b16 %v377
  %v2206 = vunpack.c.l.b16 %v378
  %v2207 = vunpack.c.l.b16 %v379
  %v2208 = vunpack.c.h.b16 %v379
  %v2209 = vunpack.c.l.b16 %v380
  %v2210 = vunpack.c.l.b16 %v381
  %v2211 = vunpack.c.h.b16 %v381
  %v2212 = vunpack.c.l.b16 %v382
  %v2213 = vunpack.c.l.b16 %v383
  %v2214 = vunpack.c.h.b16 %v383
  %v2215 = vunpack.c.l.b16 %v384
  %v2216 = vunpack.c.l.b16 %v385
  %v2217 = vunpack.c.h.b16 %v385
  %v2218 = vunpack.c.l.b16 %v386
  %v2219 = vunpack.c.l.b16 %v387
  %v2220 = vunpack.c.h.b16 %v387
  %v2221 = vunpack.c.l.b16 %v388
  %v2222 = vunpack.c.l.b16 %v389
  %v2223 = vunpack.c.h.b16 %v389
  %v2224 = vunpack.c.l.b16 %v390
  %v2225 = vunpack.c.l.b16 %v391
  %v2226 = vunpack.c.h.b16 %v391
  %v2227 = vunpack.c.l.b16 %v392
  %v2228 = vunpack.c.l.b16 %v393
  %v2229 = vunpack.c.h.b16 %v393
  %v2230 = vunpack.c.l.b16 %v394
  %v2231 = vunpack.c.l.b16 %v395
  %v2232 = vunpack.c.h.b16 %v395
  %v2233 = vunpack.c.l.b16 %v396
  %v2234 = vunpack.c.l.b16 %v397
  %v2235 = vunpack.c.h.b16 %v397
  %v2236 = vunpack.c.l.b16 %v398
  %v2237 = vunpack.c.l.b16 %v399
  %v2238 = vunpack.c.h.b16 %v399
  %v2239 = vunpack.c.l.b16 %v400
  %v2240 = vunpack.c.l.b16 %v401
  %v2241 = vunpack.c.h.b16 %v401
  %v2242 = vunpack.c.l.b16 %v402
  %v2243 = vunpack.c.l.b16 %v403
  %v2244 = vunpack.c.h.b16 %v403
  %v2245 = vunpack.c.l.b16 %v404
  %v2246 = vunpack.c.l.b16 %v405
  %v2247 = vunpack.c.h.b16 %v405
  %v2248 = vunpack.c.l.b16 %v406
  %v2249 = vunpack.c.l.b16 %v407
  %v2250 = vunpack.c.h.b16 %v407
  %v2251 = vunpack.c.l.b16 %v408
  %v2252 = vunpack.c.l.b16 %v409
  %v2253 = vunpack.c.h.b16 %v409
  %v2254 = vunpack.c.l.b16 %v410
  %v2255 = vunpack.c.l.b16 %v411
  %v2256 = vunpack.c.h.b16 %v411
  %v2257 = vunpack.c.l.b16 %v412
  %v2258 = vunpack.c.l.b16 %v413
  %v2259 = vunpack.c.h.b16 %v413
  %v2260 = vunpack.c.l.b16 %v414
  %v2261 = vunpack.c.l.b16 %v415
  %v2262 = vunpack.c.h.b16 %v415
  %v2263 = vunpack.c.l.b16 %v416
  %v2264 = vunpack.c.l.b16 %v417
  %v2265 = vunpack.c.h.b16 %v417
  %v2266 = vunpack.c.l.b16 %v418
  %v2267 = vunpack.c.l.b16 %v419
  %v2268 = vunpack.c.h.b16 %v419
  %v2269 = vunpack.c.l.b16 %v420
  %v2270 = vunpack.c.l.b16 %v421
  %v2271 = vunpack.c.h.b16 %v421
  %v2272 = vunpack.c.l.b16 %v422
  %v2273 = vunpack.c.l.b16 %v423
  %v2274 = vunpack.c.h.b16 %v423
  %v2275 = vunpack.c.l.b16 %v424
  %v2276 = vunpack.c.l.b16 %v425
  %v2277 = vunpack.c.h.b16 %v425
  %v2278 = vunpack.c.l.b16 %v426
  %v2279 = vunpack.c.l.b16 %v427
  %v2280 = vunpack.c.h.b16 %v427
  %v2281 = vunpack.c.l.b16 %v428
  %v2282 = vunpack.c.l.b16 %v429
  %v2283 = vunpack.c.h.b16 %v429
  %v2284 = vunpack.c.l.b16 %v430
  %v2285 = vunpack.c.l.b16 %v431
  %v2286 = vunpack.c.h.b16 %v431
  %v2287 = vunpack.c.l.b16 %v432
  %v2288 = vunpack.c.l.b16 %v433
  %v2289 = vunpack.c.h.b16 %v433
  %v2290 = vunpack.c.l.b16 %v434
  %v2291 = vunpack.c.l.b16 %v435
  %v2292 = vunpack.c.h.b16 %v435
  %v2293 = vunpack.c.l.b16 %v436
  %v2294 = vunpack.c.l.b16 %v437
  %v2295 = vunpack.c.h.b16 %v437
  %v2296 = vunpack.c.l.b16 %v438
  %v2297 = vunpack.c.l.b16 %v439
  %v2298 = vunpack.c.h.b16 %v439
  %v2299 = vunpack.c.l.b16 %v440
  %v2300 = vunpack.c.l.b16 %v441
  %v2301 = vunpack.c.h.b16 %v441
  %v2302 = vunpack.c.l.b16 %v442
  %v2303 = vunpack.c.l.b16 %v443
  %v2304 = vunpack.c.h.b16 %v443
  %v2305 = vunpack.c.l.b16 %v444
  %v2306 = vunpack.c.l.b16 %v445
  %v2307 = vunpack.c.h.b16 %v445
  %v2308 = vunpack.c.l.b16 %v446
  %v2309 = vunpack.c.l.b16 %v447
  %v2310 = vunpack.c.h.b16 %v447
  %v2311 = vunpack.c.l.b16 %v448
  %v2312 = vunpack.c.l.b16 %v449
  %v2313 = vunpack.c.h.b16 %v449
  %v2314 = vunpack.c.l.b16 %v450
  %v2315 = vunpack.c.l.b16 %v451
  %v2316 = vunpack.c.h.b16 %v451
  %v2317 = vunpack.c.l.b16 %v452
  %v2318 = vunpack.c.l.b16 %v453
  %v2319 = vunpack.c.h.b16 %v453
  %v2320 = vunpack.c.l.b16 %v454
  %v2321 = vunpack.c.l.b16 %v455
  %v2322 = vunpack.c.h.b16 %v455
  %v2323 = vunpack.c.l.b16 %v456
  %v2324 = vunpack.c.l.b16 %v457
  %v2325 = vunpack.c.h.b16 %v457
  %v2326 = vunpack.c.l.b16 %v458
  %v2327 = vunpack.c.l.b16 %v459
  %v2328 = vunpack.c.h.b16 %v459
  %v2329 = vunpack.c.l.b16 %v460
  %v2330 = vunpack.c.l.b16 %v461
  %v2331 = vunpack.c.h.b16 %v461
  %v2332 = vunpack.c.l.b16 %v462
  %v2333 = vunpack.c.l.b16 %v463
  %v2334 = vunpack.c.h.b16 %v463
  %v2335 = vunpack.c.l.b16 %v464
  %v2336 = vunpack.c.l.b16 %v465
  %v2337 = vunpack.c.h.b16 %v465
  %v2338 = vunpack.c.l.b16 %v466
  %v2339 = vunpack.c.l.b16 %v467
  %v2340 = vunpack.c.h.b16 %v467
  %v2341 = vunpack.c.l.b16 %v468
  %v2342 = vunpack.c.l.b16 %v469
  %v2343 = vunpack.c.h.b16 %v469
  %v2344 = vunpack.c.l.b16 %v470
  %v2345 = vunpack.c.l.b16 %v471
  %v2346 = vunpack.c.h.b16 %v471
  %v2347 = vunpack.c.l.b16 %v472
  %v2348 = vunpack.c.l.b16 %v473
  %v2349 = vunpack.c.h.b16 %v473
  %v2350 = vunpack.c.l.b16 %v474
  %v2351 = vunpack.c.l.b16 %v475
  %v2352 = vunpack.c.h.b16 %v475
  %v2353 = vunpack.c.l.b16 %v476
  %v2354 = vunpack.c.l.b16 %v477
  %v2355 = vunpack.c.h.b16 %v477
  %v2356 = vunpack.c.l.b16 %v478
  %v2357 = vunpack.c.l.b16 %v479
  %v2358 = vunpack.c.h.b16 %v479
  %v2359 = vunpack.c.l.b16 %v480
  %v2360 = vunpack.c.l.b16 %v481
  %v2361 = vunpack.c.h.b16 %v481
  %v2362 = vunpack.c.l.b16 %v482
  %v2363 = vunpack.c.l.b16 %v483
  %v2364 = vunpack.c.h.b16 %v483
  %v2365 = vunpack.c.l.b16 %v484
  %v2366 = vunpack.c.l.b16 %v485
  %v2367 = vunpack.c.h.b16 %v485
  %v2368 = vunpack.c.l.b16 %v486
  %v2369 = vunpack.c.l.b16 %v487
  %v2370 = vunpack.c.h.b16 %v487
  %v2371 = vunpack.c.l.b16 %v488
  %v2372 = vunpack.c.l.b16 %v489
  %v2373 = vunpack.c.h.b16 %v489
  %v2374 = vunpack.c.l.b16 %v490
  %v2375 = vunpack.c.l.b16 %v491
  %v2376 = vunpack.c.h.b16 %v491
  %v2377 = vunpack.c.l.b16 %v492
  %v2378 = vunpack.c.l.b16 %v493
  %v2379 = vunpack.c.h.b16 %v493
  %v2380 = vunpack.c.l.b16 %v494
  %v2381 = vunpack.c.l.b16 %v495
  %v2382 = vunpack.c.h.b16 %v495
  %v2383 = vunpack.c.l.b16 %v496
  %v2384 = vunpack.c.l.b16 %v497
  %v2385 = vunpack.c.h.b16 %v497
  %v2386 = vunpack.c.l.b16 %v498
  %v2387 = vunpack.c.l.b16 %v499
  %v2388 = vunpack.c.h.b16 %v499
  %v2389 = vunpack.c.l.b16 %v500
  %v2390 = vunpack.c.l.b16 %v501
  %v2391 = vunpack.c.h.b16 %v501
  %v2392 = vunpack.c.l.b16 %v502
  %v2393 = vunpack.c.l.b16 %v503
  %v2394 = vunpack.c.h.b16 %v503
  %v2395 = vunpack.c.l.b16 %v504
  %v2396 = vunpack.c.l.b16 %v505
  %v2397 = vunpack.c.h.b16 %v505
  %v2398 = vunpack.c.l.b16 %v506
  %v2399 = vunpack.c.l.b16 %v507
  %v2400 = vunpack.c.h.b16 %v507
  %v2401 = vunpack.c.l.b16 %v508
  %v2402 = vunpack.c.l.b16 %v509
  %v2403 = vunpack.c.h.b16 %v509
  %v2404 = vunpack.c.l.b16 %v510
  %v2405 = vunpack.c.l.b16 %v511
  %v2406 = vunpack.c.h.b16 %v511
  %v2407 = vunpack.c.l.b16 %v512
  %v2408 = vunpack.c.l.b16 %v513
  %v2409 = vunpack.c.h.b16 %v513
  %v2410 = vunpack.c.l.b16 %v514
  %v2411 = vunpack.c.l.b16 %v515
  %v2412 = vunpack.c.h.b16 %v515
  %v2413 = vunpack.c.l.b16 %v516
  %v2414 = vunpack.c.l.b16 %v517
  %v2415 = vunpack.c.h.b16 %v517
  %v2416 = vunpack.c.l.b16 %v518
  %v2417 = vunpack.c.l.b16 %v519
  %v2418 = vunpack.c.h.b16 %v519
  %v2419 = vunpack.c.l.b16 %v520
  %v2420 = vunpack.c.l.b16 %v521
  %v2421 = vunpack.c.h.b16 %v521
  %v2422 = vunpack.c.l.b16 %v522
  %v2423 = vunpack.c.l.b16 %v523
  %v2424 = vunpack.c.h.b16 %v523
  %v2425 = vunpack.c.l.b16 %v524
  %v2426 = vunpack.c.l.b16 %v525
  %v2427 = vunpack.c.h.b16 %v525
  %v2428 = vunpack.c.l.b16 %v526
  %v2429 = vunpack.c.l.b16 %v527
  %v2430 = vunpack.c.h.b16 %v527
  %v2431 = vunpack.c.l.b16 %v528
  %v2432 = vunpack.c.l.b16 %v529
  %v2433 = vunpack.c.h.b16 %v529
  %v2434 = vunpack.c.l.b16 %v530
  %v2435 = vunpack.c.l.b16 %v531
  %v2436 = vunpack.c.h.b16 %v531
  %v2437 = vunpack.c.l.b16 %v532
  %v2438 = vunpack.c.l.b16 %v533
  %v2439 = vunpack.c.h.b16 %v533
  %v2440 = vunpack.c.l.b16 %v534
  %v2441 = vunpack.c.l.b16 %v535
  %v2442 = vunpack.c.h.b16 %v535
  %v2443 = vunpack.c.l.b16 %v536
  %v2444 = vunpack.c.l.b16 %v537
  %v2445 = vunpack.c.h.b16 %v537
  %v2446 = vunpack.c.l.b16 %v538
  %v2447 = vunpack.c.l.b16 %v539
  %v2448 = vunpack.c.h.b16 %v539
  %v2449 = vunpack.c.l.b16 %v540
  %v2450 = vunpack.c.l.b16 %v541
  %v2451 = vunpack.c.h.b16 %v541
  %v2452 = vunpack.c.l.b16 %v542
  %v2453 = vunpack.c.l.b16 %v543
  %v2454 = vunpack.c.h.b16 %v543
  %v2455 = vunpack.c.l.b16 %v544
  %v2456 = vunpack.c.l.b16 %v545
  %v2457 = vunpack.c.h.b16 %v545
  %v2458 = vunpack.c.l.b16 %v546
  %v2459 = vunpack.c.l.b16 %v547
  %v2460 = vunpack.c.h.b16 %v547
  %v2461 = vunpack.c.l.b16 %v548
  %v2462 = vunpack.c.l.b16 %v549
  %v2463 = vunpack.c.h.b16 %v549
  %v2464 = vunpack.c.l.b16 %v550
  %v2465 = vunpack.c.l.b16 %v551
  %v2466 = vunpack.c.h.b16 %v551
  %v2467 = vunpack.c.l.b16 %v552
  %v2468 = vunpack.c.l.b16 %v553
  %v2469 = vunpack.c.h.b16 %v553
  %v2470 = vunpack.c.l.b16 %v554
  %v2471 = vunpack.c.l.b16 %v555
  %v2472 = vunpack.c.h.b16 %v555
  %v2473 = vunpack.c.l.b16 %v556
  %v2474 = vunpack.c.l.b16 %v557
  %v2475 = vunpack.c.h.b16 %v557
  %v2476 = vunpack.c.l.b16 %v558
  %v2477 = vunpack.c.l.b16 %v559
  %v2478 = vunpack.c.h.b16 %v559
  %v2479 = vunpack.c.l.b16 %v560
  %v2480 = vunpack.c.l.b16 %v561
  %v2481 = vunpack.c.h.b16 %v561
  %v2482 = vunpack.c.l.b16 %v562
  %v2483 = vunpack.c.l.b16 %v563
  %v2484 = vunpack.c.h.b16 %v563
  %v2485 = vunpack.c.l.b16 %v564
  %v2486 = vunpack.c.l.b16 %v565
  %v2487 = vunpack.c.h.b16 %v565
  %v2488 = vunpack.c.l.b16 %v566
  %v2489 = vunpack.c.l.b16 %v567
  %v2490 = vunpack.c.h.b16 %v567
  %v2491 = vunpack.c.l.b16 %v568
  %v2492 = vunpack.c.l.b16 %v569
  %v2493 = vunpack.c.h.b16 %v569
  %v2494 = vunpack.c.l.b16 %v570
  %v2495 = vunpack.c.l.b16 %v571
  %v2496 = vunpack.c.h.b16 %v571
  %v2497 = vunpack.c.l.b16 %v572
  %v2498 = vunpack.c.l.b16 %v573
  %v2499 = vunpack.c.h.b16 %v573
  %v2500 = vunpack.c.l.b16 %v574
  %v2501 = vunpack.c.l.b16 %v575
  %v2502 = vunpack.c.h.b16 %v575
  %v2503 = vunpack.c.l.b16 %v576
  %v2504 = vunpack.c.l.b16 %v577
  %v2505 = vunpack.c.h.b16 %v577
  %v2506 = vunpack.c.l.b16 %v578
  %v2507 = vunpack.c.l.b16 %v579
  %v2508 = vunpack.c.h.b16 %v579
  %v2509 = vunpack.c.l.b16 %v580
  %v2510 = vunpack.c.l.b16 %v581
  %v2511 = vunpack.c.h.b16 %v581
  %v2512 = vunpack.c.l.b16 %v582
  %v2513 = vunpack.c.l.b16 %v583
  %v2514 = vunpack.c.h.b16 %v583
  %v2515 = vunpack.c.l.b16 %v584
  %v2516 = vunpack.c.l.b16 %v585
  %v2517 = vunpack.c.h.b16 %v585
  %v2518 = vunpack.c.l.b16 %v586
  %v2519 = vunpack.c.l.b16 %v587
  %v2520 = vunpack.c.h.b16 %v587
  %v2521 = vunpack.c.l.b16 %v588
  %v2522 = vunpack.c.l.b16 %v589
  %v2523 = vunpack.c.h.b16 %v589
  %v2524 = vunpack.c.l.b16 %v590
  %v2525 = vunpack.c.l.b16 %v591
  %v2526 = vunpack.c.h.b16 %v591
  %v2527 = vunpack.c.l.b16 %v592
  %v2528 = vunpack.c.l.b16 %v593
  %v2529 = vunpack.c.h.b16 %v593
  %v2530 = vunpack.c.l.b16 %v594
  %v2531 = vunpack.c.l.b16 %v595
  %v2532 = vunpack.c.h.b16 %v595
  %v2533 = vunpack.c.l.b16 %v596
  %v2534 = vunpack.c.l.b16 %v597
  %v2535 = vunpack.c.h.b16 %v597
  %v2536 = vunpack.c.l.b16 %v598
  %v2537 = vunpack.c.l.b16 %v599
  %v2538 = vunpack.c.h.b16 %v599
  %v2539 = vunpack.c.l.b16 %v600
  %v2540 = vunpack.c.l.b16 %v601
  %v2541 = vunpack.c.h.b16 %v601
  %v2542 = vunpack.c.l.b16 %v602
  %v2543 = vunpack.c.l.b16 %v603
  %v2544 = vunpack.c.h.b16 %v603
  %v2545 = vunpack.c.l.b16 %v604
  %v2546 = vunpack.c.l.b16 %v605
  %v2547 = vunpack.c.h.b16 %v605
  %v2548 = vunpack.c.l.b16 %v606
  %v2549 = vunpack.c.l.b16 %v607
  %v2550 = vunpack.c.h.b16 %v607
  %v2551 = vunpack.c.l.b16 %v608
  %v2552 = vunpack.c.l.b16 %v609
  %v2553 = vunpack.c.h.b16 %v609
  %v2554 = vunpack.c.l.b16 %v610
  %v2555 = vunpack.c.l.b16 %v611
  %v2556 = vunpack.c.h.b16 %v611
  %v2557 = vunpack.c.l.b16 %v612
  %v2558 = vunpack.c.l.b16 %v613
  %v2559 = vunpack.c.h.b16 %v613
  %v2560 = vunpack.c.l.b16 %v614
  %v2561 = vunpack.c.l.b16 %v615
  %v2562 = vunpack.c.h.b16 %v615
  %v2563 = vunpack.c.l.b16 %v616
  %v2564 = vunpack.c.l.b16 %v617
  %v2565 = vunpack.c.h.b16 %v617
  %v2566 = vunpack.c.l.b16 %v618
  %v2567 = vunpack.c.l.b16 %v619
  %v2568 = vunpack.c.h.b16 %v619
  %v2569 = vunpack.c.l.b16 %v620
  %v2570 = vunpack.c.l.b16 %v621
  %v2571 = vunpack.c.h.b16 %v621
  %v2572 = vunpack.c.l.b16 %v622
  %v2573 = vunpack.c.l.b16 %v623
  %v2574 = vunpack.c.h.b16 %v623
  %v2575 = vunpack.c.l.b16 %v624
  %v2576 = vunpack.c.l.b16 %v625
  %v2577 = vunpack.c.h.b16 %v625
  %v2578 = vunpack.c.l.b16 %v626
  %v2579 = vunpack.c.l.b16 %v627
  %v2580 = vunpack.c.h.b16 %v627
  %v2581 = vunpack.c.l.b16 %v628
  %v2582 = vunpack.c.l.b16 %v629
  %v2583 = vunpack.c.h.b16 %v629
  %v2584 = vunpack.c.l.b16 %v630
  %v2585 = vunpack.c.l.b16 %v631
  %v2586 = vunpack.c.h.b16 %v631
  %v2587 = vunpack.c.l.b16 %v632
  %v2588 = vunpack.c.l.b16 %v633
  %v2589 = vunpack.c.h.b16 %v633
  %v2590 = vunpack.c.l.b16 %v634
  %v2591 = vunpack.c.l.b16 %v635
  %v2592 = vunpack.c.h.b16 %v635
  %v2593 = vunpack.c.l.b16 %v636
  %v2594 = vunpack.c.l.b16 %v637
  %v2595 = vunpack.c.h.b16 %v637
  %v2596 = vunpack.c.l.b16 %v638
  %v2597 = vunpack.c.l.b16 %v639
  %v2598 = vunpack.c.h.b16 %v639
  %v2599 = vunpack.c.l.b16 %v640
  %v2600 = vunpack.c.l.b16 %v641
  %v2601 = vunpack.c.h.b16 %v641
  %v2602 = vunpack.c.l.b16 %v642
  %v2603 = vunpack.c.l.b16 %v643
  %v2604 = vunpack.c.h.b16 %v643
  %v2605 = vunpack.c.l.b16 %v644
  %v2606 = vunpack.c.l.b16 %v645
  %v2607 = vunpack.c.h.b16 %v645
  %v2608 = vunpack.c.l.b16 %v646
  %v2609 = vunpack.c.l.b16 %v647
  %v2610 = vunpack.c.h.b16 %v647
  %v2611 = vunpack.c.l.b16 %v648
  %v2612 = vunpack.c.l.b16 %v649
  %v2613 = vunpack.c.h.b16 %v649
  %v2614 = vunpack.c.l.b16 %v650
  %v2615 = vunpack.c.l.b16 %v651
  %v2616 = vunpack.c.h.b16 %v651
  %v2617 = vunpack.c.l.b16 %v652
  %v2618 = vunpack.c.l.b16 %v653
  %v2619 = vunpack.c.h.b16 %v653
  %v2620 = vunpack.c.l.b16 %v654
  %v2621 = vunpack.c.l.b16 %v655
  %v2622 = vunpack.c.h.b16 %v655
  %v2623 = vunpack.c.l.b16 %v656
  %v2624 = vunpack.c.l.b16 %v657
  %v2625 = vunpack.c.h.b16 %v657
  %v2626 = vunpack.c.l.b16 %v658
  %v2627 = vunpack.c.l.b16 %v659
  %v2628 = vunpack.c.h.b16 %v659
  %v2629 = vunpack.c.l.b16 %v660
  %v2630 = vunpack.c.l.b16 %v661
  %v2631 = vunpack.c.h.b16 %v661
  %v2632 = vunpack.c.l.b16 %v662
  %v2633 = vunpack.c.l.b16 %v663
  %v2634 = vunpack.c.h.b16 %v663
  %v2635 = vunpack.c.l.b16 %v664
  %v2636 = vunpack.c.l.b16 %v665
  %v2637 = vunpack.c.h.b16 %v665
  %v2638 = vunpack.c.l.b16 %v666
  %v2639 = vunpack.c.l.b16 %v667
  %v2640 = vunpack.c.h.b16 %v667
  %v2641 = vunpack.c.l.b16 %v668
  %v2642 = vunpack.c.l.b16 %v669
  %v2643 = vunpack.c.h.b16 %v669
  %v2644 = vunpack.c.l.b16 %v670
  %v2645 = vunpack.c.l.b16 %v671
  %v2646 = vunpack.c.h.b16 %v671
  %v2647 = vunpack.c.l.b16 %v672
  %v2648 = vunpack.c.l.b16 %v673
  %v2649 = vunpack.c.h.b16 %v673
  %v2650 = vunpack.c.l.b16 %v674
  %v2651 = vunpack.c.l.b16 %v675
  %v2652 = vunpack.c.h.b16 %v675
  %v2653 = vunpack.c.l.b16 %v676
  %v2654 = vunpack.c.l.b16 %v677
  %v2655 = vunpack.c.h.b16 %v677
  %v2656 = vunpack.c.l.b16 %v678
  %v2657 = vunpack.c.l.b16 %v679
  %v2658 = vunpack.c.h.b16 %v679
  %v2659 = vunpack.c.l.b16 %v680
  %v2660 = vunpack.c.l.b16 %v681
  %v2661 = vunpack.c.h.b16 %v681
  %v2662 = vunpack.c.l.b16 %v682
  %v2663 = vunpack.c.l.b16 %v683
  %v2664 = vunpack.c.h.b16 %v683
  %v2665 = vunpack.c.l.b16 %v684
  %v2666 = vunpack.c.l.b16 %v685
  %v2667 = vunpack.c.h.b16 %v685
  %v2668 = vunpack.c.l.b16 %v686
  %v2669 = vunpack.c.l.b16 %v687
  %v2670 = vunpack.c.h.b16 %v687
  %v2671 = vunpack.c.l.b16 %v688
  %v2672 = vunpack.c.l.b16 %v689
  %v2673 = vunpack.c.h.b16 %v689
  %v2674 = vunpack.c.l.b16 %v690
  %v2675 = vunpack.c.l.b16 %v691
  %v2676 = vunpack.c.h.b16 %v691
  %v2677 = vunpack.c.l.b16 %v692
  %v2678 = vunpack.c.l.b16 %v693
  %v2679 = vunpack.c.h.b16 %v693
  %v2680 = vunpack.c.l.b16 %v694
  %v2681 = vunpack.c.l.b16 %v695
  %v2682 = vunpack.c.h.b16 %v695
  %v2683 = vunpack.c.l.b16 %v696
  %v2684 = vunpack.c.l.b16 %v697
  %v2685 = vunpack.c.h.b16 %v697
  %v2686 = vunpack.c.l.b16 %v698
  %v2687 = vunpack.c.l.b16 %v699
  %v2688 = vunpack.c.h.b16 %v699
  %v2689 = vunpack.c.l.b16 %v700
  %v2690 = vunpack.c.l.b16 %v701
  %v2691 = vunpack.c.h.b16 %v701
  %v2692 = vunpack.c.l.b16 %v702
  %v2693 = vunpack.c.l.b16 %v703
  %v2694 = vunpack.c.h.b16 %v703
  %v2695 = vunpack.c.l.b16 %v704
  %v2696 = vunpack.c.l.b16 %v705
  %v2697 = vunpack.c.h.b16 %v705
  %v2698 = vunpack.c.l.b16 %v706
  %v2699 = vunpack.c.l.b16 %v707
  %v2700 = vunpack.c.h.b16 %v707
  %v2701 = vunpack.c.l.b16 %v708
  %v2702 = vunpack.c.l.b16 %v709
  %v2703 = vunpack.c.h.b16 %v709
  %v2704 = vunpack.c.l.b16 %v710
  %v2705 = vunpack.c.l.b16 %v711
  %v2706 = vunpack.c.h.b16 %v711
  %v2707 = vunpack.c.l.b16 %v712
  %v2708 = vunpack.c.l.b16 %v713
  %v2709 = vunpack.c.h.b16 %v713
  %v2710 = vunpack.c.l.b16 %v714
  %v2711 = vunpack.c.l.b16 %v715
  %v2712 = vunpack.c.h.b16 %v715
  %v2713 = vunpack.c.l.b16 %v716
  %v2714 = vunpack.c.l.b16 %v717
  %v2715 = vunpack.c.h.b16 %v717
  %v2716 = vunpack.c.l.b16 %v718
  %v2717 = vunpack.c.l.b16 %v719
  %v2718 = vunpack.c.h.b16 %v719
  %v2719 = vunpack.c.l.b16 %v720
  %v2720 = vunpack.c.l.b16 %v721
  %v2721 = vunpack.c.h.b16 %v721
  %v2722 = vunpack.c.l.b16 %v722
  %v2723 = vunpack.c.l.b16 %v723
  %v2724 = vunpack.c.h.b16 %v723
  %v2725 = vunpack.c.l.b16 %v724
  %v2726 = vunpack.c.l.b16 %v725
  %v2727 = vunpack.c.h.b16 %v725
  %v2728 = vunpack.c.l.b16 %v726
  %v2729 = vunpack.c.l.b16 %v727
  %v2730 = vunpack.c.h.b16 %v727
  %v2731 = vunpack.c.l.b16 %v728
  %v2732 = vunpack.c.l.b16 %v729
  %v2733 = vunpack.c.h.b16 %v729
  %v2734 = vunpack.c.l.b16 %v730
  %v2735 = vunpack.c.l.b16 %v731
  %v2736 = vunpack.c.h.b16 %v731
  %v2737 = vunpack.c.l.b16 %v732
  %v2738 = vunpack.c.l.b16 %v733
  %v2739 = vunpack.c.h.b16 %v733
  %v2740 = vunpack.c.l.b16 %v734
  %v2741 = vunpack.c.l.b16 %v735
  %v2742 = vunpack.c.h.b16 %v735
  %v2743 = vunpack.c.l.b16 %v736
  %v2744 = vunpack.c.l.b16 %v737
  %v2745 = vunpack.c.h.b16 %v737
  %v2746 = vunpack.c.l.b16 %v738
  %v2747 = vunpack.c.l.b16 %v739
  %v2748 = vunpack.c.h.b16 %v739
  %v2749 = vunpack.c.l.b16 %v740
  %v2750 = vunpack.c.l.b16 %v741
  %v2751 = vunpack.c.h.b16 %v741
  %v2752 = vunpack.c.l.b16 %v742
  %v2753 = vunpack.c.l.b16 %v743
  %v2754 = vunpack.c.h.b16 %v743
  %v2755 = vunpack.c.l.b16 %v744
  %v2756 = vunpack.c.l.b16 %v745
  %v2757 = vunpack.c.h.b16 %v745
  %v2758 = vunpack.c.l.b16 %v746
  %v2759 = vunpack.c.l.b16 %v747
  %v2760 = vunpack.c.h.b16 %v747
  %v2761 = vunpack.c.l.b16 %v748
  %v2762 = vunpack.c.l.b16 %v749
  %v2763 = vunpack.c.h.b16 %v749
  %v2764 = vunpack.c.l.b16 %v750
  %v2765 = vunpack.c.l.b16 %v751
  %v2766 = vunpack.c.h.b16 %v751
  %v2767 = vunpack.c.l.b16 %v752
  %v2768 = vunpack.c.l.b16 %v753
  %v2769 = vunpack.c.h.b16 %v753
  %v2770 = vunpack.c.l.b16 %v754
  %v2771 = vunpack.c.l.b16 %v755
  %v2772 = vunpack.c.h.b16 %v755
  %v2773 = vunpack.c.l.b16 %v756
  %v2774 = vunpack.c.l.b16 %v757
  %v2775 = vunpack.c.h.b16 %v757
  %v2776 = vunpack.c.l.b16 %v758
  %v2777 = vunpack.c.l.b16 %v759
  %v2778 = vunpack.c.h.b16 %v759
  %v2779 = vunpack.c.l.b16 %v760
  %v2780 = vunpack.c.l.b16 %v761
  %v2781 = vunpack.c.h.b16 %v761
  %v2782 = vunpack.c.l.b16 %v762
  %v2783 = vunpack.c.l.b16 %v763
  %v2784 = vunpack.c.h.b16 %v763
  %v2785 = vunpack.c.l.b16 %v764
  %v2786 = vunpack.c.l.b16 %v765
  %v2787 = vunpack.c.h.b16 %v765
  %v2788 = vunpack.c.l.b16 %v766
  %v2789 = vunpack.c.l.b16 %v767
  %v2790 = vunpack.c.h.b16 %v767
  %v2791 = vunpack.c.l.b16 %v768
  %v2792 = vunpack.c.l.b16 %v769
  %v2793 = vunpack.c.h.b16 %v769
  %v2794 = vunpack.c.l.b16 %v770
  %v2795 = vunpack.c.l.b16 %v771
  %v2796 = vunpack.c.h.b16 %v771
  %v2797 = vunpack.c.l.b16 %v772
  %v2798 = vunpack.c.l.b16 %v773
  %v2799 = vunpack.c.h.b16 %v773
  %v2800 = vunpack.c.l.b16 %v774
  %v2801 = vunpack.c.l.b16 %v775
  %v2802 = vunpack.c.h.b16 %v775
  %v2803 = vunpack.c.l.b16 %v776
  %v2804 = vunpack.c.l.b16 %v777
  %v2805 = vunpack.c.h.b16 %v777
  %v2806 = vunpack.c.l.b16 %v778
  %v2807 = vunpack.c.l.b16 %v779
  %v2808 = vunpack.c.h.b16 %v779
  %v2809 = vunpack.c.l.b16 %v780
  %v2810 = vunpack.c.l.b16 %v781
  %v2811 = vunpack.c.h.b16 %v781
  %v2812 = vunpack.c.l.b16 %v782
  %v2813 = vunpack.c.l.b16 %v783
  %v2814 = vunpack.c.h.b16 %v783
  %v2815 = vunpack.c.l.b16 %v784
  %v2816 = vunpack.c.l.b16 %v785
  %v2817 = vunpack.c.h.b16 %v785
  %v2818 = vunpack.c.l.b16 %v786
  %v2819 = vunpack.c.l.b16 %v787
  %v2820 = vunpack.c.h.b16 %v787
  %v2821 = vunpack.c.l.b16 %v788
  %v2822 = vunpack.c.l.b16 %v789
  %v2823 = vunpack.c.h.b16 %v789
  %v2824 = vunpack.c.l.b16 %v790
  %v2825 = vunpack.c.l.b16 %v791
  %v2826 = vunpack.c.h.b16 %v791
  %v2827 = vunpack.c.l.b16 %v792
  %v2828 = vunpack.c.l.b16 %v793
  %v2829 = vunpack.c.h.b16 %v793
  %v2830 = vunpack.c.l.b16 %v794
  %v2831 = vunpack.c.l.b16 %v795
  %v2832 = vunpack.c.h.b16 %v795
  %v2833 = vunpack.c.l.b16 %v796
  %v2834 = vunpack.c.l.b16 %v797
  %v2835 = vunpack.c.h.b16 %v797
  %v2836 = vunpack.c.l.b16 %v798
  %v2837 = vunpack.c.l.b16 %v799
  %v2838 = vunpack.c.h.b16 %v799
  %v2839 = vunpack.c.l.b16 %v800
  %v2840 = vunpack.c.l.b16 %v801
  %v2841 = vunpack.c.h.b16 %v801
  %v2842 = vunpack.c.l.b16 %v802
  %v2843 = vunpack.c.l.b16 %v803
  %v2844 = vunpack.c.h.b16 %v803
  %v2845 = vunpack.c.l.b16 %v804
  %v2846 = vunpack.c.l.b16 %v805
  %v2847 = vunpack.c.h.b16 %v805
  %v2848 = vunpack.c.l.b16 %v806
  %v2849 = vunpack.c.l.b16 %v807
  %v2850 = vunpack.c.h.b16 %v807
  %v2851 = vunpack.c.l.b16 %v808
  %v2852 = vunpack.c.l.b16 %v809
  %v2853 = vunpack.c.h.b16 %v809
  %v2854 = vunpack.c.l.b16 %v810
  %v2855 = vunpack.c.l.b16 %v811
  %v2856 = vunpack.c.h.b16 %v811
  %v2857 = vunpack.c.l.b16 %v812
  %v2858 = vunpack.c.l.b16 %v813
  %v2859 = vunpack.c.h.b16 %v813
  %v2860 = vunpack.c.l.b16 %v814
  %v2861 = vunpack.c.l.b16 %v815
  %v2862 = vunpack.c.h.b16 %v815
  %v2863 = vunpack.c.l.b16 %v816
  %v2864 = vunpack.c.l.b16 %v817
  %v2865 = vunpack.c.h.b16 %v817
  %v2866 = vunpack.c.l.b16 %v818
  %v2867 = vunpack.c.l.b16 %v819
  %v2868 = vunpack.c.h.b16 %v819
  %v2869 = vunpack.c.l.b16 %v820
  %v2870 = vunpack.c.l.b16 %v821
  %v2871 = vunpack.c.h.b16 %v821
  %v2872 = vunpack.c.l.b16 %v822
  %v2873 = vunpack.c.l.b16 %v823
  %v2874 = vunpack.c.h.b16 %v823
  %v2875 = vunpack.c.l.b16 %v824
  %v2876 = vunpack.c.l.b16 %v825
  %v2877 = vunpack.c.h.b16 %v825
  %v2878 = vunpack.c.l.b16 %v826
  %v2879 = vunpack.c.l.b16 %v827
  %v2880 = vunpack.c.h.b16 %v827
  %v2881 = vunpack.c.l.b16 %v828
  %v2882 = vunpack.c.l.b16 %v829
  %v2883 = vunpack.c.h.b16 %v829
  %v2884 = vunpack.c.l.b16 %v830
  %v2885 = vunpack.c.l.b16 %v831
  %v2886 = vunpack.c.h.b16 %v831
  %v2887 = vunpack.c.l.b16 %v832
  %v2888 = vunpack.c.l.b16 %v833
  %v2889 = vunpack.c.h.b16 %v833
  %v2890 = vunpack.c.l.b16 %v834
  %v2891 = vunpack.c.l.b16 %v835
  %v2892 = vunpack.c.h.b16 %v835
  %v2893 = vunpack.c.l.b16 %v836
  %v2894 = vunpack.c.l.b16 %v837
  %v2895 = vunpack.c.h.b16 %v837
  %v2896 = vunpack.c.l.b16 %v838
  %v2897 = vpack.c.b16 %v1700, %v1697
  %v2898 = vpack.c.b16 %v1701, %v1698
  %v2899 = vpack.c.b16 %v1702, %v1699
  %v2900 = vpack.c.b16 %v1706, %v1703
  %v2901 = vpack.c.b16 %v1707, %v1704
  %v2902 = vpack.c.b16 %v1708, %v1705
  %v2903 = vpack.c.b16 %v1712, %v1709
  %v2904 = vpack.c.b16 %v1713, %v1710
  %v2905 = vpack.c.b16 %v1714, %v1711
  %v2906 = vpack.c.b16 %v1718, %v1715
  %v2907 = vpack.c.b16 %v1719, %v1716
  %v2908 = vpack.c.b16 %v1720, %v1717
  %v2909 = vpack.c.b16 %v1724, %v1721
  %v2910 = vpack.c.b16 %v1725, %v1722
  %v2911 = vpack.c.b16 %v1726, %v1723
  %v2912 = vpack.c.b16 %v1730, %v1727
  %v2913 = vpack.c.b16 %v1731, %v1728
  %v2914 = vpack.c.b16 %v1732, %v1729
  %v2915 = vpack.c.b16 %v1736, %v1733
  %v2916 = vpack.c.b16 %v1737, %v1734
  %v2917 = vpack.c.b16 %v1738, %v1735
  %v2918 = vpack.c.b16 %v1742, %v1739
  %v2919 = vpack.c.b16 %v1743, %v1740
  %v2920 = vpack.c.b16 %v1744, %v1741
  %v2921 = vpack.c.b16 %v1748, %v1745
  %v2922 = vpack.c.b16 %v1749, %v1746
  %v2923 = vpack.c.b16 %v1750, %v1747
  %v2924 = vpack.c.b16 %v1754, %v1751
  %v2925 = vpack.c.b16 %v1755, %v1752
  %v2926 = vpack.c.b16 %v1756, %v1753
  %v2927 = vpack.c.b16 %v1760, %v1757
  %v2928 = vpack.c.b16 %v1761, %v1758
  %v2929 = vpack.c.b16 %v1762, %v1759
  %v2930 = vpack.c.b16 %v1766, %v1763
  %v2931 = vpack.c.b16 %v1767, %v1764
  %v2932 = vpack.c.b16 %v1768, %v1765
  %v2933 = vpack.c.b16 %v1772, %v1769
  %v2934 = vpack.c.b16 %v1773, %v1770
  %v2935 = vpack.c.b16 %v1774, %v1771
  %v2936 = vpack.c.b16 %v1778, %v1775
  %v2937 = vpack.c.b16 %v1779, %v1776
  %v2938 = vpack.c.b16 %v1780, %v1777
  %v2939 = vpack.c.b16 %v1784, %v1781
  %v2940 = vpack.c.b16 %v1785, %v1782
  %v2941 = vpack.c.b16 %v1786, %v1783
  %v2942 = vpack.c.b16 %v1790, %v1787
  %v2943 = vpack.c.b16 %v1791, %v1788
  %v2944 = vpack.c.b16 %v1792, %v1789
  %v2945 = vpack.c.b16 %v1796, %v1793
  %v2946 = vpack.c.b16 %v1797, %v1794
  %v2947 = vpack.c.b16 %v1798, %v1795
  %v2948 = vpack.c.b16 %v1802, %v1799
  %v2949 = vpack.c.b16 %v1803, %v1800
  %v2950 = vpack.c.b16 %v1804, %v1801
  %v2951 = vpack.c.b16 %v1808, %v1805
  %v2952 = vpack.c.b16 %v1809, %v1806
  %v2953 = vpack.c.b16 %v1810, %v1807
  %v2954 = vpack.c.b16 %v1814, %v1811
  %v2955 = vpack.c.b16 %v1815, %v1812
  %v2956 = vpack.c.b16 %v1816, %v1813
  %v2957 = vpack.c.b16 %v1820, %v1817
  %v2958 = vpack.c.b16 %v1821, %v1818
  %v2959 = vpack.c.b16 %v1822, %v1819
  %v2960 = vpack.c.b16 %v1826, %v1823
  %v2961 = vpack.c.b16 %v1827, %v1824
  %v2962 = vpack.c.b16 %v1828, %v1825
  %v2963 = vpack.c.b16 %v1832, %v1829
  %v2964 = vpack.c.b16 %v1833, %v1830
  %v2965 = vpack.c.b16 %v1834, %v1831
  %v2966 = vpack.c.b16 %v1838, %v1835
  %v2967 = vpack.c.b16 %v1839, %v1836
  %v2968 = vpack.c.b16 %v1840, %v1837
  %v2969 = vpack.c.b16 %v1844, %v1841
  %v2970 = vpack.c.b16 %v1845, %v1842
  %v2971 = vpack.c.b16 %v1846, %v1843
  %v2972 = vpack.c.b16 %v1850, %v1847
  %v2973 = vpack.c.b16 %v1851, %v1848
  %v2974 = vpack.c.b16 %v1852, %v1849
  %v2975 = vpack.c.b16 %v1856, %v1853
  %v2976 = vpack.c.b16 %v1857, %v1854
  %v2977 = vpack.c.b16 %v1858, %v1855
  %v2978 = vpack.c.b16 %v1862, %v1859
  %v2979 = vpack.c.b16 %v1863, %v1860
  %v2980 = vpack.c.b16 %v1864, %v1861
  %v2981 = vpack.c.b16 %v1868, %v1865
  %v2982 = vpack.c.b16 %v1869, %v1866
  %v2983 = vpack.c.b16 %v1870, %v1867
  %v2984 = vpack.c.b16 %v1874, %v1871
  %v2985 = vpack.c.b16 %v1875, %v1872
  %v2986 = vpack.c.b16 %v1876, %v1873
  %v2987 = vpack.c.b16 %v1880, %v1877
  %v2988 = vpack.c.b16 %v1881, %v1878
  %v2989 = vpack.c.b16 %v1882, %v1879
  %v2990 = vpack.c.b16 %v1886, %v1883
  %v2991 = vpack.c.b16 %v1887, %v1884
  %v2992 = vpack.c.b16 %v1888, %v1885
  %v2993 = vpack.c.b16 %v1892, %v1889
  %v2994 = vpack.c.b16 %v1893, %v1890
  %v2995 = vpack.c.b16 %v1894, %v1891
  %v2996 = vpack.c.b16 %v1898, %v1895
  %v2997 = vpack.c.b16 %v1899, %v1896
  %v2998 = vpack.c.b16 %v1900, %v1897
  %v2999 = vpack.c.b16 %v1904, %v1901
  %v3000 = vpack.c.b16 %v1905, %v1902
  %v3001 = vpack.c.b16 %v1906, %v1903
  %v3002 = vpack.c.b16 %v1910, %v1907
  %v3003 = vpack.c.b16 %v1911, %v1908
  %v3004 = vpack.c.b16 %v1912, %v1909
  %v3005 = vpack.c.b16 %v1916, %v1913
  %v3006 = vpack.c.b16 %v1917, %v1914
  %v3007 = vpack.c.b16 %v1918, %v1915
  %v3008 = vpack.c.b16 %v1922, %v1919
  %v3009 = vpack.c.b16 %v1923, %v1920
  %v3010 = vpack.c.b16 %v1924, %v1921
  %v3011 = vpack.c.b16 %v1928, %v1925
  %v3012 = vpack.c.b16 %v1929, %v1926
  %v3013 = vpack.c.b16 %v1930, %v1927
  %v3014 = vpack.c.b16 %v1934, %v1931
  %v3015 = vpack.c.b16 %v1935, %v1932
  %v3016 = vpack.c.b16 %v1936, %v1933
  %v3017 = vpack.c.b16 %v1940, %v1937
  %v3018 = vpack.c.b16 %v1941, %v1938
  %v3019 = vpack.c.b16 %v1942, %v1939
  %v3020 = vpack.c.b16 %v1946, %v1943
  %v3021 = vpack.c.b16 %v1947, %v1944
  %v3022 = vpack.c.b16 %v1948, %v1945
  %v3023 = vpack.c.b16 %v1952, %v1949
  %v3024 = vpack.c.b16 %v1953, %v1950
  %v3025 = vpack.c.b16 %v1954, %v1951
  %v3026 = vpack.c.b16 %v1958, %v1955
  %v3027 = vpack.c.b16 %v1959, %v1956
  %v3028 = vpack.c.b16 %v1960, %v1957
  %v3029 = vpack.c.b16 %v1964, %v1961
  %v3030 = vpack.c.b16 %v1965, %v1962
  %v3031 = vpack.c.b16 %v1966, %v1963
  %v3032 = vpack.c.b16 %v1970, %v1967
  %v3033 = vpack.c.b16 %v1971, %v1968
  %v3034 = vpack.c.b16 %v1972, %v1969
  %v3035 = vpack.c.b16 %v1976, %v1973
  %v3036 = vpack.c.b16 %v1977, %v1974
  %v3037 = vpack.c.b16 %v1978, %v1975
  %v3038 = vpack.c.b16 %v1982, %v1979
  %v3039 = vpack.c.b16 %v1983, %v1980
  %v3040 = vpack.c.b16 %v1984, %v1981
  %v3041 = vpack.c.b16 %v1988, %v1985
  %v3042 = vpack.c.b16 %v1989, %v1986
  %v3043 = vpack.c.b16 %v1990, %v1987
  %v3044 = vpack.c.b16 %v1994, %v1991
  %v3045 = vpack.c.b16 %v1995, %v1992
  %v3046 = vpack.c.b16 %v1996, %v1993
  %v3047 = vpack.c.b16 %v2000, %v1997
  %v3048 = vpack.c.b16 %v2001, %v1998
  %v3049 = vpack.c.b16 %v2002, %v1999
  %v3050 = vpack.c.b16 %v2006, %v2003
  %v3051 = vpack.c.b16 %v2007, %v2004
  %v3052 = vpack.c.b16 %v2008, %v2005
  %v3053 = vpack.c.b16 %v2012, %v2009
  %v3054 = vpack.c.b16 %v2013, %v2010
  %v3055 = vpack.c.b16 %v2014, %v2011
  %v3056 = vpack.c.b16 %v2018, %v2015
  %v3057 = vpack.c.b16 %v2019, %v2016
  %v3058 = vpack.c.b16 %v2020, %v2017
  %v3059 = vpack.c.b16 %v2024, %v2021
  %v3060 = vpack.c.b16 %v2025, %v2022
  %v3061 = vpack.c.b16 %v2026, %v2023
  %v3062 = vpack.c.b16 %v2030, %v2027
  %v3063 = vpack.c.b16 %v2031, %v2028
  %v3064 = vpack.c.b16 %v2032, %v2029
  %v3065 = vpack.c.b16 %v2036, %v2033
  %v3066 = vpack.c.b16 %v2037, %v2034
  %v3067 = vpack.c.b16 %v2038, %v2035
  %v3068 = vpack.c.b16 %v2042, %v2039
  %v3069 = vpack.c.b16 %v2043, %v2040
  %v3070 = vpack.c.b16 %v2044, %v2041
  %v3071 = vpack.c.b16 %v2048, %v2045
  %v3072 = vpack.c.b16 %v2049, %v2046
  %v3073 = vpack.c.b16 %v2050, %v2047
  %v3074 = vpack.c.b16 %v2054, %v2051
  %v3075 = vpack.c.b16 %v2055, %v2052
  %v3076 = vpack.c.b16 %v2056, %v2053
  %v3077 = vpack.c.b16 %v2060, %v2057
  %v3078 = vpack.c.b16 %v2061, %v2058
  %v3079 = vpack.c.b16 %v2062, %v2059
  %v3080 = vpack.c.b16 %v2066, %v2063
  %v3081 = vpack.c.b16 %v2067, %v2064
  %v3082 = vpack.c.b16 %v2068, %v2065
  %v3083 = vpack.c.b16 %v2072, %v2069
  %v3084 = vpack.c.b16 %v2073, %v2070
  %v3085 = vpack.c.b16 %v2074, %v2071
  %v3086 = vpack.c.b16 %v2078, %v2075
  %v3087 = vpack.c.b16 %v2079, %v2076
  %v3088 = vpack.c.b16 %v2080, %v2077
  %v3089 = vpack.c.b16 %v2084, %v2081
  %v3090 = vpack.c.b16 %v2085, %v2082
  %v3091 = vpack.c.b16 %v2086, %v2083
  %v3092 = vpack.c.b16 %v2090, %v2087
  %v3093 = vpack.c.b16 %v2091, %v2088
  %v3094 = vpack.c.b16 %v2092, %v2089
  %v3095 = vpack.c.b16 %v2096, %v2093
  %v3096 = vpack.c.b16 %v2097, %v2094
  %v3097 = vpack.c.b16 %v2098, %v2095
  %v3098 = vpack.c.b16 %v2102, %v2099
  %v3099 = vpack.c.b16 %v2103, %v2100
  %v3100 = vpack.c.b16 %v2104, %v2101
  %v3101 = vpack.c.b16 %v2108, %v2105
  %v3102 = vpack.c.b16 %v2109, %v2106
  %v3103 = vpack.c.b16 %v2110, %v2107
  %v3104 = vpack.c.b16 %v2114, %v2111
  %v3105 = vpack.c.b16 %v2115, %v2112
  %v3106 = vpack.c.b16 %v2116, %v2113
  %v3107 = vpack.c.b16 %v2120, %v2117
  %v3108 = vpack.c.b16 %v2121, %v2118
  %v3109 = vpack.c.b16 %v2122, %v2119
  %v3110 = vpack.c.b16 %v2126, %v2123
  %v3111 = vpack.c.b16 %v2127, %v2124
  %v3112 = vpack.c.b16 %v2128, %v2125
  %v3113 = vpack.c.b16 %v2132, %v2129
  %v3114 = vpack.c.b16 %v2133, %v2130
  %v3115 = vpack.c.b16 %v2134, %v2131
  %v3116 = vpack.c.b16 %v2138, %v2135
  %v3117 = vpack.c.b16 %v2139, %v2136
  %v3118 = vpack.c.b16 %v2140, %v2137
  %v3119 = vpack.c.b16 %v2144, %v2141
  %v3120 = vpack.c.b16 %v2145, %v2142
  %v3121 = vpack.c.b16 %v2146, %v2143
  %v3122 = vpack.c.b16 %v2150, %v2147
  %v3123 = vpack.c.b16 %v2151, %v2148
  %v3124 = vpack.c.b16 %v2152, %v2149
  %v3125 = vpack.c.b16 %v2156, %v2153
  %v3126 = vpack.c.b16 %v2157, %v2154
  %v3127 = vpack.c.b16 %v2158, %v2155
  %v3128 = vpack.c.b16 %v2162, %v2159
  %v3129 = vpack.c.b16 %v2163, %v2160
  %v3130 = vpack.c.b16 %v2164, %v2161
  %v3131 = vpack.c.b16 %v2168, %v2165
  %v3132 = vpack.c.b16 %v2169, %v2166
  %v3133 = vpack.c.b16 %v2170, %v2167
  %v3134 = vpack.c.b16 %v2174, %v2171
  %v3135 = vpack.c.b16 %v2175, %v2172
  %v3136 = vpack.c.b16 %v2176, %v2173
  %v3137 = vpack.c.b16 %v2180, %v2177
  %v3138 = vpack.c.b16 %v2181, %v2178
  %v3139 = vpack.c.b16 %v2182, %v2179
  %v3140 = vpack.c.b16 %v2186, %v2183
  %v3141 = vpack.c.b16 %v2187, %v2184
  %v3142 = vpack.c.b16 %v2188, %v2185
  %v3143 = vpack.c.b16 %v2192, %v2189
  %v3144 = vpack.c.b16 %v2193, %v2190
  %v3145 = vpack.c.b16 %v2194, %v2191
  %v3146 = vpack.c.b16 %v2198, %v2195
  %v3147 = vpack.c.b16 %v2199, %v2196
  %v3148 = vpack.c.b16 %v2200, %v2197
  %v3149 = vpack.c.b16 %v2204, %v2201
  %v3150 = vpack.c.b16 %v2205, %v2202
  %v3151 = vpack.c.b16 %v2206, %v2203
  %v3152 = vpack.c.b16 %v2210, %v2207
  %v3153 = vpack.c.b16 %v2211, %v2208
  %v3154 = vpack.c.b16 %v2212, %v2209
  %v3155 = vpack.c.b16 %v2216, %v2213
  %v3156 = vpack.c.b16 %v2217, %v2214
  %v3157 = vpack.c.b16 %v2218, %v2215
  %v3158 = vpack.c.b16 %v2222, %v2219
  %v3159 = vpack.c.b16 %v2223, %v2220
  %v3160 = vpack.c.b16 %v2224, %v2221
  %v3161 = vpack.c.b16 %v2228, %v2225
  %v3162 = vpack.c.b16 %v2229, %v2226
  %v3163 = vpack.c.b16 %v2230, %v2227
  %v3164 = vpack.c.b16 %v2234, %v2231
  %v3165 = vpack.c.b16 %v2235, %v2232
  %v3166 = vpack.c.b16 %v2236, %v2233
  %v3167 = vpack.c.b16 %v2240, %v2237
  %v3168 = vpack.c.b16 %v2241, %v2238
  %v3169 = vpack.c.b16 %v2242, %v2239
  %v3170 = vpack.c.b16 %v2246, %v2243
  %v3171 = vpack.c.b16 %v2247, %v2244
  %v3172 = vpack.c.b16 %v2248, %v2245
  %v3173 = vpack.c.b16 %v2252, %v2249
  %v3174 = vpack.c.b16 %v2253, %v2250
  %v3175 = vpack.c.b16 %v2254, %v2251
  %v3176 = vpack.c.b16 %v2258, %v2255
  %v3177 = vpack.c.b16 %v2259, %v2256
  %v3178 = vpack.c.b16 %v2260, %v2257
  %v3179 = vpack.c.b16 %v2264, %v2261
  %v3180 = vpack.c.b16 %v2265, %v2262
  %v3181 = vpack.c.b16 %v2266, %v2263
  %v3182 = vpack.c.b16 %v2270, %v2267
  %v3183 = vpack.c.b16 %v2271, %v2268
  %v3184 = vpack.c.b16 %v2272, %v2269
  %v3185 = vpack.c.b16 %v2276, %v2273
  %v3186 = vpack.c.b16 %v2277, %v2274
  %v3187 = vpack.c.b16 %v2278, %v2275
  %v3188 = vpack.c.b16 %v2282, %v2279
  %v3189 = vpack.c.b16 %v2283, %v2280
  %v3190 = vpack.c.b16 %v2284, %v2281
  %v3191 = vpack.c.b16 %v2288, %v2285
  %v3192 = vpack.c.b16 %v2289, %v2286
  %v3193 = vpack.c.b16 %v2290, %v2287
  %v3194 = vpack.c.b16 %v2294, %v2291
  %v3195 = vpack.c.b16 %v2295, %v2292
  %v3196 = vpack.c.b16 %v2296, %v2293
  %v3197 = vpack.c.b16 %v2300, %v2297
  %v3198 = vpack.c.b16 %v2301, %v2298
  %v3199 = vpack.c.b16 %v2302, %v2299
  %v3200 = vpack.c.b16 %v2306, %v2303
  %v3201 = vpack.c.b16 %v2307, %v2304
  %v3202 = vpack.c.b16 %v2308, %v2305
  %v3203 = vpack.c.b16 %v2312, %v2309
  %v3204 = vpack.c.b16 %v2313, %v2310
  %v3205 = vpack.c.b16 %v2314, %v2311
  %v3206 = vpack.c.b16 %v2318, %v2315
  %v3207 = vpack.c.b16 %v2319, %v2316
  %v3208 = vpack.c.b16 %v2320, %v2317
  %v3209 = vpack.c.b16 %v2324, %v2321
  %v3210 = vpack.c.b16 %v2325, %v2322
  %v3211 = vpack.c.b16 %v2326, %v2323
  %v3212 = vpack.c.b16 %v2330, %v2327
  %v3213 = vpack.c.b16 %v2331, %v2328
  %v3214 = vpack.c.b16 %v2332, %v2329
  %v3215 = vpack.c.b16 %v2336, %v2333
  %v3216 = vpack.c.b16 %v2337, %v2334
  %v3217 = vpack.c.b16 %v2338, %v2335
  %v3218 = vpack.c.b16 %v2342, %v2339
  %v3219 = vpack.c.b16 %v2343, %v2340
  %v3220 = vpack.c.b16 %v2344, %v2341
  %v3221 = vpack.c.b16 %v2348, %v2345
  %v3222 = vpack.c.b16 %v2349, %v2346
  %v3223 = vpack.c.b16 %v2350, %v2347
  %v3224 = vpack.c.b16 %v2354, %v2351
  %v3225 = vpack.c.b16 %v2355, %v2352
  %v3226 = vpack.c.b16 %v2356, %v2353
  %v3227 = vpack.c.b16 %v2360, %v2357
  %v3228 = vpack.c.b16 %v2361, %v2358
  %v3229 = vpack.c.b16 %v2362, %v2359
  %v3230 = vpack.c.b16 %v2366, %v2363
  %v3231 = vpack.c.b16 %v2367, %v2364
  %v3232 = vpack.c.b16 %v2368, %v2365
  %v3233 = vpack.c.b16 %v2372, %v2369
  %v3234 = vpack.c.b16 %v2373, %v2370
  %v3235 = vpack.c.b16 %v2374, %v2371
  %v3236 = vpack.c.b16 %v2378, %v2375
  %v3237 = vpack.c.b16 %v2379, %v2376
  %v3238 = vpack.c.b16 %v2380, %v2377
  %v3239 = vpack.c.b16 %v2384, %v2381
  %v3240 = vpack.c.b16 %v2385, %v2382
  %v3241 = vpack.c.b16 %v2386, %v2383
  %v3242 = vpack.c.b16 %v2390, %v2387
  %v3243 = vpack.c.b16 %v2391, %v2388
  %v3244 = vpack.c.b16 %v2392, %v2389
  %v3245 = vpack.c.b16 %v2396, %v2393
  %v3246 = vpack.c.b16 %v2397, %v2394
  %v3247 = vpack.c.b16 %v2398, %v2395
  %v3248 = vpack.c.b16 %v2402, %v2399
  %v3249 = vpack.c.b16 %v2403, %v2400
  %v3250 = vpack.c.b16 %v2404, %v2401
  %v3251 = vpack.c.b16 %v2408, %v2405
  %v3252 = vpack.c.b16 %v2409, %v2406
  %v3253 = vpack.c.b16 %v2410, %v2407
  %v3254 = vpack.c.b16 %v2414, %v2411
  %v3255 = vpack.c.b16 %v2415, %v2412
  %v3256 = vpack.c.b16 %v2416, %v2413
  %v3257 = vpack.c.b16 %v2420, %v2417
  %v3258 = vpack.c.b16 %v2421, %v2418
  %v3259 = vpack.c.b16 %v2422, %v2419
  %v3260 = vpack.c.b16 %v2426, %v2423
  %v3261 = vpack.c.b16 %v2427, %v2424
  %v3262 = vpack.c.b16 %v2428, %v2425
  %v3263 = vpack.c.b16 %v2432, %v2429
  %v3264 = vpack.c.b16 %v2433, %v2430
  %v3265 = vpack.c.b16 %v2434, %v2431
  %v3266 = vpack.c.b16 %v2438, %v2435
  %v3267 = vpack.c.b16 %v2439, %v2436
  %v3268 = vpack.c.b16 %v2440, %v2437
  %v3269 = vpack.c.b16 %v2444, %v2441
  %v3270 = vpack.c.b16 %v2445, %v2442
  %v3271 = vpack.c.b16 %v2446, %v2443
  %v3272 = vpack.c.b16 %v2450, %v2447
  %v3273 = vpack.c.b16 %v2451, %v2448
  %v3274 = vpack.c.b16 %v2452, %v2449
  %v3275 = vpack.c.b16 %v2456, %v2453
  %v3276 = vpack.c.b16 %v2457, %v2454
  %v3277 = vpack.c.b16 %v2458, %v2455
  %v3278 = vpack.c.b16 %v2462, %v2459
  %v3279 = vpack.c.b16 %v2463, %v2460
  %v3280 = vpack.c.b16 %v2464, %v2461
  %v3281 = vpack.c.b16 %v2468, %v2465
  %v3282 = vpack.c.b16 %v2469, %v2466
  %v3283 = vpack.c.b16 %v2470, %v2467
  %v3284 = vpack.c.b16 %v2474, %v2471
  %v3285 = vpack.c.b16 %v2475, %v2472
  %v3286 = vpack.c.b16 %v2476, %v2473
  %v3287 = vpack.c.b16 %v2480, %v2477
  %v3288 = vpack.c.b16 %v2481, %v2478
  %v3289 = vpack.c.b16 %v2482, %v2479
  %v3290 = vpack.c.b16 %v2486, %v2483
  %v3291 = vpack.c.b16 %v2487, %v2484
  %v3292 = vpack.c.b16 %v2488, %v2485
  %v3293 = vpack.c.b16 %v2492, %v2489
  %v3294 = vpack.c.b16 %v2493, %v2490
  %v3295 = vpack.c.b16 %v2494, %v2491
  %v3296 = vpack.c.b16 %v2498, %v2495
  %v3297 = vpack.c.b16 %v2499, %v2496
  %v3298 = vpack.c.b16 %v2500, %v2497
  %v3299 = vpack.c.b16 %v2504, %v2501
  %v3300 = vpack.c.b16 %v2505, %v2502
  %v3301 = vpack.c.b16 %v2506, %v2503
  %v3302 = vpack.c.b16 %v2510, %v2507
  %v3303 = vpack.c.b16 %v2511, %v2508
  %v3304 = vpack.c.b16 %v2512, %v2509
  %v3305 = vpack.c.b16 %v2516, %v2513
  %v3306 = vpack.c.b16 %v2517, %v2514
  %v3307 = vpack.c.b16 %v2518, %v2515
  %v3308 = vpack.c.b16 %v2522, %v2519
  %v3309 = vpack.c.b16 %v2523, %v2520
  %v3310 = vpack.c.b16 %v2524, %v2521
  %v3311 = vpack.c.b16 %v2528, %v2525
  %v3312 = vpack.c.b16 %v2529, %v2526
  %v3313 = vpack.c.b16 %v2530, %v2527
  %v3314 = vpack.c.b16 %v2534, %v2531
  %v3315 = vpack.c.b16 %v2535, %v2532
  %v3316 = vpack.c.b16 %v2536, %v2533
  %v3317 = vpack.c.b16 %v2540, %v2537
  %v3318 = vpack.c.b16 %v2541, %v2538
  %v3319 = vpack.c.b16 %v2542, %v2539
  %v3320 = vpack.c.b16 %v2546, %v2543
  %v3321 = vpack.c.b16 %v2547, %v2544
  %v3322 = vpack.c.b16 %v2548, %v2545
  %v3323 = vpack.c.b16 %v2552, %v2549
  %v3324 = vpack.c.b16 %v2553, %v2550
  %v3325 = vpack.c.b16 %v2554, %v2551
  %v3326 = vpack.c.b16 %v2558, %v2555
  %v3327 = vpack.c.b16 %v2559, %v2556
  %v3328 = vpack.c.b16 %v2560, %v2557
  %v3329 = vpack.c.b16 %v2564, %v2561
  %v3330 = vpack.c.b16 %v2565, %v2562
  %v3331 = vpack.c.b16 %v2566, %v2563
  %v3332 = vpack.c.b16 %v2570, %v2567
  %v3333 = vpack.c.b16 %v2571, %v2568
  %v3334 = vpack.c.b16 %v2572, %v2569
  %v3335 = vpack.c.b16 %v2576, %v2573
  %v3336 = vpack.c.b16 %v2577, %v2574
  %v3337 = vpack.c.b16 %v2578, %v2575
  %v3338 = vpack.c.b16 %v2582, %v2579
  %v3339 = vpack.c.b16 %v2583, %v2580
  %v3340 = vpack.c.b16 %v2584, %v2581
  %v3341 = vpack.c.b16 %v2588, %v2585
  %v3342 = vpack.c.b16 %v2589, %v2586
  %v3343 = vpack.c.b16 %v2590, %v2587
  %v3344 = vpack.c.b16 %v2594, %v2591
  %v3345 = vpack.c.b16 %v2595, %v2592
  %v3346 = vpack.c.b16 %v2596, %v2593
  %v3347 = vpack.c.b16 %v2600, %v2597
  %v3348 = vpack.c.b16 %v2601, %v2598
  %v3349 = vpack.c.b16 %v2602, %v2599
  %v3350 = vpack.c.b16 %v2606, %v2603
  %v3351 = vpack.c.b16 %v2607, %v2604
  %v3352 = vpack.c.b16 %v2608, %v2605
  %v3353 = vpack.c.b16 %v2612, %v2609
  %v3354 = vpack.c.b16 %v2613, %v2610
  %v3355 = vpack.c.b16 %v2614, %v2611
  %v3356 = vpack.c.b16 %v2618, %v2615
  %v3357 = vpack.c.b16 %v2619, %v2616
  %v3358 = vpack.c.b16 %v2620, %v2617
  %v3359 = vpack.c.b16 %v2624, %v2621
  %v3360 = vpack.c.b16 %v2625, %v2622
  %v3361 = vpack.c.b16 %v2626, %v2623
  %v3362 = vpack.c.b16 %v2630, %v2627
  %v3363 = vpack.c.b16 %v2631, %v2628
  %v3364 = vpack.c.b16 %v2632, %v2629
  %v3365 = vpack.c.b16 %v2636, %v2633
  %v3366 = vpack.c.b16 %v2637, %v2634
  %v3367 = vpack.c.b16 %v2638, %v2635
  %v3368 = vpack.c.b16 %v2642, %v2639
  %v3369 = vpack.c.b16 %v2643, %v2640
  %v3370 = vpack.c.b16 %v2644, %v2641
  %v3371 = vpack.c.b16 %v2648, %v2645
  %v3372 = vpack.c.b16 %v2649, %v2646
  %v3373 = vpack.c.b16 %v2650, %v2647
  %v3374 = vpack.c.b16 %v2654, %v2651
  %v3375 = vpack.c.b16 %v2655, %v2652
  %v3376 = vpack.c.b16 %v2656, %v2653
  %v3377 = vpack.c.b16 %v2660, %v2657
  %v3378 = vpack.c.b16 %v2661, %v2658
  %v3379 = vpack.c.b16 %v2662, %v2659
  %v3380 = vpack.c.b16 %v2666, %v2663
  %v3381 = vpack.c.b16 %v2667, %v2664
  %v3382 = vpack.c.b16 %v2668, %v2665
  %v3383 = vpack.c.b16 %v2672, %v2669
  %v3384 = vpack.c.b16 %v2673, %v2670
  %v3385 = vpack.c.b16 %v2674, %v2671
  %v3386 = vpack.c.b16 %v2678, %v2675
  %v3387 = vpack.c.b16 %v2679, %v2676
  %v3388 = vpack.c.b16 %v2680, %v2677
  %v3389 = vpack.c.b16 %v2684, %v2681
  %v3390 = vpack.c.b16 %v2685, %v2682
  %v3391 = vpack.c.b16 %v2686, %v2683
  %v3392 = vpack.c.b16 %v2690, %v2687
  %v3393 = vpack.c.b16 %v2691, %v2688
  %v3394 = vpack.c.b16 %v2692, %v2689
  %v3395 = vpack.c.b16 %v2696, %v2693
  %v3396 = vpack.c.b16 %v2697, %v2694
  %v3397 = vpack.c.b16 %v2698, %v2695
  %v3398 = vpack.c.b16 %v2702, %v2699
  %v3399 = vpack.c.b16 %v2703, %v2700
  %v3400 = vpack.c.b16 %v2704, %v2701
  %v3401 = vpack.c.b16 %v2708, %v2705
  %v3402 = vpack.c.b16 %v2709, %v2706
  %v3403 = vpack.c.b16 %v2710, %v2707
  %v3404 = vpack.c.b16 %v2714, %v2711
  %v3405 = vpack.c.b16 %v2715, %v2712
  %v3406 = vpack.c.b16 %v2716, %v2713
  %v3407 = vpack.c.b16 %v2720, %v2717
  %v3408 = vpack.c.b16 %v2721, %v2718
  %v3409 = vpack.c.b16 %v2722, %v2719
  %v3410 = vpack.c.b16 %v2726, %v2723
  %v3411 = vpack.c.b16 %v2727, %v2724
  %v3412 = vpack.c.b16 %v2728, %v2725
  %v3413 = vpack.c.b16 %v2732, %v2729
  %v3414 = vpack.c.b16 %v2733, %v2730
  %v3415 = vpack.c.b16 %v2734, %v2731
  %v3416 = vpack.c.b16 %v2738, %v2735
  %v3417 = vpack.c.b16 %v2739, %v2736
  %v3418 = vpack.c.b16 %v2740, %v2737
  %v3419 = vpack.c.b16 %v2744, %v2741
  %v3420 = vpack.c.b16 %v2745, %v2742
  %v3421 = vpack.c.b16 %v2746, %v2743
  %v3422 = vpack.c.b16 %v2750, %v2747
  %v3423 = vpack.c.b16 %v2751, %v2748
  %v3424 = vpack.c.b16 %v2752, %v2749
  %v3425 = vpack.c.b16 %v2756, %v2753
  %v3426 = vpack.c.b16 %v2757, %v2754
  %v3427 = vpack.c.b16 %v2758, %v2755
  %v3428 = vpack.c.b16 %v2762, %v2759
  %v3429 = vpack.c.b16 %v2763, %v2760
  %v3430 = vpack.c.b16 %v2764, %v2761
  %v3431 = vpack.c.b16 %v2768, %v2765
  %v3432 = vpack.c.b16 %v2769, %v2766
  %v3433 = vpack.c.b16 %v2770, %v2767
  %v3434 = vpack.c.b16 %v2774, %v2771
  %v3435 = vpack.c.b16 %v2775, %v2772
  %v3436 = vpack.c.b16 %v2776, %v2773
  %v3437 = vpack.c.b16 %v2780, %v2777
  %v3438 = vpack.c.b16 %v2781, %v2778
  %v3439 = vpack.c.b16 %v2782, %v2779
  %v3440 = vpack.c.b16 %v2786, %v2783
  %v3441 = vpack.c.b16 %v2787, %v2784
  %v3442 = vpack.c.b16 %v2788, %v2785
  %v3443 = vpack.c.b16 %v2792, %v2789
  %v3444 = vpack.c.b16 %v2793, %v2790
  %v3445 = vpack.c.b16 %v2794, %v2791
  %v3446 = vpack.c.b16 %v2798, %v2795
  %v3447 = vpack.c.b16 %v2799, %v2796
  %v3448 = vpack.c.b16 %v2800, %v2797
  %v3449 = vpack.c.b16 %v2804, %v2801
  %v3450 = vpack.c.b16 %v2805, %v2802
  %v3451 = vpack.c.b16 %v2806, %v2803
  %v3452 = vpack.c.b16 %v2810, %v2807
  %v3453 = vpack.c.b16 %v2811, %v2808
  %v3454 = vpack.c.b16 %v2812, %v2809
  %v3455 = vpack.c.b16 %v2816, %v2813
  %v3456 = vpack.c.b16 %v2817, %v2814
  %v3457 = vpack.c.b16 %v2818, %v2815
  %v3458 = vpack.c.b16 %v2822, %v2819
  %v3459 = vpack.c.b16 %v2823, %v2820
  %v3460 = vpack.c.b16 %v2824, %v2821
  %v3461 = vpack.c.b16 %v2828, %v2825
  %v3462 = vpack.c.b16 %v2829, %v2826
  %v3463 = vpack.c.b16 %v2830, %v2827
  %v3464 = vpack.c.b16 %v2834, %v2831
  %v3465 = vpack.c.b16 %v2835, %v2832
  %v3466 = vpack.c.b16 %v2836, %v2833
  %v3467 = vpack.c.b16 %v2840, %v2837
  %v3468 = vpack.c.b16 %v2841, %v2838
  %v3469 = vpack.c.b16 %v2842, %v2839
  %v3470 = vpack.c.b16 %v2846, %v2843
  %v3471 = vpack.c.b16 %v2847, %v2844
  %v3472 = vpack.c.b16 %v2848, %v2845
  %v3473 = vpack.c.b16 %v2852, %v2849
  %v3474 = vpack.c.b16 %v2853, %v2850
  %v3475 = vpack.c.b16 %v2854, %v2851
  %v3476 = vpack.c.b16 %v2858, %v2855
  %v3477 = vpack.c.b16 %v2859, %v2856
  %v3478 = vpack.c.b16 %v2860, %v2857
  %v3479 = vpack.c.b16 %v2864, %v2861
  %v3480 = vpack.c.b16 %v2865, %v2862
  %v3481 = vpack.c.b16 %v2866, %v2863
  %v3482 = vpack.c.b16 %v2870, %v2867
  %v3483 = vpack.c.b16 %v2871, %v2868
  %v3484 = vpack.c.b16 %v2872, %v2869
  %v3485 = vpack.c.b16 %v2876, %v2873
  %v3486 = vpack.c.b16 %v2877, %v2874
  %v3487 = vpack.c.b16 %v2878, %v2875
  %v3488 = vpack.c.b16 %v2882, %v2879
  %v3489 = vpack.c.b16 %v2883, %v2880
  %v3490 = vpack.c.b16 %v2884, %v2881
  %v3491 = vpack.c.b16 %v2888, %v2885
  %v3492 = vpack.c.b16 %v2889, %v2886
  %v3493 = vpack.c.b16 %v2890, %v2887
  %v3494 = vpack.c.b16 %v2894, %v2891
  %v3495 = vpack.c.b16 %v2895, %v2892
  %v3496 = vpack.c.b16 %v2896, %v2893
  %4097 = vmatpush.bf16.msra.mxu0 %v2918
  %4098 = vmatpush.bf16.msra.mxu0 %v2915
  %4099 = vmatpush.bf16.msra.mxu0 %v2912
  %4100 = vmatpush.bf16.msra.mxu0 %v2909
  %4101 = vmatpush.bf16.msra.mxu0 %v2906
  %4102 = vmatpush.bf16.msra.mxu0 %v2903
  %4103 = vmatpush.bf16.msra.mxu0 %v2900
  %4104 = vmatpush.bf16.msra.mxu0 %v2897
  %4105 = vmatmul.bf16.gmra.mxu0 %v841
  %v4106 = vpop.f32.mrf.mxu0
  %v4107 = vadd.f32 0.0, %v4106
  %v4108 = vpop.f32.mrf.mxu0
  %4109 = vdwg.mxu0
  %4110 = vmatpush.bf16.msra.mxu0 %v2942
  %4111 = vmatpush.bf16.msra.mxu0 %v2939
  %4112 = vmatpush.bf16.msra.mxu0 %v2936
  %4113 = vmatpush.bf16.msra.mxu0 %v2933
  %4114 = vmatpush.bf16.msra.mxu0 %v2930
  %4115 = vmatpush.bf16.msra.mxu0 %v2927
  %4116 = vmatpush.bf16.msra.mxu0 %v2924
  %4117 = vmatpush.bf16.msra.mxu0 %v2921
  %4118 = vmatmul.bf16.gmra.mxu0 %v842
  %v4119 = vpop.f32.mrf.mxu0
  %v4120 = vadd.f32 %v4107, %v4119
  %v4121 = vpop.f32.mrf.mxu0
  %4122 = vdwg.mxu0
  %4123 = vmatpush.bf16.msra.mxu0 %v2966
  %4124 = vmatpush.bf16.msra.mxu0 %v2963
  %4125 = vmatpush.bf16.msra.mxu0 %v2960
  %4126 = vmatpush.bf16.msra.mxu0 %v2957
  %4127 = vmatpush.bf16.msra.mxu0 %v2954
  %4128 = vmatpush.bf16.msra.mxu0 %v2951
  %4129 = vmatpush.bf16.msra.mxu0 %v2948
  %4130 = vmatpush.bf16.msra.mxu0 %v2945
  %4131 = vmatmul.bf16.gmra.mxu0 %v843
  %v4132 = vpop.f32.mrf.mxu0
  %v4133 = vadd.f32 %v4120, %v4132
  %v4134 = vpop.f32.mrf.mxu0
  %4135 = vdwg.mxu0
  %4136 = vmatpush.bf16.msra.mxu0 %v2990
  %4137 = vmatpush.bf16.msra.mxu0 %v2987
  %4138 = vmatpush.bf16.msra.mxu0 %v2984
  %4139 = vmatpush.bf16.msra.mxu0 %v2981
  %4140 = vmatpush.bf16.msra.mxu0 %v2978
  %4141 = vmatpush.bf16.msra.mxu0 %v2975
  %4142 = vmatpush.bf16.msra.mxu0 %v2972
  %4143 = vmatpush.bf16.msra.mxu0 %v2969
  %4144 = vmatmul.bf16.gmra.mxu0 %v844
  %v4145 = vpop.f32.mrf.mxu0
  %v4146 = vadd.f32 %v4133, %v4145
  %v4147 = vpop.f32.mrf.mxu0
  %4148 = vdwg.mxu0
  %4149 = vmatpush.bf16.msra.mxu0 %v3014
  %4150 = vmatpush.bf16.msra.mxu0 %v3011
  %4151 = vmatpush.bf16.msra.mxu0 %v3008
  %4152 = vmatpush.bf16.msra.mxu0 %v3005
  %4153 = vmatpush.bf16.msra.mxu0 %v3002
  %4154 = vmatpush.bf16.msra.mxu0 %v2999
  %4155 = vmatpush.bf16.msra.mxu0 %v2996
  %4156 = vmatpush.bf16.msra.mxu0 %v2993
  %4157 = vmatmul.bf16.gmra.mxu0 %v845
  %v4158 = vpop.f32.mrf.mxu0
  %v4159 = vadd.f32 %v4146, %v4158
  %v4160 = vpop.f32.mrf.mxu0
  %4161 = vdwg.mxu0
  %4162 = vmatpush.bf16.msra.mxu0 %v3038
  %4163 = vmatpush.bf16.msra.mxu0 %v3035
  %4164 = vmatpush.bf16.msra.mxu0 %v3032
  %4165 = vmatpush.bf16.msra.mxu0 %v3029
  %4166 = vmatpush.bf16.msra.mxu0 %v3026
  %4167 = vmatpush.bf16.msra.mxu0 %v3023
  %4168 = vmatpush.bf16.msra.mxu0 %v3020
  %4169 = vmatpush.bf16.msra.mxu0 %v3017
  %4170 = vmatmul.bf16.gmra.mxu0 %v846
  %v4171 = vpop.f32.mrf.mxu0
  %v4172 = vadd.f32 %v4159, %v4171
  %v4173 = vpop.f32.mrf.mxu0
  %4174 = vdwg.mxu0
  %4175 = vmatpush.bf16.msra.mxu0 %v3062
  %4176 = vmatpush.bf16.msra.mxu0 %v3059
  %4177 = vmatpush.bf16.msra.mxu0 %v3056
  %4178 = vmatpush.bf16.msra.mxu0 %v3053
  %4179 = vmatpush.bf16.msra.mxu0 %v3050
  %4180 = vmatpush.bf16.msra.mxu0 %v3047
  %4181 = vmatpush.bf16.msra.mxu0 %v3044
  %4182 = vmatpush.bf16.msra.mxu0 %v3041
  %4183 = vmatmul.bf16.gmra.mxu0 %v847
  %v4184 = vpop.f32.mrf.mxu0
  %v4185 = vadd.f32 %v4172, %v4184
  %v4186 = vpop.f32.mrf.mxu0
  %4187 = vdwg.mxu0
  %4188 = vmatpush.bf16.msra.mxu0 %v3086
  %4189 = vmatpush.bf16.msra.mxu0 %v3083
  %4190 = vmatpush.bf16.msra.mxu0 %v3080
  %4191 = vmatpush.bf16.msra.mxu0 %v3077
  %4192 = vmatpush.bf16.msra.mxu0 %v3074
  %4193 = vmatpush.bf16.msra.mxu0 %v3071
  %4194 = vmatpush.bf16.msra.mxu0 %v3068
  %4195 = vmatpush.bf16.msra.mxu0 %v3065
  %4196 = vmatmul.bf16.gmra.mxu0 %v848
  %v4197 = vpop.f32.mrf.mxu0
  %v4198 = vadd.f32 %v4185, %v4197
  %v4199 = vpop.f32.mrf.mxu0
  %4200 = vdwg.mxu0
  %4201 = vmatpush.bf16.msra.mxu0 %v3110
  %4202 = vmatpush.bf16.msra.mxu0 %v3107
  %4203 = vmatpush.bf16.msra.mxu0 %v3104
  %4204 = vmatpush.bf16.msra.mxu0 %v3101
  %4205 = vmatpush.bf16.msra.mxu0 %v3098
  %4206 = vmatpush.bf16.msra.mxu0 %v3095
  %4207 = vmatpush.bf16.msra.mxu0 %v3092
  %4208 = vmatpush.bf16.msra.mxu0 %v3089
  %4209 = vmatmul.bf16.gmra.mxu0 %v851
  %v4210 = vpop.f32.mrf.mxu0
  %v4211 = vadd.f32 %v4198, %v4210
  %v4212 = vpop.f32.mrf.mxu0
  %4213 = vdwg.mxu0
  %4214 = vmatpush.bf16.msra.mxu0 %v3134
  %4215 = vmatpush.bf16.msra.mxu0 %v3131
  %4216 = vmatpush.bf16.msra.mxu0 %v3128
  %4217 = vmatpush.bf16.msra.mxu0 %v3125
  %4218 = vmatpush.bf16.msra.mxu0 %v3122
  %4219 = vmatpush.bf16.msra.mxu0 %v3119
  %4220 = vmatpush.bf16.msra.mxu0 %v3116
  %4221 = vmatpush.bf16.msra.mxu0 %v3113
  %4222 = vmatmul.bf16.gmra.mxu0 %v852
  %v4223 = vpop.f32.mrf.mxu0
  %v4224 = vadd.f32 %v4211, %v4223
  %v4225 = vpop.f32.mrf.mxu0
  %4226 = vdwg.mxu0
  %4227 = vmatpush.bf16.msra.mxu0 %v3158
  %4228 = vmatpush.bf16.msra.mxu0 %v3155
  %4229 = vmatpush.bf16.msra.mxu0 %v3152
  %4230 = vmatpush.bf16.msra.mxu0 %v3149
  %4231 = vmatpush.bf16.msra.mxu0 %v3146
  %4232 = vmatpush.bf16.msra.mxu0 %v3143
  %4233 = vmatpush.bf16.msra.mxu0 %v3140
  %4234 = vmatpush.bf16.msra.mxu0 %v3137
  %4235 = vmatmul.bf16.gmra.mxu0 %v853
  %v4236 = vpop.f32.mrf.mxu0
  %v4237 = vadd.f32 %v4224, %v4236
  %v4238 = vpop.f32.mrf.mxu0
  %4239 = vdwg.mxu0
  %4240 = vmatpush.bf16.msra.mxu0 %v3182
  %4241 = vmatpush.bf16.msra.mxu0 %v3179
  %4242 = vmatpush.bf16.msra.mxu0 %v3176
  %4243 = vmatpush.bf16.msra.mxu0 %v3173
  %4244 = vmatpush.bf16.msra.mxu0 %v3170
  %4245 = vmatpush.bf16.msra.mxu0 %v3167
  %4246 = vmatpush.bf16.msra.mxu0 %v3164
  %4247 = vmatpush.bf16.msra.mxu0 %v3161
  %4248 = vmatmul.bf16.gmra.mxu0 %v854
  %v4249 = vpop.f32.mrf.mxu0
  %v4250 = vadd.f32 %v4237, %v4249
  %v4251 = vpop.f32.mrf.mxu0
  %4252 = vdwg.mxu0
  %4253 = vmatpush.bf16.msra.mxu0 %v3206
  %4254 = vmatpush.bf16.msra.mxu0 %v3203
  %4255 = vmatpush.bf16.msra.mxu0 %v3200
  %4256 = vmatpush.bf16.msra.mxu0 %v3197
  %4257 = vmatpush.bf16.msra.mxu0 %v3194
  %4258 = vmatpush.bf16.msra.mxu0 %v3191
  %4259 = vmatpush.bf16.msra.mxu0 %v3188
  %4260 = vmatpush.bf16.msra.mxu0 %v3185
  %4261 = vmatmul.bf16.gmra.mxu0 %v855
  %v4262 = vpop.f32.mrf.mxu0
  %v4263 = vadd.f32 %v4250, %v4262
  %v4264 = vpop.f32.mrf.mxu0
  %4265 = vdwg.mxu0
  %4266 = vmatpush.bf16.msra.mxu0 %v3230
  %4267 = vmatpush.bf16.msra.mxu0 %v3227
  %4268 = vmatpush.bf16.msra.mxu0 %v3224
  %4269 = vmatpush.bf16.msra.mxu0 %v3221
  %4270 = vmatpush.bf16.msra.mxu0 %v3218
  %4271 = vmatpush.bf16.msra.mxu0 %v3215
  %4272 = vmatpush.bf16.msra.mxu0 %v3212
  %4273 = vmatpush.bf16.msra.mxu0 %v3209
  %4274 = vmatmul.bf16.gmra.mxu0 %v856
  %v4275 = vpop.f32.mrf.mxu0
  %v4276 = vadd.f32 %v4263, %v4275
  %v4277 = vpop.f32.mrf.mxu0
  %4278 = vdwg.mxu0
  %4279 = vmatpush.bf16.msra.mxu0 %v3254
  %4280 = vmatpush.bf16.msra.mxu0 %v3251
  %4281 = vmatpush.bf16.msra.mxu0 %v3248
  %4282 = vmatpush.bf16.msra.mxu0 %v3245
  %4283 = vmatpush.bf16.msra.mxu0 %v3242
  %4284 = vmatpush.bf16.msra.mxu0 %v3239
  %4285 = vmatpush.bf16.msra.mxu0 %v3236
  %4286 = vmatpush.bf16.msra.mxu0 %v3233
  %4287 = vmatmul.bf16.gmra.mxu0 %v857
  %v4288 = vpop.f32.mrf.mxu0
  %v4289 = vadd.f32 %v4276, %v4288
  %v4290 = vpop.f32.mrf.mxu0
  %4291 = vdwg.mxu0
  %4292 = vmatpush.bf16.msra.mxu0 %v3278
  %4293 = vmatpush.bf16.msra.mxu0 %v3275
  %4294 = vmatpush.bf16.msra.mxu0 %v3272
  %4295 = vmatpush.bf16.msra.mxu0 %v3269
  %4296 = vmatpush.bf16.msra.mxu0 %v3266
  %4297 = vmatpush.bf16.msra.mxu0 %v3263
  %4298 = vmatpush.bf16.msra.mxu0 %v3260
  %4299 = vmatpush.bf16.msra.mxu0 %v3257
  %4300 = vmatmul.bf16.gmra.mxu0 %v858
  %v4301 = vpop.f32.mrf.mxu0
  %v4302 = vadd.f32 %v4289, %v4301
  %v4303 = vpop.f32.mrf.mxu0
  %4304 = vdwg.mxu0
  %4305 = vmatpush.bf16.msra.mxu0 %v3302
  %4306 = vmatpush.bf16.msra.mxu0 %v3299
  %4307 = vmatpush.bf16.msra.mxu0 %v3296
  %4308 = vmatpush.bf16.msra.mxu0 %v3293
  %4309 = vmatpush.bf16.msra.mxu0 %v3290
  %4310 = vmatpush.bf16.msra.mxu0 %v3287
  %4311 = vmatpush.bf16.msra.mxu0 %v3284
  %4312 = vmatpush.bf16.msra.mxu0 %v3281
  %4313 = vmatmul.bf16.gmra.mxu0 %v861
  %v4314 = vpop.f32.mrf.mxu0
  %v4315 = vadd.f32 %v4302, %v4314
  %v4316 = vpop.f32.mrf.mxu0
  %4317 = vdwg.mxu0
  %4318 = vmatpush.bf16.msra.mxu0 %v3326
  %4319 = vmatpush.bf16.msra.mxu0 %v3323
  %4320 = vmatpush.bf16.msra.mxu0 %v3320
  %4321 = vmatpush.bf16.msra.mxu0 %v3317
  %4322 = vmatpush.bf16.msra.mxu0 %v3314
  %4323 = vmatpush.bf16.msra.mxu0 %v3311
  %4324 = vmatpush.bf16.msra.mxu0 %v3308
  %4325 = vmatpush.bf16.msra.mxu0 %v3305
  %4326 = vmatmul.bf16.gmra.mxu0 %v862
  %v4327 = vpop.f32.mrf.mxu0
  %v4328 = vadd.f32 %v4315, %v4327
  %v4329 = vpop.f32.mrf.mxu0
  %4330 = vdwg.mxu0
  %4331 = vmatpush.bf16.msra.mxu0 %v3350
  %4332 = vmatpush.bf16.msra.mxu0 %v3347
  %4333 = vmatpush.bf16.msra.mxu0 %v3344
  %4334 = vmatpush.bf16.msra.mxu0 %v3341
  %4335 = vmatpush.bf16.msra.mxu0 %v3338
  %4336 = vmatpush.bf16.msra.mxu0 %v3335
  %4337 = vmatpush.bf16.msra.mxu0 %v3332
  %4338 = vmatpush.bf16.msra.mxu0 %v3329
  %4339 = vmatmul.bf16.gmra.mxu0 %v863
  %v4340 = vpop.f32.mrf.mxu0
  %v4341 = vadd.f32 %v4328, %v4340
  %v4342 = vpop.f32.mrf.mxu0
  %4343 = vdwg.mxu0
  %4344 = vmatpush.bf16.msra.mxu0 %v3374
  %4345 = vmatpush.bf16.msra.mxu0 %v3371
  %4346 = vmatpush.bf16.msra.mxu0 %v3368
  %4347 = vmatpush.bf16.msra.mxu0 %v3365
  %4348 = vmatpush.bf16.msra.mxu0 %v3362
  %4349 = vmatpush.bf16.msra.mxu0 %v3359
  %4350 = vmatpush.bf16.msra.mxu0 %v3356
  %4351 = vmatpush.bf16.msra.mxu0 %v3353
  %4352 = vmatmul.bf16.gmra.mxu0 %v864
  %v4353 = vpop.f32.mrf.mxu0
  %v4354 = vadd.f32 %v4341, %v4353
  %v4355 = vpop.f32.mrf.mxu0
  %4356 = vdwg.mxu0
  %4357 = vmatpush.bf16.msra.mxu0 %v3398
  %4358 = vmatpush.bf16.msra.mxu0 %v3395
  %4359 = vmatpush.bf16.msra.mxu0 %v3392
  %4360 = vmatpush.bf16.msra.mxu0 %v3389
  %4361 = vmatpush.bf16.msra.mxu0 %v3386
  %4362 = vmatpush.bf16.msra.mxu0 %v3383
  %4363 = vmatpush.bf16.msra.mxu0 %v3380
  %4364 = vmatpush.bf16.msra.mxu0 %v3377
  %4365 = vmatmul.bf16.gmra.mxu0 %v865
  %v4366 = vpop.f32.mrf.mxu0
  %v4367 = vadd.f32 %v4354, %v4366
  %v4368 = vpop.f32.mrf.mxu0
  %4369 = vdwg.mxu0
  %4370 = vmatpush.bf16.msra.mxu0 %v3422
  %4371 = vmatpush.bf16.msra.mxu0 %v3419
  %4372 = vmatpush.bf16.msra.mxu0 %v3416
  %4373 = vmatpush.bf16.msra.mxu0 %v3413
  %4374 = vmatpush.bf16.msra.mxu0 %v3410
  %4375 = vmatpush.bf16.msra.mxu0 %v3407
  %4376 = vmatpush.bf16.msra.mxu0 %v3404
  %4377 = vmatpush.bf16.msra.mxu0 %v3401
  %4378 = vmatmul.bf16.gmra.mxu0 %v866
  %v4379 = vpop.f32.mrf.mxu0
  %v4380 = vadd.f32 %v4367, %v4379
  %v4381 = vpop.f32.mrf.mxu0
  %4382 = vdwg.mxu0
  %4383 = vmatpush.bf16.msra.mxu0 %v3446
  %4384 = vmatpush.bf16.msra.mxu0 %v3443
  %4385 = vmatpush.bf16.msra.mxu0 %v3440
  %4386 = vmatpush.bf16.msra.mxu0 %v3437
  %4387 = vmatpush.bf16.msra.mxu0 %v3434
  %4388 = vmatpush.bf16.msra.mxu0 %v3431
  %4389 = vmatpush.bf16.msra.mxu0 %v3428
  %4390 = vmatpush.bf16.msra.mxu0 %v3425
  %4391 = vmatmul.bf16.gmra.mxu0 %v867
  %v4392 = vpop.f32.mrf.mxu0
  %v4393 = vadd.f32 %v4380, %v4392
  %v4394 = vpop.f32.mrf.mxu0
  %4395 = vdwg.mxu0
  %4396 = vmatpush.bf16.msra.mxu0 %v3470
  %4397 = vmatpush.bf16.msra.mxu0 %v3467
  %4398 = vmatpush.bf16.msra.mxu0 %v3464
  %4399 = vmatpush.bf16.msra.mxu0 %v3461
  %4400 = vmatpush.bf16.msra.mxu0 %v3458
  %4401 = vmatpush.bf16.msra.mxu0 %v3455
  %4402 = vmatpush.bf16.msra.mxu0 %v3452
  %4403 = vmatpush.bf16.msra.mxu0 %v3449
  %4404 = vmatmul.bf16.gmra.mxu0 %v868
  %v4405 = vpop.f32.mrf.mxu0
  %v4406 = vadd.f32 %v4393, %v4405
  %v4407 = vpop.f32.mrf.mxu0
  %4408 = vdwg.mxu0
  %4409 = vmatpush.bf16.msra.mxu0 %v3494
  %4410 = vmatpush.bf16.msra.mxu0 %v3491
  %4411 = vmatpush.bf16.msra.mxu0 %v3488
  %4412 = vmatpush.bf16.msra.mxu0 %v3485
  %4413 = vmatpush.bf16.msra.mxu0 %v3482
  %4414 = vmatpush.bf16.msra.mxu0 %v3479
  %4415 = vmatpush.bf16.msra.mxu0 %v3476
  %4416 = vmatpush.bf16.msra.mxu0 %v3473
  %4417 = vmatmul.bf16.gmra.mxu0 %v871
  %v4418 = vpop.f32.mrf.mxu0
  %v4419 = vadd.f32 %v4406, %v4418
  %v4420 = vpop.f32.mrf.mxu0
  %4421 = vdwg.mxu0
  %4422 = vmatpush.bf16.msra.mxu0 %v2919
  %4423 = vmatpush.bf16.msra.mxu0 %v2916
  %4424 = vmatpush.bf16.msra.mxu0 %v2913
  %4425 = vmatpush.bf16.msra.mxu0 %v2910
  %4426 = vmatpush.bf16.msra.mxu0 %v2907
  %4427 = vmatpush.bf16.msra.mxu0 %v2904
  %4428 = vmatpush.bf16.msra.mxu0 %v2901
  %4429 = vmatpush.bf16.msra.mxu0 %v2898
  %4430 = vmatmul.bf16.gmra.mxu0 %v841
  %v4431 = vpop.f32.mrf.mxu0
  %v4432 = vadd.f32 0.0, %v4431
  %v4433 = vpop.f32.mrf.mxu0
  %4434 = vdwg.mxu0
  %4435 = vmatpush.bf16.msra.mxu0 %v2943
  %4436 = vmatpush.bf16.msra.mxu0 %v2940
  %4437 = vmatpush.bf16.msra.mxu0 %v2937
  %4438 = vmatpush.bf16.msra.mxu0 %v2934
  %4439 = vmatpush.bf16.msra.mxu0 %v2931
  %4440 = vmatpush.bf16.msra.mxu0 %v2928
  %4441 = vmatpush.bf16.msra.mxu0 %v2925
  %4442 = vmatpush.bf16.msra.mxu0 %v2922
  %4443 = vmatmul.bf16.gmra.mxu0 %v842
  %v4444 = vpop.f32.mrf.mxu0
  %v4445 = vadd.f32 %v4432, %v4444
  %v4446 = vpop.f32.mrf.mxu0
  %4447 = vdwg.mxu0
  %4448 = vmatpush.bf16.msra.mxu0 %v2967
  %4449 = vmatpush.bf16.msra.mxu0 %v2964
  %4450 = vmatpush.bf16.msra.mxu0 %v2961
  %4451 = vmatpush.bf16.msra.mxu0 %v2958
  %4452 = vmatpush.bf16.msra.mxu0 %v2955
  %4453 = vmatpush.bf16.msra.mxu0 %v2952
  %4454 = vmatpush.bf16.msra.mxu0 %v2949
  %4455 = vmatpush.bf16.msra.mxu0 %v2946
  %4456 = vmatmul.bf16.gmra.mxu0 %v843
  %v4457 = vpop.f32.mrf.mxu0
  %v4458 = vadd.f32 %v4445, %v4457
  %v4459 = vpop.f32.mrf.mxu0
  %4460 = vdwg.mxu0
  %4461 = vmatpush.bf16.msra.mxu0 %v2991
  %4462 = vmatpush.bf16.msra.mxu0 %v2988
  %4463 = vmatpush.bf16.msra.mxu0 %v2985
  %4464 = vmatpush.bf16.msra.mxu0 %v2982
  %4465 = vmatpush.bf16.msra.mxu0 %v2979
  %4466 = vmatpush.bf16.msra.mxu0 %v2976
  %4467 = vmatpush.bf16.msra.mxu0 %v2973
  %4468 = vmatpush.bf16.msra.mxu0 %v2970
  %4469 = vmatmul.bf16.gmra.mxu0 %v844
  %v4470 = vpop.f32.mrf.mxu0
  %v4471 = vadd.f32 %v4458, %v4470
  %v4472 = vpop.f32.mrf.mxu0
  %4473 = vdwg.mxu0
  %4474 = vmatpush.bf16.msra.mxu0 %v3015
  %4475 = vmatpush.bf16.msra.mxu0 %v3012
  %4476 = vmatpush.bf16.msra.mxu0 %v3009
  %4477 = vmatpush.bf16.msra.mxu0 %v3006
  %4478 = vmatpush.bf16.msra.mxu0 %v3003
  %4479 = vmatpush.bf16.msra.mxu0 %v3000
  %4480 = vmatpush.bf16.msra.mxu0 %v2997
  %4481 = vmatpush.bf16.msra.mxu0 %v2994
  %4482 = vmatmul.bf16.gmra.mxu0 %v845
  %v4483 = vpop.f32.mrf.mxu0
  %v4484 = vadd.f32 %v4471, %v4483
  %v4485 = vpop.f32.mrf.mxu0
  %4486 = vdwg.mxu0
  %4487 = vmatpush.bf16.msra.mxu0 %v3039
  %4488 = vmatpush.bf16.msra.mxu0 %v3036
  %4489 = vmatpush.bf16.msra.mxu0 %v3033
  %4490 = vmatpush.bf16.msra.mxu0 %v3030
  %4491 = vmatpush.bf16.msra.mxu0 %v3027
  %4492 = vmatpush.bf16.msra.mxu0 %v3024
  %4493 = vmatpush.bf16.msra.mxu0 %v3021
  %4494 = vmatpush.bf16.msra.mxu0 %v3018
  %4495 = vmatmul.bf16.gmra.mxu0 %v846
  %v4496 = vpop.f32.mrf.mxu0
  %v4497 = vadd.f32 %v4484, %v4496
  %v4498 = vpop.f32.mrf.mxu0
  %4499 = vdwg.mxu0
  %4500 = vmatpush.bf16.msra.mxu0 %v3063
  %4501 = vmatpush.bf16.msra.mxu0 %v3060
  %4502 = vmatpush.bf16.msra.mxu0 %v3057
  %4503 = vmatpush.bf16.msra.mxu0 %v3054
  %4504 = vmatpush.bf16.msra.mxu0 %v3051
  %4505 = vmatpush.bf16.msra.mxu0 %v3048
  %4506 = vmatpush.bf16.msra.mxu0 %v3045
  %4507 = vmatpush.bf16.msra.mxu0 %v3042
  %4508 = vmatmul.bf16.gmra.mxu0 %v847
  %v4509 = vpop.f32.mrf.mxu0
  %v4510 = vadd.f32 %v4497, %v4509
  %v4511 = vpop.f32.mrf.mxu0
  %4512 = vdwg.mxu0
  %4513 = vmatpush.bf16.msra.mxu0 %v3087
  %4514 = vmatpush.bf16.msra.mxu0 %v3084
  %4515 = vmatpush.bf16.msra.mxu0 %v3081
  %4516 = vmatpush.bf16.msra.mxu0 %v3078
  %4517 = vmatpush.bf16.msra.mxu0 %v3075
  %4518 = vmatpush.bf16.msra.mxu0 %v3072
  %4519 = vmatpush.bf16.msra.mxu0 %v3069
  %4520 = vmatpush.bf16.msra.mxu0 %v3066
  %4521 = vmatmul.bf16.gmra.mxu0 %v848
  %v4522 = vpop.f32.mrf.mxu0
  %v4523 = vadd.f32 %v4510, %v4522
  %v4524 = vpop.f32.mrf.mxu0
  %4525 = vdwg.mxu0
  %4526 = vmatpush.bf16.msra.mxu0 %v3111
  %4527 = vmatpush.bf16.msra.mxu0 %v3108
  %4528 = vmatpush.bf16.msra.mxu0 %v3105
  %4529 = vmatpush.bf16.msra.mxu0 %v3102
  %4530 = vmatpush.bf16.msra.mxu0 %v3099
  %4531 = vmatpush.bf16.msra.mxu0 %v3096
  %4532 = vmatpush.bf16.msra.mxu0 %v3093
  %4533 = vmatpush.bf16.msra.mxu0 %v3090
  %4534 = vmatmul.bf16.gmra.mxu0 %v851
  %v4535 = vpop.f32.mrf.mxu0
  %v4536 = vadd.f32 %v4523, %v4535
  %v4537 = vpop.f32.mrf.mxu0
  %4538 = vdwg.mxu0
  %4539 = vmatpush.bf16.msra.mxu0 %v3135
  %4540 = vmatpush.bf16.msra.mxu0 %v3132
  %4541 = vmatpush.bf16.msra.mxu0 %v3129
  %4542 = vmatpush.bf16.msra.mxu0 %v3126
  %4543 = vmatpush.bf16.msra.mxu0 %v3123
  %4544 = vmatpush.bf16.msra.mxu0 %v3120
  %4545 = vmatpush.bf16.msra.mxu0 %v3117
  %4546 = vmatpush.bf16.msra.mxu0 %v3114
  %4547 = vmatmul.bf16.gmra.mxu0 %v852
  %v4548 = vpop.f32.mrf.mxu0
  %v4549 = vadd.f32 %v4536, %v4548
  %v4550 = vpop.f32.mrf.mxu0
  %4551 = vdwg.mxu0
  %4552 = vmatpush.bf16.msra.mxu0 %v3159
  %4553 = vmatpush.bf16.msra.mxu0 %v3156
  %4554 = vmatpush.bf16.msra.mxu0 %v3153
  %4555 = vmatpush.bf16.msra.mxu0 %v3150
  %4556 = vmatpush.bf16.msra.mxu0 %v3147
  %4557 = vmatpush.bf16.msra.mxu0 %v3144
  %4558 = vmatpush.bf16.msra.mxu0 %v3141
  %4559 = vmatpush.bf16.msra.mxu0 %v3138
  %4560 = vmatmul.bf16.gmra.mxu0 %v853
  %v4561 = vpop.f32.mrf.mxu0
  %v4562 = vadd.f32 %v4549, %v4561
  %v4563 = vpop.f32.mrf.mxu0
  %4564 = vdwg.mxu0
  %4565 = vmatpush.bf16.msra.mxu0 %v3183
  %4566 = vmatpush.bf16.msra.mxu0 %v3180
  %4567 = vmatpush.bf16.msra.mxu0 %v3177
  %4568 = vmatpush.bf16.msra.mxu0 %v3174
  %4569 = vmatpush.bf16.msra.mxu0 %v3171
  %4570 = vmatpush.bf16.msra.mxu0 %v3168
  %4571 = vmatpush.bf16.msra.mxu0 %v3165
  %4572 = vmatpush.bf16.msra.mxu0 %v3162
  %4573 = vmatmul.bf16.gmra.mxu0 %v854
  %v4574 = vpop.f32.mrf.mxu0
  %v4575 = vadd.f32 %v4562, %v4574
  %v4576 = vpop.f32.mrf.mxu0
  %4577 = vdwg.mxu0
  %4578 = vmatpush.bf16.msra.mxu0 %v3207
  %4579 = vmatpush.bf16.msra.mxu0 %v3204
  %4580 = vmatpush.bf16.msra.mxu0 %v3201
  %4581 = vmatpush.bf16.msra.mxu0 %v3198
  %4582 = vmatpush.bf16.msra.mxu0 %v3195
  %4583 = vmatpush.bf16.msra.mxu0 %v3192
  %4584 = vmatpush.bf16.msra.mxu0 %v3189
  %4585 = vmatpush.bf16.msra.mxu0 %v3186
  %4586 = vmatmul.bf16.gmra.mxu0 %v855
  %v4587 = vpop.f32.mrf.mxu0
  %v4588 = vadd.f32 %v4575, %v4587
  %v4589 = vpop.f32.mrf.mxu0
  %4590 = vdwg.mxu0
  %4591 = vmatpush.bf16.msra.mxu0 %v3231
  %4592 = vmatpush.bf16.msra.mxu0 %v3228
  %4593 = vmatpush.bf16.msra.mxu0 %v3225
  %4594 = vmatpush.bf16.msra.mxu0 %v3222
  %4595 = vmatpush.bf16.msra.mxu0 %v3219
  %4596 = vmatpush.bf16.msra.mxu0 %v3216
  %4597 = vmatpush.bf16.msra.mxu0 %v3213
  %4598 = vmatpush.bf16.msra.mxu0 %v3210
  %4599 = vmatmul.bf16.gmra.mxu0 %v856
  %v4600 = vpop.f32.mrf.mxu0
  %v4601 = vadd.f32 %v4588, %v4600
  %v4602 = vpop.f32.mrf.mxu0
  %4603 = vdwg.mxu0
  %4604 = vmatpush.bf16.msra.mxu0 %v3255
  %4605 = vmatpush.bf16.msra.mxu0 %v3252
  %4606 = vmatpush.bf16.msra.mxu0 %v3249
  %4607 = vmatpush.bf16.msra.mxu0 %v3246
  %4608 = vmatpush.bf16.msra.mxu0 %v3243
  %4609 = vmatpush.bf16.msra.mxu0 %v3240
  %4610 = vmatpush.bf16.msra.mxu0 %v3237
  %4611 = vmatpush.bf16.msra.mxu0 %v3234
  %4612 = vmatmul.bf16.gmra.mxu0 %v857
  %v4613 = vpop.f32.mrf.mxu0
  %v4614 = vadd.f32 %v4601, %v4613
  %v4615 = vpop.f32.mrf.mxu0
  %4616 = vdwg.mxu0
  %4617 = vmatpush.bf16.msra.mxu0 %v3279
  %4618 = vmatpush.bf16.msra.mxu0 %v3276
  %4619 = vmatpush.bf16.msra.mxu0 %v3273
  %4620 = vmatpush.bf16.msra.mxu0 %v3270
  %4621 = vmatpush.bf16.msra.mxu0 %v3267
  %4622 = vmatpush.bf16.msra.mxu0 %v3264
  %4623 = vmatpush.bf16.msra.mxu0 %v3261
  %4624 = vmatpush.bf16.msra.mxu0 %v3258
  %4625 = vmatmul.bf16.gmra.mxu0 %v858
  %v4626 = vpop.f32.mrf.mxu0
  %v4627 = vadd.f32 %v4614, %v4626
  %v4628 = vpop.f32.mrf.mxu0
  %4629 = vdwg.mxu0
  %4630 = vmatpush.bf16.msra.mxu0 %v3303
  %4631 = vmatpush.bf16.msra.mxu0 %v3300
  %4632 = vmatpush.bf16.msra.mxu0 %v3297
  %4633 = vmatpush.bf16.msra.mxu0 %v3294
  %4634 = vmatpush.bf16.msra.mxu0 %v3291
  %4635 = vmatpush.bf16.msra.mxu0 %v3288
  %4636 = vmatpush.bf16.msra.mxu0 %v3285
  %4637 = vmatpush.bf16.msra.mxu0 %v3282
  %4638 = vmatmul.bf16.gmra.mxu0 %v861
  %v4639 = vpop.f32.mrf.mxu0
  %v4640 = vadd.f32 %v4627, %v4639
  %v4641 = vpop.f32.mrf.mxu0
  %4642 = vdwg.mxu0
  %4643 = vmatpush.bf16.msra.mxu0 %v3327
  %4644 = vmatpush.bf16.msra.mxu0 %v3324
  %4645 = vmatpush.bf16.msra.mxu0 %v3321
  %4646 = vmatpush.bf16.msra.mxu0 %v3318
  %4647 = vmatpush.bf16.msra.mxu0 %v3315
  %4648 = vmatpush.bf16.msra.mxu0 %v3312
  %4649 = vmatpush.bf16.msra.mxu0 %v3309
  %4650 = vmatpush.bf16.msra.mxu0 %v3306
  %4651 = vmatmul.bf16.gmra.mxu0 %v862
  %v4652 = vpop.f32.mrf.mxu0
  %v4653 = vadd.f32 %v4640, %v4652
  %v4654 = vpop.f32.mrf.mxu0
  %4655 = vdwg.mxu0
  %4656 = vmatpush.bf16.msra.mxu0 %v3351
  %4657 = vmatpush.bf16.msra.mxu0 %v3348
  %4658 = vmatpush.bf16.msra.mxu0 %v3345
  %4659 = vmatpush.bf16.msra.mxu0 %v3342
  %4660 = vmatpush.bf16.msra.mxu0 %v3339
  %4661 = vmatpush.bf16.msra.mxu0 %v3336
  %4662 = vmatpush.bf16.msra.mxu0 %v3333
  %4663 = vmatpush.bf16.msra.mxu0 %v3330
  %4664 = vmatmul.bf16.gmra.mxu0 %v863
  %v4665 = vpop.f32.mrf.mxu0
  %v4666 = vadd.f32 %v4653, %v4665
  %v4667 = vpop.f32.mrf.mxu0
  %4668 = vdwg.mxu0
  %4669 = vmatpush.bf16.msra.mxu0 %v3375
  %4670 = vmatpush.bf16.msra.mxu0 %v3372
  %4671 = vmatpush.bf16.msra.mxu0 %v3369
  %4672 = vmatpush.bf16.msra.mxu0 %v3366
  %4673 = vmatpush.bf16.msra.mxu0 %v3363
  %4674 = vmatpush.bf16.msra.mxu0 %v3360
  %4675 = vmatpush.bf16.msra.mxu0 %v3357
  %4676 = vmatpush.bf16.msra.mxu0 %v3354
  %4677 = vmatmul.bf16.gmra.mxu0 %v864
  %v4678 = vpop.f32.mrf.mxu0
  %v4679 = vadd.f32 %v4666, %v4678
  %v4680 = vpop.f32.mrf.mxu0
  %4681 = vdwg.mxu0
  %4682 = vmatpush.bf16.msra.mxu0 %v3399
  %4683 = vmatpush.bf16.msra.mxu0 %v3396
  %4684 = vmatpush.bf16.msra.mxu0 %v3393
  %4685 = vmatpush.bf16.msra.mxu0 %v3390
  %4686 = vmatpush.bf16.msra.mxu0 %v3387
  %4687 = vmatpush.bf16.msra.mxu0 %v3384
  %4688 = vmatpush.bf16.msra.mxu0 %v3381
  %4689 = vmatpush.bf16.msra.mxu0 %v3378
  %4690 = vmatmul.bf16.gmra.mxu0 %v865
  %v4691 = vpop.f32.mrf.mxu0
  %v4692 = vadd.f32 %v4679, %v4691
  %v4693 = vpop.f32.mrf.mxu0
  %4694 = vdwg.mxu0
  %4695 = vmatpush.bf16.msra.mxu0 %v3423
  %4696 = vmatpush.bf16.msra.mxu0 %v3420
  %4697 = vmatpush.bf16.msra.mxu0 %v3417
  %4698 = vmatpush.bf16.msra.mxu0 %v3414
  %4699 = vmatpush.bf16.msra.mxu0 %v3411
  %4700 = vmatpush.bf16.msra.mxu0 %v3408
  %4701 = vmatpush.bf16.msra.mxu0 %v3405
  %4702 = vmatpush.bf16.msra.mxu0 %v3402
  %4703 = vmatmul.bf16.gmra.mxu0 %v866
  %v4704 = vpop.f32.mrf.mxu0
  %v4705 = vadd.f32 %v4692, %v4704
  %v4706 = vpop.f32.mrf.mxu0
  %4707 = vdwg.mxu0
  %4708 = vmatpush.bf16.msra.mxu0 %v3447
  %4709 = vmatpush.bf16.msra.mxu0 %v3444
  %4710 = vmatpush.bf16.msra.mxu0 %v3441
  %4711 = vmatpush.bf16.msra.mxu0 %v3438
  %4712 = vmatpush.bf16.msra.mxu0 %v3435
  %4713 = vmatpush.bf16.msra.mxu0 %v3432
  %4714 = vmatpush.bf16.msra.mxu0 %v3429
  %4715 = vmatpush.bf16.msra.mxu0 %v3426
  %4716 = vmatmul.bf16.gmra.mxu0 %v867
  %v4717 = vpop.f32.mrf.mxu0
  %v4718 = vadd.f32 %v4705, %v4717
  %v4719 = vpop.f32.mrf.mxu0
  %4720 = vdwg.mxu0
  %4721 = vmatpush.bf16.msra.mxu0 %v3471
  %4722 = vmatpush.bf16.msra.mxu0 %v3468
  %4723 = vmatpush.bf16.msra.mxu0 %v3465
  %4724 = vmatpush.bf16.msra.mxu0 %v3462
  %4725 = vmatpush.bf16.msra.mxu0 %v3459
  %4726 = vmatpush.bf16.msra.mxu0 %v3456
  %4727 = vmatpush.bf16.msra.mxu0 %v3453
  %4728 = vmatpush.bf16.msra.mxu0 %v3450
  %4729 = vmatmul.bf16.gmra.mxu0 %v868
  %v4730 = vpop.f32.mrf.mxu0
  %v4731 = vadd.f32 %v4718, %v4730
  %v4732 = vpop.f32.mrf.mxu0
  %4733 = vdwg.mxu0
  %4734 = vmatpush.bf16.msra.mxu0 %v3495
  %4735 = vmatpush.bf16.msra.mxu0 %v3492
  %4736 = vmatpush.bf16.msra.mxu0 %v3489
  %4737 = vmatpush.bf16.msra.mxu0 %v3486
  %4738 = vmatpush.bf16.msra.mxu0 %v3483
  %4739 = vmatpush.bf16.msra.mxu0 %v3480
  %4740 = vmatpush.bf16.msra.mxu0 %v3477
  %4741 = vmatpush.bf16.msra.mxu0 %v3474
  %4742 = vmatmul.bf16.gmra.mxu0 %v871
  %v4743 = vpop.f32.mrf.mxu0
  %v4744 = vadd.f32 %v4731, %v4743
  %v4745 = vpop.f32.mrf.mxu0
  %4746 = vdwg.mxu0
  %4747 = vmatpush.bf16.msra.mxu0 %v2920
  %4748 = vmatpush.bf16.msra.mxu0 %v2917
  %4749 = vmatpush.bf16.msra.mxu0 %v2914
  %4750 = vmatpush.bf16.msra.mxu0 %v2911
  %4751 = vmatpush.bf16.msra.mxu0 %v2908
  %4752 = vmatpush.bf16.msra.mxu0 %v2905
  %4753 = vmatpush.bf16.msra.mxu0 %v2902
  %4754 = vmatpush.bf16.msra.mxu0 %v2899
  %4755 = vmatmul.bf16.gmra.mxu0 %v841
  %v4756 = vpop.f32.mrf.mxu0
  %v4757 = vadd.f32 0.0, %v4756
  %v4758 = vpop.f32.mrf.mxu0
  %4759 = vdwg.mxu0
  %4760 = vmatpush.bf16.msra.mxu0 %v2944
  %4761 = vmatpush.bf16.msra.mxu0 %v2941
  %4762 = vmatpush.bf16.msra.mxu0 %v2938
  %4763 = vmatpush.bf16.msra.mxu0 %v2935
  %4764 = vmatpush.bf16.msra.mxu0 %v2932
  %4765 = vmatpush.bf16.msra.mxu0 %v2929
  %4766 = vmatpush.bf16.msra.mxu0 %v2926
  %4767 = vmatpush.bf16.msra.mxu0 %v2923
  %4768 = vmatmul.bf16.gmra.mxu0 %v842
  %v4769 = vpop.f32.mrf.mxu0
  %v4770 = vadd.f32 %v4757, %v4769
  %v4771 = vpop.f32.mrf.mxu0
  %4772 = vdwg.mxu0
  %4773 = vmatpush.bf16.msra.mxu0 %v2968
  %4774 = vmatpush.bf16.msra.mxu0 %v2965
  %4775 = vmatpush.bf16.msra.mxu0 %v2962
  %4776 = vmatpush.bf16.msra.mxu0 %v2959
  %4777 = vmatpush.bf16.msra.mxu0 %v2956
  %4778 = vmatpush.bf16.msra.mxu0 %v2953
  %4779 = vmatpush.bf16.msra.mxu0 %v2950
  %4780 = vmatpush.bf16.msra.mxu0 %v2947
  %4781 = vmatmul.bf16.gmra.mxu0 %v843
  %v4782 = vpop.f32.mrf.mxu0
  %v4783 = vadd.f32 %v4770, %v4782
  %v4784 = vpop.f32.mrf.mxu0
  %4785 = vdwg.mxu0
  %4786 = vmatpush.bf16.msra.mxu0 %v2992
  %4787 = vmatpush.bf16.msra.mxu0 %v2989
  %4788 = vmatpush.bf16.msra.mxu0 %v2986
  %4789 = vmatpush.bf16.msra.mxu0 %v2983
  %4790 = vmatpush.bf16.msra.mxu0 %v2980
  %4791 = vmatpush.bf16.msra.mxu0 %v2977
  %4792 = vmatpush.bf16.msra.mxu0 %v2974
  %4793 = vmatpush.bf16.msra.mxu0 %v2971
  %4794 = vmatmul.bf16.gmra.mxu0 %v844
  %v4795 = vpop.f32.mrf.mxu0
  %v4796 = vadd.f32 %v4783, %v4795
  %v4797 = vpop.f32.mrf.mxu0
  %4798 = vdwg.mxu0
  %4799 = vmatpush.bf16.msra.mxu0 %v3016
  %4800 = vmatpush.bf16.msra.mxu0 %v3013
  %4801 = vmatpush.bf16.msra.mxu0 %v3010
  %4802 = vmatpush.bf16.msra.mxu0 %v3007
  %4803 = vmatpush.bf16.msra.mxu0 %v3004
  %4804 = vmatpush.bf16.msra.mxu0 %v3001
  %4805 = vmatpush.bf16.msra.mxu0 %v2998
  %4806 = vmatpush.bf16.msra.mxu0 %v2995
  %4807 = vmatmul.bf16.gmra.mxu0 %v845
  %v4808 = vpop.f32.mrf.mxu0
  %v4809 = vadd.f32 %v4796, %v4808
  %v4810 = vpop.f32.mrf.mxu0
  %4811 = vdwg.mxu0
  %4812 = vmatpush.bf16.msra.mxu0 %v3040
  %4813 = vmatpush.bf16.msra.mxu0 %v3037
  %4814 = vmatpush.bf16.msra.mxu0 %v3034
  %4815 = vmatpush.bf16.msra.mxu0 %v3031
  %4816 = vmatpush.bf16.msra.mxu0 %v3028
  %4817 = vmatpush.bf16.msra.mxu0 %v3025
  %4818 = vmatpush.bf16.msra.mxu0 %v3022
  %4819 = vmatpush.bf16.msra.mxu0 %v3019
  %4820 = vmatmul.bf16.gmra.mxu0 %v846
  %v4821 = vpop.f32.mrf.mxu0
  %v4822 = vadd.f32 %v4809, %v4821
  %v4823 = vpop.f32.mrf.mxu0
  %4824 = vdwg.mxu0
  %4825 = vmatpush.bf16.msra.mxu0 %v3064
  %4826 = vmatpush.bf16.msra.mxu0 %v3061
  %4827 = vmatpush.bf16.msra.mxu0 %v3058
  %4828 = vmatpush.bf16.msra.mxu0 %v3055
  %4829 = vmatpush.bf16.msra.mxu0 %v3052
  %4830 = vmatpush.bf16.msra.mxu0 %v3049
  %4831 = vmatpush.bf16.msra.mxu0 %v3046
  %4832 = vmatpush.bf16.msra.mxu0 %v3043
  %4833 = vmatmul.bf16.gmra.mxu0 %v847
  %v4834 = vpop.f32.mrf.mxu0
  %v4835 = vadd.f32 %v4822, %v4834
  %v4836 = vpop.f32.mrf.mxu0
  %4837 = vdwg.mxu0
  %4838 = vmatpush.bf16.msra.mxu0 %v3088
  %4839 = vmatpush.bf16.msra.mxu0 %v3085
  %4840 = vmatpush.bf16.msra.mxu0 %v3082
  %4841 = vmatpush.bf16.msra.mxu0 %v3079
  %4842 = vmatpush.bf16.msra.mxu0 %v3076
  %4843 = vmatpush.bf16.msra.mxu0 %v3073
  %4844 = vmatpush.bf16.msra.mxu0 %v3070
  %4845 = vmatpush.bf16.msra.mxu0 %v3067
  %4846 = vmatmul.bf16.gmra.mxu0 %v848
  %v4847 = vpop.f32.mrf.mxu0
  %v4848 = vadd.f32 %v4835, %v4847
  %v4849 = vpop.f32.mrf.mxu0
  %4850 = vdwg.mxu0
  %4851 = vmatpush.bf16.msra.mxu0 %v3112
  %4852 = vmatpush.bf16.msra.mxu0 %v3109
  %4853 = vmatpush.bf16.msra.mxu0 %v3106
  %4854 = vmatpush.bf16.msra.mxu0 %v3103
  %4855 = vmatpush.bf16.msra.mxu0 %v3100
  %4856 = vmatpush.bf16.msra.mxu0 %v3097
  %4857 = vmatpush.bf16.msra.mxu0 %v3094
  %4858 = vmatpush.bf16.msra.mxu0 %v3091
  %4859 = vmatmul.bf16.gmra.mxu0 %v851
  %v4860 = vpop.f32.mrf.mxu0
  %v4861 = vadd.f32 %v4848, %v4860
  %v4862 = vpop.f32.mrf.mxu0
  %4863 = vdwg.mxu0
  %4864 = vmatpush.bf16.msra.mxu0 %v3136
  %4865 = vmatpush.bf16.msra.mxu0 %v3133
  %4866 = vmatpush.bf16.msra.mxu0 %v3130
  %4867 = vmatpush.bf16.msra.mxu0 %v3127
  %4868 = vmatpush.bf16.msra.mxu0 %v3124
  %4869 = vmatpush.bf16.msra.mxu0 %v3121
  %4870 = vmatpush.bf16.msra.mxu0 %v3118
  %4871 = vmatpush.bf16.msra.mxu0 %v3115
  %4872 = vmatmul.bf16.gmra.mxu0 %v852
  %v4873 = vpop.f32.mrf.mxu0
  %v4874 = vadd.f32 %v4861, %v4873
  %v4875 = vpop.f32.mrf.mxu0
  %4876 = vdwg.mxu0
  %4877 = vmatpush.bf16.msra.mxu0 %v3160
  %4878 = vmatpush.bf16.msra.mxu0 %v3157
  %4879 = vmatpush.bf16.msra.mxu0 %v3154
  %4880 = vmatpush.bf16.msra.mxu0 %v3151
  %4881 = vmatpush.bf16.msra.mxu0 %v3148
  %4882 = vmatpush.bf16.msra.mxu0 %v3145
  %4883 = vmatpush.bf16.msra.mxu0 %v3142
  %4884 = vmatpush.bf16.msra.mxu0 %v3139
  %4885 = vmatmul.bf16.gmra.mxu0 %v853
  %v4886 = vpop.f32.mrf.mxu0
  %v4887 = vadd.f32 %v4874, %v4886
  %v4888 = vpop.f32.mrf.mxu0
  %4889 = vdwg.mxu0
  %4890 = vmatpush.bf16.msra.mxu0 %v3184
  %4891 = vmatpush.bf16.msra.mxu0 %v3181
  %4892 = vmatpush.bf16.msra.mxu0 %v3178
  %4893 = vmatpush.bf16.msra.mxu0 %v3175
  %4894 = vmatpush.bf16.msra.mxu0 %v3172
  %4895 = vmatpush.bf16.msra.mxu0 %v3169
  %4896 = vmatpush.bf16.msra.mxu0 %v3166
  %4897 = vmatpush.bf16.msra.mxu0 %v3163
  %4898 = vmatmul.bf16.gmra.mxu0 %v854
  %v4899 = vpop.f32.mrf.mxu0
  %v4900 = vadd.f32 %v4887, %v4899
  %v4901 = vpop.f32.mrf.mxu0
  %4902 = vdwg.mxu0
  %4903 = vmatpush.bf16.msra.mxu0 %v3208
  %4904 = vmatpush.bf16.msra.mxu0 %v3205
  %4905 = vmatpush.bf16.msra.mxu0 %v3202
  %4906 = vmatpush.bf16.msra.mxu0 %v3199
  %4907 = vmatpush.bf16.msra.mxu0 %v3196
  %4908 = vmatpush.bf16.msra.mxu0 %v3193
  %4909 = vmatpush.bf16.msra.mxu0 %v3190
  %4910 = vmatpush.bf16.msra.mxu0 %v3187
  %4911 = vmatmul.bf16.gmra.mxu0 %v855
  %v4912 = vpop.f32.mrf.mxu0
  %v4913 = vadd.f32 %v4900, %v4912
  %v4914 = vpop.f32.mrf.mxu0
  %4915 = vdwg.mxu0
  %4916 = vmatpush.bf16.msra.mxu0 %v3232
  %4917 = vmatpush.bf16.msra.mxu0 %v3229
  %4918 = vmatpush.bf16.msra.mxu0 %v3226
  %4919 = vmatpush.bf16.msra.mxu0 %v3223
  %4920 = vmatpush.bf16.msra.mxu0 %v3220
  %4921 = vmatpush.bf16.msra.mxu0 %v3217
  %4922 = vmatpush.bf16.msra.mxu0 %v3214
  %4923 = vmatpush.bf16.msra.mxu0 %v3211
  %4924 = vmatmul.bf16.gmra.mxu0 %v856
  %v4925 = vpop.f32.mrf.mxu0
  %v4926 = vadd.f32 %v4913, %v4925
  %v4927 = vpop.f32.mrf.mxu0
  %4928 = vdwg.mxu0
  %4929 = vmatpush.bf16.msra.mxu0 %v3256
  %4930 = vmatpush.bf16.msra.mxu0 %v3253
  %4931 = vmatpush.bf16.msra.mxu0 %v3250
  %4932 = vmatpush.bf16.msra.mxu0 %v3247
  %4933 = vmatpush.bf16.msra.mxu0 %v3244
  %4934 = vmatpush.bf16.msra.mxu0 %v3241
  %4935 = vmatpush.bf16.msra.mxu0 %v3238
  %4936 = vmatpush.bf16.msra.mxu0 %v3235
  %4937 = vmatmul.bf16.gmra.mxu0 %v857
  %v4938 = vpop.f32.mrf.mxu0
  %v4939 = vadd.f32 %v4926, %v4938
  %v4940 = vpop.f32.mrf.mxu0
  %4941 = vdwg.mxu0
  %4942 = vmatpush.bf16.msra.mxu0 %v3280
  %4943 = vmatpush.bf16.msra.mxu0 %v3277
  %4944 = vmatpush.bf16.msra.mxu0 %v3274
  %4945 = vmatpush.bf16.msra.mxu0 %v3271
  %4946 = vmatpush.bf16.msra.mxu0 %v3268
  %4947 = vmatpush.bf16.msra.mxu0 %v3265
  %4948 = vmatpush.bf16.msra.mxu0 %v3262
  %4949 = vmatpush.bf16.msra.mxu0 %v3259
  %4950 = vmatmul.bf16.gmra.mxu0 %v858
  %v4951 = vpop.f32.mrf.mxu0
  %v4952 = vadd.f32 %v4939, %v4951
  %v4953 = vpop.f32.mrf.mxu0
  %4954 = vdwg.mxu0
  %4955 = vmatpush.bf16.msra.mxu0 %v3304
  %4956 = vmatpush.bf16.msra.mxu0 %v3301
  %4957 = vmatpush.bf16.msra.mxu0 %v3298
  %4958 = vmatpush.bf16.msra.mxu0 %v3295
  %4959 = vmatpush.bf16.msra.mxu0 %v3292
  %4960 = vmatpush.bf16.msra.mxu0 %v3289
  %4961 = vmatpush.bf16.msra.mxu0 %v3286
  %4962 = vmatpush.bf16.msra.mxu0 %v3283
  %4963 = vmatmul.bf16.gmra.mxu0 %v861
  %v4964 = vpop.f32.mrf.mxu0
  %v4965 = vadd.f32 %v4952, %v4964
  %v4966 = vpop.f32.mrf.mxu0
  %4967 = vdwg.mxu0
  %4968 = vmatpush.bf16.msra.mxu0 %v3328
  %4969 = vmatpush.bf16.msra.mxu0 %v3325
  %4970 = vmatpush.bf16.msra.mxu0 %v3322
  %4971 = vmatpush.bf16.msra.mxu0 %v3319
  %4972 = vmatpush.bf16.msra.mxu0 %v3316
  %4973 = vmatpush.bf16.msra.mxu0 %v3313
  %4974 = vmatpush.bf16.msra.mxu0 %v3310
  %4975 = vmatpush.bf16.msra.mxu0 %v3307
  %4976 = vmatmul.bf16.gmra.mxu0 %v862
  %v4977 = vpop.f32.mrf.mxu0
  %v4978 = vadd.f32 %v4965, %v4977
  %v4979 = vpop.f32.mrf.mxu0
  %4980 = vdwg.mxu0
  %4981 = vmatpush.bf16.msra.mxu0 %v3352
  %4982 = vmatpush.bf16.msra.mxu0 %v3349
  %4983 = vmatpush.bf16.msra.mxu0 %v3346
  %4984 = vmatpush.bf16.msra.mxu0 %v3343
  %4985 = vmatpush.bf16.msra.mxu0 %v3340
  %4986 = vmatpush.bf16.msra.mxu0 %v3337
  %4987 = vmatpush.bf16.msra.mxu0 %v3334
  %4988 = vmatpush.bf16.msra.mxu0 %v3331
  %4989 = vmatmul.bf16.gmra.mxu0 %v863
  %v4990 = vpop.f32.mrf.mxu0
  %v4991 = vadd.f32 %v4978, %v4990
  %v4992 = vpop.f32.mrf.mxu0
  %4993 = vdwg.mxu0
  %4994 = vmatpush.bf16.msra.mxu0 %v3376
  %4995 = vmatpush.bf16.msra.mxu0 %v3373
  %4996 = vmatpush.bf16.msra.mxu0 %v3370
  %4997 = vmatpush.bf16.msra.mxu0 %v3367
  %4998 = vmatpush.bf16.msra.mxu0 %v3364
  %4999 = vmatpush.bf16.msra.mxu0 %v3361
  %5000 = vmatpush.bf16.msra.mxu0 %v3358
  %5001 = vmatpush.bf16.msra.mxu0 %v3355
  %5002 = vmatmul.bf16.gmra.mxu0 %v864
  %v5003 = vpop.f32.mrf.mxu0
  %v5004 = vadd.f32 %v4991, %v5003
  %v5005 = vpop.f32.mrf.mxu0
  %5006 = vdwg.mxu0
  %5007 = vmatpush.bf16.msra.mxu0 %v3400
  %5008 = vmatpush.bf16.msra.mxu0 %v3397
  %5009 = vmatpush.bf16.msra.mxu0 %v3394
  %5010 = vmatpush.bf16.msra.mxu0 %v3391
  %5011 = vmatpush.bf16.msra.mxu0 %v3388
  %5012 = vmatpush.bf16.msra.mxu0 %v3385
  %5013 = vmatpush.bf16.msra.mxu0 %v3382
  %5014 = vmatpush.bf16.msra.mxu0 %v3379
  %5015 = vmatmul.bf16.gmra.mxu0 %v865
  %v5016 = vpop.f32.mrf.mxu0
  %v5017 = vadd.f32 %v5004, %v5016
  %v5018 = vpop.f32.mrf.mxu0
  %5019 = vdwg.mxu0
  %5020 = vmatpush.bf16.msra.mxu0 %v3424
  %5021 = vmatpush.bf16.msra.mxu0 %v3421
  %5022 = vmatpush.bf16.msra.mxu0 %v3418
  %5023 = vmatpush.bf16.msra.mxu0 %v3415
  %5024 = vmatpush.bf16.msra.mxu0 %v3412
  %5025 = vmatpush.bf16.msra.mxu0 %v3409
  %5026 = vmatpush.bf16.msra.mxu0 %v3406
  %5027 = vmatpush.bf16.msra.mxu0 %v3403
  %5028 = vmatmul.bf16.gmra.mxu0 %v866
  %v5029 = vpop.f32.mrf.mxu0
  %v5030 = vadd.f32 %v5017, %v5029
  %v5031 = vpop.f32.mrf.mxu0
  %5032 = vdwg.mxu0
  %5033 = vmatpush.bf16.msra.mxu0 %v3448
  %5034 = vmatpush.bf16.msra.mxu0 %v3445
  %5035 = vmatpush.bf16.msra.mxu0 %v3442
  %5036 = vmatpush.bf16.msra.mxu0 %v3439
  %5037 = vmatpush.bf16.msra.mxu0 %v3436
  %5038 = vmatpush.bf16.msra.mxu0 %v3433
  %5039 = vmatpush.bf16.msra.mxu0 %v3430
  %5040 = vmatpush.bf16.msra.mxu0 %v3427
  %5041 = vmatmul.bf16.gmra.mxu0 %v867
  %v5042 = vpop.f32.mrf.mxu0
  %v5043 = vadd.f32 %v5030, %v5042
  %v5044 = vpop.f32.mrf.mxu0
  %5045 = vdwg.mxu0
  %5046 = vmatpush.bf16.msra.mxu0 %v3472
  %5047 = vmatpush.bf16.msra.mxu0 %v3469
  %5048 = vmatpush.bf16.msra.mxu0 %v3466
  %5049 = vmatpush.bf16.msra.mxu0 %v3463
  %5050 = vmatpush.bf16.msra.mxu0 %v3460
  %5051 = vmatpush.bf16.msra.mxu0 %v3457
  %5052 = vmatpush.bf16.msra.mxu0 %v3454
  %5053 = vmatpush.bf16.msra.mxu0 %v3451
  %5054 = vmatmul.bf16.gmra.mxu0 %v868
  %v5055 = vpop.f32.mrf.mxu0
  %v5056 = vadd.f32 %v5043, %v5055
  %v5057 = vpop.f32.mrf.mxu0
  %5058 = vdwg.mxu0
  %5059 = vmatpush.bf16.msra.mxu0 %v3496
  %5060 = vmatpush.bf16.msra.mxu0 %v3493
  %5061 = vmatpush.bf16.msra.mxu0 %v3490
  %5062 = vmatpush.bf16.msra.mxu0 %v3487
  %5063 = vmatpush.bf16.msra.mxu0 %v3484
  %5064 = vmatpush.bf16.msra.mxu0 %v3481
  %5065 = vmatpush.bf16.msra.mxu0 %v3478
  %5066 = vmatpush.bf16.msra.mxu0 %v3475
  %5067 = vmatmul.bf16.gmra.mxu0 %v871
  %v5068 = vpop.f32.mrf.mxu0
  %v5069 = vadd.f32 %v5056, %v5068
  %v5070 = vpop.f32.mrf.mxu0
  %5071 = vdwg.mxu0
  %v5072 = vld [vmem:[%s2] sm:$0x7]
  %v5073 = vld [vmem:[%s3] sm:$0x7]
  %vm5074 = vcmask 1041408
  %v5075 = vsel %vm5074, %v4419, 0.0
  %v5076 = vrot.slane %v5075, 4
  %v5077 = vadd.f32 %v5075, %v5076
  %v5078 = vrot.slane %v5077, 2
  %v5079 = vadd.f32 %v5077, %v5078
  %v5080 = vrot.slane %v5079, 1
  %v5081 = vadd.f32 %v5079, %v5080
  %v5082 = vsel %vm5074, %v4744, 0.0
  %v5083 = vrot.slane %v5082, 4
  %v5084 = vadd.f32 %v5082, %v5083
  %v5085 = vrot.slane %v5084, 2
  %v5086 = vadd.f32 %v5084, %v5085
  %v5087 = vrot.slane %v5086, 1
  %v5088 = vadd.f32 %v5086, %v5087
  %v5089 = vsel %vm5074, %v5069, 0.0
  %v5090 = vrot.slane %v5089, 4
  %v5091 = vadd.f32 %v5089, %v5090
  %v5092 = vrot.slane %v5091, 2
  %v5093 = vadd.f32 %v5091, %v5092
  %v5094 = vrot.slane %v5093, 1
  %v5095 = vadd.f32 %v5093, %v5094
  %v5096 = vrcp.pop 2.0
  %v5097 = vmul.f32 2.0, %v5096
  %v5098 = vsub.f32 1.0, %v5097
  %v5099 = vmul.f32 %v5096, %v5098
  %v5100 = vadd.f32 %v5096, %v5099
  %vm5101 = vweird.f32 %v5096
  %v5102 = vsel %vm5101, %v5096, %v5100
  %v5103 = vmul.f32 %v5081, %v5102
  %v5104 = vmul.f32 %v5088, %v5102
  %v5105 = vmul.f32 %v5095, %v5102
  %v5106 = vsub.f32 %v4419, %v5103
  %v5107 = vsub.f32 %v4744, %v5104
  %v5108 = vsub.f32 %v5069, %v5105
  %v5109 = vmul.f32 %v5106, %v5106
  %v5110 = vmul.f32 %v5107, %v5107
  %v5111 = vmul.f32 %v5108, %v5108
  %v5112 = vsel %vm5074, %v5109, 0.0
  %v5113 = vrot.slane %v5112, 4
  %v5114 = vadd.f32 %v5112, %v5113
  %v5115 = vrot.slane %v5114, 2
  %v5116 = vadd.f32 %v5114, %v5115
  %v5117 = vrot.slane %v5116, 1
  %v5118 = vadd.f32 %v5116, %v5117
  %v5119 = vsel %vm5074, %v5110, 0.0
  %v5120 = vrot.slane %v5119, 4
  %v5121 = vadd.f32 %v5119, %v5120
  %v5122 = vrot.slane %v5121, 2
  %v5123 = vadd.f32 %v5121, %v5122
  %v5124 = vrot.slane %v5123, 1
  %v5125 = vadd.f32 %v5123, %v5124
  %v5126 = vsel %vm5074, %v5111, 0.0
  %v5127 = vrot.slane %v5126, 4
  %v5128 = vadd.f32 %v5126, %v5127
  %v5129 = vrot.slane %v5128, 2
  %v5130 = vadd.f32 %v5128, %v5129
  %v5131 = vrot.slane %v5130, 1
  %v5132 = vadd.f32 %v5130, %v5131
  %v5133 = vmul.f32 %v5118, %v5102
  %v5134 = vmul.f32 %v5125, %v5102
  %v5135 = vmul.f32 %v5132, %v5102
  %v5136 = vadd.f32 %v5133, 1e-05
  %v5137 = vadd.f32 %v5134, 1e-05
  %v5138 = vadd.f32 %v5135, 1e-05
  %v5139 = vrsqrt.pop %v5136
  %v5140 = vmul.f32 %v5139, %v5136
  %v5141 = vmul.f32 %v5140, %v5139
  %v5142 = vmul.f32 0.5, %v5141
  %v5143 = vsub.f32 1.5, %v5142
  %v5144 = vmul.f32 %v5139, %v5143
  %vm5145 = vweird.f32 %v5136
  %vm5146 = vweird.f32 %v5139
  %vm5147 = vmor %vm5145, %vm5146
  %v5148 = vsel %vm5147, %v5139, %v5144
  %v5149 = vrsqrt.pop %v5137
  %v5150 = vmul.f32 %v5149, %v5137
  %v5151 = vmul.f32 %v5150, %v5149
  %v5152 = vmul.f32 0.5, %v5151
  %v5153 = vsub.f32 1.5, %v5152
  %v5154 = vmul.f32 %v5149, %v5153
  %vm5155 = vweird.f32 %v5137
  %vm5156 = vweird.f32 %v5149
  %vm5157 = vmor %vm5155, %vm5156
  %v5158 = vsel %vm5157, %v5149, %v5154
  %v5159 = vrsqrt.pop %v5138
  %v5160 = vmul.f32 %v5159, %v5138
  %v5161 = vmul.f32 %v5160, %v5159
  %v5162 = vmul.f32 0.5, %v5161
  %v5163 = vsub.f32 1.5, %v5162
  %v5164 = vmul.f32 %v5159, %v5163
  %vm5165 = vweird.f32 %v5138
  %vm5166 = vweird.f32 %v5159
  %vm5167 = vmor %vm5165, %vm5166
  %v5168 = vsel %vm5167, %v5159, %v5164
  %v5172 = vrot.slane %v5158, 7
  %v5173 = vrot.slane %v5168, 6
  %vm5174 = vcmask 1040384
  %v5175 = vsel %vm5174, %v5148, %v5172
  %v5176 = vsel %vm5074, %v5175, %v5173
  %v5178 = vmul.f32 %v5072, %v5176
  %v5180 = vperm.slane %v5178, 0
  %v5181 = vperm.slane %v5178, 1
  %v5182 = vperm.slane %v5178, 2
  %v5186 = vmul.f32 %v4419, %v5180
  %v5187 = vmul.f32 %v4744, %v5181
  %v5188 = vmul.f32 %v5069, %v5182
  %v5189 = vmul.f32 %v5103, %v5180
  %v5190 = vmul.f32 %v5104, %v5181
  %v5191 = vmul.f32 %v5105, %v5182
  %v5195 = vrot.slane %v5190, 7
  %v5196 = vrot.slane %v5191, 6
  %v5197 = vsel %vm5174, %v5189, %v5195
  %v5198 = vsel %vm5074, %v5197, %v5196
  %v5200 = vsub.f32 %v5073, %v5198
  %v5202 = vperm.slane %v5200, 0
  %v5203 = vperm.slane %v5200, 1
  %v5204 = vperm.slane %v5200, 2
  %v5208 = vadd.f32 %v5186, %v5202
  %v5209 = vadd.f32 %v5187, %v5203
  %v5210 = vadd.f32 %v5188, %v5204
  %v5211 = vmax.f32 %v5208, 0.0
  %v5212 = vmax.f32 %v5209, 0.0
  %v5213 = vmax.f32 %v5210, 0.0
  %v5214 = vpack.c.bf16 %v5212, %v5211
  %v5215 = vpack.c.bf16 %v5213, %v5213
  %v5216 = vld [vmem:[%s4] sm:$0xf]
  %v5217 = vld [vmem:[%s4 + $0x4] sm:$0xf]
  %v5218 = vld [vmem:[%s4 + $0x8] sm:$0xf]
  %v5219 = vld [vmem:[%s4 + $0xc] sm:$0xf]
  %v5220 = vld [vmem:[%s4 + $0x10] sm:$0xf]
  %v5221 = vld [vmem:[%s4 + $0x14] sm:$0xf]
  %v5222 = vld [vmem:[%s4 + $0x18] sm:$0xf]
  %v5223 = vld [vmem:[%s4 + $0x1c] sm:$0xf]
  %v5224 = vld [vmem:[%s4 + $0x20] sm:$0xf]
  %v5225 = vld [vmem:[%s4 + $0x24] sm:$0xf]
  %v5226 = vld [vmem:[%s4 + $0x28] sm:$0xf]
  %v5227 = vld [vmem:[%s4 + $0x2c] sm:$0xf]
  %v5228 = vld [vmem:[%s4 + $0x30] sm:$0xf]
  %v5229 = vld [vmem:[%s4 + $0x34] sm:$0xf]
  %v5230 = vld [vmem:[%s4 + $0x38] sm:$0xf]
  %v5231 = vld [vmem:[%s4 + $0x3c] sm:$0xf]
  %v5248 = vunpack.c.l.b16 %v5216
  %v5249 = vunpack.c.l.b16 %v5217
  %v5250 = vunpack.c.l.b16 %v5218
  %v5251 = vunpack.c.l.b16 %v5219
  %v5252 = vunpack.c.l.b16 %v5220
  %v5253 = vunpack.c.l.b16 %v5221
  %v5254 = vunpack.c.l.b16 %v5222
  %v5255 = vunpack.c.l.b16 %v5223
  %v5256 = vunpack.c.l.b16 %v5224
  %v5257 = vunpack.c.l.b16 %v5225
  %v5258 = vunpack.c.l.b16 %v5226
  %v5259 = vunpack.c.l.b16 %v5227
  %v5260 = vunpack.c.l.b16 %v5228
  %v5261 = vunpack.c.l.b16 %v5229
  %v5262 = vunpack.c.l.b16 %v5230
  %v5263 = vunpack.c.l.b16 %v5231
  %v5264 = vpack.c.b16 %v5249, %v5248
  %v5265 = vpack.c.b16 %v5251, %v5250
  %v5266 = vpack.c.b16 %v5253, %v5252
  %v5267 = vpack.c.b16 %v5255, %v5254
  %v5268 = vpack.c.b16 %v5257, %v5256
  %v5269 = vpack.c.b16 %v5259, %v5258
  %v5270 = vpack.c.b16 %v5261, %v5260
  %v5271 = vpack.c.b16 %v5263, %v5262
  %5280 = vmatpush.bf16.msra.mxu0 %v5271
  %5281 = vmatpush.bf16.msra.mxu0 %v5270
  %5282 = vmatpush.bf16.msra.mxu0 %v5269
  %5283 = vmatpush.bf16.msra.mxu0 %v5268
  %5284 = vmatpush.bf16.msra.mxu0 %v5267
  %5285 = vmatpush.bf16.msra.mxu0 %v5266
  %5286 = vmatpush.bf16.msra.mxu0 %v5265
  %5287 = vmatpush.bf16.msra.mxu0 %v5264
  %5288 = vmatmul.bf16.gmra.mxu0 %v5214
  %v5289 = vpop.f32.mrf.mxu0
  %v5290 = vadd.f32 0.0, %v5289
  %v5291 = vpop.f32.mrf.mxu0
  %5292 = vdwg.mxu0
  %v5293 = vld [vmem:[%s5] sm:$0x1]
  %v5294 = vld [vmem:[%s6] sm:$0x1]
  %v5295 = vsel %vm5074, %v5290, 0.0
  %v5296 = vrot.slane %v5295, 4
  %v5297 = vadd.f32 %v5295, %v5296
  %v5298 = vrot.slane %v5297, 2
  %v5299 = vadd.f32 %v5297, %v5298
  %v5300 = vrot.slane %v5299, 1
  %v5301 = vadd.f32 %v5299, %v5300
  %v5302 = vmul.f32 %v5301, %v5102
  %v5303 = vsub.f32 %v5290, %v5302
  %v5304 = vmul.f32 %v5303, %v5303
  %v5305 = vsel %vm5074, %v5304, 0.0
  %v5306 = vrot.slane %v5305, 4
  %v5307 = vadd.f32 %v5305, %v5306
  %v5308 = vrot.slane %v5307, 2
  %v5309 = vadd.f32 %v5307, %v5308
  %v5310 = vrot.slane %v5309, 1
  %v5311 = vadd.f32 %v5309, %v5310
  %v5312 = vmul.f32 %v5311, %v5102
  %v5313 = vadd.f32 %v5312, 1e-05
  %v5314 = vrsqrt.pop %v5313
  %v5315 = vmul.f32 %v5314, %v5313
  %v5316 = vmul.f32 %v5315, %v5314
  %v5317 = vmul.f32 0.5, %v5316
  %v5318 = vsub.f32 1.5, %v5317
  %v5319 = vmul.f32 %v5314, %v5318
  %vm5320 = vweird.f32 %v5313
  %vm5321 = vweird.f32 %v5314
  %vm5322 = vmor %vm5320, %vm5321
  %v5323 = vsel %vm5322, %v5314, %v5319
  %v5324 = vmul.f32 %v5293, %v5323
  %v5326 = vperm.slane %v5324, 0
  %v5328 = vmul.f32 %v5290, %v5326
  %v5329 = vmul.f32 %v5302, %v5324
  %v5330 = vsub.f32 %v5294, %v5329
  %v5332 = vperm.slane %v5330, 0
  %v5334 = vadd.f32 %v5328, %v5332
  %v5335 = vmax.f32 %v5334, 0.0
  %v5336 = vld [vmem:[%s7] sm:$0xff]
  %v5337 = vld [vmem:[%s7 + $0x8] sm:$0xff]
  %v5338 = vld [vmem:[%s7 + $0x10] sm:$0xff]
  %v5339 = vld [vmem:[%s7 + $0x18] sm:$0xff]
  %v5340 = vld [vmem:[%s7 + $0x20] sm:$0xff]
  %v5341 = vld [vmem:[%s7 + $0x28] sm:$0xff]
  %v5342 = vld [vmem:[%s7 + $0x30] sm:$0xff]
  %v5343 = vld [vmem:[%s7 + $0x38] sm:$0xff]
  %v5344 = vld [vmem:[%s7 + $0x40] sm:$0xff]
  %v5345 = vld [vmem:[%s7 + $0x48] sm:$0xff]
  %v5346 = vld [vmem:[%s7 + $0x50] sm:$0xff]
  %v5347 = vld [vmem:[%s7 + $0x58] sm:$0xff]
  %v5348 = vld [vmem:[%s7 + $0x60] sm:$0xff]
  %v5349 = vld [vmem:[%s7 + $0x68] sm:$0xff]
  %v5350 = vld [vmem:[%s7 + $0x70] sm:$0xff]
  %v5351 = vld [vmem:[%s7 + $0x78] sm:$0xff]
  %v5352 = vld [vmem:[%s7 + $0x80] sm:$0xff]
  %v5353 = vld [vmem:[%s7 + $0x88] sm:$0xff]
  %v5354 = vld [vmem:[%s7 + $0x90] sm:$0xff]
  %v5355 = vld [vmem:[%s7 + $0x98] sm:$0xff]
  %v5356 = vld [vmem:[%s7 + $0xa0] sm:$0xff]
  %v5357 = vld [vmem:[%s7 + $0xa8] sm:$0xff]
  %v5358 = vld [vmem:[%s7 + $0xb0] sm:$0xff]
  %v5359 = vld [vmem:[%s7 + $0xb8] sm:$0xff]
  %v5360 = vld [vmem:[%s7 + $0xc0] sm:$0xff]
  %v5361 = vld [vmem:[%s7 + $0xc8] sm:$0xff]
  %v5362 = vld [vmem:[%s7 + $0xd0] sm:$0xff]
  %v5363 = vld [vmem:[%s7 + $0xd8] sm:$0xff]
  %v5364 = vld [vmem:[%s7 + $0xe0] sm:$0xff]
  %v5365 = vld [vmem:[%s7 + $0xe8] sm:$0xff]
  %v5366 = vld [vmem:[%s7 + $0xf0] sm:$0xff]
  %v5367 = vld [vmem:[%s7 + $0xf8] sm:$0xff]
  %v5368 = vld [vmem:[%s7 + $0x100] sm:$0xff]
  %v5369 = vld [vmem:[%s7 + $0x108] sm:$0xff]
  %v5370 = vld [vmem:[%s7 + $0x110] sm:$0xff]
  %v5371 = vld [vmem:[%s7 + $0x118] sm:$0xff]
  %v5372 = vld [vmem:[%s7 + $0x120] sm:$0xff]
  %v5373 = vld [vmem:[%s7 + $0x128] sm:$0xff]
  %v5374 = vld [vmem:[%s7 + $0x130] sm:$0xff]
  %v5375 = vld [vmem:[%s7 + $0x138] sm:$0xff]
  %v5376 = vld [vmem:[%s7 + $0x140] sm:$0xff]
  %v5377 = vld [vmem:[%s7 + $0x148] sm:$0xff]
  %v5378 = vld [vmem:[%s7 + $0x150] sm:$0xff]
  %v5379 = vld [vmem:[%s7 + $0x158] sm:$0xff]
  %v5380 = vld [vmem:[%s7 + $0x160] sm:$0xff]
  %v5381 = vld [vmem:[%s7 + $0x168] sm:$0xff]
  %v5382 = vld [vmem:[%s7 + $0x170] sm:$0xff]
  %v5383 = vld [vmem:[%s7 + $0x178] sm:$0xff]
  %v5384 = vpack.c.bf16 %v5335, %v5335
  %v5385 = vld [vmem:[%s8] sm:$0xff]
  %v5386 = vld [vmem:[%s8 + $0x8] sm:$0xff]
  %v5387 = vld [vmem:[%s8 + $0x10] sm:$0xff]
  %v5388 = vld [vmem:[%s8 + $0x18] sm:$0xff]
  %v5389 = vld [vmem:[%s8 + $0x20] sm:$0xff]
  %v5390 = vld [vmem:[%s8 + $0x28] sm:$0xff]
  %v5391 = vld [vmem:[%s8 + $0x30] sm:$0xff]
  %v5392 = vld [vmem:[%s8 + $0x38] sm:$0xff]
  %v5393 = vld [vmem:[%s8 + $0x40] sm:$0xff]
  %v5394 = vld [vmem:[%s8 + $0x48] sm:$0xff]
  %v5395 = vld [vmem:[%s8 + $0x50] sm:$0xff]
  %v5396 = vld [vmem:[%s8 + $0x58] sm:$0xff]
  %v5397 = vld [vmem:[%s8 + $0x60] sm:$0xff]
  %v5398 = vld [vmem:[%s8 + $0x68] sm:$0xff]
  %v5399 = vld [vmem:[%s8 + $0x70] sm:$0xff]
  %v5400 = vld [vmem:[%s8 + $0x78] sm:$0xff]
  %v5417 = vunpack.c.l.b16 %v5385
  %v5418 = vunpack.c.h.b16 %v5385
  %v5419 = vunpack.c.l.b16 %v5386
  %v5420 = vunpack.c.h.b16 %v5386
  %v5421 = vunpack.c.l.b16 %v5387
  %v5422 = vunpack.c.h.b16 %v5387
  %v5423 = vunpack.c.l.b16 %v5388
  %v5424 = vunpack.c.h.b16 %v5388
  %v5425 = vunpack.c.l.b16 %v5389
  %v5426 = vunpack.c.h.b16 %v5389
  %v5427 = vunpack.c.l.b16 %v5390
  %v5428 = vunpack.c.h.b16 %v5390
  %v5429 = vunpack.c.l.b16 %v5391
  %v5430 = vunpack.c.h.b16 %v5391
  %v5431 = vunpack.c.l.b16 %v5392
  %v5432 = vunpack.c.h.b16 %v5392
  %v5433 = vunpack.c.l.b16 %v5393
  %v5434 = vunpack.c.h.b16 %v5393
  %v5435 = vunpack.c.l.b16 %v5394
  %v5436 = vunpack.c.h.b16 %v5394
  %v5437 = vunpack.c.l.b16 %v5395
  %v5438 = vunpack.c.h.b16 %v5395
  %v5439 = vunpack.c.l.b16 %v5396
  %v5440 = vunpack.c.h.b16 %v5396
  %v5441 = vunpack.c.l.b16 %v5397
  %v5442 = vunpack.c.h.b16 %v5397
  %v5443 = vunpack.c.l.b16 %v5398
  %v5444 = vunpack.c.h.b16 %v5398
  %v5445 = vunpack.c.l.b16 %v5399
  %v5446 = vunpack.c.h.b16 %v5399
  %v5447 = vunpack.c.l.b16 %v5400
  %v5448 = vunpack.c.h.b16 %v5400
  %v5449 = vpack.c.b16 %v5419, %v5417
  %v5450 = vpack.c.b16 %v5420, %v5418
  %v5451 = vpack.c.b16 %v5423, %v5421
  %v5452 = vpack.c.b16 %v5424, %v5422
  %v5453 = vpack.c.b16 %v5427, %v5425
  %v5454 = vpack.c.b16 %v5428, %v5426
  %v5455 = vpack.c.b16 %v5431, %v5429
  %v5456 = vpack.c.b16 %v5432, %v5430
  %v5457 = vpack.c.b16 %v5435, %v5433
  %v5458 = vpack.c.b16 %v5436, %v5434
  %v5459 = vpack.c.b16 %v5439, %v5437
  %v5460 = vpack.c.b16 %v5440, %v5438
  %v5461 = vpack.c.b16 %v5443, %v5441
  %v5462 = vpack.c.b16 %v5444, %v5442
  %v5463 = vpack.c.b16 %v5447, %v5445
  %v5464 = vpack.c.b16 %v5448, %v5446
  %5481 = vmatpush.bf16.msra.mxu0 %v5463
  %5482 = vmatpush.bf16.msra.mxu0 %v5461
  %5483 = vmatpush.bf16.msra.mxu0 %v5459
  %5484 = vmatpush.bf16.msra.mxu0 %v5457
  %5485 = vmatpush.bf16.msra.mxu0 %v5455
  %5486 = vmatpush.bf16.msra.mxu0 %v5453
  %5487 = vmatpush.bf16.msra.mxu0 %v5451
  %5488 = vmatpush.bf16.msra.mxu0 %v5449
  %5489 = vmatmul.bf16.gmra.mxu0 %v5384
  %v5490 = vpop.f32.mrf.mxu0
  %v5491 = vadd.f32 0.0, %v5490
  %v5492 = vpop.f32.mrf.mxu0
  %5493 = vdwg.mxu0
  %5494 = vmatpush.bf16.msra.mxu0 %v5464
  %5495 = vmatpush.bf16.msra.mxu0 %v5462
  %5496 = vmatpush.bf16.msra.mxu0 %v5460
  %5497 = vmatpush.bf16.msra.mxu0 %v5458
  %5498 = vmatpush.bf16.msra.mxu0 %v5456
  %5499 = vmatpush.bf16.msra.mxu0 %v5454
  %5500 = vmatpush.bf16.msra.mxu0 %v5452
  %5501 = vmatpush.bf16.msra.mxu0 %v5450
  %5502 = vmatmul.bf16.gmra.mxu0 %v5384
  %v5503 = vpop.f32.mrf.mxu0
  %v5504 = vadd.f32 0.0, %v5503
  %v5505 = vpop.f32.mrf.mxu0
  %5506 = vdwg.mxu0
  %v5509 = vunpack.c.l.b16 %v5214
  %v5510 = vunpack.c.h.b16 %v5214
  %v5511 = vunpack.c.l.b16 %v5215
  %v5512 = vpack.c.b16 %v5509, %v5509
  %v5513 = vpack.c.b16 %v5510, %v5510
  %v5514 = vpack.c.b16 %v5511, %v5511
  %v5566 = vunpack.c.l.b16 %v5336
  %v5567 = vunpack.c.h.b16 %v5336
  %v5568 = vunpack.c.l.b16 %v5337
  %v5569 = vunpack.c.h.b16 %v5337
  %v5570 = vunpack.c.l.b16 %v5338
  %v5571 = vunpack.c.h.b16 %v5338
  %v5572 = vunpack.c.l.b16 %v5339
  %v5573 = vunpack.c.h.b16 %v5339
  %v5574 = vunpack.c.l.b16 %v5340
  %v5575 = vunpack.c.h.b16 %v5340
  %v5576 = vunpack.c.l.b16 %v5341
  %v5577 = vunpack.c.h.b16 %v5341
  %v5578 = vunpack.c.l.b16 %v5342
  %v5579 = vunpack.c.h.b16 %v5342
  %v5580 = vunpack.c.l.b16 %v5343
  %v5581 = vunpack.c.h.b16 %v5343
  %v5582 = vunpack.c.l.b16 %v5344
  %v5583 = vunpack.c.h.b16 %v5344
  %v5584 = vunpack.c.l.b16 %v5345
  %v5585 = vunpack.c.h.b16 %v5345
  %v5586 = vunpack.c.l.b16 %v5346
  %v5587 = vunpack.c.h.b16 %v5346
  %v5588 = vunpack.c.l.b16 %v5347
  %v5589 = vunpack.c.h.b16 %v5347
  %v5590 = vunpack.c.l.b16 %v5348
  %v5591 = vunpack.c.h.b16 %v5348
  %v5592 = vunpack.c.l.b16 %v5349
  %v5593 = vunpack.c.h.b16 %v5349
  %v5594 = vunpack.c.l.b16 %v5350
  %v5595 = vunpack.c.h.b16 %v5350
  %v5596 = vunpack.c.l.b16 %v5351
  %v5597 = vunpack.c.h.b16 %v5351
  %v5598 = vunpack.c.l.b16 %v5352
  %v5599 = vunpack.c.h.b16 %v5352
  %v5600 = vunpack.c.l.b16 %v5353
  %v5601 = vunpack.c.h.b16 %v5353
  %v5602 = vunpack.c.l.b16 %v5354
  %v5603 = vunpack.c.h.b16 %v5354
  %v5604 = vunpack.c.l.b16 %v5355
  %v5605 = vunpack.c.h.b16 %v5355
  %v5606 = vunpack.c.l.b16 %v5356
  %v5607 = vunpack.c.h.b16 %v5356
  %v5608 = vunpack.c.l.b16 %v5357
  %v5609 = vunpack.c.h.b16 %v5357
  %v5610 = vunpack.c.l.b16 %v5358
  %v5611 = vunpack.c.h.b16 %v5358
  %v5612 = vunpack.c.l.b16 %v5359
  %v5613 = vunpack.c.h.b16 %v5359
  %v5614 = vunpack.c.l.b16 %v5360
  %v5615 = vunpack.c.h.b16 %v5360
  %v5616 = vunpack.c.l.b16 %v5361
  %v5617 = vunpack.c.h.b16 %v5361
  %v5618 = vunpack.c.l.b16 %v5362
  %v5619 = vunpack.c.h.b16 %v5362
  %v5620 = vunpack.c.l.b16 %v5363
  %v5621 = vunpack.c.h.b16 %v5363
  %v5622 = vunpack.c.l.b16 %v5364
  %v5623 = vunpack.c.h.b16 %v5364
  %v5624 = vunpack.c.l.b16 %v5365
  %v5625 = vunpack.c.h.b16 %v5365
  %v5626 = vunpack.c.l.b16 %v5366
  %v5627 = vunpack.c.h.b16 %v5366
  %v5628 = vunpack.c.l.b16 %v5367
  %v5629 = vunpack.c.h.b16 %v5367
  %v5630 = vunpack.c.l.b16 %v5368
  %v5631 = vunpack.c.h.b16 %v5368
  %v5632 = vunpack.c.l.b16 %v5369
  %v5633 = vunpack.c.h.b16 %v5369
  %v5634 = vunpack.c.l.b16 %v5370
  %v5635 = vunpack.c.h.b16 %v5370
  %v5636 = vunpack.c.l.b16 %v5371
  %v5637 = vunpack.c.h.b16 %v5371
  %v5638 = vunpack.c.l.b16 %v5372
  %v5639 = vunpack.c.h.b16 %v5372
  %v5640 = vunpack.c.l.b16 %v5373
  %v5641 = vunpack.c.h.b16 %v5373
  %v5642 = vunpack.c.l.b16 %v5374
  %v5643 = vunpack.c.h.b16 %v5374
  %v5644 = vunpack.c.l.b16 %v5375
  %v5645 = vunpack.c.h.b16 %v5375
  %v5646 = vunpack.c.l.b16 %v5376
  %v5647 = vunpack.c.h.b16 %v5376
  %v5648 = vunpack.c.l.b16 %v5377
  %v5649 = vunpack.c.h.b16 %v5377
  %v5650 = vunpack.c.l.b16 %v5378
  %v5651 = vunpack.c.h.b16 %v5378
  %v5652 = vunpack.c.l.b16 %v5379
  %v5653 = vunpack.c.h.b16 %v5379
  %v5654 = vunpack.c.l.b16 %v5380
  %v5655 = vunpack.c.h.b16 %v5380
  %v5656 = vunpack.c.l.b16 %v5381
  %v5657 = vunpack.c.h.b16 %v5381
  %v5658 = vunpack.c.l.b16 %v5382
  %v5659 = vunpack.c.h.b16 %v5382
  %v5660 = vunpack.c.l.b16 %v5383
  %v5661 = vunpack.c.h.b16 %v5383
  %v5662 = vpack.c.b16 %v5568, %v5566
  %v5663 = vpack.c.b16 %v5569, %v5567
  %v5664 = vpack.c.b16 %v5572, %v5570
  %v5665 = vpack.c.b16 %v5573, %v5571
  %v5666 = vpack.c.b16 %v5576, %v5574
  %v5667 = vpack.c.b16 %v5577, %v5575
  %v5668 = vpack.c.b16 %v5580, %v5578
  %v5669 = vpack.c.b16 %v5581, %v5579
  %v5670 = vpack.c.b16 %v5584, %v5582
  %v5671 = vpack.c.b16 %v5585, %v5583
  %v5672 = vpack.c.b16 %v5588, %v5586
  %v5673 = vpack.c.b16 %v5589, %v5587
  %v5674 = vpack.c.b16 %v5592, %v5590
  %v5675 = vpack.c.b16 %v5593, %v5591
  %v5676 = vpack.c.b16 %v5596, %v5594
  %v5677 = vpack.c.b16 %v5597, %v5595
  %v5678 = vpack.c.b16 %v5600, %v5598
  %v5679 = vpack.c.b16 %v5601, %v5599
  %v5680 = vpack.c.b16 %v5604, %v5602
  %v5681 = vpack.c.b16 %v5605, %v5603
  %v5682 = vpack.c.b16 %v5608, %v5606
  %v5683 = vpack.c.b16 %v5609, %v5607
  %v5684 = vpack.c.b16 %v5612, %v5610
  %v5685 = vpack.c.b16 %v5613, %v5611
  %v5686 = vpack.c.b16 %v5616, %v5614
  %v5687 = vpack.c.b16 %v5617, %v5615
  %v5688 = vpack.c.b16 %v5620, %v5618
  %v5689 = vpack.c.b16 %v5621, %v5619
  %v5690 = vpack.c.b16 %v5624, %v5622
  %v5691 = vpack.c.b16 %v5625, %v5623
  %v5692 = vpack.c.b16 %v5628, %v5626
  %v5693 = vpack.c.b16 %v5629, %v5627
  %v5694 = vpack.c.b16 %v5632, %v5630
  %v5695 = vpack.c.b16 %v5633, %v5631
  %v5696 = vpack.c.b16 %v5636, %v5634
  %v5697 = vpack.c.b16 %v5637, %v5635
  %v5698 = vpack.c.b16 %v5640, %v5638
  %v5699 = vpack.c.b16 %v5641, %v5639
  %v5700 = vpack.c.b16 %v5644, %v5642
  %v5701 = vpack.c.b16 %v5645, %v5643
  %v5702 = vpack.c.b16 %v5648, %v5646
  %v5703 = vpack.c.b16 %v5649, %v5647
  %v5704 = vpack.c.b16 %v5652, %v5650
  %v5705 = vpack.c.b16 %v5653, %v5651
  %v5706 = vpack.c.b16 %v5656, %v5654
  %v5707 = vpack.c.b16 %v5657, %v5655
  %v5708 = vpack.c.b16 %v5660, %v5658
  %v5709 = vpack.c.b16 %v5661, %v5659
  %5758 = vmatpush.bf16.msra.mxu0 %v5676
  %5759 = vmatpush.bf16.msra.mxu0 %v5674
  %5760 = vmatpush.bf16.msra.mxu0 %v5672
  %5761 = vmatpush.bf16.msra.mxu0 %v5670
  %5762 = vmatpush.bf16.msra.mxu0 %v5668
  %5763 = vmatpush.bf16.msra.mxu0 %v5666
  %5764 = vmatpush.bf16.msra.mxu0 %v5664
  %5765 = vmatpush.bf16.msra.mxu0 %v5662
  %5766 = vmatmul.bf16.gmra.mxu0 %v5512
  %v5767 = vpop.f32.mrf.mxu0
  %v5768 = vadd.f32 %v5491, %v5767
  %v5769 = vpop.f32.mrf.mxu0
  %5770 = vdwg.mxu0
  %5771 = vmatpush.bf16.msra.mxu0 %v5692
  %5772 = vmatpush.bf16.msra.mxu0 %v5690
  %5773 = vmatpush.bf16.msra.mxu0 %v5688
  %5774 = vmatpush.bf16.msra.mxu0 %v5686
  %5775 = vmatpush.bf16.msra.mxu0 %v5684
  %5776 = vmatpush.bf16.msra.mxu0 %v5682
  %5777 = vmatpush.bf16.msra.mxu0 %v5680
  %5778 = vmatpush.bf16.msra.mxu0 %v5678
  %5779 = vmatmul.bf16.gmra.mxu0 %v5513
  %v5780 = vpop.f32.mrf.mxu0
  %v5781 = vadd.f32 %v5768, %v5780
  %v5782 = vpop.f32.mrf.mxu0
  %5783 = vdwg.mxu0
  %5784 = vmatpush.bf16.msra.mxu0 %v5708
  %5785 = vmatpush.bf16.msra.mxu0 %v5706
  %5786 = vmatpush.bf16.msra.mxu0 %v5704
  %5787 = vmatpush.bf16.msra.mxu0 %v5702
  %5788 = vmatpush.bf16.msra.mxu0 %v5700
  %5789 = vmatpush.bf16.msra.mxu0 %v5698
  %5790 = vmatpush.bf16.msra.mxu0 %v5696
  %5791 = vmatpush.bf16.msra.mxu0 %v5694
  %5792 = vmatmul.bf16.gmra.mxu0 %v5514
  %v5793 = vpop.f32.mrf.mxu0
  %v5794 = vadd.f32 %v5781, %v5793
  %v5795 = vpop.f32.mrf.mxu0
  %5796 = vdwg.mxu0
  %5797 = vmatpush.bf16.msra.mxu0 %v5677
  %5798 = vmatpush.bf16.msra.mxu0 %v5675
  %5799 = vmatpush.bf16.msra.mxu0 %v5673
  %5800 = vmatpush.bf16.msra.mxu0 %v5671
  %5801 = vmatpush.bf16.msra.mxu0 %v5669
  %5802 = vmatpush.bf16.msra.mxu0 %v5667
  %5803 = vmatpush.bf16.msra.mxu0 %v5665
  %5804 = vmatpush.bf16.msra.mxu0 %v5663
  %5805 = vmatmul.bf16.gmra.mxu0 %v5512
  %v5806 = vpop.f32.mrf.mxu0
  %v5807 = vadd.f32 %v5504, %v5806
  %v5808 = vpop.f32.mrf.mxu0
  %5809 = vdwg.mxu0
  %5810 = vmatpush.bf16.msra.mxu0 %v5693
  %5811 = vmatpush.bf16.msra.mxu0 %v5691
  %5812 = vmatpush.bf16.msra.mxu0 %v5689
  %5813 = vmatpush.bf16.msra.mxu0 %v5687
  %5814 = vmatpush.bf16.msra.mxu0 %v5685
  %5815 = vmatpush.bf16.msra.mxu0 %v5683
  %5816 = vmatpush.bf16.msra.mxu0 %v5681
  %5817 = vmatpush.bf16.msra.mxu0 %v5679
  %5818 = vmatmul.bf16.gmra.mxu0 %v5513
  %v5819 = vpop.f32.mrf.mxu0
  %v5820 = vadd.f32 %v5807, %v5819
  %v5821 = vpop.f32.mrf.mxu0
  %5822 = vdwg.mxu0
  %5823 = vmatpush.bf16.msra.mxu0 %v5709
  %5824 = vmatpush.bf16.msra.mxu0 %v5707
  %5825 = vmatpush.bf16.msra.mxu0 %v5705
  %5826 = vmatpush.bf16.msra.mxu0 %v5703
  %5827 = vmatpush.bf16.msra.mxu0 %v5701
  %5828 = vmatpush.bf16.msra.mxu0 %v5699
  %5829 = vmatpush.bf16.msra.mxu0 %v5697
  %5830 = vmatpush.bf16.msra.mxu0 %v5695
  %5831 = vmatmul.bf16.gmra.mxu0 %v5514
  %v5832 = vpop.f32.mrf.mxu0
  %v5833 = vadd.f32 %v5820, %v5832
  %v5834 = vpop.f32.mrf.mxu0
  %5835 = vdwg.mxu0
  %v5836 = vld [vmem:[%s9] sm:$0x3]
  %v5838 = vperm.slane %v5836, 0
  %v5839 = vperm.slane %v5836, 1
  %v5842 = vadd.f32 %v5794, %v5838
  %v5843 = vadd.f32 %v5833, %v5839
  %v5844 = vmax.f32 %v5842, %v5843
  %v5845 = vsub.f32 %v5842, %v5844
  %v5846 = vmul.f32 %v5845, 1.442695
  %v5847 = vpow.pop %v5846
  %v5848 = vsub.f32 %v5843, %v5844
  %v5849 = vmul.f32 %v5848, 1.442695
  %v5850 = vpow.pop %v5849
  %v5851 = vadd.f32 %v5847, %v5850
  %v5852 = vlog2.pop %v5851
  %v5853 = vmul.f32 %v5852, 0.6931472
  %v5854 = vadd.f32 %v5844, %v5853
  %v5855 = vlaneseq
  %v5856 = vand.u32 %v5855, 127
  %vm5857 = vcmp.lt.s32.totalorder %v5856, 6
  %v5858 = vsub.f32 %v5842, %v5854
  %v5859 = vsel %vm5857, %v5858, 0.0
  %5860 = vst [vmem:[%s10] sm:$0x3] %v5859
  // Predicated region
  $region42: #{dann_rep_forward.5} parent=0 // pred_check
    _
  $region43: #{dann_rep_forward.5} parent=0 // pred_check_branch
    %5862 = sbr.rel (0) target = $region45
  $region44: #{dann_rep_forward.5} parent=0 // pred_region
    _
  $region45: #{dann_rep_forward.5} parent=0 // pred_fallthru
    _
  // Predicated region
  $region46: #{dann_rep_forward.5} parent=0 // pred_check
    _
  $region47: #{dann_rep_forward.5} parent=0 // pred_check_branch
    %5864 = sbr.rel (0) target = $region49
  $region48: #{dann_rep_forward.5} parent=0 // pred_region
    _
  $region49: #{dann_rep_forward.5} parent=0 // pred_fallthru
    _

</llo_original>
